<compile_context>
chip_gen: v6e
topology: v6e:2x2x1
jax: 0.10.0
libtpu: 0.0.40
codegen_flags: <defaults>
</compile_context>

<pallas_src>
import functools
import math

import jax
import jax.numpy as jnp
from jax import lax
from jax.experimental import pallas as pl
from jax.experimental.pallas import tpu as pltpu

BN_EVAL_SCALE = 1.0 / math.sqrt(1.0 + 1e-5)   # BatchNorm(affine=False), eval mode
LEAKY_SLOPE = 0.01
MXU_DTYPE = jnp.bfloat16                      # matmul operand dtype (f32 accumulate)


def _leaky(x):
    return jnp.where(x > 0, x, LEAKY_SLOPE * x)


def _mm(a, b):
    """2-D MXU matmul, bf16 operands, f32 accumulation."""
    return jnp.dot(a.astype(MXU_DTYPE), b.astype(MXU_DTYPE),
                   preferred_element_type=jnp.float32)


def _shift_mats(T):
    """x @ sm1 -> x[:, t-1] (zero at t=0);  x @ sp1 -> x[:, t+1] (zero at t=T-1)."""
    r = lax.broadcasted_iota(jnp.int32, (T, T), 0)
    c = lax.broadcasted_iota(jnp.int32, (T, T), 1)
    sm1 = (r == c - 1).astype(jnp.float32)
    sp1 = (r == c + 1).astype(jnp.float32)
    return sm1, sp1


def _mcd_blocks(x, xm1, xp1, w, b, K):
    """3-tap conv along T producing K channels; returns K blocks of x.shape."""
    return [xm1 * w[k:k + 1, 0:1] + x * w[k:k + 1, 1:2]
            + xp1 * w[k:k + 1, 2:3] + b[0:1, k:k + 1] for k in range(K)]


# ----------------------------------------------------------------------------
# Kernel 1: one fused D_R level (MCD -> branch_select -> bsmask -> mask/sum ->
#           left & right reconstruct projections).  Grid = branches at level.
# ----------------------------------------------------------------------------
def _level_kernel(x_ref, mcdw_ref, mcdb_ref,
                  bs1w_ref, bs1b_ref, bs2w_ref, bs2b_ref,
                  bsmw_ref, bsmb_ref,
                  rw1_ref, rb1_ref, rw2_ref, rb2_ref,
                  o_ref, *, K, R, T):
    f32 = jnp.float32
    sm1, sp1 = _shift_mats(T)

    # --- MCD: decompose x into K IMF channels (k-major rows: (K*R, T)) -------
    x = x_ref[0]                                                # (R, T)
    xm1 = jnp.dot(x, sm1, preferred_element_type=f32)
    xp1 = jnp.dot(x, sp1, preferred_element_type=f32)
    ximf = jnp.concatenate(
        _mcd_blocks(x, xm1, xp1, mcdw_ref[0], mcdb_ref[0], K), axis=0)

    # --- branch_slelect: Linear(T,64)->BN(eval)->LeakyReLU->Linear(64,2)->softmax
    feat = _leaky((_mm(ximf, bs1w_ref[0]) + bs1b_ref[0]) * BN_EVAL_SCALE)
    sel = _mm(feat, bs2w_ref[0]) + bs2b_ref[0]                  # (K*R, 2)
    sel = sel - jnp.max(sel, axis=-1, keepdims=True)
    esel = jnp.exp(sel)
    hard = esel / jnp.sum(esel, axis=-1, keepdims=True)         # gumbel noise = 0

    # --- bsmask_conv: Conv2d(1, K, (K,3), pad=(0,1)); apply mask to x_imf ----
    xim1 = jnp.dot(ximf, sm1, preferred_element_type=f32)
    xip1 = jnp.dot(ximf, sp1, preferred_element_type=f32)
    taps = (xim1, ximf, xip1)
    bw = bsmw_ref[0]                                            # (K*K, 3)
    bb = bsmb_ref[0]                                            # (1, K)
    masked = []
    for ko in range(K):
        acc = jnp.zeros((R, T), f32) + bb[0:1, ko:ko + 1]
        for ki in range(K):
            row = ko * K + ki
            for d in range(3):
                acc = acc + taps[d][ki * R:(ki + 1) * R, :] * bw[row:row + 1, d:d + 1]
        masked.append(ximf[ko * R:(ko + 1) * R, :] * acc)

    # --- x_summed[..., c] = sum_k x_masked_k * hard_class[k, c] --------------
    xsum = []
    for c in range(2):
        s_c = jnp.zeros((R, T), f32)
        for k in range(K):
            s_c = s_c + masked[k] * hard[k * R:(k + 1) * R, c:c + 1]
        xsum.append(s_c)

    # --- reconstruct_proj_{left,right}: Linear->BN->LeakyReLU->Dropout(eval)
    #     ->Linear->BN->LeakyReLU.  side 0 = left child, side 1 = right child.
    for side in range(2):
        h = _leaky((_mm(xsum[side], rw1_ref[0, side]) + rb1_ref[0, side])
                   * BN_EVAL_SCALE)
        y = _leaky((_mm(h, rw2_ref[0, side]) + rb2_ref[0, side]) * BN_EVAL_SCALE)
        o_ref[0, side] = y


def run_level(lp, x_b):
    """x_b: (nb, R, T) -> (2*nb, R, T) (children of all branches, DFS order)."""
    nb, R, T = x_b.shape
    K = lp["mcd_w"].shape[1]
    H = lp["rec_w1"].shape[-1]
    out = pl.pallas_call(
        functools.partial(_level_kernel, K=K, R=R, T=T),
        out_shape=jax.ShapeDtypeStruct((nb, 2, R, T), jnp.float32),
        grid=(nb,),
        in_specs=[
            pl.BlockSpec((1, R, T), lambda g: (g, 0, 0)),
            pl.BlockSpec((1, K, 3), lambda g: (g, 0, 0)),
            pl.BlockSpec((1, 1, K), lambda g: (g, 0, 0)),
            pl.BlockSpec((1, T, 64), lambda g: (g, 0, 0)),
            pl.BlockSpec((1, 1, 64), lambda g: (g, 0, 0)),
            pl.BlockSpec((1, 64, 2), lambda g: (g, 0, 0)),
            pl.BlockSpec((1, 1, 2), lambda g: (g, 0, 0)),
            pl.BlockSpec((1, K * K, 3), lambda g: (g, 0, 0)),
            pl.BlockSpec((1, 1, K), lambda g: (g, 0, 0)),
            pl.BlockSpec((1, 2, T, H), lambda g: (g, 0, 0, 0)),
            pl.BlockSpec((1, 2, 1, H), lambda g: (g, 0, 0, 0)),
            pl.BlockSpec((1, 2, H, T), lambda g: (g, 0, 0, 0)),
            pl.BlockSpec((1, 2, 1, T), lambda g: (g, 0, 0, 0)),
        ],
        out_specs=pl.BlockSpec((1, 2, R, T), lambda g: (g, 0, 0, 0)),
        compiler_params=pltpu.CompilerParams(dimension_semantics=("parallel",)),
    )(x_b, lp["mcd_w"], lp["mcd_b"],
      lp["bs1_w"], lp["bs1_b"], lp["bs2_w"], lp["bs2_b"],
      lp["bsm_w"], lp["bsm_b"],
      lp["rec_w1"], lp["rec_b1"], lp["rec_w2"], lp["rec_b2"])
    return out.reshape(2 * nb, R, T)


# ----------------------------------------------------------------------------
# Kernel 2: leaf-level MCD for all 2^L leaves (IMF axis output, k-minor order).
# ----------------------------------------------------------------------------
def _leaf_mcd_kernel(x_ref, w_ref, b_ref, o_ref, *, K, T):
    f32 = jnp.float32
    sm1, sp1 = _shift_mats(T)
    x = x_ref[0]
    xm1 = jnp.dot(x, sm1, preferred_element_type=f32)
    xp1 = jnp.dot(x, sp1, preferred_element_type=f32)
    blocks = _mcd_blocks(x, xm1, xp1, w_ref[0], b_ref[0], K)
    for k in range(K):
        o_ref[0, k] = blocks[k]


def run_leaf_mcd(lp, x_b):
    """x_b: (n_leaf, R, T) -> (n_leaf*K, R, T) = (I, R, T)."""
    nb, R, T = x_b.shape
    K = lp["mcd_w"].shape[1]
    out = pl.pallas_call(
        functools.partial(_leaf_mcd_kernel, K=K, T=T),
        out_shape=jax.ShapeDtypeStruct((nb, K, R, T), jnp.float32),
        grid=(nb,),
        in_specs=[pl.BlockSpec((1, R, T), lambda g: (g, 0, 0)),
                  pl.BlockSpec((1, K, 3), lambda g: (g, 0, 0)),
                  pl.BlockSpec((1, 1, K), lambda g: (g, 0, 0))],
        out_specs=pl.BlockSpec((1, K, R, T), lambda g: (g, 0, 0, 0)),
        compiler_params=pltpu.CompilerParams(dimension_semantics=("parallel",)),
    )(x_b, lp["mcd_w"], lp["mcd_b"])
    return out.reshape(nb * K, R, T)


# ----------------------------------------------------------------------------
# Kernel 3: all per-IMF 2-layer forecast MLPs in a single grid step
#           (full weight blocks, batched dot_general over the IMF axis).
# ----------------------------------------------------------------------------
def _forecast_kernel(x_ref, w1_ref, b1_ref, w2_ref, b2_ref, o_ref):
    bt = MXU_DTYPE
    dn = (((2,), (1,)), ((0,), (0,)))                           # batched matmul
    h = lax.dot_general(x_ref[...].astype(bt), w1_ref[...].astype(bt), dn,
                        preferred_element_type=jnp.float32)
    h = _leaky(h + b1_ref[...])
    y = lax.dot_general(h.astype(bt), w2_ref[...].astype(bt), dn,
                        preferred_element_type=jnp.float32)
    o_ref[...] = y + b2_ref[...]


def run_forecast(fp, x_imf):
    """x_imf: (I, R, T) -> (I, R, T)."""
    I, R, T = x_imf.shape
    H = fp["w1"].shape[-1]
    return pl.pallas_call(
        _forecast_kernel,
        out_shape=jax.ShapeDtypeStruct((I, R, T), jnp.float32),
        grid=(1,),
        in_specs=[pl.BlockSpec((I, R, T), lambda i: (0, 0, 0)),
                  pl.BlockSpec((I, T, H), lambda i: (0, 0, 0)),
                  pl.BlockSpec((I, 1, H), lambda i: (0, 0, 0)),
                  pl.BlockSpec((I, H, T), lambda i: (0, 0, 0)),
                  pl.BlockSpec((I, 1, T), lambda i: (0, 0, 0))],
        out_specs=pl.BlockSpec((I, R, T), lambda i: (0, 0, 0)),
    )(x_imf, fp["w1"], fp["b1"], fp["w2"], fp["b2"])


# ----------------------------------------------------------------------------
# Kernel 4: fused adaptive GCN + LeakyReLU + node-sum + predict Linear
#           (IFNet), several (b, n) groups per grid step.
# ----------------------------------------------------------------------------
def _gcn_pred_kernel(x_ref, w1_ref, b1_ref, w2_ref, b2_ref, pw_ref, pb_ref,
                     o_ref, *, gb):
    f32 = jnp.float32
    bt = MXU_DTYPE
    w1 = w1_ref[...].astype(bt)
    w2 = w2_ref[...].astype(bt)
    pw = pw_ref[...].astype(bt)
    b1 = b1_ref[...]
    b2 = b2_ref[...]
    pb = pb_ref[...]
    for g in range(gb):
        xg = x_ref[g]                                           # (I, T)
        xb = xg.astype(bt)
        sc = lax.dot_general(xb, xb, (((1,), (1,)), ((), ())),
                             preferred_element_type=f32)        # (I, I)
        sc = _leaky(sc)
        sc = sc - jnp.max(sc, axis=-1, keepdims=True)
        e = jnp.exp(sc)
        a = e * pl.reciprocal(jnp.sum(e, axis=-1, keepdims=True), approx=True)
        ab = a.astype(bt)
        h = jnp.dot(ab, xb, preferred_element_type=f32)                      # A X
        h = _leaky(jnp.dot(h.astype(bt), w1, preferred_element_type=f32) + b1)
        h = jnp.dot(ab, h.astype(bt), preferred_element_type=f32)            # A H
        y = jnp.dot(h.astype(bt), w2, preferred_element_type=f32) + b2
        z = jnp.sum(_leaky(y), axis=0, keepdims=True)                        # (1, T)
        o_ref[0, g] = jnp.dot(z.astype(bt), pw, preferred_element_type=f32) + pb


def run_gcn_predict(ip, x_nodes):
    """x_nodes: (G, I, T) -> (G, output_len)."""
    G, I, T = x_nodes.shape
    Hd = ip["gcn_w1"].shape[-1]
    out_len = ip["pred_w"].shape[-1]
    steps = 2 if (G % 2 == 0 and G >= 2) else 1                 # v7x: 2 TCs
    gb = G // steps
    out = pl.pallas_call(
        functools.partial(_gcn_pred_kernel, gb=gb),
        out_shape=jax.ShapeDtypeStruct((steps, gb, 1, out_len), jnp.float32),
        grid=(steps,),
        in_specs=[pl.BlockSpec((gb, I, T), lambda s: (s, 0, 0)),
                  pl.BlockSpec((T, Hd), lambda s: (0, 0)),
                  pl.BlockSpec((1, Hd), lambda s: (0, 0)),
                  pl.BlockSpec((Hd, T), lambda s: (0, 0)),
                  pl.BlockSpec((1, T), lambda s: (0, 0)),
                  pl.BlockSpec((T, out_len), lambda s: (0, 0)),
                  pl.BlockSpec((1, out_len), lambda s: (0, 0))],
        out_specs=pl.BlockSpec((1, gb, 1, out_len), lambda s: (s, 0, 0, 0)),
        compiler_params=pltpu.CompilerParams(dimension_semantics=("parallel",)),
    )(x_nodes, ip["gcn_w1"], ip["gcn_b1"], ip["gcn_w2"], ip["gcn_b2"],
      ip["pred_w"], ip["pred_b"])
    return out.reshape(G, out_len)


# ----------------------------------------------------------------------------
# Full forward pass (glue is reshapes/transposes only; compute is in kernels).
# ----------------------------------------------------------------------------
def dpad_forward(params, x):
    """x: (B, input_len, input_dim) -> (B, output_len).  (RIN = 0 path.)"""
    B, T, N = x.shape
    xr = jnp.transpose(x, (0, 2, 1)).reshape(1, B * N, T)       # (1, R, T)
    for lp in params["levels"]:                                 # level L .. 1
        xr = run_level(lp, xr)                                  # (2*nb, R, T)
    ximf = run_leaf_mcd(params["leaf"], xr)                     # (I, R, T)
    yimf = run_forecast(params["forecast"], ximf)               # (I, R, T)
    nodes = jnp.transpose(yimf, (1, 0, 2))                      # (R, I, T)
    pred = run_gcn_predict(params["ifnet"], nodes)              # (R, out_len)
    pred = pred.reshape(B, N, -1)
    return jnp.transpose(pred, (0, 2, 1))[:, :, 0]              # (B, out_len)


# ----------------------------------------------------------------------------
# Deterministic parameter init (level-stacked layout used by the kernels)
# ----------------------------------------------------------------------------
def init_params(key, *, input_dim, input_len, num_levels, enc_hidden, dec_hidden,
                output_len, K_IMP):
    T, K, H, L = input_len, K_IMP, enc_hidden, num_levels - 1
    assert L >= 1, "need num_levels >= 2"

    keys = iter(jax.random.split(key, 16 * (L + 4)))

    def nx(shape):
        return 0.1 * jax.random.normal(next(keys), shape, dtype=jnp.float32)

    levels = []
    for lvl in range(L):                     # lvl 0 == top of the D_R tree
        nb = 2 ** lvl
        levels.append(dict(
            mcd_w=nx((nb, K, 3)), mcd_b=nx((nb, 1, K)),
            bs1_w=nx((nb, T, 64)), bs1_b=nx((nb, 1, 64)),
            bs2_w=nx((nb, 64, 2)), bs2_b=nx((nb, 1, 2)),
            bsm_w=nx((nb, K * K, 3)), bsm_b=nx((nb, 1, K)),
            rec_w1=nx((nb, 2, T, H)), rec_b1=nx((nb, 2, 1, H)),
            rec_w2=nx((nb, 2, H, T)), rec_b2=nx((nb, 2, 1, T)),
        ))
    n_leaf = 2 ** L
    I = n_leaf * K
    leaf = dict(mcd_w=nx((n_leaf, K, 3)), mcd_b=nx((n_leaf, 1, K)))
    forecast = dict(w1=nx((I, T, H)), b1=nx((I, 1, H)),
                    w2=nx((I, H, T)), b2=nx((I, 1, T)))
    ifnet = dict(gcn_w1=nx((T, dec_hidden)), gcn_b1=nx((1, dec_hidden)),
                 gcn_w2=nx((dec_hidden, T)), gcn_b2=nx((1, T)),
                 pred_w=nx((T, output_len)), pred_b=nx((1, output_len)))
    return dict(levels=levels, leaf=leaf, forecast=forecast, ifnet=ifnet)


if __name__ == "__main__":
    B, input_dim, input_len, output_len = 2, 4, 16, 8
    enc_hidden, dec_hidden, num_levels, K_IMP = 16, 16, 3, 4

    key = jax.random.PRNGKey(0)
    k_x, k_p = jax.random.split(key)
    x = jax.random.normal(k_x, (B, input_len, input_dim), dtype=jnp.float32)
    params = init_params(k_p, input_dim=input_dim, input_len=input_len,
                         num_levels=num_levels, enc_hidden=enc_hidden,
                         dec_hidden=dec_hidden, output_len=output_len,
                         K_IMP=K_IMP)

    fwd = jax.jit(dpad_forward)
    y = jax.block_until_ready(fwd(params, x))
    assert y.shape == (B, output_len), y.shape
    assert bool(jnp.all(jnp.isfinite(y)))
    print("KERNEL_OK")
</pallas_src>

<mosaic_0001>
module attributes {stable_mosaic.version = 11 : i64} {
  func.func @_level_kernel(%arg0: i32, %arg1: memref<1x8x16xf32, #tpu.memory_space<vmem>>, %arg2: memref<1x4x3xf32, #tpu.memory_space<vmem>>, %arg3: memref<1x1x4xf32, #tpu.memory_space<vmem>>, %arg4: memref<1x16x64xf32, #tpu.memory_space<vmem>>, %arg5: memref<1x1x64xf32, #tpu.memory_space<vmem>>, %arg6: memref<1x64x2xf32, #tpu.memory_space<vmem>>, %arg7: memref<1x1x2xf32, #tpu.memory_space<vmem>>, %arg8: memref<1x16x3xf32, #tpu.memory_space<vmem>>, %arg9: memref<1x1x4xf32, #tpu.memory_space<vmem>>, %arg10: memref<1x2x16x16xf32, #tpu.memory_space<vmem>>, %arg11: memref<1x2x1x16xf32, #tpu.memory_space<vmem>>, %arg12: memref<1x2x16x16xf32, #tpu.memory_space<vmem>>, %arg13: memref<1x2x1x16xf32, #tpu.memory_space<vmem>>, %arg14: memref<1x2x8x16xf32, #tpu.memory_space<vmem>>) attributes {dimension_semantics = [#tpu.dimension_semantics<parallel>], iteration_bounds = array<i64: 2>, scalar_prefetch = 0 : i64, scratch_operands = 0 : i64, tpu.core_type = #tpu.core_type<tc>, window_params = [{transform_indices = @transform_0, window_bounds = array<i64: 1, 8, 16>}, {transform_indices = @transform_1, window_bounds = array<i64: 1, 4, 3>}, {transform_indices = @transform_2, window_bounds = array<i64: 1, 1, 4>}, {transform_indices = @transform_3, window_bounds = array<i64: 1, 16, 64>}, {transform_indices = @transform_4, window_bounds = array<i64: 1, 1, 64>}, {transform_indices = @transform_5, window_bounds = array<i64: 1, 64, 2>}, {transform_indices = @transform_6, window_bounds = array<i64: 1, 1, 2>}, {transform_indices = @transform_7, window_bounds = array<i64: 1, 16, 3>}, {transform_indices = @transform_8, window_bounds = array<i64: 1, 1, 4>}, {transform_indices = @transform_9, window_bounds = array<i64: 1, 2, 16, 16>}, {transform_indices = @transform_10, window_bounds = array<i64: 1, 2, 1, 16>}, {transform_indices = @transform_11, window_bounds = array<i64: 1, 2, 16, 16>}, {transform_indices = @transform_12, window_bounds = array<i64: 1, 2, 1, 16>}, {transform_indices = @transform_13, window_bounds = array<i64: 1, 2, 8, 16>}]} {
    %0 = tpu.iota {dimensions = array<i32: 0>} : vector<16x16xi32>
    %1 = tpu.iota {dimensions = array<i32: 1>} : vector<16x16xi32>
    %c1_i32 = arith.constant 1 : i32
    %2 = vector.broadcast %c1_i32 : i32 to vector<16x16xi32>
    %3 = arith.subi %1, %2 : vector<16x16xi32>
    %4 = arith.cmpi eq, %0, %3 : vector<16x16xi32>
    %5 = arith.extui %4 : vector<16x16xi1> to vector<16x16xi32>
    %6 = arith.sitofp %5 : vector<16x16xi32> to vector<16x16xf32>
    %c1_i32_0 = arith.constant 1 : i32
    %7 = vector.broadcast %c1_i32_0 : i32 to vector<16x16xi32>
    %8 = arith.addi %1, %7 : vector<16x16xi32>
    %9 = arith.cmpi eq, %0, %8 : vector<16x16xi32>
    %10 = arith.extui %9 : vector<16x16xi1> to vector<16x16xi32>
    %11 = arith.sitofp %10 : vector<16x16xi32> to vector<16x16xf32>
    %c0 = arith.constant 0 : index
    %c0_1 = arith.constant 0 : index
    %c0_2 = arith.constant 0 : index
    %12 = vector.load %arg1[%c0, %c0_1, %c0_2] : memref<1x8x16xf32, #tpu.memory_space<vmem>>, vector<1x8x16xf32>
    %13 = vector.shape_cast %12 : vector<1x8x16xf32> to vector<8x16xf32>
    %cst = arith.constant dense<0.000000e+00> : vector<8x16xf32>
    %14 = tpu.matmul %13, %6, %cst {dimension_numbers = #tpu.dot_dimension_numbers<[1], [0], [0], [1], [0, 0, 1, 1], [], []>} : vector<8x16xf32>, vector<16x16xf32>, vector<8x16xf32> -> vector<8x16xf32>
    %cst_3 = arith.constant dense<0.000000e+00> : vector<8x16xf32>
    %15 = tpu.matmul %13, %11, %cst_3 {dimension_numbers = #tpu.dot_dimension_numbers<[1], [0], [0], [1], [0, 0, 1, 1], [], []>} : vector<8x16xf32>, vector<16x16xf32>, vector<8x16xf32> -> vector<8x16xf32>
    %c0_4 = arith.constant 0 : index
    %c0_5 = arith.constant 0 : index
    %c0_6 = arith.constant 0 : index
    %16 = vector.load %arg2[%c0_4, %c0_5, %c0_6] : memref<1x4x3xf32, #tpu.memory_space<vmem>>, vector<1x4x3xf32>
    %17 = vector.shape_cast %16 : vector<1x4x3xf32> to vector<4x3xf32>
    %c0_7 = arith.constant 0 : index
    %c0_8 = arith.constant 0 : index
    %c0_9 = arith.constant 0 : index
    %18 = vector.load %arg3[%c0_7, %c0_8, %c0_9] : memref<1x1x4xf32, #tpu.memory_space<vmem>>, vector<1x1x4xf32>
    %19 = vector.shape_cast %18 : vector<1x1x4xf32> to vector<1x4xf32>
    %20 = vector.extract_strided_slice %17 {offsets = [0, 0], sizes = [1, 1], strides = [1, 1]} : vector<4x3xf32> to vector<1x1xf32>
    %21 = vector.broadcast %20 : vector<1x1xf32> to vector<8x16xf32>
    %22 = arith.mulf %14, %21 : vector<8x16xf32>
    %23 = vector.extract_strided_slice %17 {offsets = [0, 1], sizes = [1, 1], strides = [1, 1]} : vector<4x3xf32> to vector<1x1xf32>
    %24 = vector.broadcast %23 : vector<1x1xf32> to vector<8x16xf32>
    %25 = arith.mulf %13, %24 : vector<8x16xf32>
    %26 = arith.addf %22, %25 : vector<8x16xf32>
    %27 = vector.extract_strided_slice %17 {offsets = [0, 2], sizes = [1, 1], strides = [1, 1]} : vector<4x3xf32> to vector<1x1xf32>
    %28 = vector.broadcast %27 : vector<1x1xf32> to vector<8x16xf32>
    %29 = arith.mulf %15, %28 : vector<8x16xf32>
    %30 = arith.addf %26, %29 : vector<8x16xf32>
    %31 = vector.extract_strided_slice %19 {offsets = [0, 0], sizes = [1, 1], strides = [1, 1]} : vector<1x4xf32> to vector<1x1xf32>
    %32 = vector.broadcast %31 : vector<1x1xf32> to vector<8x16xf32>
    %33 = arith.addf %30, %32 : vector<8x16xf32>
    %34 = vector.extract_strided_slice %17 {offsets = [1, 0], sizes = [1, 1], strides = [1, 1]} : vector<4x3xf32> to vector<1x1xf32>
    %35 = vector.broadcast %34 : vector<1x1xf32> to vector<8x16xf32>
    %36 = arith.mulf %14, %35 : vector<8x16xf32>
    %37 = vector.extract_strided_slice %17 {offsets = [1, 1], sizes = [1, 1], strides = [1, 1]} : vector<4x3xf32> to vector<1x1xf32>
    %38 = vector.broadcast %37 : vector<1x1xf32> to vector<8x16xf32>
    %39 = arith.mulf %13, %38 : vector<8x16xf32>
    %40 = arith.addf %36, %39 : vector<8x16xf32>
    %41 = vector.extract_strided_slice %17 {offsets = [1, 2], sizes = [1, 1], strides = [1, 1]} : vector<4x3xf32> to vector<1x1xf32>
    %42 = vector.broadcast %41 : vector<1x1xf32> to vector<8x16xf32>
    %43 = arith.mulf %15, %42 : vector<8x16xf32>
    %44 = arith.addf %40, %43 : vector<8x16xf32>
    %45 = vector.extract_strided_slice %19 {offsets = [0, 1], sizes = [1, 1], strides = [1, 1]} : vector<1x4xf32> to vector<1x1xf32>
    %46 = vector.broadcast %45 : vector<1x1xf32> to vector<8x16xf32>
    %47 = arith.addf %44, %46 : vector<8x16xf32>
    %48 = vector.extract_strided_slice %17 {offsets = [2, 0], sizes = [1, 1], strides = [1, 1]} : vector<4x3xf32> to vector<1x1xf32>
    %49 = vector.broadcast %48 : vector<1x1xf32> to vector<8x16xf32>
    %50 = arith.mulf %14, %49 : vector<8x16xf32>
    %51 = vector.extract_strided_slice %17 {offsets = [2, 1], sizes = [1, 1], strides = [1, 1]} : vector<4x3xf32> to vector<1x1xf32>
    %52 = vector.broadcast %51 : vector<1x1xf32> to vector<8x16xf32>
    %53 = arith.mulf %13, %52 : vector<8x16xf32>
    %54 = arith.addf %50, %53 : vector<8x16xf32>
    %55 = vector.extract_strided_slice %17 {offsets = [2, 2], sizes = [1, 1], strides = [1, 1]} : vector<4x3xf32> to vector<1x1xf32>
    %56 = vector.broadcast %55 : vector<1x1xf32> to vector<8x16xf32>
    %57 = arith.mulf %15, %56 : vector<8x16xf32>
    %58 = arith.addf %54, %57 : vector<8x16xf32>
    %59 = vector.extract_strided_slice %19 {offsets = [0, 2], sizes = [1, 1], strides = [1, 1]} : vector<1x4xf32> to vector<1x1xf32>
    %60 = vector.broadcast %59 : vector<1x1xf32> to vector<8x16xf32>
    %61 = arith.addf %58, %60 : vector<8x16xf32>
    %62 = vector.extract_strided_slice %17 {offsets = [3, 0], sizes = [1, 1], strides = [1, 1]} : vector<4x3xf32> to vector<1x1xf32>
    %63 = vector.broadcast %62 : vector<1x1xf32> to vector<8x16xf32>
    %64 = arith.mulf %14, %63 : vector<8x16xf32>
    %65 = vector.extract_strided_slice %17 {offsets = [3, 1], sizes = [1, 1], strides = [1, 1]} : vector<4x3xf32> to vector<1x1xf32>
    %66 = vector.broadcast %65 : vector<1x1xf32> to vector<8x16xf32>
    %67 = arith.mulf %13, %66 : vector<8x16xf32>
    %68 = arith.addf %64, %67 : vector<8x16xf32>
    %69 = vector.extract_strided_slice %17 {offsets = [3, 2], sizes = [1, 1], strides = [1, 1]} : vector<4x3xf32> to vector<1x1xf32>
    %70 = vector.broadcast %69 : vector<1x1xf32> to vector<8x16xf32>
    %71 = arith.mulf %15, %70 : vector<8x16xf32>
    %72 = arith.addf %68, %71 : vector<8x16xf32>
    %73 = vector.extract_strided_slice %19 {offsets = [0, 3], sizes = [1, 1], strides = [1, 1]} : vector<1x4xf32> to vector<1x1xf32>
    %74 = vector.broadcast %73 : vector<1x1xf32> to vector<8x16xf32>
    %75 = arith.addf %72, %74 : vector<8x16xf32>
    %76 = tpu.concatenate %33, %47, %61, %75 in 0 : vector<8x16xf32>, vector<8x16xf32>, vector<8x16xf32>, vector<8x16xf32> -> vector<32x16xf32>
    %c0_10 = arith.constant 0 : index
    %c0_11 = arith.constant 0 : index
    %c0_12 = arith.constant 0 : index
    %77 = vector.load %arg4[%c0_10, %c0_11, %c0_12] : memref<1x16x64xf32, #tpu.memory_space<vmem>>, vector<1x16x64xf32>
    %78 = vector.shape_cast %77 : vector<1x16x64xf32> to vector<16x64xf32>
    %79 = arith.truncf %76 : vector<32x16xf32> to vector<32x16xbf16>
    %80 = arith.truncf %78 : vector<16x64xf32> to vector<16x64xbf16>
    %cst_13 = arith.constant dense<0.000000e+00> : vector<32x64xf32>
    %81 = tpu.matmul %79, %80, %cst_13 {dimension_numbers = #tpu.dot_dimension_numbers<[1], [0], [0], [1], [0, 0, 1, 1], [], []>} : vector<32x16xbf16>, vector<16x64xbf16>, vector<32x64xf32> -> vector<32x64xf32>
    %c0_14 = arith.constant 0 : index
    %c0_15 = arith.constant 0 : index
    %c0_16 = arith.constant 0 : index
    %82 = vector.load %arg5[%c0_14, %c0_15, %c0_16] : memref<1x1x64xf32, #tpu.memory_space<vmem>>, vector<1x1x64xf32>
    %83 = vector.shape_cast %82 : vector<1x1x64xf32> to vector<1x64xf32>
    %84 = vector.broadcast %83 : vector<1x64xf32> to vector<32x64xf32>
    %85 = arith.addf %81, %84 : vector<32x64xf32>
    %cst_17 = arith.constant 0.999994993 : f32
    %86 = vector.broadcast %cst_17 : f32 to vector<32x64xf32>
    %87 = arith.mulf %85, %86 : vector<32x64xf32>
    %cst_18 = arith.constant 0.000000e+00 : f32
    %88 = vector.broadcast %cst_18 : f32 to vector<32x64xf32>
    %89 = arith.cmpf ogt, %87, %88 : vector<32x64xf32>
    %cst_19 = arith.constant 0.00999999977 : f32
    %90 = vector.broadcast %cst_19 : f32 to vector<32x64xf32>
    %91 = arith.mulf %90, %87 : vector<32x64xf32>
    %92 = arith.select %89, %87, %91 : vector<32x64xi1>, vector<32x64xf32>
    %c0_20 = arith.constant 0 : index
    %c0_21 = arith.constant 0 : index
    %c0_22 = arith.constant 0 : index
    %93 = vector.load %arg6[%c0_20, %c0_21, %c0_22] : memref<1x64x2xf32, #tpu.memory_space<vmem>>, vector<1x64x2xf32>
    %94 = vector.shape_cast %93 : vector<1x64x2xf32> to vector<64x2xf32>
    %95 = arith.truncf %92 : vector<32x64xf32> to vector<32x64xbf16>
    %96 = arith.truncf %94 : vector<64x2xf32> to vector<64x2xbf16>
    %cst_23 = arith.constant dense<0.000000e+00> : vector<32x2xf32>
    %97 = tpu.matmul %95, %96, %cst_23 {dimension_numbers = #tpu.dot_dimension_numbers<[1], [0], [0], [1], [0, 0, 1, 1], [], []>} : vector<32x64xbf16>, vector<64x2xbf16>, vector<32x2xf32> -> vector<32x2xf32>
    %c0_24 = arith.constant 0 : index
    %c0_25 = arith.constant 0 : index
    %c0_26 = arith.constant 0 : index
    %98 = vector.load %arg7[%c0_24, %c0_25, %c0_26] : memref<1x1x2xf32, #tpu.memory_space<vmem>>, vector<1x1x2xf32>
    %99 = vector.shape_cast %98 : vector<1x1x2xf32> to vector<1x2xf32>
    %100 = vector.broadcast %99 : vector<1x2xf32> to vector<32x2xf32>
    %101 = arith.addf %97, %100 : vector<32x2xf32>
    %cst_27 = arith.constant dense<0xFF800000> : vector<32xf32>
    %102 = vector.multi_reduction <maximumf>, %101, %cst_27 [1] : vector<32x2xf32> to vector<32xf32>
    %103 = vector.shape_cast %102 : vector<32xf32> to vector<32x1xf32>
    %104 = vector.broadcast %103 : vector<32x1xf32> to vector<32x2xf32>
    %105 = arith.subf %101, %104 : vector<32x2xf32>
    %106 = math.exp %105 : vector<32x2xf32>
    %cst_28 = arith.constant dense<0.000000e+00> : vector<32xf32>
    %107 = vector.multi_reduction <add>, %106, %cst_28 [1] : vector<32x2xf32> to vector<32xf32>
    %108 = vector.shape_cast %107 : vector<32xf32> to vector<32x1xf32>
    %109 = vector.broadcast %108 : vector<32x1xf32> to vector<32x2xf32>
    %110 = arith.divf %106, %109 : vector<32x2xf32>
    %cst_29 = arith.constant dense<0.000000e+00> : vector<32x16xf32>
    %111 = tpu.matmul %76, %6, %cst_29 {dimension_numbers = #tpu.dot_dimension_numbers<[1], [0], [0], [1], [0, 0, 1, 1], [], []>} : vector<32x16xf32>, vector<16x16xf32>, vector<32x16xf32> -> vector<32x16xf32>
    %cst_30 = arith.constant dense<0.000000e+00> : vector<32x16xf32>
    %112 = tpu.matmul %76, %11, %cst_30 {dimension_numbers = #tpu.dot_dimension_numbers<[1], [0], [0], [1], [0, 0, 1, 1], [], []>} : vector<32x16xf32>, vector<16x16xf32>, vector<32x16xf32> -> vector<32x16xf32>
    %c0_31 = arith.constant 0 : index
    %c0_32 = arith.constant 0 : index
    %c0_33 = arith.constant 0 : index
    %113 = vector.load %arg8[%c0_31, %c0_32, %c0_33] : memref<1x16x3xf32, #tpu.memory_space<vmem>>, vector<1x16x3xf32>
    %114 = vector.shape_cast %113 : vector<1x16x3xf32> to vector<16x3xf32>
    %c0_34 = arith.constant 0 : index
    %c0_35 = arith.constant 0 : index
    %c0_36 = arith.constant 0 : index
    %115 = vector.load %arg9[%c0_34, %c0_35, %c0_36] : memref<1x1x4xf32, #tpu.memory_space<vmem>>, vector<1x1x4xf32>
    %116 = vector.shape_cast %115 : vector<1x1x4xf32> to vector<1x4xf32>
    %cst_37 = arith.constant 0.000000e+00 : f32
    %117 = vector.broadcast %cst_37 : f32 to vector<8x16xf32>
    %118 = vector.extract_strided_slice %116 {offsets = [0, 0], sizes = [1, 1], strides = [1, 1]} : vector<1x4xf32> to vector<1x1xf32>
    %119 = vector.broadcast %118 : vector<1x1xf32> to vector<8x16xf32>
    %120 = arith.addf %117, %119 : vector<8x16xf32>
    %121 = vector.extract_strided_slice %111 {offsets = [0, 0], sizes = [8, 16], strides = [1, 1]} : vector<32x16xf32> to vector<8x16xf32>
    %122 = vector.extract_strided_slice %114 {offsets = [0, 0], sizes = [1, 1], strides = [1, 1]} : vector<16x3xf32> to vector<1x1xf32>
    %123 = vector.broadcast %122 : vector<1x1xf32> to vector<8x16xf32>
    %124 = arith.mulf %121, %123 : vector<8x16xf32>
    %125 = arith.addf %120, %124 : vector<8x16xf32>
    %126 = vector.extract_strided_slice %76 {offsets = [0, 0], sizes = [8, 16], strides = [1, 1]} : vector<32x16xf32> to vector<8x16xf32>
    %127 = vector.extract_strided_slice %114 {offsets = [0, 1], sizes = [1, 1], strides = [1, 1]} : vector<16x3xf32> to vector<1x1xf32>
    %128 = vector.broadcast %127 : vector<1x1xf32> to vector<8x16xf32>
    %129 = arith.mulf %126, %128 : vector<8x16xf32>
    %130 = arith.addf %125, %129 : vector<8x16xf32>
    %131 = vector.extract_strided_slice %112 {offsets = [0, 0], sizes = [8, 16], strides = [1, 1]} : vector<32x16xf32> to vector<8x16xf32>
    %132 = vector.extract_strided_slice %114 {offsets = [0, 2], sizes = [1, 1], strides = [1, 1]} : vector<16x3xf32> to vector<1x1xf32>
    %133 = vector.broadcast %132 : vector<1x1xf32> to vector<8x16xf32>
    %134 = arith.mulf %131, %133 : vector<8x16xf32>
    %135 = arith.addf %130, %134 : vector<8x16xf32>
    %136 = vector.extract_strided_slice %111 {offsets = [8, 0], sizes = [8, 16], strides = [1, 1]} : vector<32x16xf32> to vector<8x16xf32>
    %137 = vector.extract_strided_slice %114 {offsets = [1, 0], sizes = [1, 1], strides = [1, 1]} : vector<16x3xf32> to vector<1x1xf32>
    %138 = vector.broadcast %137 : vector<1x1xf32> to vector<8x16xf32>
    %139 = arith.mulf %136, %138 : vector<8x16xf32>
    %140 = arith.addf %135, %139 : vector<8x16xf32>
    %141 = vector.extract_strided_slice %76 {offsets = [8, 0], sizes = [8, 16], strides = [1, 1]} : vector<32x16xf32> to vector<8x16xf32>
    %142 = vector.extract_strided_slice %114 {offsets = [1, 1], sizes = [1, 1], strides = [1, 1]} : vector<16x3xf32> to vector<1x1xf32>
    %143 = vector.broadcast %142 : vector<1x1xf32> to vector<8x16xf32>
    %144 = arith.mulf %141, %143 : vector<8x16xf32>
    %145 = arith.addf %140, %144 : vector<8x16xf32>
    %146 = vector.extract_strided_slice %112 {offsets = [8, 0], sizes = [8, 16], strides = [1, 1]} : vector<32x16xf32> to vector<8x16xf32>
    %147 = vector.extract_strided_slice %114 {offsets = [1, 2], sizes = [1, 1], strides = [1, 1]} : vector<16x3xf32> to vector<1x1xf32>
    %148 = vector.broadcast %147 : vector<1x1xf32> to vector<8x16xf32>
    %149 = arith.mulf %146, %148 : vector<8x16xf32>
    %150 = arith.addf %145, %149 : vector<8x16xf32>
    %151 = vector.extract_strided_slice %111 {offsets = [16, 0], sizes = [8, 16], strides = [1, 1]} : vector<32x16xf32> to vector<8x16xf32>
    %152 = vector.extract_strided_slice %114 {offsets = [2, 0], sizes = [1, 1], strides = [1, 1]} : vector<16x3xf32> to vector<1x1xf32>
    %153 = vector.broadcast %152 : vector<1x1xf32> to vector<8x16xf32>
    %154 = arith.mulf %151, %153 : vector<8x16xf32>
    %155 = arith.addf %150, %154 : vector<8x16xf32>
    %156 = vector.extract_strided_slice %76 {offsets = [16, 0], sizes = [8, 16], strides = [1, 1]} : vector<32x16xf32> to vector<8x16xf32>
    %157 = vector.extract_strided_slice %114 {offsets = [2, 1], sizes = [1, 1], strides = [1, 1]} : vector<16x3xf32> to vector<1x1xf32>
    %158 = vector.broadcast %157 : vector<1x1xf32> to vector<8x16xf32>
    %159 = arith.mulf %156, %158 : vector<8x16xf32>
    %160 = arith.addf %155, %159 : vector<8x16xf32>
    %161 = vector.extract_strided_slice %112 {offsets = [16, 0], sizes = [8, 16], strides = [1, 1]} : vector<32x16xf32> to vector<8x16xf32>
    %162 = vector.extract_strided_slice %114 {offsets = [2, 2], sizes = [1, 1], strides = [1, 1]} : vector<16x3xf32> to vector<1x1xf32>
    %163 = vector.broadcast %162 : vector<1x1xf32> to vector<8x16xf32>
    %164 = arith.mulf %161, %163 : vector<8x16xf32>
    %165 = arith.addf %160, %164 : vector<8x16xf32>
    %166 = vector.extract_strided_slice %111 {offsets = [24, 0], sizes = [8, 16], strides = [1, 1]} : vector<32x16xf32> to vector<8x16xf32>
    %167 = vector.extract_strided_slice %114 {offsets = [3, 0], sizes = [1, 1], strides = [1, 1]} : vector<16x3xf32> to vector<1x1xf32>
    %168 = vector.broadcast %167 : vector<1x1xf32> to vector<8x16xf32>
    %169 = arith.mulf %166, %168 : vector<8x16xf32>
    %170 = arith.addf %165, %169 : vector<8x16xf32>
    %171 = vector.extract_strided_slice %76 {offsets = [24, 0], sizes = [8, 16], strides = [1, 1]} : vector<32x16xf32> to vector<8x16xf32>
    %172 = vector.extract_strided_slice %114 {offsets = [3, 1], sizes = [1, 1], strides = [1, 1]} : vector<16x3xf32> to vector<1x1xf32>
    %173 = vector.broadcast %172 : vector<1x1xf32> to vector<8x16xf32>
    %174 = arith.mulf %171, %173 : vector<8x16xf32>
    %175 = arith.addf %170, %174 : vector<8x16xf32>
    %176 = vector.extract_strided_slice %112 {offsets = [24, 0], sizes = [8, 16], strides = [1, 1]} : vector<32x16xf32> to vector<8x16xf32>
    %177 = vector.extract_strided_slice %114 {offsets = [3, 2], sizes = [1, 1], strides = [1, 1]} : vector<16x3xf32> to vector<1x1xf32>
    %178 = vector.broadcast %177 : vector<1x1xf32> to vector<8x16xf32>
    %179 = arith.mulf %176, %178 : vector<8x16xf32>
    %180 = arith.addf %175, %179 : vector<8x16xf32>
    %181 = vector.extract_strided_slice %76 {offsets = [0, 0], sizes = [8, 16], strides = [1, 1]} : vector<32x16xf32> to vector<8x16xf32>
    %182 = arith.mulf %181, %180 : vector<8x16xf32>
    %cst_38 = arith.constant 0.000000e+00 : f32
    %183 = vector.broadcast %cst_38 : f32 to vector<8x16xf32>
    %184 = vector.extract_strided_slice %116 {offsets = [0, 1], sizes = [1, 1], strides = [1, 1]} : vector<1x4xf32> to vector<1x1xf32>
    %185 = vector.broadcast %184 : vector<1x1xf32> to vector<8x16xf32>
    %186 = arith.addf %183, %185 : vector<8x16xf32>
    %187 = vector.extract_strided_slice %111 {offsets = [0, 0], sizes = [8, 16], strides = [1, 1]} : vector<32x16xf32> to vector<8x16xf32>
    %188 = vector.extract_strided_slice %114 {offsets = [4, 0], sizes = [1, 1], strides = [1, 1]} : vector<16x3xf32> to vector<1x1xf32>
    %189 = vector.broadcast %188 : vector<1x1xf32> to vector<8x16xf32>
    %190 = arith.mulf %187, %189 : vector<8x16xf32>
    %191 = arith.addf %186, %190 : vector<8x16xf32>
    %192 = vector.extract_strided_slice %76 {offsets = [0, 0], sizes = [8, 16], strides = [1, 1]} : vector<32x16xf32> to vector<8x16xf32>
    %193 = vector.extract_strided_slice %114 {offsets = [4, 1], sizes = [1, 1], strides = [1, 1]} : vector<16x3xf32> to vector<1x1xf32>
    %194 = vector.broadcast %193 : vector<1x1xf32> to vector<8x16xf32>
    %195 = arith.mulf %192, %194 : vector<8x16xf32>
    %196 = arith.addf %191, %195 : vector<8x16xf32>
    %197 = vector.extract_strided_slice %112 {offsets = [0, 0], sizes = [8, 16], strides = [1, 1]} : vector<32x16xf32> to vector<8x16xf32>
    %198 = vector.extract_strided_slice %114 {offsets = [4, 2], sizes = [1, 1], strides = [1, 1]} : vector<16x3xf32> to vector<1x1xf32>
    %199 = vector.broadcast %198 : vector<1x1xf32> to vector<8x16xf32>
    %200 = arith.mulf %197, %199 : vector<8x16xf32>
    %201 = arith.addf %196, %200 : vector<8x16xf32>
    %202 = vector.extract_strided_slice %111 {offsets = [8, 0], sizes = [8, 16], strides = [1, 1]} : vector<32x16xf32> to vector<8x16xf32>
    %203 = vector.extract_strided_slice %114 {offsets = [5, 0], sizes = [1, 1], strides = [1, 1]} : vector<16x3xf32> to vector<1x1xf32>
    %204 = vector.broadcast %203 : vector<1x1xf32> to vector<8x16xf32>
    %205 = arith.mulf %202, %204 : vector<8x16xf32>
    %206 = arith.addf %201, %205 : vector<8x16xf32>
    %207 = vector.extract_strided_slice %76 {offsets = [8, 0], sizes = [8, 16], strides = [1, 1]} : vector<32x16xf32> to vector<8x16xf32>
    %208 = vector.extract_strided_slice %114 {offsets = [5, 1], sizes = [1, 1], strides = [1, 1]} : vector<16x3xf32> to vector<1x1xf32>
    %209 = vector.broadcast %208 : vector<1x1xf32> to vector<8x16xf32>
    %210 = arith.mulf %207, %209 : vector<8x16xf32>
    %211 = arith.addf %206, %210 : vector<8x16xf32>
    %212 = vector.extract_strided_slice %112 {offsets = [8, 0], sizes = [8, 16], strides = [1, 1]} : vector<32x16xf32> to vector<8x16xf32>
    %213 = vector.extract_strided_slice %114 {offsets = [5, 2], sizes = [1, 1], strides = [1, 1]} : vector<16x3xf32> to vector<1x1xf32>
    %214 = vector.broadcast %213 : vector<1x1xf32> to vector<8x16xf32>
    %215 = arith.mulf %212, %214 : vector<8x16xf32>
    %216 = arith.addf %211, %215 : vector<8x16xf32>
    %217 = vector.extract_strided_slice %111 {offsets = [16, 0], sizes = [8, 16], strides = [1, 1]} : vector<32x16xf32> to vector<8x16xf32>
    %218 = vector.extract_strided_slice %114 {offsets = [6, 0], sizes = [1, 1], strides = [1, 1]} : vector<16x3xf32> to vector<1x1xf32>
    %219 = vector.broadcast %218 : vector<1x1xf32> to vector<8x16xf32>
    %220 = arith.mulf %217, %219 : vector<8x16xf32>
    %221 = arith.addf %216, %220 : vector<8x16xf32>
    %222 = vector.extract_strided_slice %76 {offsets = [16, 0], sizes = [8, 16], strides = [1, 1]} : vector<32x16xf32> to vector<8x16xf32>
    %223 = vector.extract_strided_slice %114 {offsets = [6, 1], sizes = [1, 1], strides = [1, 1]} : vector<16x3xf32> to vector<1x1xf32>
    %224 = vector.broadcast %223 : vector<1x1xf32> to vector<8x16xf32>
    %225 = arith.mulf %222, %224 : vector<8x16xf32>
    %226 = arith.addf %221, %225 : vector<8x16xf32>
    %227 = vector.extract_strided_slice %112 {offsets = [16, 0], sizes = [8, 16], strides = [1, 1]} : vector<32x16xf32> to vector<8x16xf32>
    %228 = vector.extract_strided_slice %114 {offsets = [6, 2], sizes = [1, 1], strides = [1, 1]} : vector<16x3xf32> to vector<1x1xf32>
    %229 = vector.broadcast %228 : vector<1x1xf32> to vector<8x16xf32>
    %230 = arith.mulf %227, %229 : vector<8x16xf32>
    %231 = arith.addf %226, %230 : vector<8x16xf32>
    %232 = vector.extract_strided_slice %111 {offsets = [24, 0], sizes = [8, 16], strides = [1, 1]} : vector<32x16xf32> to vector<8x16xf32>
    %233 = vector.extract_strided_slice %114 {offsets = [7, 0], sizes = [1, 1], strides = [1, 1]} : vector<16x3xf32> to vector<1x1xf32>
    %234 = vector.broadcast %233 : vector<1x1xf32> to vector<8x16xf32>
    %235 = arith.mulf %232, %234 : vector<8x16xf32>
    %236 = arith.addf %231, %235 : vector<8x16xf32>
    %237 = vector.extract_strided_slice %76 {offsets = [24, 0], sizes = [8, 16], strides = [1, 1]} : vector<32x16xf32> to vector<8x16xf32>
    %238 = vector.extract_strided_slice %114 {offsets = [7, 1], sizes = [1, 1], strides = [1, 1]} : vector<16x3xf32> to vector<1x1xf32>
    %239 = vector.broadcast %238 : vector<1x1xf32> to vector<8x16xf32>
    %240 = arith.mulf %237, %239 : vector<8x16xf32>
    %241 = arith.addf %236, %240 : vector<8x16xf32>
    %242 = vector.extract_strided_slice %112 {offsets = [24, 0], sizes = [8, 16], strides = [1, 1]} : vector<32x16xf32> to vector<8x16xf32>
    %243 = vector.extract_strided_slice %114 {offsets = [7, 2], sizes = [1, 1], strides = [1, 1]} : vector<16x3xf32> to vector<1x1xf32>
    %244 = vector.broadcast %243 : vector<1x1xf32> to vector<8x16xf32>
    %245 = arith.mulf %242, %244 : vector<8x16xf32>
    %246 = arith.addf %241, %245 : vector<8x16xf32>
    %247 = vector.extract_strided_slice %76 {offsets = [8, 0], sizes = [8, 16], strides = [1, 1]} : vector<32x16xf32> to vector<8x16xf32>
    %248 = arith.mulf %247, %246 : vector<8x16xf32>
    %cst_39 = arith.constant 0.000000e+00 : f32
    %249 = vector.broadcast %cst_39 : f32 to vector<8x16xf32>
    %250 = vector.extract_strided_slice %116 {offsets = [0, 2], sizes = [1, 1], strides = [1, 1]} : vector<1x4xf32> to vector<1x1xf32>
    %251 = vector.broadcast %250 : vector<1x1xf32> to vector<8x16xf32>
    %252 = arith.addf %249, %251 : vector<8x16xf32>
    %253 = vector.extract_strided_slice %111 {offsets = [0, 0], sizes = [8, 16], strides = [1, 1]} : vector<32x16xf32> to vector<8x16xf32>
    %254 = vector.extract_strided_slice %114 {offsets = [8, 0], sizes = [1, 1], strides = [1, 1]} : vector<16x3xf32> to vector<1x1xf32>
    %255 = vector.broadcast %254 : vector<1x1xf32> to vector<8x16xf32>
    %256 = arith.mulf %253, %255 : vector<8x16xf32>
    %257 = arith.addf %252, %256 : vector<8x16xf32>
    %258 = vector.extract_strided_slice %76 {offsets = [0, 0], sizes = [8, 16], strides = [1, 1]} : vector<32x16xf32> to vector<8x16xf32>
    %259 = vector.extract_strided_slice %114 {offsets = [8, 1], sizes = [1, 1], strides = [1, 1]} : vector<16x3xf32> to vector<1x1xf32>
    %260 = vector.broadcast %259 : vector<1x1xf32> to vector<8x16xf32>
    %261 = arith.mulf %258, %260 : vector<8x16xf32>
    %262 = arith.addf %257, %261 : vector<8x16xf32>
    %263 = vector.extract_strided_slice %112 {offsets = [0, 0], sizes = [8, 16], strides = [1, 1]} : vector<32x16xf32> to vector<8x16xf32>
    %264 = vector.extract_strided_slice %114 {offsets = [8, 2], sizes = [1, 1], strides = [1, 1]} : vector<16x3xf32> to vector<1x1xf32>
    %265 = vector.broadcast %264 : vector<1x1xf32> to vector<8x16xf32>
    %266 = arith.mulf %263, %265 : vector<8x16xf32>
    %267 = arith.addf %262, %266 : vector<8x16xf32>
    %268 = vector.extract_strided_slice %111 {offsets = [8, 0], sizes = [8, 16], strides = [1, 1]} : vector<32x16xf32> to vector<8x16xf32>
    %269 = vector.extract_strided_slice %114 {offsets = [9, 0], sizes = [1, 1], strides = [1, 1]} : vector<16x3xf32> to vector<1x1xf32>
    %270 = vector.broadcast %269 : vector<1x1xf32> to vector<8x16xf32>
    %271 = arith.mulf %268, %270 : vector<8x16xf32>
    %272 = arith.addf %267, %271 : vector<8x16xf32>
    %273 = vector.extract_strided_slice %76 {offsets = [8, 0], sizes = [8, 16], strides = [1, 1]} : vector<32x16xf32> to vector<8x16xf32>
    %274 = vector.extract_strided_slice %114 {offsets = [9, 1], sizes = [1, 1], strides = [1, 1]} : vector<16x3xf32> to vector<1x1xf32>
    %275 = vector.broadcast %274 : vector<1x1xf32> to vector<8x16xf32>
    %276 = arith.mulf %273, %275 : vector<8x16xf32>
    %277 = arith.addf %272, %276 : vector<8x16xf32>
    %278 = vector.extract_strided_slice %112 {offsets = [8, 0], sizes = [8, 16], strides = [1, 1]} : vector<32x16xf32> to vector<8x16xf32>
    %279 = vector.extract_strided_slice %114 {offsets = [9, 2], sizes = [1, 1], strides = [1, 1]} : vector<16x3xf32> to vector<1x1xf32>
    %280 = vector.broadcast %279 : vector<1x1xf32> to vector<8x16xf32>
    %281 = arith.mulf %278, %280 : vector<8x16xf32>
    %282 = arith.addf %277, %281 : vector<8x16xf32>
    %283 = vector.extract_strided_slice %111 {offsets = [16, 0], sizes = [8, 16], strides = [1, 1]} : vector<32x16xf32> to vector<8x16xf32>
    %284 = vector.extract_strided_slice %114 {offsets = [10, 0], sizes = [1, 1], strides = [1, 1]} : vector<16x3xf32> to vector<1x1xf32>
    %285 = vector.broadcast %284 : vector<1x1xf32> to vector<8x16xf32>
    %286 = arith.mulf %283, %285 : vector<8x16xf32>
    %287 = arith.addf %282, %286 : vector<8x16xf32>
    %288 = vector.extract_strided_slice %76 {offsets = [16, 0], sizes = [8, 16], strides = [1, 1]} : vector<32x16xf32> to vector<8x16xf32>
    %289 = vector.extract_strided_slice %114 {offsets = [10, 1], sizes = [1, 1], strides = [1, 1]} : vector<16x3xf32> to vector<1x1xf32>
    %290 = vector.broadcast %289 : vector<1x1xf32> to vector<8x16xf32>
    %291 = arith.mulf %288, %290 : vector<8x16xf32>
    %292 = arith.addf %287, %291 : vector<8x16xf32>
    %293 = vector.extract_strided_slice %112 {offsets = [16, 0], sizes = [8, 16], strides = [1, 1]} : vector<32x16xf32> to vector<8x16xf32>
    %294 = vector.extract_strided_slice %114 {offsets = [10, 2], sizes = [1, 1], strides = [1, 1]} : vector<16x3xf32> to vector<1x1xf32>
    %295 = vector.broadcast %294 : vector<1x1xf32> to vector<8x16xf32>
    %296 = arith.mulf %293, %295 : vector<8x16xf32>
    %297 = arith.addf %292, %296 : vector<8x16xf32>
    %298 = vector.extract_strided_slice %111 {offsets = [24, 0], sizes = [8, 16], strides = [1, 1]} : vector<32x16xf32> to vector<8x16xf32>
    %299 = vector.extract_strided_slice %114 {offsets = [11, 0], sizes = [1, 1], strides = [1, 1]} : vector<16x3xf32> to vector<1x1xf32>
    %300 = vector.broadcast %299 : vector<1x1xf32> to vector<8x16xf32>
    %301 = arith.mulf %298, %300 : vector<8x16xf32>
    %302 = arith.addf %297, %301 : vector<8x16xf32>
    %303 = vector.extract_strided_slice %76 {offsets = [24, 0], sizes = [8, 16], strides = [1, 1]} : vector<32x16xf32> to vector<8x16xf32>
    %304 = vector.extract_strided_slice %114 {offsets = [11, 1], sizes = [1, 1], strides = [1, 1]} : vector<16x3xf32> to vector<1x1xf32>
    %305 = vector.broadcast %304 : vector<1x1xf32> to vector<8x16xf32>
    %306 = arith.mulf %303, %305 : vector<8x16xf32>
    %307 = arith.addf %302, %306 : vector<8x16xf32>
    %308 = vector.extract_strided_slice %112 {offsets = [24, 0], sizes = [8, 16], strides = [1, 1]} : vector<32x16xf32> to vector<8x16xf32>
    %309 = vector.extract_strided_slice %114 {offsets = [11, 2], sizes = [1, 1], strides = [1, 1]} : vector<16x3xf32> to vector<1x1xf32>
    %310 = vector.broadcast %309 : vector<1x1xf32> to vector<8x16xf32>
    %311 = arith.mulf %308, %310 : vector<8x16xf32>
    %312 = arith.addf %307, %311 : vector<8x16xf32>
    %313 = vector.extract_strided_slice %76 {offsets = [16, 0], sizes = [8, 16], strides = [1, 1]} : vector<32x16xf32> to vector<8x16xf32>
    %314 = arith.mulf %313, %312 : vector<8x16xf32>
    %cst_40 = arith.constant 0.000000e+00 : f32
    %315 = vector.broadcast %cst_40 : f32 to vector<8x16xf32>
    %316 = vector.extract_strided_slice %116 {offsets = [0, 3], sizes = [1, 1], strides = [1, 1]} : vector<1x4xf32> to vector<1x1xf32>
    %317 = vector.broadcast %316 : vector<1x1xf32> to vector<8x16xf32>
    %318 = arith.addf %315, %317 : vector<8x16xf32>
    %319 = vector.extract_strided_slice %111 {offsets = [0, 0], sizes = [8, 16], strides = [1, 1]} : vector<32x16xf32> to vector<8x16xf32>
    %320 = vector.extract_strided_slice %114 {offsets = [12, 0], sizes = [1, 1], strides = [1, 1]} : vector<16x3xf32> to vector<1x1xf32>
    %321 = vector.broadcast %320 : vector<1x1xf32> to vector<8x16xf32>
    %322 = arith.mulf %319, %321 : vector<8x16xf32>
    %323 = arith.addf %318, %322 : vector<8x16xf32>
    %324 = vector.extract_strided_slice %76 {offsets = [0, 0], sizes = [8, 16], strides = [1, 1]} : vector<32x16xf32> to vector<8x16xf32>
    %325 = vector.extract_strided_slice %114 {offsets = [12, 1], sizes = [1, 1], strides = [1, 1]} : vector<16x3xf32> to vector<1x1xf32>
    %326 = vector.broadcast %325 : vector<1x1xf32> to vector<8x16xf32>
    %327 = arith.mulf %324, %326 : vector<8x16xf32>
    %328 = arith.addf %323, %327 : vector<8x16xf32>
    %329 = vector.extract_strided_slice %112 {offsets = [0, 0], sizes = [8, 16], strides = [1, 1]} : vector<32x16xf32> to vector<8x16xf32>
    %330 = vector.extract_strided_slice %114 {offsets = [12, 2], sizes = [1, 1], strides = [1, 1]} : vector<16x3xf32> to vector<1x1xf32>
    %331 = vector.broadcast %330 : vector<1x1xf32> to vector<8x16xf32>
    %332 = arith.mulf %329, %331 : vector<8x16xf32>
    %333 = arith.addf %328, %332 : vector<8x16xf32>
    %334 = vector.extract_strided_slice %111 {offsets = [8, 0], sizes = [8, 16], strides = [1, 1]} : vector<32x16xf32> to vector<8x16xf32>
    %335 = vector.extract_strided_slice %114 {offsets = [13, 0], sizes = [1, 1], strides = [1, 1]} : vector<16x3xf32> to vector<1x1xf32>
    %336 = vector.broadcast %335 : vector<1x1xf32> to vector<8x16xf32>
    %337 = arith.mulf %334, %336 : vector<8x16xf32>
    %338 = arith.addf %333, %337 : vector<8x16xf32>
    %339 = vector.extract_strided_slice %76 {offsets = [8, 0], sizes = [8, 16], strides = [1, 1]} : vector<32x16xf32> to vector<8x16xf32>
    %340 = vector.extract_strided_slice %114 {offsets = [13, 1], sizes = [1, 1], strides = [1, 1]} : vector<16x3xf32> to vector<1x1xf32>
    %341 = vector.broadcast %340 : vector<1x1xf32> to vector<8x16xf32>
    %342 = arith.mulf %339, %341 : vector<8x16xf32>
    %343 = arith.addf %338, %342 : vector<8x16xf32>
    %344 = vector.extract_strided_slice %112 {offsets = [8, 0], sizes = [8, 16], strides = [1, 1]} : vector<32x16xf32> to vector<8x16xf32>
    %345 = vector.extract_strided_slice %114 {offsets = [13, 2], sizes = [1, 1], strides = [1, 1]} : vector<16x3xf32> to vector<1x1xf32>
    %346 = vector.broadcast %345 : vector<1x1xf32> to vector<8x16xf32>
    %347 = arith.mulf %344, %346 : vector<8x16xf32>
    %348 = arith.addf %343, %347 : vector<8x16xf32>
    %349 = vector.extract_strided_slice %111 {offsets = [16, 0], sizes = [8, 16], strides = [1, 1]} : vector<32x16xf32> to vector<8x16xf32>
    %350 = vector.extract_strided_slice %114 {offsets = [14, 0], sizes = [1, 1], strides = [1, 1]} : vector<16x3xf32> to vector<1x1xf32>
    %351 = vector.broadcast %350 : vector<1x1xf32> to vector<8x16xf32>
    %352 = arith.mulf %349, %351 : vector<8x16xf32>
    %353 = arith.addf %348, %352 : vector<8x16xf32>
    %354 = vector.extract_strided_slice %76 {offsets = [16, 0], sizes = [8, 16], strides = [1, 1]} : vector<32x16xf32> to vector<8x16xf32>
    %355 = vector.extract_strided_slice %114 {offsets = [14, 1], sizes = [1, 1], strides = [1, 1]} : vector<16x3xf32> to vector<1x1xf32>
    %356 = vector.broadcast %355 : vector<1x1xf32> to vector<8x16xf32>
    %357 = arith.mulf %354, %356 : vector<8x16xf32>
    %358 = arith.addf %353, %357 : vector<8x16xf32>
    %359 = vector.extract_strided_slice %112 {offsets = [16, 0], sizes = [8, 16], strides = [1, 1]} : vector<32x16xf32> to vector<8x16xf32>
    %360 = vector.extract_strided_slice %114 {offsets = [14, 2], sizes = [1, 1], strides = [1, 1]} : vector<16x3xf32> to vector<1x1xf32>
    %361 = vector.broadcast %360 : vector<1x1xf32> to vector<8x16xf32>
    %362 = arith.mulf %359, %361 : vector<8x16xf32>
    %363 = arith.addf %358, %362 : vector<8x16xf32>
    %364 = vector.extract_strided_slice %111 {offsets = [24, 0], sizes = [8, 16], strides = [1, 1]} : vector<32x16xf32> to vector<8x16xf32>
    %365 = vector.extract_strided_slice %114 {offsets = [15, 0], sizes = [1, 1], strides = [1, 1]} : vector<16x3xf32> to vector<1x1xf32>
    %366 = vector.broadcast %365 : vector<1x1xf32> to vector<8x16xf32>
    %367 = arith.mulf %364, %366 : vector<8x16xf32>
    %368 = arith.addf %363, %367 : vector<8x16xf32>
    %369 = vector.extract_strided_slice %76 {offsets = [24, 0], sizes = [8, 16], strides = [1, 1]} : vector<32x16xf32> to vector<8x16xf32>
    %370 = vector.extract_strided_slice %114 {offsets = [15, 1], sizes = [1, 1], strides = [1, 1]} : vector<16x3xf32> to vector<1x1xf32>
    %371 = vector.broadcast %370 : vector<1x1xf32> to vector<8x16xf32>
    %372 = arith.mulf %369, %371 : vector<8x16xf32>
    %373 = arith.addf %368, %372 : vector<8x16xf32>
    %374 = vector.extract_strided_slice %112 {offsets = [24, 0], sizes = [8, 16], strides = [1, 1]} : vector<32x16xf32> to vector<8x16xf32>
    %375 = vector.extract_strided_slice %114 {offsets = [15, 2], sizes = [1, 1], strides = [1, 1]} : vector<16x3xf32> to vector<1x1xf32>
    %376 = vector.broadcast %375 : vector<1x1xf32> to vector<8x16xf32>
    %377 = arith.mulf %374, %376 : vector<8x16xf32>
    %378 = arith.addf %373, %377 : vector<8x16xf32>
    %379 = vector.extract_strided_slice %76 {offsets = [24, 0], sizes = [8, 16], strides = [1, 1]} : vector<32x16xf32> to vector<8x16xf32>
    %380 = arith.mulf %379, %378 : vector<8x16xf32>
    %cst_41 = arith.constant 0.000000e+00 : f32
    %381 = vector.broadcast %cst_41 : f32 to vector<8x16xf32>
    %382 = vector.extract_strided_slice %110 {offsets = [0, 0], sizes = [8, 1], strides = [1, 1]} : vector<32x2xf32> to vector<8x1xf32>
    %383 = vector.broadcast %382 : vector<8x1xf32> to vector<8x16xf32>
    %384 = arith.mulf %182, %383 : vector<8x16xf32>
    %385 = arith.addf %381, %384 : vector<8x16xf32>
    %386 = vector.extract_strided_slice %110 {offsets = [8, 0], sizes = [8, 1], strides = [1, 1]} : vector<32x2xf32> to vector<8x1xf32>
    %387 = vector.broadcast %386 : vector<8x1xf32> to vector<8x16xf32>
    %388 = arith.mulf %248, %387 : vector<8x16xf32>
    %389 = arith.addf %385, %388 : vector<8x16xf32>
    %390 = vector.extract_strided_slice %110 {offsets = [16, 0], sizes = [8, 1], strides = [1, 1]} : vector<32x2xf32> to vector<8x1xf32>
    %391 = vector.broadcast %390 : vector<8x1xf32> to vector<8x16xf32>
    %392 = arith.mulf %314, %391 : vector<8x16xf32>
    %393 = arith.addf %389, %392 : vector<8x16xf32>
    %394 = vector.extract_strided_slice %110 {offsets = [24, 0], sizes = [8, 1], strides = [1, 1]} : vector<32x2xf32> to vector<8x1xf32>
    %395 = vector.broadcast %394 : vector<8x1xf32> to vector<8x16xf32>
    %396 = arith.mulf %380, %395 : vector<8x16xf32>
    %397 = arith.addf %393, %396 : vector<8x16xf32>
    %cst_42 = arith.constant 0.000000e+00 : f32
    %398 = vector.broadcast %cst_42 : f32 to vector<8x16xf32>
    %399 = vector.extract_strided_slice %110 {offsets = [0, 1], sizes = [8, 1], strides = [1, 1]} : vector<32x2xf32> to vector<8x1xf32>
    %400 = vector.broadcast %399 : vector<8x1xf32> to vector<8x16xf32>
    %401 = arith.mulf %182, %400 : vector<8x16xf32>
    %402 = arith.addf %398, %401 : vector<8x16xf32>
    %403 = vector.extract_strided_slice %110 {offsets = [8, 1], sizes = [8, 1], strides = [1, 1]} : vector<32x2xf32> to vector<8x1xf32>
    %404 = vector.broadcast %403 : vector<8x1xf32> to vector<8x16xf32>
    %405 = arith.mulf %248, %404 : vector<8x16xf32>
    %406 = arith.addf %402, %405 : vector<8x16xf32>
    %407 = vector.extract_strided_slice %110 {offsets = [16, 1], sizes = [8, 1], strides = [1, 1]} : vector<32x2xf32> to vector<8x1xf32>
    %408 = vector.broadcast %407 : vector<8x1xf32> to vector<8x16xf32>
    %409 = arith.mulf %314, %408 : vector<8x16xf32>
    %410 = arith.addf %406, %409 : vector<8x16xf32>
    %411 = vector.extract_strided_slice %110 {offsets = [24, 1], sizes = [8, 1], strides = [1, 1]} : vector<32x2xf32> to vector<8x1xf32>
    %412 = vector.broadcast %411 : vector<8x1xf32> to vector<8x16xf32>
    %413 = arith.mulf %380, %412 : vector<8x16xf32>
    %414 = arith.addf %410, %413 : vector<8x16xf32>
    %c0_43 = arith.constant 0 : index
    %c0_44 = arith.constant 0 : index
    %c0_45 = arith.constant 0 : index
    %c0_46 = arith.constant 0 : index
    %415 = vector.load %arg10[%c0_43, %c0_44, %c0_45, %c0_46] : memref<1x2x16x16xf32, #tpu.memory_space<vmem>>, vector<1x1x16x16xf32>
    %416 = vector.shape_cast %415 : vector<1x1x16x16xf32> to vector<16x16xf32>
    %417 = arith.truncf %397 : vector<8x16xf32> to vector<8x16xbf16>
    %418 = arith.truncf %416 : vector<16x16xf32> to vector<16x16xbf16>
    %cst_47 = arith.constant dense<0.000000e+00> : vector<8x16xf32>
    %419 = tpu.matmul %417, %418, %cst_47 {dimension_numbers = #tpu.dot_dimension_numbers<[1], [0], [0], [1], [0, 0, 1, 1], [], []>} : vector<8x16xbf16>, vector<16x16xbf16>, vector<8x16xf32> -> vector<8x16xf32>
    %c0_48 = arith.constant 0 : index
    %c0_49 = arith.constant 0 : index
    %c0_50 = arith.constant 0 : index
    %c0_51 = arith.constant 0 : index
    %420 = vector.load %arg11[%c0_48, %c0_49, %c0_50, %c0_51] : memref<1x2x1x16xf32, #tpu.memory_space<vmem>>, vector<1x1x1x16xf32>
    %421 = vector.shape_cast %420 : vector<1x1x1x16xf32> to vector<1x16xf32>
    %422 = vector.broadcast %421 : vector<1x16xf32> to vector<8x16xf32>
    %423 = arith.addf %419, %422 : vector<8x16xf32>
    %cst_52 = arith.constant 0.999994993 : f32
    %424 = vector.broadcast %cst_52 : f32 to vector<8x16xf32>
    %425 = arith.mulf %423, %424 : vector<8x16xf32>
    %cst_53 = arith.constant 0.000000e+00 : f32
    %426 = vector.broadcast %cst_53 : f32 to vector<8x16xf32>
    %427 = arith.cmpf ogt, %425, %426 : vector<8x16xf32>
    %cst_54 = arith.constant 0.00999999977 : f32
    %428 = vector.broadcast %cst_54 : f32 to vector<8x16xf32>
    %429 = arith.mulf %428, %425 : vector<8x16xf32>
    %430 = arith.select %427, %425, %429 : vector<8x16xi1>, vector<8x16xf32>
    %c0_55 = arith.constant 0 : index
    %c0_56 = arith.constant 0 : index
    %c0_57 = arith.constant 0 : index
    %c0_58 = arith.constant 0 : index
    %431 = vector.load %arg12[%c0_55, %c0_56, %c0_57, %c0_58] : memref<1x2x16x16xf32, #tpu.memory_space<vmem>>, vector<1x1x16x16xf32>
    %432 = vector.shape_cast %431 : vector<1x1x16x16xf32> to vector<16x16xf32>
    %433 = arith.truncf %430 : vector<8x16xf32> to vector<8x16xbf16>
    %434 = arith.truncf %432 : vector<16x16xf32> to vector<16x16xbf16>
    %cst_59 = arith.constant dense<0.000000e+00> : vector<8x16xf32>
    %435 = tpu.matmul %433, %434, %cst_59 {dimension_numbers = #tpu.dot_dimension_numbers<[1], [0], [0], [1], [0, 0, 1, 1], [], []>} : vector<8x16xbf16>, vector<16x16xbf16>, vector<8x16xf32> -> vector<8x16xf32>
    %c0_60 = arith.constant 0 : index
    %c0_61 = arith.constant 0 : index
    %c0_62 = arith.constant 0 : index
    %c0_63 = arith.constant 0 : index
    %436 = vector.load %arg13[%c0_60, %c0_61, %c0_62, %c0_63] : memref<1x2x1x16xf32, #tpu.memory_space<vmem>>, vector<1x1x1x16xf32>
    %437 = vector.shape_cast %436 : vector<1x1x1x16xf32> to vector<1x16xf32>
    %438 = vector.broadcast %437 : vector<1x16xf32> to vector<8x16xf32>
    %439 = arith.addf %435, %438 : vector<8x16xf32>
    %cst_64 = arith.constant 0.999994993 : f32
    %440 = vector.broadcast %cst_64 : f32 to vector<8x16xf32>
    %441 = arith.mulf %439, %440 : vector<8x16xf32>
    %cst_65 = arith.constant 0.000000e+00 : f32
    %442 = vector.broadcast %cst_65 : f32 to vector<8x16xf32>
    %443 = arith.cmpf ogt, %441, %442 : vector<8x16xf32>
    %cst_66 = arith.constant 0.00999999977 : f32
    %444 = vector.broadcast %cst_66 : f32 to vector<8x16xf32>
    %445 = arith.mulf %444, %441 : vector<8x16xf32>
    %446 = arith.select %443, %441, %445 : vector<8x16xi1>, vector<8x16xf32>
    %c0_67 = arith.constant 0 : index
    %c0_68 = arith.constant 0 : index
    %c0_69 = arith.constant 0 : index
    %c0_70 = arith.constant 0 : index
    %447 = vector.load %arg14[%c0_67, %c0_68, %c0_69, %c0_70] : memref<1x2x8x16xf32, #tpu.memory_space<vmem>>, vector<1x1x8x16xf32>
    %448 = vector.shape_cast %447 : vector<1x1x8x16xf32> to vector<8x16xf32>
    %449 = vector.shape_cast %446 : vector<8x16xf32> to vector<1x1x8x16xf32>
    tpu.vector_store %arg14[%c0_67, %c0_68, %c0_69, %c0_70], %449 {strides = array<i32>} : memref<1x2x8x16xf32, #tpu.memory_space<vmem>>, vector<1x1x8x16xf32>,
    %c0_71 = arith.constant 0 : index
    %c1 = arith.constant 1 : index
    %c0_72 = arith.constant 0 : index
    %c0_73 = arith.constant 0 : index
    %450 = vector.load %arg10[%c0_71, %c1, %c0_72, %c0_73] : memref<1x2x16x16xf32, #tpu.memory_space<vmem>>, vector<1x1x16x16xf32>
    %451 = vector.shape_cast %450 : vector<1x1x16x16xf32> to vector<16x16xf32>
    %452 = arith.truncf %414 : vector<8x16xf32> to vector<8x16xbf16>
    %453 = arith.truncf %451 : vector<16x16xf32> to vector<16x16xbf16>
    %cst_74 = arith.constant dense<0.000000e+00> : vector<8x16xf32>
    %454 = tpu.matmul %452, %453, %cst_74 {dimension_numbers = #tpu.dot_dimension_numbers<[1], [0], [0], [1], [0, 0, 1, 1], [], []>} : vector<8x16xbf16>, vector<16x16xbf16>, vector<8x16xf32> -> vector<8x16xf32>
    %c0_75 = arith.constant 0 : index
    %c1_76 = arith.constant 1 : index
    %c0_77 = arith.constant 0 : index
    %c0_78 = arith.constant 0 : index
    %455 = vector.load %arg11[%c0_75, %c1_76, %c0_77, %c0_78] : memref<1x2x1x16xf32, #tpu.memory_space<vmem>>, vector<1x1x1x16xf32>
    %456 = vector.shape_cast %455 : vector<1x1x1x16xf32> to vector<1x16xf32>
    %457 = vector.broadcast %456 : vector<1x16xf32> to vector<8x16xf32>
    %458 = arith.addf %454, %457 : vector<8x16xf32>
    %cst_79 = arith.constant 0.999994993 : f32
    %459 = vector.broadcast %cst_79 : f32 to vector<8x16xf32>
    %460 = arith.mulf %458, %459 : vector<8x16xf32>
    %cst_80 = arith.constant 0.000000e+00 : f32
    %461 = vector.broadcast %cst_80 : f32 to vector<8x16xf32>
    %462 = arith.cmpf ogt, %460, %461 : vector<8x16xf32>
    %cst_81 = arith.constant 0.00999999977 : f32
    %463 = vector.broadcast %cst_81 : f32 to vector<8x16xf32>
    %464 = arith.mulf %463, %460 : vector<8x16xf32>
    %465 = arith.select %462, %460, %464 : vector<8x16xi1>, vector<8x16xf32>
    %c0_82 = arith.constant 0 : index
    %c1_83 = arith.constant 1 : index
    %c0_84 = arith.constant 0 : index
    %c0_85 = arith.constant 0 : index
    %466 = vector.load %arg12[%c0_82, %c1_83, %c0_84, %c0_85] : memref<1x2x16x16xf32, #tpu.memory_space<vmem>>, vector<1x1x16x16xf32>
    %467 = vector.shape_cast %466 : vector<1x1x16x16xf32> to vector<16x16xf32>
    %468 = arith.truncf %465 : vector<8x16xf32> to vector<8x16xbf16>
    %469 = arith.truncf %467 : vector<16x16xf32> to vector<16x16xbf16>
    %cst_86 = arith.constant dense<0.000000e+00> : vector<8x16xf32>
    %470 = tpu.matmul %468, %469, %cst_86 {dimension_numbers = #tpu.dot_dimension_numbers<[1], [0], [0], [1], [0, 0, 1, 1], [], []>} : vector<8x16xbf16>, vector<16x16xbf16>, vector<8x16xf32> -> vector<8x16xf32>
    %c0_87 = arith.constant 0 : index
    %c1_88 = arith.constant 1 : index
    %c0_89 = arith.constant 0 : index
    %c0_90 = arith.constant 0 : index
    %471 = vector.load %arg13[%c0_87, %c1_88, %c0_89, %c0_90] : memref<1x2x1x16xf32, #tpu.memory_space<vmem>>, vector<1x1x1x16xf32>
    %472 = vector.shape_cast %471 : vector<1x1x1x16xf32> to vector<1x16xf32>
    %473 = vector.broadcast %472 : vector<1x16xf32> to vector<8x16xf32>
    %474 = arith.addf %470, %473 : vector<8x16xf32>
    %cst_91 = arith.constant 0.999994993 : f32
    %475 = vector.broadcast %cst_91 : f32 to vector<8x16xf32>
    %476 = arith.mulf %474, %475 : vector<8x16xf32>
    %cst_92 = arith.constant 0.000000e+00 : f32
    %477 = vector.broadcast %cst_92 : f32 to vector<8x16xf32>
    %478 = arith.cmpf ogt, %476, %477 : vector<8x16xf32>
    %cst_93 = arith.constant 0.00999999977 : f32
    %479 = vector.broadcast %cst_93 : f32 to vector<8x16xf32>
    %480 = arith.mulf %479, %476 : vector<8x16xf32>
    %481 = arith.select %478, %476, %480 : vector<8x16xi1>, vector<8x16xf32>
    %c0_94 = arith.constant 0 : index
    %c1_95 = arith.constant 1 : index
    %c0_96 = arith.constant 0 : index
    %c0_97 = arith.constant 0 : index
    %482 = vector.load %arg14[%c0_94, %c1_95, %c0_96, %c0_97] : memref<1x2x8x16xf32, #tpu.memory_space<vmem>>, vector<1x1x8x16xf32>
    %483 = vector.shape_cast %482 : vector<1x1x8x16xf32> to vector<8x16xf32>
    %484 = vector.shape_cast %481 : vector<8x16xf32> to vector<1x1x8x16xf32>
    tpu.vector_store %arg14[%c0_94, %c1_95, %c0_96, %c0_97], %484 {strides = array<i32>} : memref<1x2x8x16xf32, #tpu.memory_space<vmem>>, vector<1x1x8x16xf32>,
    return
  }
  func.func @transform_0(%arg0: i32) -> (i32, i32, i32) {
    %c0_i32 = arith.constant 0 : i32
    %c0_i32_0 = arith.constant 0 : i32
    %c0_i32_1 = arith.constant 0 : i32
    return %arg0, %c0_i32, %c0_i32_0 : i32, i32, i32
  }
  func.func @transform_1(%arg0: i32) -> (i32, i32, i32) {
    %c0_i32 = arith.constant 0 : i32
    %c0_i32_0 = arith.constant 0 : i32
    %c0_i32_1 = arith.constant 0 : i32
    return %arg0, %c0_i32, %c0_i32_0 : i32, i32, i32
  }
  func.func @transform_2(%arg0: i32) -> (i32, i32, i32) {
    %c0_i32 = arith.constant 0 : i32
    %c0_i32_0 = arith.constant 0 : i32
    %c0_i32_1 = arith.constant 0 : i32
    return %arg0, %c0_i32, %c0_i32_0 : i32, i32, i32
  }
  func.func @transform_3(%arg0: i32) -> (i32, i32, i32) {
    %c0_i32 = arith.constant 0 : i32
    %c0_i32_0 = arith.constant 0 : i32
    %c0_i32_1 = arith.constant 0 : i32
    return %arg0, %c0_i32, %c0_i32_0 : i32, i32, i32
  }
  func.func @transform_4(%arg0: i32) -> (i32, i32, i32) {
    %c0_i32 = arith.constant 0 : i32
    %c0_i32_0 = arith.constant 0 : i32
    %c0_i32_1 = arith.constant 0 : i32
    return %arg0, %c0_i32, %c0_i32_0 : i32, i32, i32
  }
  func.func @transform_5(%arg0: i32) -> (i32, i32, i32) {
    %c0_i32 = arith.constant 0 : i32
    %c0_i32_0 = arith.constant 0 : i32
    %c0_i32_1 = arith.constant 0 : i32
    return %arg0, %c0_i32, %c0_i32_0 : i32, i32, i32
  }
  func.func @transform_6(%arg0: i32) -> (i32, i32, i32) {
    %c0_i32 = arith.constant 0 : i32
    %c0_i32_0 = arith.constant 0 : i32
    %c0_i32_1 = arith.constant 0 : i32
    return %arg0, %c0_i32, %c0_i32_0 : i32, i32, i32
  }
  func.func @transform_7(%arg0: i32) -> (i32, i32, i32) {
    %c0_i32 = arith.constant 0 : i32
    %c0_i32_0 = arith.constant 0 : i32
    %c0_i32_1 = arith.constant 0 : i32
    return %arg0, %c0_i32, %c0_i32_0 : i32, i32, i32
  }
  func.func @transform_8(%arg0: i32) -> (i32, i32, i32) {
    %c0_i32 = arith.constant 0 : i32
    %c0_i32_0 = arith.constant 0 : i32
    %c0_i32_1 = arith.constant 0 : i32
    return %arg0, %c0_i32, %c0_i32_0 : i32, i32, i32
  }
  func.func @transform_9(%arg0: i32) -> (i32, i32, i32, i32) {
    %c0_i32 = arith.constant 0 : i32
    %c0_i32_0 = arith.constant 0 : i32
    %c0_i32_1 = arith.constant 0 : i32
    %c0_i32_2 = arith.constant 0 : i32
    return %arg0, %c0_i32, %c0_i32_0, %c0_i32_1 : i32, i32, i32, i32
  }
  func.func @transform_10(%arg0: i32) -> (i32, i32, i32, i32) {
    %c0_i32 = arith.constant 0 : i32
    %c0_i32_0 = arith.constant 0 : i32
    %c0_i32_1 = arith.constant 0 : i32
    %c0_i32_2 = arith.constant 0 : i32
    return %arg0, %c0_i32, %c0_i32_0, %c0_i32_1 : i32, i32, i32, i32
  }
  func.func @transform_11(%arg0: i32) -> (i32, i32, i32, i32) {
    %c0_i32 = arith.constant 0 : i32
    %c0_i32_0 = arith.constant 0 : i32
    %c0_i32_1 = arith.constant 0 : i32
    %c0_i32_2 = arith.constant 0 : i32
    return %arg0, %c0_i32, %c0_i32_0, %c0_i32_1 : i32, i32, i32, i32
  }
  func.func @transform_12(%arg0: i32) -> (i32, i32, i32, i32) {
    %c0_i32 = arith.constant 0 : i32
    %c0_i32_0 = arith.constant 0 : i32
    %c0_i32_1 = arith.constant 0 : i32
    %c0_i32_2 = arith.constant 0 : i32
    return %arg0, %c0_i32, %c0_i32_0, %c0_i32_1 : i32, i32, i32, i32
  }
  func.func @transform_13(%arg0: i32) -> (i32, i32, i32, i32) {
    %c0_i32 = arith.constant 0 : i32
    %c0_i32_0 = arith.constant 0 : i32
    %c0_i32_1 = arith.constant 0 : i32
    %c0_i32_2 = arith.constant 0 : i32
    return %arg0, %c0_i32, %c0_i32_0, %c0_i32_1 : i32, i32, i32, i32
  }
}

module attributes {stable_mosaic.version = 11 : i64} {
  func.func @_level_kernel(%arg0: i32, %arg1: memref<1x8x16xf32, #tpu.memory_space<vmem>>, %arg2: memref<1x4x3xf32, #tpu.memory_space<vmem>>, %arg3: memref<1x1x4xf32, #tpu.memory_space<vmem>>, %arg4: memref<1x16x64xf32, #tpu.memory_space<vmem>>, %arg5: memref<1x1x64xf32, #tpu.memory_space<vmem>>, %arg6: memref<1x64x2xf32, #tpu.memory_space<vmem>>, %arg7: memref<1x1x2xf32, #tpu.memory_space<vmem>>, %arg8: memref<1x16x3xf32, #tpu.memory_space<vmem>>, %arg9: memref<1x1x4xf32, #tpu.memory_space<vmem>>, %arg10: memref<1x2x16x16xf32, #tpu.memory_space<vmem>>, %arg11: memref<1x2x1x16xf32, #tpu.memory_space<vmem>>, %arg12: memref<1x2x16x16xf32, #tpu.memory_space<vmem>>, %arg13: memref<1x2x1x16xf32, #tpu.memory_space<vmem>>, %arg14: memref<1x2x8x16xf32, #tpu.memory_space<vmem>>) attributes {dimension_semantics = [#tpu.dimension_semantics<parallel>], iteration_bounds = array<i64: 1>, scalar_prefetch = 0 : i64, scratch_operands = 0 : i64, tpu.core_type = #tpu.core_type<tc>, window_params = [{transform_indices = @transform_0, window_bounds = array<i64: 1, 8, 16>}, {transform_indices = @transform_1, window_bounds = array<i64: 1, 4, 3>}, {transform_indices = @transform_2, window_bounds = array<i64: 1, 1, 4>}, {transform_indices = @transform_3, window_bounds = array<i64: 1, 16, 64>}, {transform_indices = @transform_4, window_bounds = array<i64: 1, 1, 64>}, {transform_indices = @transform_5, window_bounds = array<i64: 1, 64, 2>}, {transform_indices = @transform_6, window_bounds = array<i64: 1, 1, 2>}, {transform_indices = @transform_7, window_bounds = array<i64: 1, 16, 3>}, {transform_indices = @transform_8, window_bounds = array<i64: 1, 1, 4>}, {transform_indices = @transform_9, window_bounds = array<i64: 1, 2, 16, 16>}, {transform_indices = @transform_10, window_bounds = array<i64: 1, 2, 1, 16>}, {transform_indices = @transform_11, window_bounds = array<i64: 1, 2, 16, 16>}, {transform_indices = @transform_12, window_bounds = array<i64: 1, 2, 1, 16>}, {transform_indices = @transform_13, window_bounds = array<i64: 1, 2, 8, 16>}]} {
    %0 = tpu.iota {dimensions = array<i32: 0>} : vector<16x16xi32>
    %1 = tpu.iota {dimensions = array<i32: 1>} : vector<16x16xi32>
    %c1_i32 = arith.constant 1 : i32
    %2 = vector.broadcast %c1_i32 : i32 to vector<16x16xi32>
    %3 = arith.subi %1, %2 : vector<16x16xi32>
    %4 = arith.cmpi eq, %0, %3 : vector<16x16xi32>
    %5 = arith.extui %4 : vector<16x16xi1> to vector<16x16xi32>
    %6 = arith.sitofp %5 : vector<16x16xi32> to vector<16x16xf32>
    %c1_i32_0 = arith.constant 1 : i32
    %7 = vector.broadcast %c1_i32_0 : i32 to vector<16x16xi32>
    %8 = arith.addi %1, %7 : vector<16x16xi32>
    %9 = arith.cmpi eq, %0, %8 : vector<16x16xi32>
    %10 = arith.extui %9 : vector<16x16xi1> to vector<16x16xi32>
    %11 = arith.sitofp %10 : vector<16x16xi32> to vector<16x16xf32>
    %c0 = arith.constant 0 : index
    %c0_1 = arith.constant 0 : index
    %c0_2 = arith.constant 0 : index
    %12 = vector.load %arg1[%c0, %c0_1, %c0_2] : memref<1x8x16xf32, #tpu.memory_space<vmem>>, vector<1x8x16xf32>
    %13 = vector.shape_cast %12 : vector<1x8x16xf32> to vector<8x16xf32>
    %cst = arith.constant dense<0.000000e+00> : vector<8x16xf32>
    %14 = tpu.matmul %13, %6, %cst {dimension_numbers = #tpu.dot_dimension_numbers<[1], [0], [0], [1], [0, 0, 1, 1], [], []>} : vector<8x16xf32>, vector<16x16xf32>, vector<8x16xf32> -> vector<8x16xf32>
    %cst_3 = arith.constant dense<0.000000e+00> : vector<8x16xf32>
    %15 = tpu.matmul %13, %11, %cst_3 {dimension_numbers = #tpu.dot_dimension_numbers<[1], [0], [0], [1], [0, 0, 1, 1], [], []>} : vector<8x16xf32>, vector<16x16xf32>, vector<8x16xf32> -> vector<8x16xf32>
    %c0_4 = arith.constant 0 : index
    %c0_5 = arith.constant 0 : index
    %c0_6 = arith.constant 0 : index
    %16 = vector.load %arg2[%c0_4, %c0_5, %c0_6] : memref<1x4x3xf32, #tpu.memory_space<vmem>>, vector<1x4x3xf32>
    %17 = vector.shape_cast %16 : vector<1x4x3xf32> to vector<4x3xf32>
    %c0_7 = arith.constant 0 : index
    %c0_8 = arith.constant 0 : index
    %c0_9 = arith.constant 0 : index
    %18 = vector.load %arg3[%c0_7, %c0_8, %c0_9] : memref<1x1x4xf32, #tpu.memory_space<vmem>>, vector<1x1x4xf32>
    %19 = vector.shape_cast %18 : vector<1x1x4xf32> to vector<1x4xf32>
    %20 = vector.extract_strided_slice %17 {offsets = [0, 0], sizes = [1, 1], strides = [1, 1]} : vector<4x3xf32> to vector<1x1xf32>
    %21 = vector.broadcast %20 : vector<1x1xf32> to vector<8x16xf32>
    %22 = arith.mulf %14, %21 : vector<8x16xf32>
    %23 = vector.extract_strided_slice %17 {offsets = [0, 1], sizes = [1, 1], strides = [1, 1]} : vector<4x3xf32> to vector<1x1xf32>
    %24 = vector.broadcast %23 : vector<1x1xf32> to vector<8x16xf32>
    %25 = arith.mulf %13, %24 : vector<8x16xf32>
    %26 = arith.addf %22, %25 : vector<8x16xf32>
    %27 = vector.extract_strided_slice %17 {offsets = [0, 2], sizes = [1, 1], strides = [1, 1]} : vector<4x3xf32> to vector<1x1xf32>
    %28 = vector.broadcast %27 : vector<1x1xf32> to vector<8x16xf32>
    %29 = arith.mulf %15, %28 : vector<8x16xf32>
    %30 = arith.addf %26, %29 : vector<8x16xf32>
    %31 = vector.extract_strided_slice %19 {offsets = [0, 0], sizes = [1, 1], strides = [1, 1]} : vector<1x4xf32> to vector<1x1xf32>
    %32 = vector.broadcast %31 : vector<1x1xf32> to vector<8x16xf32>
    %33 = arith.addf %30, %32 : vector<8x16xf32>
    %34 = vector.extract_strided_slice %17 {offsets = [1, 0], sizes = [1, 1], strides = [1, 1]} : vector<4x3xf32> to vector<1x1xf32>
    %35 = vector.broadcast %34 : vector<1x1xf32> to vector<8x16xf32>
    %36 = arith.mulf %14, %35 : vector<8x16xf32>
    %37 = vector.extract_strided_slice %17 {offsets = [1, 1], sizes = [1, 1], strides = [1, 1]} : vector<4x3xf32> to vector<1x1xf32>
    %38 = vector.broadcast %37 : vector<1x1xf32> to vector<8x16xf32>
    %39 = arith.mulf %13, %38 : vector<8x16xf32>
    %40 = arith.addf %36, %39 : vector<8x16xf32>
    %41 = vector.extract_strided_slice %17 {offsets = [1, 2], sizes = [1, 1], strides = [1, 1]} : vector<4x3xf32> to vector<1x1xf32>
    %42 = vector.broadcast %41 : vector<1x1xf32> to vector<8x16xf32>
    %43 = arith.mulf %15, %42 : vector<8x16xf32>
    %44 = arith.addf %40, %43 : vector<8x16xf32>
    %45 = vector.extract_strided_slice %19 {offsets = [0, 1], sizes = [1, 1], strides = [1, 1]} : vector<1x4xf32> to vector<1x1xf32>
    %46 = vector.broadcast %45 : vector<1x1xf32> to vector<8x16xf32>
    %47 = arith.addf %44, %46 : vector<8x16xf32>
    %48 = vector.extract_strided_slice %17 {offsets = [2, 0], sizes = [1, 1], strides = [1, 1]} : vector<4x3xf32> to vector<1x1xf32>
    %49 = vector.broadcast %48 : vector<1x1xf32> to vector<8x16xf32>
    %50 = arith.mulf %14, %49 : vector<8x16xf32>
    %51 = vector.extract_strided_slice %17 {offsets = [2, 1], sizes = [1, 1], strides = [1, 1]} : vector<4x3xf32> to vector<1x1xf32>
    %52 = vector.broadcast %51 : vector<1x1xf32> to vector<8x16xf32>
    %53 = arith.mulf %13, %52 : vector<8x16xf32>
    %54 = arith.addf %50, %53 : vector<8x16xf32>
    %55 = vector.extract_strided_slice %17 {offsets = [2, 2], sizes = [1, 1], strides = [1, 1]} : vector<4x3xf32> to vector<1x1xf32>
    %56 = vector.broadcast %55 : vector<1x1xf32> to vector<8x16xf32>
    %57 = arith.mulf %15, %56 : vector<8x16xf32>
    %58 = arith.addf %54, %57 : vector<8x16xf32>
    %59 = vector.extract_strided_slice %19 {offsets = [0, 2], sizes = [1, 1], strides = [1, 1]} : vector<1x4xf32> to vector<1x1xf32>
    %60 = vector.broadcast %59 : vector<1x1xf32> to vector<8x16xf32>
    %61 = arith.addf %58, %60 : vector<8x16xf32>
    %62 = vector.extract_strided_slice %17 {offsets = [3, 0], sizes = [1, 1], strides = [1, 1]} : vector<4x3xf32> to vector<1x1xf32>
    %63 = vector.broadcast %62 : vector<1x1xf32> to vector<8x16xf32>
    %64 = arith.mulf %14, %63 : vector<8x16xf32>
    %65 = vector.extract_strided_slice %17 {offsets = [3, 1], sizes = [1, 1], strides = [1, 1]} : vector<4x3xf32> to vector<1x1xf32>
    %66 = vector.broadcast %65 : vector<1x1xf32> to vector<8x16xf32>
    %67 = arith.mulf %13, %66 : vector<8x16xf32>
    %68 = arith.addf %64, %67 : vector<8x16xf32>
    %69 = vector.extract_strided_slice %17 {offsets = [3, 2], sizes = [1, 1], strides = [1, 1]} : vector<4x3xf32> to vector<1x1xf32>
    %70 = vector.broadcast %69 : vector<1x1xf32> to vector<8x16xf32>
    %71 = arith.mulf %15, %70 : vector<8x16xf32>
    %72 = arith.addf %68, %71 : vector<8x16xf32>
    %73 = vector.extract_strided_slice %19 {offsets = [0, 3], sizes = [1, 1], strides = [1, 1]} : vector<1x4xf32> to vector<1x1xf32>
    %74 = vector.broadcast %73 : vector<1x1xf32> to vector<8x16xf32>
    %75 = arith.addf %72, %74 : vector<8x16xf32>
    %76 = tpu.concatenate %33, %47, %61, %75 in 0 : vector<8x16xf32>, vector<8x16xf32>, vector<8x16xf32>, vector<8x16xf32> -> vector<32x16xf32>
    %c0_10 = arith.constant 0 : index
    %c0_11 = arith.constant 0 : index
    %c0_12 = arith.constant 0 : index
    %77 = vector.load %arg4[%c0_10, %c0_11, %c0_12] : memref<1x16x64xf32, #tpu.memory_space<vmem>>, vector<1x16x64xf32>
    %78 = vector.shape_cast %77 : vector<1x16x64xf32> to vector<16x64xf32>
    %79 = arith.truncf %76 : vector<32x16xf32> to vector<32x16xbf16>
    %80 = arith.truncf %78 : vector<16x64xf32> to vector<16x64xbf16>
    %cst_13 = arith.constant dense<0.000000e+00> : vector<32x64xf32>
    %81 = tpu.matmul %79, %80, %cst_13 {dimension_numbers = #tpu.dot_dimension_numbers<[1], [0], [0], [1], [0, 0, 1, 1], [], []>} : vector<32x16xbf16>, vector<16x64xbf16>, vector<32x64xf32> -> vector<32x64xf32>
    %c0_14 = arith.constant 0 : index
    %c0_15 = arith.constant 0 : index
    %c0_16 = arith.constant 0 : index
    %82 = vector.load %arg5[%c0_14, %c0_15, %c0_16] : memref<1x1x64xf32, #tpu.memory_space<vmem>>, vector<1x1x64xf32>
    %83 = vector.shape_cast %82 : vector<1x1x64xf32> to vector<1x64xf32>
    %84 = vector.broadcast %83 : vector<1x64xf32> to vector<32x64xf32>
    %85 = arith.addf %81, %84 : vector<32x64xf32>
    %cst_17 = arith.constant 0.999994993 : f32
    %86 = vector.broadcast %cst_17 : f32 to vector<32x64xf32>
    %87 = arith.mulf %85, %86 : vector<32x64xf32>
    %cst_18 = arith.constant 0.000000e+00 : f32
    %88 = vector.broadcast %cst_18 : f32 to vector<32x64xf32>
    %89 = arith.cmpf ogt, %87, %88 : vector<32x64xf32>
    %cst_19 = arith.constant 0.00999999977 : f32
    %90 = vector.broadcast %cst_19 : f32 to vector<32x64xf32>
    %91 = arith.mulf %90, %87 : vector<32x64xf32>
    %92 = arith.select %89, %87, %91 : vector<32x64xi1>, vector<32x64xf32>
    %c0_20 = arith.constant 0 : index
    %c0_21 = arith.constant 0 : index
    %c0_22 = arith.constant 0 : index
    %93 = vector.load %arg6[%c0_20, %c0_21, %c0_22] : memref<1x64x2xf32, #tpu.memory_space<vmem>>, vector<1x64x2xf32>
    %94 = vector.shape_cast %93 : vector<1x64x2xf32> to vector<64x2xf32>
    %95 = arith.truncf %92 : vector<32x64xf32> to vector<32x64xbf16>
    %96 = arith.truncf %94 : vector<64x2xf32> to vector<64x2xbf16>
    %cst_23 = arith.constant dense<0.000000e+00> : vector<32x2xf32>
    %97 = tpu.matmul %95, %96, %cst_23 {dimension_numbers = #tpu.dot_dimension_numbers<[1], [0], [0], [1], [0, 0, 1, 1], [], []>} : vector<32x64xbf16>, vector<64x2xbf16>, vector<32x2xf32> -> vector<32x2xf32>
    %c0_24 = arith.constant 0 : index
    %c0_25 = arith.constant 0 : index
    %c0_26 = arith.constant 0 : index
    %98 = vector.load %arg7[%c0_24, %c0_25, %c0_26] : memref<1x1x2xf32, #tpu.memory_space<vmem>>, vector<1x1x2xf32>
    %99 = vector.shape_cast %98 : vector<1x1x2xf32> to vector<1x2xf32>
    %100 = vector.broadcast %99 : vector<1x2xf32> to vector<32x2xf32>
    %101 = arith.addf %97, %100 : vector<32x2xf32>
    %cst_27 = arith.constant dense<0xFF800000> : vector<32xf32>
    %102 = vector.multi_reduction <maximumf>, %101, %cst_27 [1] : vector<32x2xf32> to vector<32xf32>
    %103 = vector.shape_cast %102 : vector<32xf32> to vector<32x1xf32>
    %104 = vector.broadcast %103 : vector<32x1xf32> to vector<32x2xf32>
    %105 = arith.subf %101, %104 : vector<32x2xf32>
    %106 = math.exp %105 : vector<32x2xf32>
    %cst_28 = arith.constant dense<0.000000e+00> : vector<32xf32>
    %107 = vector.multi_reduction <add>, %106, %cst_28 [1] : vector<32x2xf32> to vector<32xf32>
    %108 = vector.shape_cast %107 : vector<32xf32> to vector<32x1xf32>
    %109 = vector.broadcast %108 : vector<32x1xf32> to vector<32x2xf32>
    %110 = arith.divf %106, %109 : vector<32x2xf32>
    %cst_29 = arith.constant dense<0.000000e+00> : vector<32x16xf32>
    %111 = tpu.matmul %76, %6, %cst_29 {dimension_numbers = #tpu.dot_dimension_numbers<[1], [0], [0], [1], [0, 0, 1, 1], [], []>} : vector<32x16xf32>, vector<16x16xf32>, vector<32x16xf32> -> vector<32x16xf32>
    %cst_30 = arith.constant dense<0.000000e+00> : vector<32x16xf32>
    %112 = tpu.matmul %76, %11, %cst_30 {dimension_numbers = #tpu.dot_dimension_numbers<[1], [0], [0], [1], [0, 0, 1, 1], [], []>} : vector<32x16xf32>, vector<16x16xf32>, vector<32x16xf32> -> vector<32x16xf32>
    %c0_31 = arith.constant 0 : index
    %c0_32 = arith.constant 0 : index
    %c0_33 = arith.constant 0 : index
    %113 = vector.load %arg8[%c0_31, %c0_32, %c0_33] : memref<1x16x3xf32, #tpu.memory_space<vmem>>, vector<1x16x3xf32>
    %114 = vector.shape_cast %113 : vector<1x16x3xf32> to vector<16x3xf32>
    %c0_34 = arith.constant 0 : index
    %c0_35 = arith.constant 0 : index
    %c0_36 = arith.constant 0 : index
    %115 = vector.load %arg9[%c0_34, %c0_35, %c0_36] : memref<1x1x4xf32, #tpu.memory_space<vmem>>, vector<1x1x4xf32>
    %116 = vector.shape_cast %115 : vector<1x1x4xf32> to vector<1x4xf32>
    %cst_37 = arith.constant 0.000000e+00 : f32
    %117 = vector.broadcast %cst_37 : f32 to vector<8x16xf32>
    %118 = vector.extract_strided_slice %116 {offsets = [0, 0], sizes = [1, 1], strides = [1, 1]} : vector<1x4xf32> to vector<1x1xf32>
    %119 = vector.broadcast %118 : vector<1x1xf32> to vector<8x16xf32>
    %120 = arith.addf %117, %119 : vector<8x16xf32>
    %121 = vector.extract_strided_slice %111 {offsets = [0, 0], sizes = [8, 16], strides = [1, 1]} : vector<32x16xf32> to vector<8x16xf32>
    %122 = vector.extract_strided_slice %114 {offsets = [0, 0], sizes = [1, 1], strides = [1, 1]} : vector<16x3xf32> to vector<1x1xf32>
    %123 = vector.broadcast %122 : vector<1x1xf32> to vector<8x16xf32>
    %124 = arith.mulf %121, %123 : vector<8x16xf32>
    %125 = arith.addf %120, %124 : vector<8x16xf32>
    %126 = vector.extract_strided_slice %76 {offsets = [0, 0], sizes = [8, 16], strides = [1, 1]} : vector<32x16xf32> to vector<8x16xf32>
    %127 = vector.extract_strided_slice %114 {offsets = [0, 1], sizes = [1, 1], strides = [1, 1]} : vector<16x3xf32> to vector<1x1xf32>
    %128 = vector.broadcast %127 : vector<1x1xf32> to vector<8x16xf32>
    %129 = arith.mulf %126, %128 : vector<8x16xf32>
    %130 = arith.addf %125, %129 : vector<8x16xf32>
    %131 = vector.extract_strided_slice %112 {offsets = [0, 0], sizes = [8, 16], strides = [1, 1]} : vector<32x16xf32> to vector<8x16xf32>
    %132 = vector.extract_strided_slice %114 {offsets = [0, 2], sizes = [1, 1], strides = [1, 1]} : vector<16x3xf32> to vector<1x1xf32>
    %133 = vector.broadcast %132 : vector<1x1xf32> to vector<8x16xf32>
    %134 = arith.mulf %131, %133 : vector<8x16xf32>
    %135 = arith.addf %130, %134 : vector<8x16xf32>
    %136 = vector.extract_strided_slice %111 {offsets = [8, 0], sizes = [8, 16], strides = [1, 1]} : vector<32x16xf32> to vector<8x16xf32>
    %137 = vector.extract_strided_slice %114 {offsets = [1, 0], sizes = [1, 1], strides = [1, 1]} : vector<16x3xf32> to vector<1x1xf32>
    %138 = vector.broadcast %137 : vector<1x1xf32> to vector<8x16xf32>
    %139 = arith.mulf %136, %138 : vector<8x16xf32>
    %140 = arith.addf %135, %139 : vector<8x16xf32>
    %141 = vector.extract_strided_slice %76 {offsets = [8, 0], sizes = [8, 16], strides = [1, 1]} : vector<32x16xf32> to vector<8x16xf32>
    %142 = vector.extract_strided_slice %114 {offsets = [1, 1], sizes = [1, 1], strides = [1, 1]} : vector<16x3xf32> to vector<1x1xf32>
    %143 = vector.broadcast %142 : vector<1x1xf32> to vector<8x16xf32>
    %144 = arith.mulf %141, %143 : vector<8x16xf32>
    %145 = arith.addf %140, %144 : vector<8x16xf32>
    %146 = vector.extract_strided_slice %112 {offsets = [8, 0], sizes = [8, 16], strides = [1, 1]} : vector<32x16xf32> to vector<8x16xf32>
    %147 = vector.extract_strided_slice %114 {offsets = [1, 2], sizes = [1, 1], strides = [1, 1]} : vector<16x3xf32> to vector<1x1xf32>
    %148 = vector.broadcast %147 : vector<1x1xf32> to vector<8x16xf32>
    %149 = arith.mulf %146, %148 : vector<8x16xf32>
    %150 = arith.addf %145, %149 : vector<8x16xf32>
    %151 = vector.extract_strided_slice %111 {offsets = [16, 0], sizes = [8, 16], strides = [1, 1]} : vector<32x16xf32> to vector<8x16xf32>
    %152 = vector.extract_strided_slice %114 {offsets = [2, 0], sizes = [1, 1], strides = [1, 1]} : vector<16x3xf32> to vector<1x1xf32>
    %153 = vector.broadcast %152 : vector<1x1xf32> to vector<8x16xf32>
    %154 = arith.mulf %151, %153 : vector<8x16xf32>
    %155 = arith.addf %150, %154 : vector<8x16xf32>
    %156 = vector.extract_strided_slice %76 {offsets = [16, 0], sizes = [8, 16], strides = [1, 1]} : vector<32x16xf32> to vector<8x16xf32>
    %157 = vector.extract_strided_slice %114 {offsets = [2, 1], sizes = [1, 1], strides = [1, 1]} : vector<16x3xf32> to vector<1x1xf32>
    %158 = vector.broadcast %157 : vector<1x1xf32> to vector<8x16xf32>
    %159 = arith.mulf %156, %158 : vector<8x16xf32>
    %160 = arith.addf %155, %159 : vector<8x16xf32>
    %161 = vector.extract_strided_slice %112 {offsets = [16, 0], sizes = [8, 16], strides = [1, 1]} : vector<32x16xf32> to vector<8x16xf32>
    %162 = vector.extract_strided_slice %114 {offsets = [2, 2], sizes = [1, 1], strides = [1, 1]} : vector<16x3xf32> to vector<1x1xf32>
    %163 = vector.broadcast %162 : vector<1x1xf32> to vector<8x16xf32>
    %164 = arith.mulf %161, %163 : vector<8x16xf32>
    %165 = arith.addf %160, %164 : vector<8x16xf32>
    %166 = vector.extract_strided_slice %111 {offsets = [24, 0], sizes = [8, 16], strides = [1, 1]} : vector<32x16xf32> to vector<8x16xf32>
    %167 = vector.extract_strided_slice %114 {offsets = [3, 0], sizes = [1, 1], strides = [1, 1]} : vector<16x3xf32> to vector<1x1xf32>
    %168 = vector.broadcast %167 : vector<1x1xf32> to vector<8x16xf32>
    %169 = arith.mulf %166, %168 : vector<8x16xf32>
    %170 = arith.addf %165, %169 : vector<8x16xf32>
    %171 = vector.extract_strided_slice %76 {offsets = [24, 0], sizes = [8, 16], strides = [1, 1]} : vector<32x16xf32> to vector<8x16xf32>
    %172 = vector.extract_strided_slice %114 {offsets = [3, 1], sizes = [1, 1], strides = [1, 1]} : vector<16x3xf32> to vector<1x1xf32>
    %173 = vector.broadcast %172 : vector<1x1xf32> to vector<8x16xf32>
    %174 = arith.mulf %171, %173 : vector<8x16xf32>
    %175 = arith.addf %170, %174 : vector<8x16xf32>
    %176 = vector.extract_strided_slice %112 {offsets = [24, 0], sizes = [8, 16], strides = [1, 1]} : vector<32x16xf32> to vector<8x16xf32>
    %177 = vector.extract_strided_slice %114 {offsets = [3, 2], sizes = [1, 1], strides = [1, 1]} : vector<16x3xf32> to vector<1x1xf32>
    %178 = vector.broadcast %177 : vector<1x1xf32> to vector<8x16xf32>
    %179 = arith.mulf %176, %178 : vector<8x16xf32>
    %180 = arith.addf %175, %179 : vector<8x16xf32>
    %181 = vector.extract_strided_slice %76 {offsets = [0, 0], sizes = [8, 16], strides = [1, 1]} : vector<32x16xf32> to vector<8x16xf32>
    %182 = arith.mulf %181, %180 : vector<8x16xf32>
    %cst_38 = arith.constant 0.000000e+00 : f32
    %183 = vector.broadcast %cst_38 : f32 to vector<8x16xf32>
    %184 = vector.extract_strided_slice %116 {offsets = [0, 1], sizes = [1, 1], strides = [1, 1]} : vector<1x4xf32> to vector<1x1xf32>
    %185 = vector.broadcast %184 : vector<1x1xf32> to vector<8x16xf32>
    %186 = arith.addf %183, %185 : vector<8x16xf32>
    %187 = vector.extract_strided_slice %111 {offsets = [0, 0], sizes = [8, 16], strides = [1, 1]} : vector<32x16xf32> to vector<8x16xf32>
    %188 = vector.extract_strided_slice %114 {offsets = [4, 0], sizes = [1, 1], strides = [1, 1]} : vector<16x3xf32> to vector<1x1xf32>
    %189 = vector.broadcast %188 : vector<1x1xf32> to vector<8x16xf32>
    %190 = arith.mulf %187, %189 : vector<8x16xf32>
    %191 = arith.addf %186, %190 : vector<8x16xf32>
    %192 = vector.extract_strided_slice %76 {offsets = [0, 0], sizes = [8, 16], strides = [1, 1]} : vector<32x16xf32> to vector<8x16xf32>
    %193 = vector.extract_strided_slice %114 {offsets = [4, 1], sizes = [1, 1], strides = [1, 1]} : vector<16x3xf32> to vector<1x1xf32>
    %194 = vector.broadcast %193 : vector<1x1xf32> to vector<8x16xf32>
    %195 = arith.mulf %192, %194 : vector<8x16xf32>
    %196 = arith.addf %191, %195 : vector<8x16xf32>
    %197 = vector.extract_strided_slice %112 {offsets = [0, 0], sizes = [8, 16], strides = [1, 1]} : vector<32x16xf32> to vector<8x16xf32>
    %198 = vector.extract_strided_slice %114 {offsets = [4, 2], sizes = [1, 1], strides = [1, 1]} : vector<16x3xf32> to vector<1x1xf32>
    %199 = vector.broadcast %198 : vector<1x1xf32> to vector<8x16xf32>
    %200 = arith.mulf %197, %199 : vector<8x16xf32>
    %201 = arith.addf %196, %200 : vector<8x16xf32>
    %202 = vector.extract_strided_slice %111 {offsets = [8, 0], sizes = [8, 16], strides = [1, 1]} : vector<32x16xf32> to vector<8x16xf32>
    %203 = vector.extract_strided_slice %114 {offsets = [5, 0], sizes = [1, 1], strides = [1, 1]} : vector<16x3xf32> to vector<1x1xf32>
    %204 = vector.broadcast %203 : vector<1x1xf32> to vector<8x16xf32>
    %205 = arith.mulf %202, %204 : vector<8x16xf32>
    %206 = arith.addf %201, %205 : vector<8x16xf32>
    %207 = vector.extract_strided_slice %76 {offsets = [8, 0], sizes = [8, 16], strides = [1, 1]} : vector<32x16xf32> to vector<8x16xf32>
    %208 = vector.extract_strided_slice %114 {offsets = [5, 1], sizes = [1, 1], strides = [1, 1]} : vector<16x3xf32> to vector<1x1xf32>
    %209 = vector.broadcast %208 : vector<1x1xf32> to vector<8x16xf32>
    %210 = arith.mulf %207, %209 : vector<8x16xf32>
    %211 = arith.addf %206, %210 : vector<8x16xf32>
    %212 = vector.extract_strided_slice %112 {offsets = [8, 0], sizes = [8, 16], strides = [1, 1]} : vector<32x16xf32> to vector<8x16xf32>
    %213 = vector.extract_strided_slice %114 {offsets = [5, 2], sizes = [1, 1], strides = [1, 1]} : vector<16x3xf32> to vector<1x1xf32>
    %214 = vector.broadcast %213 : vector<1x1xf32> to vector<8x16xf32>
    %215 = arith.mulf %212, %214 : vector<8x16xf32>
    %216 = arith.addf %211, %215 : vector<8x16xf32>
    %217 = vector.extract_strided_slice %111 {offsets = [16, 0], sizes = [8, 16], strides = [1, 1]} : vector<32x16xf32> to vector<8x16xf32>
    %218 = vector.extract_strided_slice %114 {offsets = [6, 0], sizes = [1, 1], strides = [1, 1]} : vector<16x3xf32> to vector<1x1xf32>
    %219 = vector.broadcast %218 : vector<1x1xf32> to vector<8x16xf32>
    %220 = arith.mulf %217, %219 : vector<8x16xf32>
    %221 = arith.addf %216, %220 : vector<8x16xf32>
    %222 = vector.extract_strided_slice %76 {offsets = [16, 0], sizes = [8, 16], strides = [1, 1]} : vector<32x16xf32> to vector<8x16xf32>
    %223 = vector.extract_strided_slice %114 {offsets = [6, 1], sizes = [1, 1], strides = [1, 1]} : vector<16x3xf32> to vector<1x1xf32>
    %224 = vector.broadcast %223 : vector<1x1xf32> to vector<8x16xf32>
    %225 = arith.mulf %222, %224 : vector<8x16xf32>
    %226 = arith.addf %221, %225 : vector<8x16xf32>
    %227 = vector.extract_strided_slice %112 {offsets = [16, 0], sizes = [8, 16], strides = [1, 1]} : vector<32x16xf32> to vector<8x16xf32>
    %228 = vector.extract_strided_slice %114 {offsets = [6, 2], sizes = [1, 1], strides = [1, 1]} : vector<16x3xf32> to vector<1x1xf32>
    %229 = vector.broadcast %228 : vector<1x1xf32> to vector<8x16xf32>
    %230 = arith.mulf %227, %229 : vector<8x16xf32>
    %231 = arith.addf %226, %230 : vector<8x16xf32>
    %232 = vector.extract_strided_slice %111 {offsets = [24, 0], sizes = [8, 16], strides = [1, 1]} : vector<32x16xf32> to vector<8x16xf32>
    %233 = vector.extract_strided_slice %114 {offsets = [7, 0], sizes = [1, 1], strides = [1, 1]} : vector<16x3xf32> to vector<1x1xf32>
    %234 = vector.broadcast %233 : vector<1x1xf32> to vector<8x16xf32>
    %235 = arith.mulf %232, %234 : vector<8x16xf32>
    %236 = arith.addf %231, %235 : vector<8x16xf32>
    %237 = vector.extract_strided_slice %76 {offsets = [24, 0], sizes = [8, 16], strides = [1, 1]} : vector<32x16xf32> to vector<8x16xf32>
    %238 = vector.extract_strided_slice %114 {offsets = [7, 1], sizes = [1, 1], strides = [1, 1]} : vector<16x3xf32> to vector<1x1xf32>
    %239 = vector.broadcast %238 : vector<1x1xf32> to vector<8x16xf32>
    %240 = arith.mulf %237, %239 : vector<8x16xf32>
    %241 = arith.addf %236, %240 : vector<8x16xf32>
    %242 = vector.extract_strided_slice %112 {offsets = [24, 0], sizes = [8, 16], strides = [1, 1]} : vector<32x16xf32> to vector<8x16xf32>
    %243 = vector.extract_strided_slice %114 {offsets = [7, 2], sizes = [1, 1], strides = [1, 1]} : vector<16x3xf32> to vector<1x1xf32>
    %244 = vector.broadcast %243 : vector<1x1xf32> to vector<8x16xf32>
    %245 = arith.mulf %242, %244 : vector<8x16xf32>
    %246 = arith.addf %241, %245 : vector<8x16xf32>
    %247 = vector.extract_strided_slice %76 {offsets = [8, 0], sizes = [8, 16], strides = [1, 1]} : vector<32x16xf32> to vector<8x16xf32>
    %248 = arith.mulf %247, %246 : vector<8x16xf32>
    %cst_39 = arith.constant 0.000000e+00 : f32
    %249 = vector.broadcast %cst_39 : f32 to vector<8x16xf32>
    %250 = vector.extract_strided_slice %116 {offsets = [0, 2], sizes = [1, 1], strides = [1, 1]} : vector<1x4xf32> to vector<1x1xf32>
    %251 = vector.broadcast %250 : vector<1x1xf32> to vector<8x16xf32>
    %252 = arith.addf %249, %251 : vector<8x16xf32>
    %253 = vector.extract_strided_slice %111 {offsets = [0, 0], sizes = [8, 16], strides = [1, 1]} : vector<32x16xf32> to vector<8x16xf32>
    %254 = vector.extract_strided_slice %114 {offsets = [8, 0], sizes = [1, 1], strides = [1, 1]} : vector<16x3xf32> to vector<1x1xf32>
    %255 = vector.broadcast %254 : vector<1x1xf32> to vector<8x16xf32>
    %256 = arith.mulf %253, %255 : vector<8x16xf32>
    %257 = arith.addf %252, %256 : vector<8x16xf32>
    %258 = vector.extract_strided_slice %76 {offsets = [0, 0], sizes = [8, 16], strides = [1, 1]} : vector<32x16xf32> to vector<8x16xf32>
    %259 = vector.extract_strided_slice %114 {offsets = [8, 1], sizes = [1, 1], strides = [1, 1]} : vector<16x3xf32> to vector<1x1xf32>
    %260 = vector.broadcast %259 : vector<1x1xf32> to vector<8x16xf32>
    %261 = arith.mulf %258, %260 : vector<8x16xf32>
    %262 = arith.addf %257, %261 : vector<8x16xf32>
    %263 = vector.extract_strided_slice %112 {offsets = [0, 0], sizes = [8, 16], strides = [1, 1]} : vector<32x16xf32> to vector<8x16xf32>
    %264 = vector.extract_strided_slice %114 {offsets = [8, 2], sizes = [1, 1], strides = [1, 1]} : vector<16x3xf32> to vector<1x1xf32>
    %265 = vector.broadcast %264 : vector<1x1xf32> to vector<8x16xf32>
    %266 = arith.mulf %263, %265 : vector<8x16xf32>
    %267 = arith.addf %262, %266 : vector<8x16xf32>
    %268 = vector.extract_strided_slice %111 {offsets = [8, 0], sizes = [8, 16], strides = [1, 1]} : vector<32x16xf32> to vector<8x16xf32>
    %269 = vector.extract_strided_slice %114 {offsets = [9, 0], sizes = [1, 1], strides = [1, 1]} : vector<16x3xf32> to vector<1x1xf32>
    %270 = vector.broadcast %269 : vector<1x1xf32> to vector<8x16xf32>
    %271 = arith.mulf %268, %270 : vector<8x16xf32>
    %272 = arith.addf %267, %271 : vector<8x16xf32>
    %273 = vector.extract_strided_slice %76 {offsets = [8, 0], sizes = [8, 16], strides = [1, 1]} : vector<32x16xf32> to vector<8x16xf32>
    %274 = vector.extract_strided_slice %114 {offsets = [9, 1], sizes = [1, 1], strides = [1, 1]} : vector<16x3xf32> to vector<1x1xf32>
    %275 = vector.broadcast %274 : vector<1x1xf32> to vector<8x16xf32>
    %276 = arith.mulf %273, %275 : vector<8x16xf32>
    %277 = arith.addf %272, %276 : vector<8x16xf32>
    %278 = vector.extract_strided_slice %112 {offsets = [8, 0], sizes = [8, 16], strides = [1, 1]} : vector<32x16xf32> to vector<8x16xf32>
    %279 = vector.extract_strided_slice %114 {offsets = [9, 2], sizes = [1, 1], strides = [1, 1]} : vector<16x3xf32> to vector<1x1xf32>
    %280 = vector.broadcast %279 : vector<1x1xf32> to vector<8x16xf32>
    %281 = arith.mulf %278, %280 : vector<8x16xf32>
    %282 = arith.addf %277, %281 : vector<8x16xf32>
    %283 = vector.extract_strided_slice %111 {offsets = [16, 0], sizes = [8, 16], strides = [1, 1]} : vector<32x16xf32> to vector<8x16xf32>
    %284 = vector.extract_strided_slice %114 {offsets = [10, 0], sizes = [1, 1], strides = [1, 1]} : vector<16x3xf32> to vector<1x1xf32>
    %285 = vector.broadcast %284 : vector<1x1xf32> to vector<8x16xf32>
    %286 = arith.mulf %283, %285 : vector<8x16xf32>
    %287 = arith.addf %282, %286 : vector<8x16xf32>
    %288 = vector.extract_strided_slice %76 {offsets = [16, 0], sizes = [8, 16], strides = [1, 1]} : vector<32x16xf32> to vector<8x16xf32>
    %289 = vector.extract_strided_slice %114 {offsets = [10, 1], sizes = [1, 1], strides = [1, 1]} : vector<16x3xf32> to vector<1x1xf32>
    %290 = vector.broadcast %289 : vector<1x1xf32> to vector<8x16xf32>
    %291 = arith.mulf %288, %290 : vector<8x16xf32>
    %292 = arith.addf %287, %291 : vector<8x16xf32>
    %293 = vector.extract_strided_slice %112 {offsets = [16, 0], sizes = [8, 16], strides = [1, 1]} : vector<32x16xf32> to vector<8x16xf32>
    %294 = vector.extract_strided_slice %114 {offsets = [10, 2], sizes = [1, 1], strides = [1, 1]} : vector<16x3xf32> to vector<1x1xf32>
    %295 = vector.broadcast %294 : vector<1x1xf32> to vector<8x16xf32>
    %296 = arith.mulf %293, %295 : vector<8x16xf32>
    %297 = arith.addf %292, %296 : vector<8x16xf32>
    %298 = vector.extract_strided_slice %111 {offsets = [24, 0], sizes = [8, 16], strides = [1, 1]} : vector<32x16xf32> to vector<8x16xf32>
    %299 = vector.extract_strided_slice %114 {offsets = [11, 0], sizes = [1, 1], strides = [1, 1]} : vector<16x3xf32> to vector<1x1xf32>
    %300 = vector.broadcast %299 : vector<1x1xf32> to vector<8x16xf32>
    %301 = arith.mulf %298, %300 : vector<8x16xf32>
    %302 = arith.addf %297, %301 : vector<8x16xf32>
    %303 = vector.extract_strided_slice %76 {offsets = [24, 0], sizes = [8, 16], strides = [1, 1]} : vector<32x16xf32> to vector<8x16xf32>
    %304 = vector.extract_strided_slice %114 {offsets = [11, 1], sizes = [1, 1], strides = [1, 1]} : vector<16x3xf32> to vector<1x1xf32>
    %305 = vector.broadcast %304 : vector<1x1xf32> to vector<8x16xf32>
    %306 = arith.mulf %303, %305 : vector<8x16xf32>
    %307 = arith.addf %302, %306 : vector<8x16xf32>
    %308 = vector.extract_strided_slice %112 {offsets = [24, 0], sizes = [8, 16], strides = [1, 1]} : vector<32x16xf32> to vector<8x16xf32>
    %309 = vector.extract_strided_slice %114 {offsets = [11, 2], sizes = [1, 1], strides = [1, 1]} : vector<16x3xf32> to vector<1x1xf32>
    %310 = vector.broadcast %309 : vector<1x1xf32> to vector<8x16xf32>
    %311 = arith.mulf %308, %310 : vector<8x16xf32>
    %312 = arith.addf %307, %311 : vector<8x16xf32>
    %313 = vector.extract_strided_slice %76 {offsets = [16, 0], sizes = [8, 16], strides = [1, 1]} : vector<32x16xf32> to vector<8x16xf32>
    %314 = arith.mulf %313, %312 : vector<8x16xf32>
    %cst_40 = arith.constant 0.000000e+00 : f32
    %315 = vector.broadcast %cst_40 : f32 to vector<8x16xf32>
    %316 = vector.extract_strided_slice %116 {offsets = [0, 3], sizes = [1, 1], strides = [1, 1]} : vector<1x4xf32> to vector<1x1xf32>
    %317 = vector.broadcast %316 : vector<1x1xf32> to vector<8x16xf32>
    %318 = arith.addf %315, %317 : vector<8x16xf32>
    %319 = vector.extract_strided_slice %111 {offsets = [0, 0], sizes = [8, 16], strides = [1, 1]} : vector<32x16xf32> to vector<8x16xf32>
    %320 = vector.extract_strided_slice %114 {offsets = [12, 0], sizes = [1, 1], strides = [1, 1]} : vector<16x3xf32> to vector<1x1xf32>
    %321 = vector.broadcast %320 : vector<1x1xf32> to vector<8x16xf32>
    %322 = arith.mulf %319, %321 : vector<8x16xf32>
    %323 = arith.addf %318, %322 : vector<8x16xf32>
    %324 = vector.extract_strided_slice %76 {offsets = [0, 0], sizes = [8, 16], strides = [1, 1]} : vector<32x16xf32> to vector<8x16xf32>
    %325 = vector.extract_strided_slice %114 {offsets = [12, 1], sizes = [1, 1], strides = [1, 1]} : vector<16x3xf32> to vector<1x1xf32>
    %326 = vector.broadcast %325 : vector<1x1xf32> to vector<8x16xf32>
    %327 = arith.mulf %324, %326 : vector<8x16xf32>
    %328 = arith.addf %323, %327 : vector<8x16xf32>
    %329 = vector.extract_strided_slice %112 {offsets = [0, 0], sizes = [8, 16], strides = [1, 1]} : vector<32x16xf32> to vector<8x16xf32>
    %330 = vector.extract_strided_slice %114 {offsets = [12, 2], sizes = [1, 1], strides = [1, 1]} : vector<16x3xf32> to vector<1x1xf32>
    %331 = vector.broadcast %330 : vector<1x1xf32> to vector<8x16xf32>
    %332 = arith.mulf %329, %331 : vector<8x16xf32>
    %333 = arith.addf %328, %332 : vector<8x16xf32>
    %334 = vector.extract_strided_slice %111 {offsets = [8, 0], sizes = [8, 16], strides = [1, 1]} : vector<32x16xf32> to vector<8x16xf32>
    %335 = vector.extract_strided_slice %114 {offsets = [13, 0], sizes = [1, 1], strides = [1, 1]} : vector<16x3xf32> to vector<1x1xf32>
    %336 = vector.broadcast %335 : vector<1x1xf32> to vector<8x16xf32>
    %337 = arith.mulf %334, %336 : vector<8x16xf32>
    %338 = arith.addf %333, %337 : vector<8x16xf32>
    %339 = vector.extract_strided_slice %76 {offsets = [8, 0], sizes = [8, 16], strides = [1, 1]} : vector<32x16xf32> to vector<8x16xf32>
    %340 = vector.extract_strided_slice %114 {offsets = [13, 1], sizes = [1, 1], strides = [1, 1]} : vector<16x3xf32> to vector<1x1xf32>
    %341 = vector.broadcast %340 : vector<1x1xf32> to vector<8x16xf32>
    %342 = arith.mulf %339, %341 : vector<8x16xf32>
    %343 = arith.addf %338, %342 : vector<8x16xf32>
    %344 = vector.extract_strided_slice %112 {offsets = [8, 0], sizes = [8, 16], strides = [1, 1]} : vector<32x16xf32> to vector<8x16xf32>
    %345 = vector.extract_strided_slice %114 {offsets = [13, 2], sizes = [1, 1], strides = [1, 1]} : vector<16x3xf32> to vector<1x1xf32>
    %346 = vector.broadcast %345 : vector<1x1xf32> to vector<8x16xf32>
    %347 = arith.mulf %344, %346 : vector<8x16xf32>
    %348 = arith.addf %343, %347 : vector<8x16xf32>
    %349 = vector.extract_strided_slice %111 {offsets = [16, 0], sizes = [8, 16], strides = [1, 1]} : vector<32x16xf32> to vector<8x16xf32>
    %350 = vector.extract_strided_slice %114 {offsets = [14, 0], sizes = [1, 1], strides = [1, 1]} : vector<16x3xf32> to vector<1x1xf32>
    %351 = vector.broadcast %350 : vector<1x1xf32> to vector<8x16xf32>
    %352 = arith.mulf %349, %351 : vector<8x16xf32>
    %353 = arith.addf %348, %352 : vector<8x16xf32>
    %354 = vector.extract_strided_slice %76 {offsets = [16, 0], sizes = [8, 16], strides = [1, 1]} : vector<32x16xf32> to vector<8x16xf32>
    %355 = vector.extract_strided_slice %114 {offsets = [14, 1], sizes = [1, 1], strides = [1, 1]} : vector<16x3xf32> to vector<1x1xf32>
    %356 = vector.broadcast %355 : vector<1x1xf32> to vector<8x16xf32>
    %357 = arith.mulf %354, %356 : vector<8x16xf32>
    %358 = arith.addf %353, %357 : vector<8x16xf32>
    %359 = vector.extract_strided_slice %112 {offsets = [16, 0], sizes = [8, 16], strides = [1, 1]} : vector<32x16xf32> to vector<8x16xf32>
    %360 = vector.extract_strided_slice %114 {offsets = [14, 2], sizes = [1, 1], strides = [1, 1]} : vector<16x3xf32> to vector<1x1xf32>
    %361 = vector.broadcast %360 : vector<1x1xf32> to vector<8x16xf32>
    %362 = arith.mulf %359, %361 : vector<8x16xf32>
    %363 = arith.addf %358, %362 : vector<8x16xf32>
    %364 = vector.extract_strided_slice %111 {offsets = [24, 0], sizes = [8, 16], strides = [1, 1]} : vector<32x16xf32> to vector<8x16xf32>
    %365 = vector.extract_strided_slice %114 {offsets = [15, 0], sizes = [1, 1], strides = [1, 1]} : vector<16x3xf32> to vector<1x1xf32>
    %366 = vector.broadcast %365 : vector<1x1xf32> to vector<8x16xf32>
    %367 = arith.mulf %364, %366 : vector<8x16xf32>
    %368 = arith.addf %363, %367 : vector<8x16xf32>
    %369 = vector.extract_strided_slice %76 {offsets = [24, 0], sizes = [8, 16], strides = [1, 1]} : vector<32x16xf32> to vector<8x16xf32>
    %370 = vector.extract_strided_slice %114 {offsets = [15, 1], sizes = [1, 1], strides = [1, 1]} : vector<16x3xf32> to vector<1x1xf32>
    %371 = vector.broadcast %370 : vector<1x1xf32> to vector<8x16xf32>
    %372 = arith.mulf %369, %371 : vector<8x16xf32>
    %373 = arith.addf %368, %372 : vector<8x16xf32>
    %374 = vector.extract_strided_slice %112 {offsets = [24, 0], sizes = [8, 16], strides = [1, 1]} : vector<32x16xf32> to vector<8x16xf32>
    %375 = vector.extract_strided_slice %114 {offsets = [15, 2], sizes = [1, 1], strides = [1, 1]} : vector<16x3xf32> to vector<1x1xf32>
    %376 = vector.broadcast %375 : vector<1x1xf32> to vector<8x16xf32>
    %377 = arith.mulf %374, %376 : vector<8x16xf32>
    %378 = arith.addf %373, %377 : vector<8x16xf32>
    %379 = vector.extract_strided_slice %76 {offsets = [24, 0], sizes = [8, 16], strides = [1, 1]} : vector<32x16xf32> to vector<8x16xf32>
    %380 = arith.mulf %379, %378 : vector<8x16xf32>
    %cst_41 = arith.constant 0.000000e+00 : f32
    %381 = vector.broadcast %cst_41 : f32 to vector<8x16xf32>
    %382 = vector.extract_strided_slice %110 {offsets = [0, 0], sizes = [8, 1], strides = [1, 1]} : vector<32x2xf32> to vector<8x1xf32>
    %383 = vector.broadcast %382 : vector<8x1xf32> to vector<8x16xf32>
    %384 = arith.mulf %182, %383 : vector<8x16xf32>
    %385 = arith.addf %381, %384 : vector<8x16xf32>
    %386 = vector.extract_strided_slice %110 {offsets = [8, 0], sizes = [8, 1], strides = [1, 1]} : vector<32x2xf32> to vector<8x1xf32>
    %387 = vector.broadcast %386 : vector<8x1xf32> to vector<8x16xf32>
    %388 = arith.mulf %248, %387 : vector<8x16xf32>
    %389 = arith.addf %385, %388 : vector<8x16xf32>
    %390 = vector.extract_strided_slice %110 {offsets = [16, 0], sizes = [8, 1], strides = [1, 1]} : vector<32x2xf32> to vector<8x1xf32>
    %391 = vector.broadcast %390 : vector<8x1xf32> to vector<8x16xf32>
    %392 = arith.mulf %314, %391 : vector<8x16xf32>
    %393 = arith.addf %389, %392 : vector<8x16xf32>
    %394 = vector.extract_strided_slice %110 {offsets = [24, 0], sizes = [8, 1], strides = [1, 1]} : vector<32x2xf32> to vector<8x1xf32>
    %395 = vector.broadcast %394 : vector<8x1xf32> to vector<8x16xf32>
    %396 = arith.mulf %380, %395 : vector<8x16xf32>
    %397 = arith.addf %393, %396 : vector<8x16xf32>
    %cst_42 = arith.constant 0.000000e+00 : f32
    %398 = vector.broadcast %cst_42 : f32 to vector<8x16xf32>
    %399 = vector.extract_strided_slice %110 {offsets = [0, 1], sizes = [8, 1], strides = [1, 1]} : vector<32x2xf32> to vector<8x1xf32>
    %400 = vector.broadcast %399 : vector<8x1xf32> to vector<8x16xf32>
    %401 = arith.mulf %182, %400 : vector<8x16xf32>
    %402 = arith.addf %398, %401 : vector<8x16xf32>
    %403 = vector.extract_strided_slice %110 {offsets = [8, 1], sizes = [8, 1], strides = [1, 1]} : vector<32x2xf32> to vector<8x1xf32>
    %404 = vector.broadcast %403 : vector<8x1xf32> to vector<8x16xf32>
    %405 = arith.mulf %248, %404 : vector<8x16xf32>
    %406 = arith.addf %402, %405 : vector<8x16xf32>
    %407 = vector.extract_strided_slice %110 {offsets = [16, 1], sizes = [8, 1], strides = [1, 1]} : vector<32x2xf32> to vector<8x1xf32>
    %408 = vector.broadcast %407 : vector<8x1xf32> to vector<8x16xf32>
    %409 = arith.mulf %314, %408 : vector<8x16xf32>
    %410 = arith.addf %406, %409 : vector<8x16xf32>
    %411 = vector.extract_strided_slice %110 {offsets = [24, 1], sizes = [8, 1], strides = [1, 1]} : vector<32x2xf32> to vector<8x1xf32>
    %412 = vector.broadcast %411 : vector<8x1xf32> to vector<8x16xf32>
    %413 = arith.mulf %380, %412 : vector<8x16xf32>
    %414 = arith.addf %410, %413 : vector<8x16xf32>
    %c0_43 = arith.constant 0 : index
    %c0_44 = arith.constant 0 : index
    %c0_45 = arith.constant 0 : index
    %c0_46 = arith.constant 0 : index
    %415 = vector.load %arg10[%c0_43, %c0_44, %c0_45, %c0_46] : memref<1x2x16x16xf32, #tpu.memory_space<vmem>>, vector<1x1x16x16xf32>
    %416 = vector.shape_cast %415 : vector<1x1x16x16xf32> to vector<16x16xf32>
    %417 = arith.truncf %397 : vector<8x16xf32> to vector<8x16xbf16>
    %418 = arith.truncf %416 : vector<16x16xf32> to vector<16x16xbf16>
    %cst_47 = arith.constant dense<0.000000e+00> : vector<8x16xf32>
    %419 = tpu.matmul %417, %418, %cst_47 {dimension_numbers = #tpu.dot_dimension_numbers<[1], [0], [0], [1], [0, 0, 1, 1], [], []>} : vector<8x16xbf16>, vector<16x16xbf16>, vector<8x16xf32> -> vector<8x16xf32>
    %c0_48 = arith.constant 0 : index
    %c0_49 = arith.constant 0 : index
    %c0_50 = arith.constant 0 : index
    %c0_51 = arith.constant 0 : index
    %420 = vector.load %arg11[%c0_48, %c0_49, %c0_50, %c0_51] : memref<1x2x1x16xf32, #tpu.memory_space<vmem>>, vector<1x1x1x16xf32>
    %421 = vector.shape_cast %420 : vector<1x1x1x16xf32> to vector<1x16xf32>
    %422 = vector.broadcast %421 : vector<1x16xf32> to vector<8x16xf32>
    %423 = arith.addf %419, %422 : vector<8x16xf32>
    %cst_52 = arith.constant 0.999994993 : f32
    %424 = vector.broadcast %cst_52 : f32 to vector<8x16xf32>
    %425 = arith.mulf %423, %424 : vector<8x16xf32>
    %cst_53 = arith.constant 0.000000e+00 : f32
    %426 = vector.broadcast %cst_53 : f32 to vector<8x16xf32>
    %427 = arith.cmpf ogt, %425, %426 : vector<8x16xf32>
    %cst_54 = arith.constant 0.00999999977 : f32
    %428 = vector.broadcast %cst_54 : f32 to vector<8x16xf32>
    %429 = arith.mulf %428, %425 : vector<8x16xf32>
    %430 = arith.select %427, %425, %429 : vector<8x16xi1>, vector<8x16xf32>
    %c0_55 = arith.constant 0 : index
    %c0_56 = arith.constant 0 : index
    %c0_57 = arith.constant 0 : index
    %c0_58 = arith.constant 0 : index
    %431 = vector.load %arg12[%c0_55, %c0_56, %c0_57, %c0_58] : memref<1x2x16x16xf32, #tpu.memory_space<vmem>>, vector<1x1x16x16xf32>
    %432 = vector.shape_cast %431 : vector<1x1x16x16xf32> to vector<16x16xf32>
    %433 = arith.truncf %430 : vector<8x16xf32> to vector<8x16xbf16>
    %434 = arith.truncf %432 : vector<16x16xf32> to vector<16x16xbf16>
    %cst_59 = arith.constant dense<0.000000e+00> : vector<8x16xf32>
    %435 = tpu.matmul %433, %434, %cst_59 {dimension_numbers = #tpu.dot_dimension_numbers<[1], [0], [0], [1], [0, 0, 1, 1], [], []>} : vector<8x16xbf16>, vector<16x16xbf16>, vector<8x16xf32> -> vector<8x16xf32>
    %c0_60 = arith.constant 0 : index
    %c0_61 = arith.constant 0 : index
    %c0_62 = arith.constant 0 : index
    %c0_63 = arith.constant 0 : index
    %436 = vector.load %arg13[%c0_60, %c0_61, %c0_62, %c0_63] : memref<1x2x1x16xf32, #tpu.memory_space<vmem>>, vector<1x1x1x16xf32>
    %437 = vector.shape_cast %436 : vector<1x1x1x16xf32> to vector<1x16xf32>
    %438 = vector.broadcast %437 : vector<1x16xf32> to vector<8x16xf32>
    %439 = arith.addf %435, %438 : vector<8x16xf32>
    %cst_64 = arith.constant 0.999994993 : f32
    %440 = vector.broadcast %cst_64 : f32 to vector<8x16xf32>
    %441 = arith.mulf %439, %440 : vector<8x16xf32>
    %cst_65 = arith.constant 0.000000e+00 : f32
    %442 = vector.broadcast %cst_65 : f32 to vector<8x16xf32>
    %443 = arith.cmpf ogt, %441, %442 : vector<8x16xf32>
    %cst_66 = arith.constant 0.00999999977 : f32
    %444 = vector.broadcast %cst_66 : f32 to vector<8x16xf32>
    %445 = arith.mulf %444, %441 : vector<8x16xf32>
    %446 = arith.select %443, %441, %445 : vector<8x16xi1>, vector<8x16xf32>
    %c0_67 = arith.constant 0 : index
    %c0_68 = arith.constant 0 : index
    %c0_69 = arith.constant 0 : index
    %c0_70 = arith.constant 0 : index
    %447 = vector.load %arg14[%c0_67, %c0_68, %c0_69, %c0_70] : memref<1x2x8x16xf32, #tpu.memory_space<vmem>>, vector<1x1x8x16xf32>
    %448 = vector.shape_cast %447 : vector<1x1x8x16xf32> to vector<8x16xf32>
    %449 = vector.shape_cast %446 : vector<8x16xf32> to vector<1x1x8x16xf32>
    tpu.vector_store %arg14[%c0_67, %c0_68, %c0_69, %c0_70], %449 {strides = array<i32>} : memref<1x2x8x16xf32, #tpu.memory_space<vmem>>, vector<1x1x8x16xf32>,
    %c0_71 = arith.constant 0 : index
    %c1 = arith.constant 1 : index
    %c0_72 = arith.constant 0 : index
    %c0_73 = arith.constant 0 : index
    %450 = vector.load %arg10[%c0_71, %c1, %c0_72, %c0_73] : memref<1x2x16x16xf32, #tpu.memory_space<vmem>>, vector<1x1x16x16xf32>
    %451 = vector.shape_cast %450 : vector<1x1x16x16xf32> to vector<16x16xf32>
    %452 = arith.truncf %414 : vector<8x16xf32> to vector<8x16xbf16>
    %453 = arith.truncf %451 : vector<16x16xf32> to vector<16x16xbf16>
    %cst_74 = arith.constant dense<0.000000e+00> : vector<8x16xf32>
    %454 = tpu.matmul %452, %453, %cst_74 {dimension_numbers = #tpu.dot_dimension_numbers<[1], [0], [0], [1], [0, 0, 1, 1], [], []>} : vector<8x16xbf16>, vector<16x16xbf16>, vector<8x16xf32> -> vector<8x16xf32>
    %c0_75 = arith.constant 0 : index
    %c1_76 = arith.constant 1 : index
    %c0_77 = arith.constant 0 : index
    %c0_78 = arith.constant 0 : index
    %455 = vector.load %arg11[%c0_75, %c1_76, %c0_77, %c0_78] : memref<1x2x1x16xf32, #tpu.memory_space<vmem>>, vector<1x1x1x16xf32>
    %456 = vector.shape_cast %455 : vector<1x1x1x16xf32> to vector<1x16xf32>
    %457 = vector.broadcast %456 : vector<1x16xf32> to vector<8x16xf32>
    %458 = arith.addf %454, %457 : vector<8x16xf32>
    %cst_79 = arith.constant 0.999994993 : f32
    %459 = vector.broadcast %cst_79 : f32 to vector<8x16xf32>
    %460 = arith.mulf %458, %459 : vector<8x16xf32>
    %cst_80 = arith.constant 0.000000e+00 : f32
    %461 = vector.broadcast %cst_80 : f32 to vector<8x16xf32>
    %462 = arith.cmpf ogt, %460, %461 : vector<8x16xf32>
    %cst_81 = arith.constant 0.00999999977 : f32
    %463 = vector.broadcast %cst_81 : f32 to vector<8x16xf32>
    %464 = arith.mulf %463, %460 : vector<8x16xf32>
    %465 = arith.select %462, %460, %464 : vector<8x16xi1>, vector<8x16xf32>
    %c0_82 = arith.constant 0 : index
    %c1_83 = arith.constant 1 : index
    %c0_84 = arith.constant 0 : index
    %c0_85 = arith.constant 0 : index
    %466 = vector.load %arg12[%c0_82, %c1_83, %c0_84, %c0_85] : memref<1x2x16x16xf32, #tpu.memory_space<vmem>>, vector<1x1x16x16xf32>
    %467 = vector.shape_cast %466 : vector<1x1x16x16xf32> to vector<16x16xf32>
    %468 = arith.truncf %465 : vector<8x16xf32> to vector<8x16xbf16>
    %469 = arith.truncf %467 : vector<16x16xf32> to vector<16x16xbf16>
    %cst_86 = arith.constant dense<0.000000e+00> : vector<8x16xf32>
    %470 = tpu.matmul %468, %469, %cst_86 {dimension_numbers = #tpu.dot_dimension_numbers<[1], [0], [0], [1], [0, 0, 1, 1], [], []>} : vector<8x16xbf16>, vector<16x16xbf16>, vector<8x16xf32> -> vector<8x16xf32>
    %c0_87 = arith.constant 0 : index
    %c1_88 = arith.constant 1 : index
    %c0_89 = arith.constant 0 : index
    %c0_90 = arith.constant 0 : index
    %471 = vector.load %arg13[%c0_87, %c1_88, %c0_89, %c0_90] : memref<1x2x1x16xf32, #tpu.memory_space<vmem>>, vector<1x1x1x16xf32>
    %472 = vector.shape_cast %471 : vector<1x1x1x16xf32> to vector<1x16xf32>
    %473 = vector.broadcast %472 : vector<1x16xf32> to vector<8x16xf32>
    %474 = arith.addf %470, %473 : vector<8x16xf32>
    %cst_91 = arith.constant 0.999994993 : f32
    %475 = vector.broadcast %cst_91 : f32 to vector<8x16xf32>
    %476 = arith.mulf %474, %475 : vector<8x16xf32>
    %cst_92 = arith.constant 0.000000e+00 : f32
    %477 = vector.broadcast %cst_92 : f32 to vector<8x16xf32>
    %478 = arith.cmpf ogt, %476, %477 : vector<8x16xf32>
    %cst_93 = arith.constant 0.00999999977 : f32
    %479 = vector.broadcast %cst_93 : f32 to vector<8x16xf32>
    %480 = arith.mulf %479, %476 : vector<8x16xf32>
    %481 = arith.select %478, %476, %480 : vector<8x16xi1>, vector<8x16xf32>
    %c0_94 = arith.constant 0 : index
    %c1_95 = arith.constant 1 : index
    %c0_96 = arith.constant 0 : index
    %c0_97 = arith.constant 0 : index
    %482 = vector.load %arg14[%c0_94, %c1_95, %c0_96, %c0_97] : memref<1x2x8x16xf32, #tpu.memory_space<vmem>>, vector<1x1x8x16xf32>
    %483 = vector.shape_cast %482 : vector<1x1x8x16xf32> to vector<8x16xf32>
    %484 = vector.shape_cast %481 : vector<8x16xf32> to vector<1x1x8x16xf32>
    tpu.vector_store %arg14[%c0_94, %c1_95, %c0_96, %c0_97], %484 {strides = array<i32>} : memref<1x2x8x16xf32, #tpu.memory_space<vmem>>, vector<1x1x8x16xf32>,
    return
  }
  func.func @transform_0(%arg0: i32) -> (i32, i32, i32) {
    %c0_i32 = arith.constant 0 : i32
    %c0_i32_0 = arith.constant 0 : i32
    %c0_i32_1 = arith.constant 0 : i32
    return %arg0, %c0_i32, %c0_i32_0 : i32, i32, i32
  }
  func.func @transform_1(%arg0: i32) -> (i32, i32, i32) {
    %c0_i32 = arith.constant 0 : i32
    %c0_i32_0 = arith.constant 0 : i32
    %c0_i32_1 = arith.constant 0 : i32
    return %arg0, %c0_i32, %c0_i32_0 : i32, i32, i32
  }
  func.func @transform_2(%arg0: i32) -> (i32, i32, i32) {
    %c0_i32 = arith.constant 0 : i32
    %c0_i32_0 = arith.constant 0 : i32
    %c0_i32_1 = arith.constant 0 : i32
    return %arg0, %c0_i32, %c0_i32_0 : i32, i32, i32
  }
  func.func @transform_3(%arg0: i32) -> (i32, i32, i32) {
    %c0_i32 = arith.constant 0 : i32
    %c0_i32_0 = arith.constant 0 : i32
    %c0_i32_1 = arith.constant 0 : i32
    return %arg0, %c0_i32, %c0_i32_0 : i32, i32, i32
  }
  func.func @transform_4(%arg0: i32) -> (i32, i32, i32) {
    %c0_i32 = arith.constant 0 : i32
    %c0_i32_0 = arith.constant 0 : i32
    %c0_i32_1 = arith.constant 0 : i32
    return %arg0, %c0_i32, %c0_i32_0 : i32, i32, i32
  }
  func.func @transform_5(%arg0: i32) -> (i32, i32, i32) {
    %c0_i32 = arith.constant 0 : i32
    %c0_i32_0 = arith.constant 0 : i32
    %c0_i32_1 = arith.constant 0 : i32
    return %arg0, %c0_i32, %c0_i32_0 : i32, i32, i32
  }
  func.func @transform_6(%arg0: i32) -> (i32, i32, i32) {
    %c0_i32 = arith.constant 0 : i32
    %c0_i32_0 = arith.constant 0 : i32
    %c0_i32_1 = arith.constant 0 : i32
    return %arg0, %c0_i32, %c0_i32_0 : i32, i32, i32
  }
  func.func @transform_7(%arg0: i32) -> (i32, i32, i32) {
    %c0_i32 = arith.constant 0 : i32
    %c0_i32_0 = arith.constant 0 : i32
    %c0_i32_1 = arith.constant 0 : i32
    return %arg0, %c0_i32, %c0_i32_0 : i32, i32, i32
  }
  func.func @transform_8(%arg0: i32) -> (i32, i32, i32) {
    %c0_i32 = arith.constant 0 : i32
    %c0_i32_0 = arith.constant 0 : i32
    %c0_i32_1 = arith.constant 0 : i32
    return %arg0, %c0_i32, %c0_i32_0 : i32, i32, i32
  }
  func.func @transform_9(%arg0: i32) -> (i32, i32, i32, i32) {
    %c0_i32 = arith.constant 0 : i32
    %c0_i32_0 = arith.constant 0 : i32
    %c0_i32_1 = arith.constant 0 : i32
    %c0_i32_2 = arith.constant 0 : i32
    return %arg0, %c0_i32, %c0_i32_0, %c0_i32_1 : i32, i32, i32, i32
  }
  func.func @transform_10(%arg0: i32) -> (i32, i32, i32, i32) {
    %c0_i32 = arith.constant 0 : i32
    %c0_i32_0 = arith.constant 0 : i32
    %c0_i32_1 = arith.constant 0 : i32
    %c0_i32_2 = arith.constant 0 : i32
    return %arg0, %c0_i32, %c0_i32_0, %c0_i32_1 : i32, i32, i32, i32
  }
  func.func @transform_11(%arg0: i32) -> (i32, i32, i32, i32) {
    %c0_i32 = arith.constant 0 : i32
    %c0_i32_0 = arith.constant 0 : i32
    %c0_i32_1 = arith.constant 0 : i32
    %c0_i32_2 = arith.constant 0 : i32
    return %arg0, %c0_i32, %c0_i32_0, %c0_i32_1 : i32, i32, i32, i32
  }
  func.func @transform_12(%arg0: i32) -> (i32, i32, i32, i32) {
    %c0_i32 = arith.constant 0 : i32
    %c0_i32_0 = arith.constant 0 : i32
    %c0_i32_1 = arith.constant 0 : i32
    %c0_i32_2 = arith.constant 0 : i32
    return %arg0, %c0_i32, %c0_i32_0, %c0_i32_1 : i32, i32, i32, i32
  }
  func.func @transform_13(%arg0: i32) -> (i32, i32, i32, i32) {
    %c0_i32 = arith.constant 0 : i32
    %c0_i32_0 = arith.constant 0 : i32
    %c0_i32_1 = arith.constant 0 : i32
    %c0_i32_2 = arith.constant 0 : i32
    return %arg0, %c0_i32, %c0_i32_0, %c0_i32_1 : i32, i32, i32, i32
  }
}

module attributes {stable_mosaic.version = 11 : i64} {
  func.func @_leaf_mcd_kernel(%arg0: i32, %arg1: memref<1x8x16xf32, #tpu.memory_space<vmem>>, %arg2: memref<1x4x3xf32, #tpu.memory_space<vmem>>, %arg3: memref<1x1x4xf32, #tpu.memory_space<vmem>>, %arg4: memref<1x4x8x16xf32, #tpu.memory_space<vmem>>) attributes {dimension_semantics = [#tpu.dimension_semantics<parallel>], iteration_bounds = array<i64: 4>, scalar_prefetch = 0 : i64, scratch_operands = 0 : i64, tpu.core_type = #tpu.core_type<tc>, window_params = [{transform_indices = @transform_0, window_bounds = array<i64: 1, 8, 16>}, {transform_indices = @transform_1, window_bounds = array<i64: 1, 4, 3>}, {transform_indices = @transform_2, window_bounds = array<i64: 1, 1, 4>}, {transform_indices = @transform_3, window_bounds = array<i64: 1, 4, 8, 16>}]} {
    %0 = tpu.iota {dimensions = array<i32: 0>} : vector<16x16xi32>
    %1 = tpu.iota {dimensions = array<i32: 1>} : vector<16x16xi32>
    %c1_i32 = arith.constant 1 : i32
    %2 = vector.broadcast %c1_i32 : i32 to vector<16x16xi32>
    %3 = arith.subi %1, %2 : vector<16x16xi32>
    %4 = arith.cmpi eq, %0, %3 : vector<16x16xi32>
    %5 = arith.extui %4 : vector<16x16xi1> to vector<16x16xi32>
    %6 = arith.sitofp %5 : vector<16x16xi32> to vector<16x16xf32>
    %c1_i32_0 = arith.constant 1 : i32
    %7 = vector.broadcast %c1_i32_0 : i32 to vector<16x16xi32>
    %8 = arith.addi %1, %7 : vector<16x16xi32>
    %9 = arith.cmpi eq, %0, %8 : vector<16x16xi32>
    %10 = arith.extui %9 : vector<16x16xi1> to vector<16x16xi32>
    %11 = arith.sitofp %10 : vector<16x16xi32> to vector<16x16xf32>
    %c0 = arith.constant 0 : index
    %c0_1 = arith.constant 0 : index
    %c0_2 = arith.constant 0 : index
    %12 = vector.load %arg1[%c0, %c0_1, %c0_2] : memref<1x8x16xf32, #tpu.memory_space<vmem>>, vector<1x8x16xf32>
    %13 = vector.shape_cast %12 : vector<1x8x16xf32> to vector<8x16xf32>
    %cst = arith.constant dense<0.000000e+00> : vector<8x16xf32>
    %14 = tpu.matmul %13, %6, %cst {dimension_numbers = #tpu.dot_dimension_numbers<[1], [0], [0], [1], [0, 0, 1, 1], [], []>} : vector<8x16xf32>, vector<16x16xf32>, vector<8x16xf32> -> vector<8x16xf32>
    %cst_3 = arith.constant dense<0.000000e+00> : vector<8x16xf32>
    %15 = tpu.matmul %13, %11, %cst_3 {dimension_numbers = #tpu.dot_dimension_numbers<[1], [0], [0], [1], [0, 0, 1, 1], [], []>} : vector<8x16xf32>, vector<16x16xf32>, vector<8x16xf32> -> vector<8x16xf32>
    %c0_4 = arith.constant 0 : index
    %c0_5 = arith.constant 0 : index
    %c0_6 = arith.constant 0 : index
    %16 = vector.load %arg2[%c0_4, %c0_5, %c0_6] : memref<1x4x3xf32, #tpu.memory_space<vmem>>, vector<1x4x3xf32>
    %17 = vector.shape_cast %16 : vector<1x4x3xf32> to vector<4x3xf32>
    %c0_7 = arith.constant 0 : index
    %c0_8 = arith.constant 0 : index
    %c0_9 = arith.constant 0 : index
    %18 = vector.load %arg3[%c0_7, %c0_8, %c0_9] : memref<1x1x4xf32, #tpu.memory_space<vmem>>, vector<1x1x4xf32>
    %19 = vector.shape_cast %18 : vector<1x1x4xf32> to vector<1x4xf32>
    %20 = vector.extract_strided_slice %17 {offsets = [0, 0], sizes = [1, 1], strides = [1, 1]} : vector<4x3xf32> to vector<1x1xf32>
    %21 = vector.broadcast %20 : vector<1x1xf32> to vector<8x16xf32>
    %22 = arith.mulf %14, %21 : vector<8x16xf32>
    %23 = vector.extract_strided_slice %17 {offsets = [0, 1], sizes = [1, 1], strides = [1, 1]} : vector<4x3xf32> to vector<1x1xf32>
    %24 = vector.broadcast %23 : vector<1x1xf32> to vector<8x16xf32>
    %25 = arith.mulf %13, %24 : vector<8x16xf32>
    %26 = arith.addf %22, %25 : vector<8x16xf32>
    %27 = vector.extract_strided_slice %17 {offsets = [0, 2], sizes = [1, 1], strides = [1, 1]} : vector<4x3xf32> to vector<1x1xf32>
    %28 = vector.broadcast %27 : vector<1x1xf32> to vector<8x16xf32>
    %29 = arith.mulf %15, %28 : vector<8x16xf32>
    %30 = arith.addf %26, %29 : vector<8x16xf32>
    %31 = vector.extract_strided_slice %19 {offsets = [0, 0], sizes = [1, 1], strides = [1, 1]} : vector<1x4xf32> to vector<1x1xf32>
    %32 = vector.broadcast %31 : vector<1x1xf32> to vector<8x16xf32>
    %33 = arith.addf %30, %32 : vector<8x16xf32>
    %34 = vector.extract_strided_slice %17 {offsets = [1, 0], sizes = [1, 1], strides = [1, 1]} : vector<4x3xf32> to vector<1x1xf32>
    %35 = vector.broadcast %34 : vector<1x1xf32> to vector<8x16xf32>
    %36 = arith.mulf %14, %35 : vector<8x16xf32>
    %37 = vector.extract_strided_slice %17 {offsets = [1, 1], sizes = [1, 1], strides = [1, 1]} : vector<4x3xf32> to vector<1x1xf32>
    %38 = vector.broadcast %37 : vector<1x1xf32> to vector<8x16xf32>
    %39 = arith.mulf %13, %38 : vector<8x16xf32>
    %40 = arith.addf %36, %39 : vector<8x16xf32>
    %41 = vector.extract_strided_slice %17 {offsets = [1, 2], sizes = [1, 1], strides = [1, 1]} : vector<4x3xf32> to vector<1x1xf32>
    %42 = vector.broadcast %41 : vector<1x1xf32> to vector<8x16xf32>
    %43 = arith.mulf %15, %42 : vector<8x16xf32>
    %44 = arith.addf %40, %43 : vector<8x16xf32>
    %45 = vector.extract_strided_slice %19 {offsets = [0, 1], sizes = [1, 1], strides = [1, 1]} : vector<1x4xf32> to vector<1x1xf32>
    %46 = vector.broadcast %45 : vector<1x1xf32> to vector<8x16xf32>
    %47 = arith.addf %44, %46 : vector<8x16xf32>
    %48 = vector.extract_strided_slice %17 {offsets = [2, 0], sizes = [1, 1], strides = [1, 1]} : vector<4x3xf32> to vector<1x1xf32>
    %49 = vector.broadcast %48 : vector<1x1xf32> to vector<8x16xf32>
    %50 = arith.mulf %14, %49 : vector<8x16xf32>
    %51 = vector.extract_strided_slice %17 {offsets = [2, 1], sizes = [1, 1], strides = [1, 1]} : vector<4x3xf32> to vector<1x1xf32>
    %52 = vector.broadcast %51 : vector<1x1xf32> to vector<8x16xf32>
    %53 = arith.mulf %13, %52 : vector<8x16xf32>
    %54 = arith.addf %50, %53 : vector<8x16xf32>
    %55 = vector.extract_strided_slice %17 {offsets = [2, 2], sizes = [1, 1], strides = [1, 1]} : vector<4x3xf32> to vector<1x1xf32>
    %56 = vector.broadcast %55 : vector<1x1xf32> to vector<8x16xf32>
    %57 = arith.mulf %15, %56 : vector<8x16xf32>
    %58 = arith.addf %54, %57 : vector<8x16xf32>
    %59 = vector.extract_strided_slice %19 {offsets = [0, 2], sizes = [1, 1], strides = [1, 1]} : vector<1x4xf32> to vector<1x1xf32>
    %60 = vector.broadcast %59 : vector<1x1xf32> to vector<8x16xf32>
    %61 = arith.addf %58, %60 : vector<8x16xf32>
    %62 = vector.extract_strided_slice %17 {offsets = [3, 0], sizes = [1, 1], strides = [1, 1]} : vector<4x3xf32> to vector<1x1xf32>
    %63 = vector.broadcast %62 : vector<1x1xf32> to vector<8x16xf32>
    %64 = arith.mulf %14, %63 : vector<8x16xf32>
    %65 = vector.extract_strided_slice %17 {offsets = [3, 1], sizes = [1, 1], strides = [1, 1]} : vector<4x3xf32> to vector<1x1xf32>
    %66 = vector.broadcast %65 : vector<1x1xf32> to vector<8x16xf32>
    %67 = arith.mulf %13, %66 : vector<8x16xf32>
    %68 = arith.addf %64, %67 : vector<8x16xf32>
    %69 = vector.extract_strided_slice %17 {offsets = [3, 2], sizes = [1, 1], strides = [1, 1]} : vector<4x3xf32> to vector<1x1xf32>
    %70 = vector.broadcast %69 : vector<1x1xf32> to vector<8x16xf32>
    %71 = arith.mulf %15, %70 : vector<8x16xf32>
    %72 = arith.addf %68, %71 : vector<8x16xf32>
    %73 = vector.extract_strided_slice %19 {offsets = [0, 3], sizes = [1, 1], strides = [1, 1]} : vector<1x4xf32> to vector<1x1xf32>
    %74 = vector.broadcast %73 : vector<1x1xf32> to vector<8x16xf32>
    %75 = arith.addf %72, %74 : vector<8x16xf32>
    %c0_10 = arith.constant 0 : index
    %c0_11 = arith.constant 0 : index
    %c0_12 = arith.constant 0 : index
    %c0_13 = arith.constant 0 : index
    %76 = vector.load %arg4[%c0_10, %c0_11, %c0_12, %c0_13] : memref<1x4x8x16xf32, #tpu.memory_space<vmem>>, vector<1x1x8x16xf32>
    %77 = vector.shape_cast %76 : vector<1x1x8x16xf32> to vector<8x16xf32>
    %78 = vector.shape_cast %33 : vector<8x16xf32> to vector<1x1x8x16xf32>
    tpu.vector_store %arg4[%c0_10, %c0_11, %c0_12, %c0_13], %78 {strides = array<i32>} : memref<1x4x8x16xf32, #tpu.memory_space<vmem>>, vector<1x1x8x16xf32>,
    %c0_14 = arith.constant 0 : index
    %c1 = arith.constant 1 : index
    %c0_15 = arith.constant 0 : index
    %c0_16 = arith.constant 0 : index
    %79 = vector.load %arg4[%c0_14, %c1, %c0_15, %c0_16] : memref<1x4x8x16xf32, #tpu.memory_space<vmem>>, vector<1x1x8x16xf32>
    %80 = vector.shape_cast %79 : vector<1x1x8x16xf32> to vector<8x16xf32>
    %81 = vector.shape_cast %47 : vector<8x16xf32> to vector<1x1x8x16xf32>
    tpu.vector_store %arg4[%c0_14, %c1, %c0_15, %c0_16], %81 {strides = array<i32>} : memref<1x4x8x16xf32, #tpu.memory_space<vmem>>, vector<1x1x8x16xf32>,
    %c0_17 = arith.constant 0 : index
    %c2 = arith.constant 2 : index
    %c0_18 = arith.constant 0 : index
    %c0_19 = arith.constant 0 : index
    %82 = vector.load %arg4[%c0_17, %c2, %c0_18, %c0_19] : memref<1x4x8x16xf32, #tpu.memory_space<vmem>>, vector<1x1x8x16xf32>
    %83 = vector.shape_cast %82 : vector<1x1x8x16xf32> to vector<8x16xf32>
    %84 = vector.shape_cast %61 : vector<8x16xf32> to vector<1x1x8x16xf32>
    tpu.vector_store %arg4[%c0_17, %c2, %c0_18, %c0_19], %84 {strides = array<i32>} : memref<1x4x8x16xf32, #tpu.memory_space<vmem>>, vector<1x1x8x16xf32>,
    %c0_20 = arith.constant 0 : index
    %c3 = arith.constant 3 : index
    %c0_21 = arith.constant 0 : index
    %c0_22 = arith.constant 0 : index
    %85 = vector.load %arg4[%c0_20, %c3, %c0_21, %c0_22] : memref<1x4x8x16xf32, #tpu.memory_space<vmem>>, vector<1x1x8x16xf32>
    %86 = vector.shape_cast %85 : vector<1x1x8x16xf32> to vector<8x16xf32>
    %87 = vector.shape_cast %75 : vector<8x16xf32> to vector<1x1x8x16xf32>
    tpu.vector_store %arg4[%c0_20, %c3, %c0_21, %c0_22], %87 {strides = array<i32>} : memref<1x4x8x16xf32, #tpu.memory_space<vmem>>, vector<1x1x8x16xf32>,
    return
  }
  func.func @transform_0(%arg0: i32) -> (i32, i32, i32) {
    %c0_i32 = arith.constant 0 : i32
    %c0_i32_0 = arith.constant 0 : i32
    %c0_i32_1 = arith.constant 0 : i32
    return %arg0, %c0_i32, %c0_i32_0 : i32, i32, i32
  }
  func.func @transform_1(%arg0: i32) -> (i32, i32, i32) {
    %c0_i32 = arith.constant 0 : i32
    %c0_i32_0 = arith.constant 0 : i32
    %c0_i32_1 = arith.constant 0 : i32
    return %arg0, %c0_i32, %c0_i32_0 : i32, i32, i32
  }
  func.func @transform_2(%arg0: i32) -> (i32, i32, i32) {
    %c0_i32 = arith.constant 0 : i32
    %c0_i32_0 = arith.constant 0 : i32
    %c0_i32_1 = arith.constant 0 : i32
    return %arg0, %c0_i32, %c0_i32_0 : i32, i32, i32
  }
  func.func @transform_3(%arg0: i32) -> (i32, i32, i32, i32) {
    %c0_i32 = arith.constant 0 : i32
    %c0_i32_0 = arith.constant 0 : i32
    %c0_i32_1 = arith.constant 0 : i32
    %c0_i32_2 = arith.constant 0 : i32
    return %arg0, %c0_i32, %c0_i32_0, %c0_i32_1 : i32, i32, i32, i32
  }
}

module attributes {stable_mosaic.version = 11 : i64} {
  func.func @_forecast_kernel(%arg0: i32, %arg1: memref<16x8x16xf32, #tpu.memory_space<vmem>>, %arg2: memref<16x16x16xf32, #tpu.memory_space<vmem>>, %arg3: memref<16x1x16xf32, #tpu.memory_space<vmem>>, %arg4: memref<16x16x16xf32, #tpu.memory_space<vmem>>, %arg5: memref<16x1x16xf32, #tpu.memory_space<vmem>>, %arg6: memref<16x8x16xf32, #tpu.memory_space<vmem>>) attributes {dimension_semantics = [#tpu.dimension_semantics<arbitrary>], iteration_bounds = array<i64: 1>, scalar_prefetch = 0 : i64, scratch_operands = 0 : i64, tpu.core_type = #tpu.core_type<tc>, window_params = [{pipeline_mode = #tpu.pipeline_mode<synchronous>, transform_indices = @transform_0, window_bounds = array<i64: 16, 8, 16>}, {pipeline_mode = #tpu.pipeline_mode<synchronous>, transform_indices = @transform_1, window_bounds = array<i64: 16, 16, 16>}, {pipeline_mode = #tpu.pipeline_mode<synchronous>, transform_indices = @transform_2, window_bounds = array<i64: 16, 1, 16>}, {pipeline_mode = #tpu.pipeline_mode<synchronous>, transform_indices = @transform_3, window_bounds = array<i64: 16, 16, 16>}, {pipeline_mode = #tpu.pipeline_mode<synchronous>, transform_indices = @transform_4, window_bounds = array<i64: 16, 1, 16>}, {pipeline_mode = #tpu.pipeline_mode<synchronous>, transform_indices = @transform_5, window_bounds = array<i64: 16, 8, 16>}]} {
    %c0 = arith.constant 0 : index
    %c0_0 = arith.constant 0 : index
    %c0_1 = arith.constant 0 : index
    %0 = vector.load %arg1[%c0, %c0_0, %c0_1] : memref<16x8x16xf32, #tpu.memory_space<vmem>>, vector<16x8x16xf32>
    %1 = arith.truncf %0 : vector<16x8x16xf32> to vector<16x8x16xbf16>
    %c0_2 = arith.constant 0 : index
    %c0_3 = arith.constant 0 : index
    %c0_4 = arith.constant 0 : index
    %2 = vector.load %arg2[%c0_2, %c0_3, %c0_4] : memref<16x16x16xf32, #tpu.memory_space<vmem>>, vector<16x16x16xf32>
    %3 = arith.truncf %2 : vector<16x16x16xf32> to vector<16x16x16xbf16>
    %cst = arith.constant dense<0.000000e+00> : vector<16x8x16xf32>
    %4 = tpu.matmul %1, %3, %cst {dimension_numbers = #tpu.dot_dimension_numbers<[2], [1], [1], [2], [0, 0, 0, 1, 1, 2], [0], [0]>} : vector<16x8x16xbf16>, vector<16x16x16xbf16>, vector<16x8x16xf32> -> vector<16x8x16xf32>
    %c0_5 = arith.constant 0 : index
    %c0_6 = arith.constant 0 : index
    %c0_7 = arith.constant 0 : index
    %5 = vector.load %arg3[%c0_5, %c0_6, %c0_7] : memref<16x1x16xf32, #tpu.memory_space<vmem>>, vector<16x1x16xf32>
    %6 = vector.broadcast %5 : vector<16x1x16xf32> to vector<16x8x16xf32>
    %7 = arith.addf %4, %6 : vector<16x8x16xf32>
    %cst_8 = arith.constant 0.000000e+00 : f32
    %8 = vector.broadcast %cst_8 : f32 to vector<16x8x16xf32>
    %9 = arith.cmpf ogt, %7, %8 : vector<16x8x16xf32>
    %cst_9 = arith.constant 0.00999999977 : f32
    %10 = vector.broadcast %cst_9 : f32 to vector<16x8x16xf32>
    %11 = arith.mulf %10, %7 : vector<16x8x16xf32>
    %12 = arith.select %9, %7, %11 : vector<16x8x16xi1>, vector<16x8x16xf32>
    %13 = arith.truncf %12 : vector<16x8x16xf32> to vector<16x8x16xbf16>
    %c0_10 = arith.constant 0 : index
    %c0_11 = arith.constant 0 : index
    %c0_12 = arith.constant 0 : index
    %14 = vector.load %arg4[%c0_10, %c0_11, %c0_12] : memref<16x16x16xf32, #tpu.memory_space<vmem>>, vector<16x16x16xf32>
    %15 = arith.truncf %14 : vector<16x16x16xf32> to vector<16x16x16xbf16>
    %cst_13 = arith.constant dense<0.000000e+00> : vector<16x8x16xf32>
    %16 = tpu.matmul %13, %15, %cst_13 {dimension_numbers = #tpu.dot_dimension_numbers<[2], [1], [1], [2], [0, 0, 0, 1, 1, 2], [0], [0]>} : vector<16x8x16xbf16>, vector<16x16x16xbf16>, vector<16x8x16xf32> -> vector<16x8x16xf32>
    %c0_14 = arith.constant 0 : index
    %c0_15 = arith.constant 0 : index
    %c0_16 = arith.constant 0 : index
    %17 = vector.load %arg5[%c0_14, %c0_15, %c0_16] : memref<16x1x16xf32, #tpu.memory_space<vmem>>, vector<16x1x16xf32>
    %18 = vector.broadcast %17 : vector<16x1x16xf32> to vector<16x8x16xf32>
    %19 = arith.addf %16, %18 : vector<16x8x16xf32>
    %c0_17 = arith.constant 0 : index
    %c0_18 = arith.constant 0 : index
    %c0_19 = arith.constant 0 : index
    %20 = vector.load %arg6[%c0_17, %c0_18, %c0_19] : memref<16x8x16xf32, #tpu.memory_space<vmem>>, vector<16x8x16xf32>
    tpu.vector_store %arg6[%c0_17, %c0_18, %c0_19], %19 {strides = array<i32>} : memref<16x8x16xf32, #tpu.memory_space<vmem>>, vector<16x8x16xf32>,
    return
  }
  func.func @transform_0(%arg0: i32) -> (i32, i32, i32) {
    %c0_i32 = arith.constant 0 : i32
    %c0_i32_0 = arith.constant 0 : i32
    %c0_i32_1 = arith.constant 0 : i32
    %c0_i32_2 = arith.constant 0 : i32
    return %c0_i32, %c0_i32_0, %c0_i32_1 : i32, i32, i32
  }
  func.func @transform_1(%arg0: i32) -> (i32, i32, i32) {
    %c0_i32 = arith.constant 0 : i32
    %c0_i32_0 = arith.constant 0 : i32
    %c0_i32_1 = arith.constant 0 : i32
    %c0_i32_2 = arith.constant 0 : i32
    return %c0_i32, %c0_i32_0, %c0_i32_1 : i32, i32, i32
  }
  func.func @transform_2(%arg0: i32) -> (i32, i32, i32) {
    %c0_i32 = arith.constant 0 : i32
    %c0_i32_0 = arith.constant 0 : i32
    %c0_i32_1 = arith.constant 0 : i32
    %c0_i32_2 = arith.constant 0 : i32
    return %c0_i32, %c0_i32_0, %c0_i32_1 : i32, i32, i32
  }
  func.func @transform_3(%arg0: i32) -> (i32, i32, i32) {
    %c0_i32 = arith.constant 0 : i32
    %c0_i32_0 = arith.constant 0 : i32
    %c0_i32_1 = arith.constant 0 : i32
    %c0_i32_2 = arith.constant 0 : i32
    return %c0_i32, %c0_i32_0, %c0_i32_1 : i32, i32, i32
  }
  func.func @transform_4(%arg0: i32) -> (i32, i32, i32) {
    %c0_i32 = arith.constant 0 : i32
    %c0_i32_0 = arith.constant 0 : i32
    %c0_i32_1 = arith.constant 0 : i32
    %c0_i32_2 = arith.constant 0 : i32
    return %c0_i32, %c0_i32_0, %c0_i32_1 : i32, i32, i32
  }
  func.func @transform_5(%arg0: i32) -> (i32, i32, i32) {
    %c0_i32 = arith.constant 0 : i32
    %c0_i32_0 = arith.constant 0 : i32
    %c0_i32_1 = arith.constant 0 : i32
    %c0_i32_2 = arith.constant 0 : i32
    return %c0_i32, %c0_i32_0, %c0_i32_1 : i32, i32, i32
  }
}

module attributes {stable_mosaic.version = 11 : i64} {
  func.func @_gcn_pred_kernel(%arg0: i32, %arg1: memref<4x16x16xf32, #tpu.memory_space<vmem>>, %arg2: memref<16x16xf32, #tpu.memory_space<vmem>>, %arg3: memref<1x16xf32, #tpu.memory_space<vmem>>, %arg4: memref<16x16xf32, #tpu.memory_space<vmem>>, %arg5: memref<1x16xf32, #tpu.memory_space<vmem>>, %arg6: memref<16x8xf32, #tpu.memory_space<vmem>>, %arg7: memref<1x8xf32, #tpu.memory_space<vmem>>, %arg8: memref<1x4x1x8xf32, #tpu.memory_space<vmem>>) attributes {dimension_semantics = [#tpu.dimension_semantics<parallel>], iteration_bounds = array<i64: 2>, scalar_prefetch = 0 : i64, scratch_operands = 0 : i64, tpu.core_type = #tpu.core_type<tc>, window_params = [{transform_indices = @transform_0, window_bounds = array<i64: 4, 16, 16>}, {pipeline_mode = #tpu.pipeline_mode<synchronous>, transform_indices = @transform_1, window_bounds = array<i64: 16, 16>}, {pipeline_mode = #tpu.pipeline_mode<synchronous>, transform_indices = @transform_2, window_bounds = array<i64: 1, 16>}, {pipeline_mode = #tpu.pipeline_mode<synchronous>, transform_indices = @transform_3, window_bounds = array<i64: 16, 16>}, {pipeline_mode = #tpu.pipeline_mode<synchronous>, transform_indices = @transform_4, window_bounds = array<i64: 1, 16>}, {pipeline_mode = #tpu.pipeline_mode<synchronous>, transform_indices = @transform_5, window_bounds = array<i64: 16, 8>}, {pipeline_mode = #tpu.pipeline_mode<synchronous>, transform_indices = @transform_6, window_bounds = array<i64: 1, 8>}, {transform_indices = @transform_7, window_bounds = array<i64: 1, 4, 1, 8>}]} {
    %c0 = arith.constant 0 : index
    %c0_0 = arith.constant 0 : index
    %0 = vector.load %arg2[%c0, %c0_0] : memref<16x16xf32, #tpu.memory_space<vmem>>, vector<16x16xf32>
    %1 = arith.truncf %0 : vector<16x16xf32> to vector<16x16xbf16>
    %c0_1 = arith.constant 0 : index
    %c0_2 = arith.constant 0 : index
    %2 = vector.load %arg4[%c0_1, %c0_2] : memref<16x16xf32, #tpu.memory_space<vmem>>, vector<16x16xf32>
    %3 = arith.truncf %2 : vector<16x16xf32> to vector<16x16xbf16>
    %c0_3 = arith.constant 0 : index
    %c0_4 = arith.constant 0 : index
    %4 = vector.load %arg6[%c0_3, %c0_4] : memref<16x8xf32, #tpu.memory_space<vmem>>, vector<16x8xf32>
    %5 = arith.truncf %4 : vector<16x8xf32> to vector<16x8xbf16>
    %c0_5 = arith.constant 0 : index
    %c0_6 = arith.constant 0 : index
    %6 = vector.load %arg3[%c0_5, %c0_6] : memref<1x16xf32, #tpu.memory_space<vmem>>, vector<1x16xf32>
    %c0_7 = arith.constant 0 : index
    %c0_8 = arith.constant 0 : index
    %7 = vector.load %arg5[%c0_7, %c0_8] : memref<1x16xf32, #tpu.memory_space<vmem>>, vector<1x16xf32>
    %c0_9 = arith.constant 0 : index
    %c0_10 = arith.constant 0 : index
    %8 = vector.load %arg7[%c0_9, %c0_10] : memref<1x8xf32, #tpu.memory_space<vmem>>, vector<1x8xf32>
    %c0_11 = arith.constant 0 : index
    %c0_12 = arith.constant 0 : index
    %c0_13 = arith.constant 0 : index
    %9 = vector.load %arg1[%c0_11, %c0_12, %c0_13] : memref<4x16x16xf32, #tpu.memory_space<vmem>>, vector<1x16x16xf32>
    %10 = vector.shape_cast %9 : vector<1x16x16xf32> to vector<16x16xf32>
    %11 = arith.truncf %10 : vector<16x16xf32> to vector<16x16xbf16>
    %cst = arith.constant dense<0.000000e+00> : vector<16x16xf32>
    %12 = tpu.matmul %11, %11, %cst {dimension_numbers = #tpu.dot_dimension_numbers<[1], [1], [0], [0], [0, 0, 1, 0], [], []>} : vector<16x16xbf16>, vector<16x16xbf16>, vector<16x16xf32> -> vector<16x16xf32>
    %cst_14 = arith.constant 0.000000e+00 : f32
    %13 = vector.broadcast %cst_14 : f32 to vector<16x16xf32>
    %14 = arith.cmpf ogt, %12, %13 : vector<16x16xf32>
    %cst_15 = arith.constant 0.00999999977 : f32
    %15 = vector.broadcast %cst_15 : f32 to vector<16x16xf32>
    %16 = arith.mulf %15, %12 : vector<16x16xf32>
    %17 = arith.select %14, %12, %16 : vector<16x16xi1>, vector<16x16xf32>
    %cst_16 = arith.constant dense<0xFF800000> : vector<16xf32>
    %18 = vector.multi_reduction <maximumf>, %17, %cst_16 [1] : vector<16x16xf32> to vector<16xf32>
    %19 = vector.shape_cast %18 : vector<16xf32> to vector<16x1xf32>
    %20 = vector.broadcast %19 : vector<16x1xf32> to vector<16x16xf32>
    %21 = arith.subf %17, %20 : vector<16x16xf32>
    %22 = math.exp %21 : vector<16x16xf32>
    %cst_17 = arith.constant dense<0.000000e+00> : vector<16xf32>
    %23 = vector.multi_reduction <add>, %22, %cst_17 [1] : vector<16x16xf32> to vector<16xf32>
    %24 = vector.shape_cast %23 : vector<16xf32> to vector<16x1xf32>
    %25 = tpu.reciprocal %24 {approx = true} : vector<16x1xf32> -> vector<16x1xf32>
    %26 = vector.broadcast %25 : vector<16x1xf32> to vector<16x16xf32>
    %27 = arith.mulf %22, %26 : vector<16x16xf32>
    %28 = arith.truncf %27 : vector<16x16xf32> to vector<16x16xbf16>
    %cst_18 = arith.constant dense<0.000000e+00> : vector<16x16xf32>
    %29 = tpu.matmul %28, %11, %cst_18 {dimension_numbers = #tpu.dot_dimension_numbers<[1], [0], [0], [1], [0, 0, 1, 1], [], []>} : vector<16x16xbf16>, vector<16x16xbf16>, vector<16x16xf32> -> vector<16x16xf32>
    %30 = arith.truncf %29 : vector<16x16xf32> to vector<16x16xbf16>
    %cst_19 = arith.constant dense<0.000000e+00> : vector<16x16xf32>
    %31 = tpu.matmul %30, %1, %cst_19 {dimension_numbers = #tpu.dot_dimension_numbers<[1], [0], [0], [1], [0, 0, 1, 1], [], []>} : vector<16x16xbf16>, vector<16x16xbf16>, vector<16x16xf32> -> vector<16x16xf32>
    %32 = vector.broadcast %6 : vector<1x16xf32> to vector<16x16xf32>
    %33 = arith.addf %31, %32 : vector<16x16xf32>
    %cst_20 = arith.constant 0.000000e+00 : f32
    %34 = vector.broadcast %cst_20 : f32 to vector<16x16xf32>
    %35 = arith.cmpf ogt, %33, %34 : vector<16x16xf32>
    %cst_21 = arith.constant 0.00999999977 : f32
    %36 = vector.broadcast %cst_21 : f32 to vector<16x16xf32>
    %37 = arith.mulf %36, %33 : vector<16x16xf32>
    %38 = arith.select %35, %33, %37 : vector<16x16xi1>, vector<16x16xf32>
    %39 = arith.truncf %38 : vector<16x16xf32> to vector<16x16xbf16>
    %cst_22 = arith.constant dense<0.000000e+00> : vector<16x16xf32>
    %40 = tpu.matmul %28, %39, %cst_22 {dimension_numbers = #tpu.dot_dimension_numbers<[1], [0], [0], [1], [0, 0, 1, 1], [], []>} : vector<16x16xbf16>, vector<16x16xbf16>, vector<16x16xf32> -> vector<16x16xf32>
    %41 = arith.truncf %40 : vector<16x16xf32> to vector<16x16xbf16>
    %cst_23 = arith.constant dense<0.000000e+00> : vector<16x16xf32>
    %42 = tpu.matmul %41, %3, %cst_23 {dimension_numbers = #tpu.dot_dimension_numbers<[1], [0], [0], [1], [0, 0, 1, 1], [], []>} : vector<16x16xbf16>, vector<16x16xbf16>, vector<16x16xf32> -> vector<16x16xf32>
    %43 = vector.broadcast %7 : vector<1x16xf32> to vector<16x16xf32>
    %44 = arith.addf %42, %43 : vector<16x16xf32>
    %cst_24 = arith.constant 0.000000e+00 : f32
    %45 = vector.broadcast %cst_24 : f32 to vector<16x16xf32>
    %46 = arith.cmpf ogt, %44, %45 : vector<16x16xf32>
    %cst_25 = arith.constant 0.00999999977 : f32
    %47 = vector.broadcast %cst_25 : f32 to vector<16x16xf32>
    %48 = arith.mulf %47, %44 : vector<16x16xf32>
    %49 = arith.select %46, %44, %48 : vector<16x16xi1>, vector<16x16xf32>
    %cst_26 = arith.constant dense<0.000000e+00> : vector<16xf32>
    %50 = vector.multi_reduction <add>, %49, %cst_26 [0] : vector<16x16xf32> to vector<16xf32>
    %51 = vector.shape_cast %50 : vector<16xf32> to vector<1x16xf32>
    %52 = arith.truncf %51 : vector<1x16xf32> to vector<1x16xbf16>
    %cst_27 = arith.constant dense<0.000000e+00> : vector<1x8xf32>
    %53 = tpu.matmul %52, %5, %cst_27 {dimension_numbers = #tpu.dot_dimension_numbers<[1], [0], [0], [1], [0, 0, 1, 1], [], []>} : vector<1x16xbf16>, vector<16x8xbf16>, vector<1x8xf32> -> vector<1x8xf32>
    %54 = arith.addf %53, %8 : vector<1x8xf32>
    %c0_28 = arith.constant 0 : index
    %c0_29 = arith.constant 0 : index
    %c0_30 = arith.constant 0 : index
    %c0_31 = arith.constant 0 : index
    %55 = vector.load %arg8[%c0_28, %c0_29, %c0_30, %c0_31] : memref<1x4x1x8xf32, #tpu.memory_space<vmem>>, vector<1x1x1x8xf32>
    %56 = vector.shape_cast %55 : vector<1x1x1x8xf32> to vector<1x8xf32>
    %57 = vector.shape_cast %54 : vector<1x8xf32> to vector<1x1x1x8xf32>
    tpu.vector_store %arg8[%c0_28, %c0_29, %c0_30, %c0_31], %57 {strides = array<i32>} : memref<1x4x1x8xf32, #tpu.memory_space<vmem>>, vector<1x1x1x8xf32>,
    %c1 = arith.constant 1 : index
    %c0_32 = arith.constant 0 : index
    %c0_33 = arith.constant 0 : index
    %58 = vector.load %arg1[%c1, %c0_32, %c0_33] : memref<4x16x16xf32, #tpu.memory_space<vmem>>, vector<1x16x16xf32>
    %59 = vector.shape_cast %58 : vector<1x16x16xf32> to vector<16x16xf32>
    %60 = arith.truncf %59 : vector<16x16xf32> to vector<16x16xbf16>
    %cst_34 = arith.constant dense<0.000000e+00> : vector<16x16xf32>
    %61 = tpu.matmul %60, %60, %cst_34 {dimension_numbers = #tpu.dot_dimension_numbers<[1], [1], [0], [0], [0, 0, 1, 0], [], []>} : vector<16x16xbf16>, vector<16x16xbf16>, vector<16x16xf32> -> vector<16x16xf32>
    %cst_35 = arith.constant 0.000000e+00 : f32
    %62 = vector.broadcast %cst_35 : f32 to vector<16x16xf32>
    %63 = arith.cmpf ogt, %61, %62 : vector<16x16xf32>
    %cst_36 = arith.constant 0.00999999977 : f32
    %64 = vector.broadcast %cst_36 : f32 to vector<16x16xf32>
    %65 = arith.mulf %64, %61 : vector<16x16xf32>
    %66 = arith.select %63, %61, %65 : vector<16x16xi1>, vector<16x16xf32>
    %cst_37 = arith.constant dense<0xFF800000> : vector<16xf32>
    %67 = vector.multi_reduction <maximumf>, %66, %cst_37 [1] : vector<16x16xf32> to vector<16xf32>
    %68 = vector.shape_cast %67 : vector<16xf32> to vector<16x1xf32>
    %69 = vector.broadcast %68 : vector<16x1xf32> to vector<16x16xf32>
    %70 = arith.subf %66, %69 : vector<16x16xf32>
    %71 = math.exp %70 : vector<16x16xf32>
    %cst_38 = arith.constant dense<0.000000e+00> : vector<16xf32>
    %72 = vector.multi_reduction <add>, %71, %cst_38 [1] : vector<16x16xf32> to vector<16xf32>
    %73 = vector.shape_cast %72 : vector<16xf32> to vector<16x1xf32>
    %74 = tpu.reciprocal %73 {approx = true} : vector<16x1xf32> -> vector<16x1xf32>
    %75 = vector.broadcast %74 : vector<16x1xf32> to vector<16x16xf32>
    %76 = arith.mulf %71, %75 : vector<16x16xf32>
    %77 = arith.truncf %76 : vector<16x16xf32> to vector<16x16xbf16>
    %cst_39 = arith.constant dense<0.000000e+00> : vector<16x16xf32>
    %78 = tpu.matmul %77, %60, %cst_39 {dimension_numbers = #tpu.dot_dimension_numbers<[1], [0], [0], [1], [0, 0, 1, 1], [], []>} : vector<16x16xbf16>, vector<16x16xbf16>, vector<16x16xf32> -> vector<16x16xf32>
    %79 = arith.truncf %78 : vector<16x16xf32> to vector<16x16xbf16>
    %cst_40 = arith.constant dense<0.000000e+00> : vector<16x16xf32>
    %80 = tpu.matmul %79, %1, %cst_40 {dimension_numbers = #tpu.dot_dimension_numbers<[1], [0], [0], [1], [0, 0, 1, 1], [], []>} : vector<16x16xbf16>, vector<16x16xbf16>, vector<16x16xf32> -> vector<16x16xf32>
    %81 = vector.broadcast %6 : vector<1x16xf32> to vector<16x16xf32>
    %82 = arith.addf %80, %81 : vector<16x16xf32>
    %cst_41 = arith.constant 0.000000e+00 : f32
    %83 = vector.broadcast %cst_41 : f32 to vector<16x16xf32>
    %84 = arith.cmpf ogt, %82, %83 : vector<16x16xf32>
    %cst_42 = arith.constant 0.00999999977 : f32
    %85 = vector.broadcast %cst_42 : f32 to vector<16x16xf32>
    %86 = arith.mulf %85, %82 : vector<16x16xf32>
    %87 = arith.select %84, %82, %86 : vector<16x16xi1>, vector<16x16xf32>
    %88 = arith.truncf %87 : vector<16x16xf32> to vector<16x16xbf16>
    %cst_43 = arith.constant dense<0.000000e+00> : vector<16x16xf32>
    %89 = tpu.matmul %77, %88, %cst_43 {dimension_numbers = #tpu.dot_dimension_numbers<[1], [0], [0], [1], [0, 0, 1, 1], [], []>} : vector<16x16xbf16>, vector<16x16xbf16>, vector<16x16xf32> -> vector<16x16xf32>
    %90 = arith.truncf %89 : vector<16x16xf32> to vector<16x16xbf16>
    %cst_44 = arith.constant dense<0.000000e+00> : vector<16x16xf32>
    %91 = tpu.matmul %90, %3, %cst_44 {dimension_numbers = #tpu.dot_dimension_numbers<[1], [0], [0], [1], [0, 0, 1, 1], [], []>} : vector<16x16xbf16>, vector<16x16xbf16>, vector<16x16xf32> -> vector<16x16xf32>
    %92 = vector.broadcast %7 : vector<1x16xf32> to vector<16x16xf32>
    %93 = arith.addf %91, %92 : vector<16x16xf32>
    %cst_45 = arith.constant 0.000000e+00 : f32
    %94 = vector.broadcast %cst_45 : f32 to vector<16x16xf32>
    %95 = arith.cmpf ogt, %93, %94 : vector<16x16xf32>
    %cst_46 = arith.constant 0.00999999977 : f32
    %96 = vector.broadcast %cst_46 : f32 to vector<16x16xf32>
    %97 = arith.mulf %96, %93 : vector<16x16xf32>
    %98 = arith.select %95, %93, %97 : vector<16x16xi1>, vector<16x16xf32>
    %cst_47 = arith.constant dense<0.000000e+00> : vector<16xf32>
    %99 = vector.multi_reduction <add>, %98, %cst_47 [0] : vector<16x16xf32> to vector<16xf32>
    %100 = vector.shape_cast %99 : vector<16xf32> to vector<1x16xf32>
    %101 = arith.truncf %100 : vector<1x16xf32> to vector<1x16xbf16>
    %cst_48 = arith.constant dense<0.000000e+00> : vector<1x8xf32>
    %102 = tpu.matmul %101, %5, %cst_48 {dimension_numbers = #tpu.dot_dimension_numbers<[1], [0], [0], [1], [0, 0, 1, 1], [], []>} : vector<1x16xbf16>, vector<16x8xbf16>, vector<1x8xf32> -> vector<1x8xf32>
    %103 = arith.addf %102, %8 : vector<1x8xf32>
    %c0_49 = arith.constant 0 : index
    %c1_50 = arith.constant 1 : index
    %c0_51 = arith.constant 0 : index
    %c0_52 = arith.constant 0 : index
    %104 = vector.load %arg8[%c0_49, %c1_50, %c0_51, %c0_52] : memref<1x4x1x8xf32, #tpu.memory_space<vmem>>, vector<1x1x1x8xf32>
    %105 = vector.shape_cast %104 : vector<1x1x1x8xf32> to vector<1x8xf32>
    %106 = vector.shape_cast %103 : vector<1x8xf32> to vector<1x1x1x8xf32>
    tpu.vector_store %arg8[%c0_49, %c1_50, %c0_51, %c0_52], %106 {strides = array<i32>} : memref<1x4x1x8xf32, #tpu.memory_space<vmem>>, vector<1x1x1x8xf32>,
    %c2 = arith.constant 2 : index
    %c0_53 = arith.constant 0 : index
    %c0_54 = arith.constant 0 : index
    %107 = vector.load %arg1[%c2, %c0_53, %c0_54] : memref<4x16x16xf32, #tpu.memory_space<vmem>>, vector<1x16x16xf32>
    %108 = vector.shape_cast %107 : vector<1x16x16xf32> to vector<16x16xf32>
    %109 = arith.truncf %108 : vector<16x16xf32> to vector<16x16xbf16>
    %cst_55 = arith.constant dense<0.000000e+00> : vector<16x16xf32>
    %110 = tpu.matmul %109, %109, %cst_55 {dimension_numbers = #tpu.dot_dimension_numbers<[1], [1], [0], [0], [0, 0, 1, 0], [], []>} : vector<16x16xbf16>, vector<16x16xbf16>, vector<16x16xf32> -> vector<16x16xf32>
    %cst_56 = arith.constant 0.000000e+00 : f32
    %111 = vector.broadcast %cst_56 : f32 to vector<16x16xf32>
    %112 = arith.cmpf ogt, %110, %111 : vector<16x16xf32>
    %cst_57 = arith.constant 0.00999999977 : f32
    %113 = vector.broadcast %cst_57 : f32 to vector<16x16xf32>
    %114 = arith.mulf %113, %110 : vector<16x16xf32>
    %115 = arith.select %112, %110, %114 : vector<16x16xi1>, vector<16x16xf32>
    %cst_58 = arith.constant dense<0xFF800000> : vector<16xf32>
    %116 = vector.multi_reduction <maximumf>, %115, %cst_58 [1] : vector<16x16xf32> to vector<16xf32>
    %117 = vector.shape_cast %116 : vector<16xf32> to vector<16x1xf32>
    %118 = vector.broadcast %117 : vector<16x1xf32> to vector<16x16xf32>
    %119 = arith.subf %115, %118 : vector<16x16xf32>
    %120 = math.exp %119 : vector<16x16xf32>
    %cst_59 = arith.constant dense<0.000000e+00> : vector<16xf32>
    %121 = vector.multi_reduction <add>, %120, %cst_59 [1] : vector<16x16xf32> to vector<16xf32>
    %122 = vector.shape_cast %121 : vector<16xf32> to vector<16x1xf32>
    %123 = tpu.reciprocal %122 {approx = true} : vector<16x1xf32> -> vector<16x1xf32>
    %124 = vector.broadcast %123 : vector<16x1xf32> to vector<16x16xf32>
    %125 = arith.mulf %120, %124 : vector<16x16xf32>
    %126 = arith.truncf %125 : vector<16x16xf32> to vector<16x16xbf16>
    %cst_60 = arith.constant dense<0.000000e+00> : vector<16x16xf32>
    %127 = tpu.matmul %126, %109, %cst_60 {dimension_numbers = #tpu.dot_dimension_numbers<[1], [0], [0], [1], [0, 0, 1, 1], [], []>} : vector<16x16xbf16>, vector<16x16xbf16>, vector<16x16xf32> -> vector<16x16xf32>
    %128 = arith.truncf %127 : vector<16x16xf32> to vector<16x16xbf16>
    %cst_61 = arith.constant dense<0.000000e+00> : vector<16x16xf32>
    %129 = tpu.matmul %128, %1, %cst_61 {dimension_numbers = #tpu.dot_dimension_numbers<[1], [0], [0], [1], [0, 0, 1, 1], [], []>} : vector<16x16xbf16>, vector<16x16xbf16>, vector<16x16xf32> -> vector<16x16xf32>
    %130 = vector.broadcast %6 : vector<1x16xf32> to vector<16x16xf32>
    %131 = arith.addf %129, %130 : vector<16x16xf32>
    %cst_62 = arith.constant 0.000000e+00 : f32
    %132 = vector.broadcast %cst_62 : f32 to vector<16x16xf32>
    %133 = arith.cmpf ogt, %131, %132 : vector<16x16xf32>
    %cst_63 = arith.constant 0.00999999977 : f32
    %134 = vector.broadcast %cst_63 : f32 to vector<16x16xf32>
    %135 = arith.mulf %134, %131 : vector<16x16xf32>
    %136 = arith.select %133, %131, %135 : vector<16x16xi1>, vector<16x16xf32>
    %137 = arith.truncf %136 : vector<16x16xf32> to vector<16x16xbf16>
    %cst_64 = arith.constant dense<0.000000e+00> : vector<16x16xf32>
    %138 = tpu.matmul %126, %137, %cst_64 {dimension_numbers = #tpu.dot_dimension_numbers<[1], [0], [0], [1], [0, 0, 1, 1], [], []>} : vector<16x16xbf16>, vector<16x16xbf16>, vector<16x16xf32> -> vector<16x16xf32>
    %139 = arith.truncf %138 : vector<16x16xf32> to vector<16x16xbf16>
    %cst_65 = arith.constant dense<0.000000e+00> : vector<16x16xf32>
    %140 = tpu.matmul %139, %3, %cst_65 {dimension_numbers = #tpu.dot_dimension_numbers<[1], [0], [0], [1], [0, 0, 1, 1], [], []>} : vector<16x16xbf16>, vector<16x16xbf16>, vector<16x16xf32> -> vector<16x16xf32>
    %141 = vector.broadcast %7 : vector<1x16xf32> to vector<16x16xf32>
    %142 = arith.addf %140, %141 : vector<16x16xf32>
    %cst_66 = arith.constant 0.000000e+00 : f32
    %143 = vector.broadcast %cst_66 : f32 to vector<16x16xf32>
    %144 = arith.cmpf ogt, %142, %143 : vector<16x16xf32>
    %cst_67 = arith.constant 0.00999999977 : f32
    %145 = vector.broadcast %cst_67 : f32 to vector<16x16xf32>
    %146 = arith.mulf %145, %142 : vector<16x16xf32>
    %147 = arith.select %144, %142, %146 : vector<16x16xi1>, vector<16x16xf32>
    %cst_68 = arith.constant dense<0.000000e+00> : vector<16xf32>
    %148 = vector.multi_reduction <add>, %147, %cst_68 [0] : vector<16x16xf32> to vector<16xf32>
    %149 = vector.shape_cast %148 : vector<16xf32> to vector<1x16xf32>
    %150 = arith.truncf %149 : vector<1x16xf32> to vector<1x16xbf16>
    %cst_69 = arith.constant dense<0.000000e+00> : vector<1x8xf32>
    %151 = tpu.matmul %150, %5, %cst_69 {dimension_numbers = #tpu.dot_dimension_numbers<[1], [0], [0], [1], [0, 0, 1, 1], [], []>} : vector<1x16xbf16>, vector<16x8xbf16>, vector<1x8xf32> -> vector<1x8xf32>
    %152 = arith.addf %151, %8 : vector<1x8xf32>
    %c0_70 = arith.constant 0 : index
    %c2_71 = arith.constant 2 : index
    %c0_72 = arith.constant 0 : index
    %c0_73 = arith.constant 0 : index
    %153 = vector.load %arg8[%c0_70, %c2_71, %c0_72, %c0_73] : memref<1x4x1x8xf32, #tpu.memory_space<vmem>>, vector<1x1x1x8xf32>
    %154 = vector.shape_cast %153 : vector<1x1x1x8xf32> to vector<1x8xf32>
    %155 = vector.shape_cast %152 : vector<1x8xf32> to vector<1x1x1x8xf32>
    tpu.vector_store %arg8[%c0_70, %c2_71, %c0_72, %c0_73], %155 {strides = array<i32>} : memref<1x4x1x8xf32, #tpu.memory_space<vmem>>, vector<1x1x1x8xf32>,
    %c3 = arith.constant 3 : index
    %c0_74 = arith.constant 0 : index
    %c0_75 = arith.constant 0 : index
    %156 = vector.load %arg1[%c3, %c0_74, %c0_75] : memref<4x16x16xf32, #tpu.memory_space<vmem>>, vector<1x16x16xf32>
    %157 = vector.shape_cast %156 : vector<1x16x16xf32> to vector<16x16xf32>
    %158 = arith.truncf %157 : vector<16x16xf32> to vector<16x16xbf16>
    %cst_76 = arith.constant dense<0.000000e+00> : vector<16x16xf32>
    %159 = tpu.matmul %158, %158, %cst_76 {dimension_numbers = #tpu.dot_dimension_numbers<[1], [1], [0], [0], [0, 0, 1, 0], [], []>} : vector<16x16xbf16>, vector<16x16xbf16>, vector<16x16xf32> -> vector<16x16xf32>
    %cst_77 = arith.constant 0.000000e+00 : f32
    %160 = vector.broadcast %cst_77 : f32 to vector<16x16xf32>
    %161 = arith.cmpf ogt, %159, %160 : vector<16x16xf32>
    %cst_78 = arith.constant 0.00999999977 : f32
    %162 = vector.broadcast %cst_78 : f32 to vector<16x16xf32>
    %163 = arith.mulf %162, %159 : vector<16x16xf32>
    %164 = arith.select %161, %159, %163 : vector<16x16xi1>, vector<16x16xf32>
    %cst_79 = arith.constant dense<0xFF800000> : vector<16xf32>
    %165 = vector.multi_reduction <maximumf>, %164, %cst_79 [1] : vector<16x16xf32> to vector<16xf32>
    %166 = vector.shape_cast %165 : vector<16xf32> to vector<16x1xf32>
    %167 = vector.broadcast %166 : vector<16x1xf32> to vector<16x16xf32>
    %168 = arith.subf %164, %167 : vector<16x16xf32>
    %169 = math.exp %168 : vector<16x16xf32>
    %cst_80 = arith.constant dense<0.000000e+00> : vector<16xf32>
    %170 = vector.multi_reduction <add>, %169, %cst_80 [1] : vector<16x16xf32> to vector<16xf32>
    %171 = vector.shape_cast %170 : vector<16xf32> to vector<16x1xf32>
    %172 = tpu.reciprocal %171 {approx = true} : vector<16x1xf32> -> vector<16x1xf32>
    %173 = vector.broadcast %172 : vector<16x1xf32> to vector<16x16xf32>
    %174 = arith.mulf %169, %173 : vector<16x16xf32>
    %175 = arith.truncf %174 : vector<16x16xf32> to vector<16x16xbf16>
    %cst_81 = arith.constant dense<0.000000e+00> : vector<16x16xf32>
    %176 = tpu.matmul %175, %158, %cst_81 {dimension_numbers = #tpu.dot_dimension_numbers<[1], [0], [0], [1], [0, 0, 1, 1], [], []>} : vector<16x16xbf16>, vector<16x16xbf16>, vector<16x16xf32> -> vector<16x16xf32>
    %177 = arith.truncf %176 : vector<16x16xf32> to vector<16x16xbf16>
    %cst_82 = arith.constant dense<0.000000e+00> : vector<16x16xf32>
    %178 = tpu.matmul %177, %1, %cst_82 {dimension_numbers = #tpu.dot_dimension_numbers<[1], [0], [0], [1], [0, 0, 1, 1], [], []>} : vector<16x16xbf16>, vector<16x16xbf16>, vector<16x16xf32> -> vector<16x16xf32>
    %179 = vector.broadcast %6 : vector<1x16xf32> to vector<16x16xf32>
    %180 = arith.addf %178, %179 : vector<16x16xf32>
    %cst_83 = arith.constant 0.000000e+00 : f32
    %181 = vector.broadcast %cst_83 : f32 to vector<16x16xf32>
    %182 = arith.cmpf ogt, %180, %181 : vector<16x16xf32>
    %cst_84 = arith.constant 0.00999999977 : f32
    %183 = vector.broadcast %cst_84 : f32 to vector<16x16xf32>
    %184 = arith.mulf %183, %180 : vector<16x16xf32>
    %185 = arith.select %182, %180, %184 : vector<16x16xi1>, vector<16x16xf32>
    %186 = arith.truncf %185 : vector<16x16xf32> to vector<16x16xbf16>
    %cst_85 = arith.constant dense<0.000000e+00> : vector<16x16xf32>
    %187 = tpu.matmul %175, %186, %cst_85 {dimension_numbers = #tpu.dot_dimension_numbers<[1], [0], [0], [1], [0, 0, 1, 1], [], []>} : vector<16x16xbf16>, vector<16x16xbf16>, vector<16x16xf32> -> vector<16x16xf32>
    %188 = arith.truncf %187 : vector<16x16xf32> to vector<16x16xbf16>
    %cst_86 = arith.constant dense<0.000000e+00> : vector<16x16xf32>
    %189 = tpu.matmul %188, %3, %cst_86 {dimension_numbers = #tpu.dot_dimension_numbers<[1], [0], [0], [1], [0, 0, 1, 1], [], []>} : vector<16x16xbf16>, vector<16x16xbf16>, vector<16x16xf32> -> vector<16x16xf32>
    %190 = vector.broadcast %7 : vector<1x16xf32> to vector<16x16xf32>
    %191 = arith.addf %189, %190 : vector<16x16xf32>
    %cst_87 = arith.constant 0.000000e+00 : f32
    %192 = vector.broadcast %cst_87 : f32 to vector<16x16xf32>
    %193 = arith.cmpf ogt, %191, %192 : vector<16x16xf32>
    %cst_88 = arith.constant 0.00999999977 : f32
    %194 = vector.broadcast %cst_88 : f32 to vector<16x16xf32>
    %195 = arith.mulf %194, %191 : vector<16x16xf32>
    %196 = arith.select %193, %191, %195 : vector<16x16xi1>, vector<16x16xf32>
    %cst_89 = arith.constant dense<0.000000e+00> : vector<16xf32>
    %197 = vector.multi_reduction <add>, %196, %cst_89 [0] : vector<16x16xf32> to vector<16xf32>
    %198 = vector.shape_cast %197 : vector<16xf32> to vector<1x16xf32>
    %199 = arith.truncf %198 : vector<1x16xf32> to vector<1x16xbf16>
    %cst_90 = arith.constant dense<0.000000e+00> : vector<1x8xf32>
    %200 = tpu.matmul %199, %5, %cst_90 {dimension_numbers = #tpu.dot_dimension_numbers<[1], [0], [0], [1], [0, 0, 1, 1], [], []>} : vector<1x16xbf16>, vector<16x8xbf16>, vector<1x8xf32> -> vector<1x8xf32>
    %201 = arith.addf %200, %8 : vector<1x8xf32>
    %c0_91 = arith.constant 0 : index
    %c3_92 = arith.constant 3 : index
    %c0_93 = arith.constant 0 : index
    %c0_94 = arith.constant 0 : index
    %202 = vector.load %arg8[%c0_91, %c3_92, %c0_93, %c0_94] : memref<1x4x1x8xf32, #tpu.memory_space<vmem>>, vector<1x1x1x8xf32>
    %203 = vector.shape_cast %202 : vector<1x1x1x8xf32> to vector<1x8xf32>
    %204 = vector.shape_cast %201 : vector<1x8xf32> to vector<1x1x1x8xf32>
    tpu.vector_store %arg8[%c0_91, %c3_92, %c0_93, %c0_94], %204 {strides = array<i32>} : memref<1x4x1x8xf32, #tpu.memory_space<vmem>>, vector<1x1x1x8xf32>,
    return
  }
  func.func @transform_0(%arg0: i32) -> (i32, i32, i32) {
    %c0_i32 = arith.constant 0 : i32
    %c0_i32_0 = arith.constant 0 : i32
    %c0_i32_1 = arith.constant 0 : i32
    return %arg0, %c0_i32, %c0_i32_0 : i32, i32, i32
  }
  func.func @transform_1(%arg0: i32) -> (i32, i32) {
    %c0_i32 = arith.constant 0 : i32
    %c0_i32_0 = arith.constant 0 : i32
    %c0_i32_1 = arith.constant 0 : i32
    return %c0_i32, %c0_i32_0 : i32, i32
  }
  func.func @transform_2(%arg0: i32) -> (i32, i32) {
    %c0_i32 = arith.constant 0 : i32
    %c0_i32_0 = arith.constant 0 : i32
    %c0_i32_1 = arith.constant 0 : i32
    return %c0_i32, %c0_i32_0 : i32, i32
  }
  func.func @transform_3(%arg0: i32) -> (i32, i32) {
    %c0_i32 = arith.constant 0 : i32
    %c0_i32_0 = arith.constant 0 : i32
    %c0_i32_1 = arith.constant 0 : i32
    return %c0_i32, %c0_i32_0 : i32, i32
  }
  func.func @transform_4(%arg0: i32) -> (i32, i32) {
    %c0_i32 = arith.constant 0 : i32
    %c0_i32_0 = arith.constant 0 : i32
    %c0_i32_1 = arith.constant 0 : i32
    return %c0_i32, %c0_i32_0 : i32, i32
  }
  func.func @transform_5(%arg0: i32) -> (i32, i32) {
    %c0_i32 = arith.constant 0 : i32
    %c0_i32_0 = arith.constant 0 : i32
    %c0_i32_1 = arith.constant 0 : i32
    return %c0_i32, %c0_i32_0 : i32, i32
  }
  func.func @transform_6(%arg0: i32) -> (i32, i32) {
    %c0_i32 = arith.constant 0 : i32
    %c0_i32_0 = arith.constant 0 : i32
    %c0_i32_1 = arith.constant 0 : i32
    return %c0_i32, %c0_i32_0 : i32, i32
  }
  func.func @transform_7(%arg0: i32) -> (i32, i32, i32, i32) {
    %c0_i32 = arith.constant 0 : i32
    %c0_i32_0 = arith.constant 0 : i32
    %c0_i32_1 = arith.constant 0 : i32
    %c0_i32_2 = arith.constant 0 : i32
    return %arg0, %c0_i32, %c0_i32_0, %c0_i32_1 : i32, i32, i32, i32
  }
}

</mosaic_0001>

<llo_original>
// kernel: dpad_forward.7
$region0: #{dpad_forward.7}
  #allocation0 [shape = 'u32[]', space=smem, size = 0x4, offset = 0x4, fixed_abs, tag = 'smem constant byte address 0x4 - core index']
  #allocation1 [shape = 'u32[144,128]{1,0:T(1,128)}', space=vmem, size = 0x12000, scoped, tag = 'internal scratch']
  %s0 = inlined_call_operand.vmem [shape: f32[4,8,16], index: 0, kind: input, shape index: {}]
  %s1 = inlined_call_operand.vmem [shape: f32[4,4,3], index: 1, kind: input, shape index: {}]
  %s2 = inlined_call_operand.vmem [shape: f32[4,1,4], index: 2, kind: input, shape index: {}]
  %s3 = inlined_call_operand.vmem [shape: f32[4,4,8,16], index: 3, kind: output, shape index: {}]
  %s4 = sld [smem:[#allocation0]]
  $region45: #{dpad_forward.7} parent=0
    _
  %s6 = ssub.s32 1, %s4
  %s7 = scalar_select 0, %s6, %s4
  loop: start=0, step=1, limit=6
  $region2: #{dpad_forward.7} parent=0 // loop_pre_header
    _
  $region3: #{dpad_forward.7} parent=0 // loop_header
    %s9 = sphi 0, %s13
    %p10 = scmp.ge.s32.totalorder %s9, 6
    %s19 = sphi 0, %s21
    %s22 = sphi 0, %s19
    %s23 = sphi 0, %s22
    %s39 = sphi 0, %s23
    %s45 = sphi 0, %s47
    %s48 = sphi 0, %s45
    %s49 = sphi 0, %s48
    %s65 = sphi 0, %s49
    %s71 = sphi 0, %s73
    %s74 = sphi 0, %s71
    %s75 = sphi 0, %s74
    %s91 = sphi 0, %s75
    %s97 = sphi 0, %s99
    %s100 = sphi 0, %s97
    %s101 = sphi 0, %s100
    %s117 = sphi 0, %s101
  $region4: #{dpad_forward.7} parent=0 // loop_header_branch
    %12 = sbr.rel (%p10) target = $region8
  $region5: #{dpad_forward.7} parent=0 // loop_body
    %s14 = ssub.s32 %s9, 1
    %s15 = ssub.s32 %s9, 2
    %s16 = sadd.s32 %s9, 1
    %s17 = ssub.s32 %s9, %s16
    %p18 = scmp.eq.s32.totalorder %s17, 0
    %s20 = sadd.s32 %s19, 1
    %s21 = scalar_select %p18, %s19, %s20
    %p24 = pneg %p18
    %p25 = scmp.eq.s32.totalorder %s9, 3
    %p26 = por %p24, %p25
    %p27 = scmp.ne.s32.totalorder %s19, %s22
    %p28 = scmp.eq.s32.totalorder %s9, 0
    %p29 = por %p27, %p28
    %p30 = scmp.ne.s32.totalorder %s19, %s22
    %p31 = scmp.eq.s32.totalorder %s14, 3
    %p32 = por %p30, %p31
    %p33 = scmp.ne.s32.totalorder %s22, %s23
    %p34 = scmp.eq.s32.totalorder %s14, 0
    %p35 = por %p33, %p34
    %p36 = scmp.ne.s32.totalorder %s22, %s23
    %p37 = scmp.eq.s32.totalorder %s15, 3
    %p38 = por %p36, %p37
    %p40 = scmp.ne.s32.totalorder %s23, %s39
    %p41 = scmp.eq.s32.totalorder %s15, 0
    %p42 = por %p40, %p41
    %s43 = ssub.s32 %s9, %s16
    %p44 = scmp.eq.s32.totalorder %s43, 0
    %s46 = sadd.s32 %s45, 1
    %s47 = scalar_select %p44, %s45, %s46
    %p50 = pneg %p44
    %p51 = scmp.eq.s32.totalorder %s9, 3
    %p52 = por %p50, %p51
    %p53 = scmp.ne.s32.totalorder %s45, %s48
    %p54 = scmp.eq.s32.totalorder %s9, 0
    %p55 = por %p53, %p54
    %p56 = scmp.ne.s32.totalorder %s45, %s48
    %p57 = scmp.eq.s32.totalorder %s14, 3
    %p58 = por %p56, %p57
    %p59 = scmp.ne.s32.totalorder %s48, %s49
    %p60 = scmp.eq.s32.totalorder %s14, 0
    %p61 = por %p59, %p60
    %p62 = scmp.ne.s32.totalorder %s48, %s49
    %p63 = scmp.eq.s32.totalorder %s15, 3
    %p64 = por %p62, %p63
    %p66 = scmp.ne.s32.totalorder %s49, %s65
    %p67 = scmp.eq.s32.totalorder %s15, 0
    %p68 = por %p66, %p67
    %s69 = ssub.s32 %s9, %s16
    %p70 = scmp.eq.s32.totalorder %s69, 0
    %s72 = sadd.s32 %s71, 1
    %s73 = scalar_select %p70, %s71, %s72
    %p76 = pneg %p70
    %p77 = scmp.eq.s32.totalorder %s9, 3
    %p78 = por %p76, %p77
    %p79 = scmp.ne.s32.totalorder %s71, %s74
    %p80 = scmp.eq.s32.totalorder %s9, 0
    %p81 = por %p79, %p80
    %p82 = scmp.ne.s32.totalorder %s71, %s74
    %p83 = scmp.eq.s32.totalorder %s14, 3
    %p84 = por %p82, %p83
    %p85 = scmp.ne.s32.totalorder %s74, %s75
    %p86 = scmp.eq.s32.totalorder %s14, 0
    %p87 = por %p85, %p86
    %p88 = scmp.ne.s32.totalorder %s74, %s75
    %p89 = scmp.eq.s32.totalorder %s15, 3
    %p90 = por %p88, %p89
    %p92 = scmp.ne.s32.totalorder %s75, %s91
    %p93 = scmp.eq.s32.totalorder %s15, 0
    %p94 = por %p92, %p93
    %s95 = ssub.s32 %s9, %s16
    %p96 = scmp.eq.s32.totalorder %s95, 0
    %s98 = sadd.s32 %s97, 1
    %s99 = scalar_select %p96, %s97, %s98
    %p102 = pneg %p96
    %p103 = scmp.eq.s32.totalorder %s9, 3
    %p104 = por %p102, %p103
    %p105 = scmp.ne.s32.totalorder %s97, %s100
    %p106 = scmp.eq.s32.totalorder %s9, 0
    %p107 = por %p105, %p106
    %p108 = scmp.ne.s32.totalorder %s97, %s100
    %p109 = scmp.eq.s32.totalorder %s14, 3
    %p110 = por %p108, %p109
    %p111 = scmp.ne.s32.totalorder %s100, %s101
    %p112 = scmp.eq.s32.totalorder %s14, 0
    %p113 = por %p111, %p112
    %p114 = scmp.ne.s32.totalorder %s100, %s101
    %p115 = scmp.eq.s32.totalorder %s15, 3
    %p116 = por %p114, %p115
    %p118 = scmp.ne.s32.totalorder %s101, %s117
    %p119 = scmp.eq.s32.totalorder %s15, 0
    %p120 = por %p118, %p119
    %p121 = scmp.le.s32.totalorder 1, %s9
    %p122 = scmp.lt.s32.totalorder %s9, 5
    %p123 = pnand %p121, %p122
    %p124 = pneg %p123
    // Predicated region
    $region9: #{dpad_forward.7} parent=5 // pred_check
      _
    $region10: #{dpad_forward.7} parent=5 // pred_check_branch
      %126 = sbr.rel (%p123) target = $region12
    $region11: #{dpad_forward.7} parent=5 // pred_region
      %s127 = ssub.s32 %s9, 1
    $region12: #{dpad_forward.7} parent=5 // pred_fallthru
      _
    %p128 = scmp.lt.s32.totalorder %s9, 4
    // Predicated region
    $region13: #{dpad_forward.7} parent=5 // pred_check
      %p129 = pneg %p128
    $region14: #{dpad_forward.7} parent=5 // pred_check_branch
      %131 = sbr.rel (%p129) target = $region16
    $region15: #{dpad_forward.7} parent=5 // pred_region
      // Predicated region
      $region17: #{dpad_forward.7} parent=15 // pred_check
        %p132 = pneg %p29
      $region18: #{dpad_forward.7} parent=15 // pred_check_branch
        %134 = sbr.rel (%p132) target = $region20
      $region19: #{dpad_forward.7} parent=15 // pred_region
        %p135 = scmp.lt.s32.totalorder %s9, 3
        %s136 = scalar_select %p135, %s9, 3
        %s137 = smul.addr %s136, 8
        %s138 = scalar_lea.vmem %s0, %s137
      $region20: #{dpad_forward.7} parent=15 // pred_fallthru
        _
      // Predicated region
      $region21: #{dpad_forward.7} parent=15 // pred_check
        %p139 = pneg %p55
      $region22: #{dpad_forward.7} parent=15 // pred_check_branch
        %141 = sbr.rel (%p139) target = $region24
      $region23: #{dpad_forward.7} parent=15 // pred_region
        %p142 = scmp.lt.s32.totalorder %s9, 3
        %s143 = scalar_select %p142, %s9, 3
        %s144 = smul.addr %s143, 4
        %s145 = scalar_lea.vmem %s1, %s144
      $region24: #{dpad_forward.7} parent=15 // pred_fallthru
        _
      // Predicated region
      $region25: #{dpad_forward.7} parent=15 // pred_check
        %p146 = pneg %p81
      $region26: #{dpad_forward.7} parent=15 // pred_check_branch
        %148 = sbr.rel (%p146) target = $region28
      $region27: #{dpad_forward.7} parent=15 // pred_region
        %p149 = scmp.lt.s32.totalorder %s9, 3
        %s150 = scalar_select %p149, %s9, 3
        %s151 = scalar_lea.vmem %s2, %s150
      $region28: #{dpad_forward.7} parent=15 // pred_fallthru
        _
    $region16: #{dpad_forward.7} parent=5 // pred_fallthru
      _
    %p152 = scmp.le.s32.totalorder 1, %s9
    %p153 = scmp.lt.s32.totalorder %s9, 5
    %p154 = pnand %p152, %p153
    %p155 = pneg %p154
    // Predicated region
    $region29: #{dpad_forward.7} parent=5 // pred_check
      _
    $region30: #{dpad_forward.7} parent=5 // pred_check_branch
      %157 = sbr.rel (%p154) target = $region32
    $region31: #{dpad_forward.7} parent=5 // pred_region
      %s158 = ssub.s32 %s9, 1
      %p159 = scmp.lt.s32.totalorder %s14, 3
      %s160 = scalar_select %p159, %s14, 3
      %s161 = smul.addr %s160, 8
      %s162 = scalar_lea.vmem %s0, %s161
      %p163 = pneg %p35
      %p164 = pneg %p32
      %p165 = scmp.lt.s32.totalorder %s14, 3
      %s166 = scalar_select %p165, %s14, 3
      %s167 = smul.addr %s166, 4
      %s168 = scalar_lea.vmem %s1, %s167
      %p169 = pneg %p61
      %p170 = pneg %p58
      %p171 = scmp.lt.s32.totalorder %s14, 3
      %s172 = scalar_select %p171, %s14, 3
      %s173 = scalar_lea.vmem %s2, %s172
      %p174 = pneg %p87
      %p175 = pneg %p84
      %p176 = pneg %p113
      %p177 = pneg %p110
      %p178 = scmp.lt.s32.totalorder %s14, 3
      %s179 = scalar_select %p178, %s14, 3
      %s180 = smul.addr %s179, 4
      %s181 = smul.addr %s180, 8
      %s182 = scalar_lea.vmem %s3, %s181
      %p183 = scmp.lt.s32.totalorder %s14, 3
      %s184 = scalar_select %p183, %s14, 3
      %s185 = smul.addr %s184, 8
      %s186 = scalar_lea.vmem %s0, %s185
      %p187 = scmp.lt.s32.totalorder %s14, 3
      %s188 = scalar_select %p187, %s14, 3
      %s189 = smul.addr %s188, 4
      %s190 = scalar_lea.vmem %s1, %s189
      %p191 = scmp.lt.s32.totalorder %s14, 3
      %s192 = scalar_select %p191, %s14, 3
      %s193 = scalar_lea.vmem %s2, %s192
      %p194 = scmp.lt.s32.totalorder %s14, 3
      %s195 = scalar_select %p194, %s14, 3
      %s196 = smul.addr %s195, 4
      %s197 = smul.addr %s196, 8
      %s198 = scalar_lea.vmem %s3, %s197
      %v199 = vlaneseq
      %v200 = vshrl.u32 %v199, 7
      %v201 = vadd.s32 %v200, 8
      %v202 = vlaneseq
      %v203 = vand.u32 %v202, 127
      %v204 = vsub.s32 %v203, 1
      %vm205 = vcmp.eq.s32.totalorder %v200, %v204
      %vm206 = vcmp.eq.s32.totalorder %v201, %v204
      %v207 = vsel %vm205, 1, 0
      %v208 = vsel %vm206, 1, 0
      %v209 = vcvt.s32.f32 %v207
      %v210 = vcvt.s32.f32 %v208
      %v211 = vadd.s32 %v203, 1
      %vm212 = vcmp.eq.s32.totalorder %v200, %v211
      %vm213 = vcmp.eq.s32.totalorder %v201, %v211
      %v214 = vsel %vm212, 1, 0
      %v215 = vsel %vm213, 1, 0
      %v216 = vcvt.s32.f32 %v214
      %v217 = vcvt.s32.f32 %v215
      %v218 = vld [vmem:[%s186] sm:$0xff]
      %vm219 = vcmask 130048
      %v221 = vsel %vm219, %v218, 0
      %223 = vmatprep.subr.mxu0 0.0
      %224 = vmatpush1.msra.mxu0 0.0
      %225 = vmatprep.subr.mxu0 0.0
      %226 = vmatpush1.msra.mxu0 0.0
      %227 = vmatprep.subr.mxu0 0.0
      %228 = vmatpush1.msra.mxu0 0.0
      %229 = vmatprep.subr.mxu0 0.0
      %230 = vmatpush1.msra.mxu0 0.0
      %231 = vmatprep.subr.mxu0 0.0
      %232 = vmatpush1.msra.mxu0 0.0
      %233 = vmatprep.subr.mxu0 0.0
      %234 = vmatpush1.msra.mxu0 0.0
      %235 = vmatprep.subr.mxu0 0.0
      %236 = vmatpush1.msra.mxu0 0.0
      %237 = vmatprep.subr.mxu0 0.0
      %238 = vmatpush1.msra.mxu0 0.0
      %239 = vmatprep.subr.mxu0 0.0
      %240 = vmatpush1.msra.mxu0 0.0
      %241 = vmatprep.subr.mxu0 0.0
      %242 = vmatpush1.msra.mxu0 0.0
      %243 = vmatprep.subr.mxu0 0.0
      %244 = vmatpush1.msra.mxu0 0.0
      %245 = vmatprep.subr.mxu0 0.0
      %246 = vmatpush1.msra.mxu0 0.0
      %247 = vmatprep.subr.mxu0 0.0
      %248 = vmatpush1.msra.mxu0 0.0
      %249 = vmatprep.subr.mxu0 0.0
      %250 = vmatpush1.msra.mxu0 0.0
      %251 = vmatprep.subr.mxu0 0.0
      %252 = vmatpush1.msra.mxu0 %v210
      %253 = vmatprep.subr.mxu0 0.0
      %254 = vmatpush1.msra.mxu0 %v209
      %255 = vmatprep.subr.mxu0 0.0
      %256 = vmatpush2.msra.mxu0 0.0
      %257 = vmatprep.subr.mxu0 0.0
      %258 = vmatpush2.msra.mxu0 0.0
      %259 = vmatprep.subr.mxu0 0.0
      %260 = vmatpush2.msra.mxu0 0.0
      %261 = vmatprep.subr.mxu0 0.0
      %262 = vmatpush2.msra.mxu0 0.0
      %263 = vmatprep.subr.mxu0 0.0
      %264 = vmatpush2.msra.mxu0 0.0
      %265 = vmatprep.subr.mxu0 0.0
      %266 = vmatpush2.msra.mxu0 0.0
      %267 = vmatprep.subr.mxu0 0.0
      %268 = vmatpush2.msra.mxu0 0.0
      %269 = vmatprep.subr.mxu0 0.0
      %270 = vmatpush2.msra.mxu0 0.0
      %271 = vmatprep.subr.mxu0 0.0
      %272 = vmatpush2.msra.mxu0 0.0
      %273 = vmatprep.subr.mxu0 0.0
      %274 = vmatpush2.msra.mxu0 0.0
      %275 = vmatprep.subr.mxu0 0.0
      %276 = vmatpush2.msra.mxu0 0.0
      %277 = vmatprep.subr.mxu0 0.0
      %278 = vmatpush2.msra.mxu0 0.0
      %279 = vmatprep.subr.mxu0 0.0
      %280 = vmatpush2.msra.mxu0 0.0
      %281 = vmatprep.subr.mxu0 0.0
      %282 = vmatpush2.msra.mxu0 0.0
      %283 = vmatprep.subr.mxu0 0.0
      %284 = vmatpush2.msra.mxu0 0.0
      %285 = vmatprep.subr.mxu0 0.0
      %286 = vmatpush2.msra.mxu0 0.0
      %287 = vmatprep.mubr.f32.mxu0 0.0
      %288 = vmatmul.mubr.f32.gmra.mxu0 %v221
      %v289 = vpop.f32.mrf.mxu0
      %v290 = vadd.f32 0.0, %v289
      %v291 = vpop.f32.mrf.mxu0
      %292 = vdwg.mxu0
      %293 = vmatprep.subr.mxu0 0.0
      %294 = vmatpush1.msra.mxu0 0.0
      %295 = vmatprep.subr.mxu0 0.0
      %296 = vmatpush1.msra.mxu0 0.0
      %297 = vmatprep.subr.mxu0 0.0
      %298 = vmatpush1.msra.mxu0 0.0
      %299 = vmatprep.subr.mxu0 0.0
      %300 = vmatpush1.msra.mxu0 0.0
      %301 = vmatprep.subr.mxu0 0.0
      %302 = vmatpush1.msra.mxu0 0.0
      %303 = vmatprep.subr.mxu0 0.0
      %304 = vmatpush1.msra.mxu0 0.0
      %305 = vmatprep.subr.mxu0 0.0
      %306 = vmatpush1.msra.mxu0 0.0
      %307 = vmatprep.subr.mxu0 0.0
      %308 = vmatpush1.msra.mxu0 0.0
      %309 = vmatprep.subr.mxu0 0.0
      %310 = vmatpush1.msra.mxu0 0.0
      %311 = vmatprep.subr.mxu0 0.0
      %312 = vmatpush1.msra.mxu0 0.0
      %313 = vmatprep.subr.mxu0 0.0
      %314 = vmatpush1.msra.mxu0 0.0
      %315 = vmatprep.subr.mxu0 0.0
      %316 = vmatpush1.msra.mxu0 0.0
      %317 = vmatprep.subr.mxu0 0.0
      %318 = vmatpush1.msra.mxu0 0.0
      %319 = vmatprep.subr.mxu0 0.0
      %320 = vmatpush1.msra.mxu0 0.0
      %321 = vmatprep.subr.mxu0 0.0
      %322 = vmatpush1.msra.mxu0 %v217
      %323 = vmatprep.subr.mxu0 0.0
      %324 = vmatpush1.msra.mxu0 %v216
      %325 = vmatprep.subr.mxu0 0.0
      %326 = vmatpush2.msra.mxu0 0.0
      %327 = vmatprep.subr.mxu0 0.0
      %328 = vmatpush2.msra.mxu0 0.0
      %329 = vmatprep.subr.mxu0 0.0
      %330 = vmatpush2.msra.mxu0 0.0
      %331 = vmatprep.subr.mxu0 0.0
      %332 = vmatpush2.msra.mxu0 0.0
      %333 = vmatprep.subr.mxu0 0.0
      %334 = vmatpush2.msra.mxu0 0.0
      %335 = vmatprep.subr.mxu0 0.0
      %336 = vmatpush2.msra.mxu0 0.0
      %337 = vmatprep.subr.mxu0 0.0
      %338 = vmatpush2.msra.mxu0 0.0
      %339 = vmatprep.subr.mxu0 0.0
      %340 = vmatpush2.msra.mxu0 0.0
      %341 = vmatprep.subr.mxu0 0.0
      %342 = vmatpush2.msra.mxu0 0.0
      %343 = vmatprep.subr.mxu0 0.0
      %344 = vmatpush2.msra.mxu0 0.0
      %345 = vmatprep.subr.mxu0 0.0
      %346 = vmatpush2.msra.mxu0 0.0
      %347 = vmatprep.subr.mxu0 0.0
      %348 = vmatpush2.msra.mxu0 0.0
      %349 = vmatprep.subr.mxu0 0.0
      %350 = vmatpush2.msra.mxu0 0.0
      %351 = vmatprep.subr.mxu0 0.0
      %352 = vmatpush2.msra.mxu0 0.0
      %353 = vmatprep.subr.mxu0 0.0
      %354 = vmatpush2.msra.mxu0 0.0
      %355 = vmatprep.subr.mxu0 0.0
      %356 = vmatpush2.msra.mxu0 0.0
      %357 = vmatprep.mubr.f32.mxu0 0.0
      %358 = vmatmul.mubr.f32.gmra.mxu0 %v221
      %v359 = vpop.f32.mrf.mxu0
      %v360 = vadd.f32 0.0, %v359
      %v361 = vpop.f32.mrf.mxu0
      %362 = vdwg.mxu0
      %v363 = vld [vmem:[%s190] sm:$0xf]
      %v364 = vld [vmem:[%s193] sm:$0x1]
      %s366 = vtos %v363
      %v367 = vstv %s366
      %v369 = vmul.f32 %v290, %v367
      %370 = vrot.lane.b32.xlu0 %v363, 127
      %v371 = vpop.permute.xlu0 %370
      %s372 = vtos %v371
      %v373 = vstv %s372
      %v375 = vmul.f32 %v218, %v373
      %v376 = vadd.f32 %v369, %v375
      %377 = vrot.lane.b32.xlu0 %v363, 126
      %v378 = vpop.permute.xlu0 %377
      %s379 = vtos %v378
      %v380 = vstv %s379
      %v382 = vmul.f32 %v360, %v380
      %v383 = vadd.f32 %v376, %v382
      %v385 = vlaneseq
      %v386 = vshrl.u32 %v385, 7
      %v387 = vsub.s32 0, %v386
      %v388 = vrot.slane %v364, %v387
      %389 = vset.pattern.permute.xlu0 0
      %390 = vperm.xlu0 %389, %v388
      %v391 = vpop.permute.xlu0 %390
      %v393 = vadd.f32 %v383, %v391
      %v394 = vrot.slane %v363, 1
      %s395 = vtos %v394
      %v396 = vstv %s395
      %v398 = vmul.f32 %v290, %v396
      %399 = vrot.lane.b32.xlu0 %v394, 127
      %v400 = vpop.permute.xlu0 %399
      %s401 = vtos %v400
      %v402 = vstv %s401
      %v404 = vmul.f32 %v218, %v402
      %v405 = vadd.f32 %v398, %v404
      %406 = vrot.lane.b32.xlu0 %v394, 126
      %v407 = vpop.permute.xlu0 %406
      %s408 = vtos %v407
      %v409 = vstv %s408
      %v411 = vmul.f32 %v360, %v409
      %v412 = vadd.f32 %v405, %v411
      %413 = vset.pattern.permute.xlu0 1
      %414 = vperm.xlu0 %413, %v388
      %v415 = vpop.permute.xlu0 %414
      %v417 = vadd.f32 %v412, %v415
      %v418 = vrot.slane %v363, 2
      %s419 = vtos %v418
      %v420 = vstv %s419
      %v422 = vmul.f32 %v290, %v420
      %423 = vrot.lane.b32.xlu0 %v418, 127
      %v424 = vpop.permute.xlu0 %423
      %s425 = vtos %v424
      %v426 = vstv %s425
      %v428 = vmul.f32 %v218, %v426
      %v429 = vadd.f32 %v422, %v428
      %430 = vrot.lane.b32.xlu0 %v418, 126
      %v431 = vpop.permute.xlu0 %430
      %s432 = vtos %v431
      %v433 = vstv %s432
      %v435 = vmul.f32 %v360, %v433
      %v436 = vadd.f32 %v429, %v435
      %437 = vset.pattern.permute.xlu0 2
      %438 = vperm.xlu0 %437, %v388
      %v439 = vpop.permute.xlu0 %438
      %v441 = vadd.f32 %v436, %v439
      %v442 = vrot.slane %v363, 3
      %s443 = vtos %v442
      %v444 = vstv %s443
      %v446 = vmul.f32 %v290, %v444
      %447 = vrot.lane.b32.xlu0 %v442, 127
      %v448 = vpop.permute.xlu0 %447
      %s449 = vtos %v448
      %v450 = vstv %s449
      %v452 = vmul.f32 %v218, %v450
      %v453 = vadd.f32 %v446, %v452
      %454 = vrot.lane.b32.xlu0 %v442, 126
      %v455 = vpop.permute.xlu0 %454
      %s456 = vtos %v455
      %v457 = vstv %s456
      %v459 = vmul.f32 %v360, %v457
      %v460 = vadd.f32 %v453, %v459
      %461 = vset.pattern.permute.xlu0 3
      %462 = vperm.xlu0 %461, %v388
      %v463 = vpop.permute.xlu0 %462
      %v465 = vadd.f32 %v460, %v463
      %466 = vst.msk [vmem:[%s198] sm:$0xff] %vm219, %v393
      %s467 = scalar_lea.vmem %s198, 8
      %468 = vst.msk [vmem:[%s467] sm:$0xff] %vm219, %v417
      %s469 = scalar_lea.vmem %s198, 16
      %470 = vst.msk [vmem:[%s469] sm:$0xff] %vm219, %v441
      %s471 = scalar_lea.vmem %s198, 24
      %472 = vst.msk [vmem:[%s471] sm:$0xff] %vm219, %v465
      %p473 = scmp.lt.s32.totalorder %s14, 3
      %s474 = scalar_select %p473, %s14, 3
      %s475 = smul.addr %s474, 4
      %s476 = smul.addr %s475, 8
      %s477 = scalar_lea.vmem %s3, %s476
      // Predicated region
      $region33: #{dpad_forward.7} parent=31 // pred_check
        %p478 = pneg %p110
      $region34: #{dpad_forward.7} parent=31 // pred_check_branch
        %480 = sbr.rel (%p478) target = $region36
      $region35: #{dpad_forward.7} parent=31 // pred_region
        _
      $region36: #{dpad_forward.7} parent=31 // pred_fallthru
        _
    $region32: #{dpad_forward.7} parent=5 // pred_fallthru
      _
    %p481 = scmp.le.s32.totalorder 2, %s9
    // Predicated region
    $region37: #{dpad_forward.7} parent=5 // pred_check
      %p482 = pneg %p481
    $region38: #{dpad_forward.7} parent=5 // pred_check_branch
      %484 = sbr.rel (%p482) target = $region40
    $region39: #{dpad_forward.7} parent=5 // pred_region
      %s485 = ssub.s32 %s9, 2
      // Predicated region
      $region41: #{dpad_forward.7} parent=39 // pred_check
        %p486 = pneg %p116
      $region42: #{dpad_forward.7} parent=39 // pred_check_branch
        %488 = sbr.rel (%p486) target = $region44
      $region43: #{dpad_forward.7} parent=39 // pred_region
        %p489 = scmp.lt.s32.totalorder %s15, 3
        %s490 = scalar_select %p489, %s15, 3
        %s491 = smul.addr %s490, 4
        %s492 = smul.addr %s491, 8
        %s493 = scalar_lea.vmem %s3, %s492
      $region44: #{dpad_forward.7} parent=39 // pred_fallthru
        _
    $region40: #{dpad_forward.7} parent=5 // pred_fallthru
      _
  $region6: #{dpad_forward.7} parent=0 // loop_footer
    %s13 = sadd.s32 1, %s9
  $region7: #{dpad_forward.7} parent=0 // loop_footer_branch
    %8 = sbr.rel target = $region3
  $region8: #{dpad_forward.7} parent=0 // loop_exit
    _

// kernel: dpad_forward.6
$region0: #{dpad_forward.6}
  #allocation0 [shape = 'u32[]', space=smem, size = 0x4, offset = 0x4, fixed_abs, tag = 'smem constant byte address 0x4 - core index']
  #allocation1 [shape = 'u32[144,128]{1,0:T(1,128)}', space=vmem, size = 0x12000, scoped, tag = 'internal scratch']
  %s0 = inlined_call_operand.vmem [shape: f32[2,8,16], index: 0, kind: input, shape index: {}]
  %s1 = inlined_call_operand.vmem [shape: f32[2,4,3], index: 1, kind: input, shape index: {}]
  %s2 = inlined_call_operand.vmem [shape: f32[2,1,4], index: 2, kind: input, shape index: {}]
  %s3 = inlined_call_operand.vmem [shape: f32[2,16,64], index: 3, kind: input, shape index: {}]
  %s4 = inlined_call_operand.vmem [shape: f32[2,1,64], index: 4, kind: input, shape index: {}]
  %s5 = inlined_call_operand.vmem [shape: f32[2,64,2], index: 5, kind: input, shape index: {}]
  %s6 = inlined_call_operand.vmem [shape: f32[2,1,2], index: 6, kind: input, shape index: {}]
  %s7 = inlined_call_operand.vmem [shape: f32[2,16,3], index: 7, kind: input, shape index: {}]
  %s8 = inlined_call_operand.vmem [shape: f32[2,1,4], index: 8, kind: input, shape index: {}]
  %s9 = inlined_call_operand.vmem [shape: f32[2,2,16,16], index: 9, kind: input, shape index: {}]
  %s10 = inlined_call_operand.vmem [shape: f32[2,2,1,16], index: 10, kind: input, shape index: {}]
  %s11 = inlined_call_operand.vmem [shape: f32[2,2,16,16], index: 11, kind: input, shape index: {}]
  %s12 = inlined_call_operand.vmem [shape: f32[2,2,1,16], index: 12, kind: input, shape index: {}]
  %s13 = inlined_call_operand.vmem [shape: f32[2,2,8,16], index: 13, kind: output, shape index: {}]
  %s14 = sld [smem:[#allocation0]]
  $region85: #{dpad_forward.6} parent=0
    _
  %s16 = ssub.s32 1, %s14
  %s17 = scalar_select 0, %s16, %s14
  loop: start=0, step=1, limit=4
  $region2: #{dpad_forward.6} parent=0 // loop_pre_header
    _
  $region3: #{dpad_forward.6} parent=0 // loop_header
    %s19 = sphi 0, %s23
    %p20 = scmp.ge.s32.totalorder %s19, 4
    %s29 = sphi 0, %s31
    %s32 = sphi 0, %s29
    %s33 = sphi 0, %s32
    %s49 = sphi 0, %s33
    %s55 = sphi 0, %s57
    %s58 = sphi 0, %s55
    %s59 = sphi 0, %s58
    %s75 = sphi 0, %s59
    %s81 = sphi 0, %s83
    %s84 = sphi 0, %s81
    %s85 = sphi 0, %s84
    %s101 = sphi 0, %s85
    %s107 = sphi 0, %s109
    %s110 = sphi 0, %s107
    %s111 = sphi 0, %s110
    %s127 = sphi 0, %s111
    %s133 = sphi 0, %s135
    %s136 = sphi 0, %s133
    %s137 = sphi 0, %s136
    %s153 = sphi 0, %s137
    %s159 = sphi 0, %s161
    %s162 = sphi 0, %s159
    %s163 = sphi 0, %s162
    %s179 = sphi 0, %s163
    %s185 = sphi 0, %s187
    %s188 = sphi 0, %s185
    %s189 = sphi 0, %s188
    %s205 = sphi 0, %s189
    %s211 = sphi 0, %s213
    %s214 = sphi 0, %s211
    %s215 = sphi 0, %s214
    %s231 = sphi 0, %s215
    %s237 = sphi 0, %s239
    %s240 = sphi 0, %s237
    %s241 = sphi 0, %s240
    %s257 = sphi 0, %s241
    %s263 = sphi 0, %s265
    %s266 = sphi 0, %s263
    %s267 = sphi 0, %s266
    %s283 = sphi 0, %s267
    %s289 = sphi 0, %s291
    %s292 = sphi 0, %s289
    %s293 = sphi 0, %s292
    %s309 = sphi 0, %s293
    %s315 = sphi 0, %s317
    %s318 = sphi 0, %s315
    %s319 = sphi 0, %s318
    %s335 = sphi 0, %s319
    %s341 = sphi 0, %s343
    %s344 = sphi 0, %s341
    %s345 = sphi 0, %s344
    %s361 = sphi 0, %s345
    %s367 = sphi 0, %s369
    %s370 = sphi 0, %s367
    %s371 = sphi 0, %s370
    %s387 = sphi 0, %s371
  $region4: #{dpad_forward.6} parent=0 // loop_header_branch
    %22 = sbr.rel (%p20) target = $region8
  $region5: #{dpad_forward.6} parent=0 // loop_body
    %s24 = ssub.s32 %s19, 1
    %s25 = ssub.s32 %s19, 2
    %s26 = sadd.s32 %s19, 1
    %s27 = ssub.s32 %s19, %s26
    %p28 = scmp.eq.s32.totalorder %s27, 0
    %s30 = sadd.s32 %s29, 1
    %s31 = scalar_select %p28, %s29, %s30
    %p34 = pneg %p28
    %p35 = scmp.eq.s32.totalorder %s19, 1
    %p36 = por %p34, %p35
    %p37 = scmp.ne.s32.totalorder %s29, %s32
    %p38 = scmp.eq.s32.totalorder %s19, 0
    %p39 = por %p37, %p38
    %p40 = scmp.ne.s32.totalorder %s29, %s32
    %p41 = scmp.eq.s32.totalorder %s24, 1
    %p42 = por %p40, %p41
    %p43 = scmp.ne.s32.totalorder %s32, %s33
    %p44 = scmp.eq.s32.totalorder %s24, 0
    %p45 = por %p43, %p44
    %p46 = scmp.ne.s32.totalorder %s32, %s33
    %p47 = scmp.eq.s32.totalorder %s25, 1
    %p48 = por %p46, %p47
    %p50 = scmp.ne.s32.totalorder %s33, %s49
    %p51 = scmp.eq.s32.totalorder %s25, 0
    %p52 = por %p50, %p51
    %s53 = ssub.s32 %s19, %s26
    %p54 = scmp.eq.s32.totalorder %s53, 0
    %s56 = sadd.s32 %s55, 1
    %s57 = scalar_select %p54, %s55, %s56
    %p60 = pneg %p54
    %p61 = scmp.eq.s32.totalorder %s19, 1
    %p62 = por %p60, %p61
    %p63 = scmp.ne.s32.totalorder %s55, %s58
    %p64 = scmp.eq.s32.totalorder %s19, 0
    %p65 = por %p63, %p64
    %p66 = scmp.ne.s32.totalorder %s55, %s58
    %p67 = scmp.eq.s32.totalorder %s24, 1
    %p68 = por %p66, %p67
    %p69 = scmp.ne.s32.totalorder %s58, %s59
    %p70 = scmp.eq.s32.totalorder %s24, 0
    %p71 = por %p69, %p70
    %p72 = scmp.ne.s32.totalorder %s58, %s59
    %p73 = scmp.eq.s32.totalorder %s25, 1
    %p74 = por %p72, %p73
    %p76 = scmp.ne.s32.totalorder %s59, %s75
    %p77 = scmp.eq.s32.totalorder %s25, 0
    %p78 = por %p76, %p77
    %s79 = ssub.s32 %s19, %s26
    %p80 = scmp.eq.s32.totalorder %s79, 0
    %s82 = sadd.s32 %s81, 1
    %s83 = scalar_select %p80, %s81, %s82
    %p86 = pneg %p80
    %p87 = scmp.eq.s32.totalorder %s19, 1
    %p88 = por %p86, %p87
    %p89 = scmp.ne.s32.totalorder %s81, %s84
    %p90 = scmp.eq.s32.totalorder %s19, 0
    %p91 = por %p89, %p90
    %p92 = scmp.ne.s32.totalorder %s81, %s84
    %p93 = scmp.eq.s32.totalorder %s24, 1
    %p94 = por %p92, %p93
    %p95 = scmp.ne.s32.totalorder %s84, %s85
    %p96 = scmp.eq.s32.totalorder %s24, 0
    %p97 = por %p95, %p96
    %p98 = scmp.ne.s32.totalorder %s84, %s85
    %p99 = scmp.eq.s32.totalorder %s25, 1
    %p100 = por %p98, %p99
    %p102 = scmp.ne.s32.totalorder %s85, %s101
    %p103 = scmp.eq.s32.totalorder %s25, 0
    %p104 = por %p102, %p103
    %s105 = ssub.s32 %s19, %s26
    %p106 = scmp.eq.s32.totalorder %s105, 0
    %s108 = sadd.s32 %s107, 1
    %s109 = scalar_select %p106, %s107, %s108
    %p112 = pneg %p106
    %p113 = scmp.eq.s32.totalorder %s19, 1
    %p114 = por %p112, %p113
    %p115 = scmp.ne.s32.totalorder %s107, %s110
    %p116 = scmp.eq.s32.totalorder %s19, 0
    %p117 = por %p115, %p116
    %p118 = scmp.ne.s32.totalorder %s107, %s110
    %p119 = scmp.eq.s32.totalorder %s24, 1
    %p120 = por %p118, %p119
    %p121 = scmp.ne.s32.totalorder %s110, %s111
    %p122 = scmp.eq.s32.totalorder %s24, 0
    %p123 = por %p121, %p122
    %p124 = scmp.ne.s32.totalorder %s110, %s111
    %p125 = scmp.eq.s32.totalorder %s25, 1
    %p126 = por %p124, %p125
    %p128 = scmp.ne.s32.totalorder %s111, %s127
    %p129 = scmp.eq.s32.totalorder %s25, 0
    %p130 = por %p128, %p129
    %s131 = ssub.s32 %s19, %s26
    %p132 = scmp.eq.s32.totalorder %s131, 0
    %s134 = sadd.s32 %s133, 1
    %s135 = scalar_select %p132, %s133, %s134
    %p138 = pneg %p132
    %p139 = scmp.eq.s32.totalorder %s19, 1
    %p140 = por %p138, %p139
    %p141 = scmp.ne.s32.totalorder %s133, %s136
    %p142 = scmp.eq.s32.totalorder %s19, 0
    %p143 = por %p141, %p142
    %p144 = scmp.ne.s32.totalorder %s133, %s136
    %p145 = scmp.eq.s32.totalorder %s24, 1
    %p146 = por %p144, %p145
    %p147 = scmp.ne.s32.totalorder %s136, %s137
    %p148 = scmp.eq.s32.totalorder %s24, 0
    %p149 = por %p147, %p148
    %p150 = scmp.ne.s32.totalorder %s136, %s137
    %p151 = scmp.eq.s32.totalorder %s25, 1
    %p152 = por %p150, %p151
    %p154 = scmp.ne.s32.totalorder %s137, %s153
    %p155 = scmp.eq.s32.totalorder %s25, 0
    %p156 = por %p154, %p155
    %s157 = ssub.s32 %s19, %s26
    %p158 = scmp.eq.s32.totalorder %s157, 0
    %s160 = sadd.s32 %s159, 1
    %s161 = scalar_select %p158, %s159, %s160
    %p164 = pneg %p158
    %p165 = scmp.eq.s32.totalorder %s19, 1
    %p166 = por %p164, %p165
    %p167 = scmp.ne.s32.totalorder %s159, %s162
    %p168 = scmp.eq.s32.totalorder %s19, 0
    %p169 = por %p167, %p168
    %p170 = scmp.ne.s32.totalorder %s159, %s162
    %p171 = scmp.eq.s32.totalorder %s24, 1
    %p172 = por %p170, %p171
    %p173 = scmp.ne.s32.totalorder %s162, %s163
    %p174 = scmp.eq.s32.totalorder %s24, 0
    %p175 = por %p173, %p174
    %p176 = scmp.ne.s32.totalorder %s162, %s163
    %p177 = scmp.eq.s32.totalorder %s25, 1
    %p178 = por %p176, %p177
    %p180 = scmp.ne.s32.totalorder %s163, %s179
    %p181 = scmp.eq.s32.totalorder %s25, 0
    %p182 = por %p180, %p181
    %s183 = ssub.s32 %s19, %s26
    %p184 = scmp.eq.s32.totalorder %s183, 0
    %s186 = sadd.s32 %s185, 1
    %s187 = scalar_select %p184, %s185, %s186
    %p190 = pneg %p184
    %p191 = scmp.eq.s32.totalorder %s19, 1
    %p192 = por %p190, %p191
    %p193 = scmp.ne.s32.totalorder %s185, %s188
    %p194 = scmp.eq.s32.totalorder %s19, 0
    %p195 = por %p193, %p194
    %p196 = scmp.ne.s32.totalorder %s185, %s188
    %p197 = scmp.eq.s32.totalorder %s24, 1
    %p198 = por %p196, %p197
    %p199 = scmp.ne.s32.totalorder %s188, %s189
    %p200 = scmp.eq.s32.totalorder %s24, 0
    %p201 = por %p199, %p200
    %p202 = scmp.ne.s32.totalorder %s188, %s189
    %p203 = scmp.eq.s32.totalorder %s25, 1
    %p204 = por %p202, %p203
    %p206 = scmp.ne.s32.totalorder %s189, %s205
    %p207 = scmp.eq.s32.totalorder %s25, 0
    %p208 = por %p206, %p207
    %s209 = ssub.s32 %s19, %s26
    %p210 = scmp.eq.s32.totalorder %s209, 0
    %s212 = sadd.s32 %s211, 1
    %s213 = scalar_select %p210, %s211, %s212
    %p216 = pneg %p210
    %p217 = scmp.eq.s32.totalorder %s19, 1
    %p218 = por %p216, %p217
    %p219 = scmp.ne.s32.totalorder %s211, %s214
    %p220 = scmp.eq.s32.totalorder %s19, 0
    %p221 = por %p219, %p220
    %p222 = scmp.ne.s32.totalorder %s211, %s214
    %p223 = scmp.eq.s32.totalorder %s24, 1
    %p224 = por %p222, %p223
    %p225 = scmp.ne.s32.totalorder %s214, %s215
    %p226 = scmp.eq.s32.totalorder %s24, 0
    %p227 = por %p225, %p226
    %p228 = scmp.ne.s32.totalorder %s214, %s215
    %p229 = scmp.eq.s32.totalorder %s25, 1
    %p230 = por %p228, %p229
    %p232 = scmp.ne.s32.totalorder %s215, %s231
    %p233 = scmp.eq.s32.totalorder %s25, 0
    %p234 = por %p232, %p233
    %s235 = ssub.s32 %s19, %s26
    %p236 = scmp.eq.s32.totalorder %s235, 0
    %s238 = sadd.s32 %s237, 1
    %s239 = scalar_select %p236, %s237, %s238
    %p242 = pneg %p236
    %p243 = scmp.eq.s32.totalorder %s19, 1
    %p244 = por %p242, %p243
    %p245 = scmp.ne.s32.totalorder %s237, %s240
    %p246 = scmp.eq.s32.totalorder %s19, 0
    %p247 = por %p245, %p246
    %p248 = scmp.ne.s32.totalorder %s237, %s240
    %p249 = scmp.eq.s32.totalorder %s24, 1
    %p250 = por %p248, %p249
    %p251 = scmp.ne.s32.totalorder %s240, %s241
    %p252 = scmp.eq.s32.totalorder %s24, 0
    %p253 = por %p251, %p252
    %p254 = scmp.ne.s32.totalorder %s240, %s241
    %p255 = scmp.eq.s32.totalorder %s25, 1
    %p256 = por %p254, %p255
    %p258 = scmp.ne.s32.totalorder %s241, %s257
    %p259 = scmp.eq.s32.totalorder %s25, 0
    %p260 = por %p258, %p259
    %s261 = ssub.s32 %s19, %s26
    %p262 = scmp.eq.s32.totalorder %s261, 0
    %s264 = sadd.s32 %s263, 1
    %s265 = scalar_select %p262, %s263, %s264
    %p268 = pneg %p262
    %p269 = scmp.eq.s32.totalorder %s19, 1
    %p270 = por %p268, %p269
    %p271 = scmp.ne.s32.totalorder %s263, %s266
    %p272 = scmp.eq.s32.totalorder %s19, 0
    %p273 = por %p271, %p272
    %p274 = scmp.ne.s32.totalorder %s263, %s266
    %p275 = scmp.eq.s32.totalorder %s24, 1
    %p276 = por %p274, %p275
    %p277 = scmp.ne.s32.totalorder %s266, %s267
    %p278 = scmp.eq.s32.totalorder %s24, 0
    %p279 = por %p277, %p278
    %p280 = scmp.ne.s32.totalorder %s266, %s267
    %p281 = scmp.eq.s32.totalorder %s25, 1
    %p282 = por %p280, %p281
    %p284 = scmp.ne.s32.totalorder %s267, %s283
    %p285 = scmp.eq.s32.totalorder %s25, 0
    %p286 = por %p284, %p285
    %s287 = ssub.s32 %s19, %s26
    %p288 = scmp.eq.s32.totalorder %s287, 0
    %s290 = sadd.s32 %s289, 1
    %s291 = scalar_select %p288, %s289, %s290
    %p294 = pneg %p288
    %p295 = scmp.eq.s32.totalorder %s19, 1
    %p296 = por %p294, %p295
    %p297 = scmp.ne.s32.totalorder %s289, %s292
    %p298 = scmp.eq.s32.totalorder %s19, 0
    %p299 = por %p297, %p298
    %p300 = scmp.ne.s32.totalorder %s289, %s292
    %p301 = scmp.eq.s32.totalorder %s24, 1
    %p302 = por %p300, %p301
    %p303 = scmp.ne.s32.totalorder %s292, %s293
    %p304 = scmp.eq.s32.totalorder %s24, 0
    %p305 = por %p303, %p304
    %p306 = scmp.ne.s32.totalorder %s292, %s293
    %p307 = scmp.eq.s32.totalorder %s25, 1
    %p308 = por %p306, %p307
    %p310 = scmp.ne.s32.totalorder %s293, %s309
    %p311 = scmp.eq.s32.totalorder %s25, 0
    %p312 = por %p310, %p311
    %s313 = ssub.s32 %s19, %s26
    %p314 = scmp.eq.s32.totalorder %s313, 0
    %s316 = sadd.s32 %s315, 1
    %s317 = scalar_select %p314, %s315, %s316
    %p320 = pneg %p314
    %p321 = scmp.eq.s32.totalorder %s19, 1
    %p322 = por %p320, %p321
    %p323 = scmp.ne.s32.totalorder %s315, %s318
    %p324 = scmp.eq.s32.totalorder %s19, 0
    %p325 = por %p323, %p324
    %p326 = scmp.ne.s32.totalorder %s315, %s318
    %p327 = scmp.eq.s32.totalorder %s24, 1
    %p328 = por %p326, %p327
    %p329 = scmp.ne.s32.totalorder %s318, %s319
    %p330 = scmp.eq.s32.totalorder %s24, 0
    %p331 = por %p329, %p330
    %p332 = scmp.ne.s32.totalorder %s318, %s319
    %p333 = scmp.eq.s32.totalorder %s25, 1
    %p334 = por %p332, %p333
    %p336 = scmp.ne.s32.totalorder %s319, %s335
    %p337 = scmp.eq.s32.totalorder %s25, 0
    %p338 = por %p336, %p337
    %s339 = ssub.s32 %s19, %s26
    %p340 = scmp.eq.s32.totalorder %s339, 0
    %s342 = sadd.s32 %s341, 1
    %s343 = scalar_select %p340, %s341, %s342
    %p346 = pneg %p340
    %p347 = scmp.eq.s32.totalorder %s19, 1
    %p348 = por %p346, %p347
    %p349 = scmp.ne.s32.totalorder %s341, %s344
    %p350 = scmp.eq.s32.totalorder %s19, 0
    %p351 = por %p349, %p350
    %p352 = scmp.ne.s32.totalorder %s341, %s344
    %p353 = scmp.eq.s32.totalorder %s24, 1
    %p354 = por %p352, %p353
    %p355 = scmp.ne.s32.totalorder %s344, %s345
    %p356 = scmp.eq.s32.totalorder %s24, 0
    %p357 = por %p355, %p356
    %p358 = scmp.ne.s32.totalorder %s344, %s345
    %p359 = scmp.eq.s32.totalorder %s25, 1
    %p360 = por %p358, %p359
    %p362 = scmp.ne.s32.totalorder %s345, %s361
    %p363 = scmp.eq.s32.totalorder %s25, 0
    %p364 = por %p362, %p363
    %s365 = ssub.s32 %s19, %s26
    %p366 = scmp.eq.s32.totalorder %s365, 0
    %s368 = sadd.s32 %s367, 1
    %s369 = scalar_select %p366, %s367, %s368
    %p372 = pneg %p366
    %p373 = scmp.eq.s32.totalorder %s19, 1
    %p374 = por %p372, %p373
    %p375 = scmp.ne.s32.totalorder %s367, %s370
    %p376 = scmp.eq.s32.totalorder %s19, 0
    %p377 = por %p375, %p376
    %p378 = scmp.ne.s32.totalorder %s367, %s370
    %p379 = scmp.eq.s32.totalorder %s24, 1
    %p380 = por %p378, %p379
    %p381 = scmp.ne.s32.totalorder %s370, %s371
    %p382 = scmp.eq.s32.totalorder %s24, 0
    %p383 = por %p381, %p382
    %p384 = scmp.ne.s32.totalorder %s370, %s371
    %p385 = scmp.eq.s32.totalorder %s25, 1
    %p386 = por %p384, %p385
    %p388 = scmp.ne.s32.totalorder %s371, %s387
    %p389 = scmp.eq.s32.totalorder %s25, 0
    %p390 = por %p388, %p389
    %p391 = scmp.le.s32.totalorder 1, %s19
    %p392 = scmp.lt.s32.totalorder %s19, 3
    %p393 = pnand %p391, %p392
    %p394 = pneg %p393
    // Predicated region
    $region9: #{dpad_forward.6} parent=5 // pred_check
      _
    $region10: #{dpad_forward.6} parent=5 // pred_check_branch
      %396 = sbr.rel (%p393) target = $region12
    $region11: #{dpad_forward.6} parent=5 // pred_region
      %s397 = ssub.s32 %s19, 1
    $region12: #{dpad_forward.6} parent=5 // pred_fallthru
      _
    %p398 = scmp.lt.s32.totalorder %s19, 2
    // Predicated region
    $region13: #{dpad_forward.6} parent=5 // pred_check
      %p399 = pneg %p398
    $region14: #{dpad_forward.6} parent=5 // pred_check_branch
      %401 = sbr.rel (%p399) target = $region16
    $region15: #{dpad_forward.6} parent=5 // pred_region
      // Predicated region
      $region17: #{dpad_forward.6} parent=15 // pred_check
        %p402 = pneg %p39
      $region18: #{dpad_forward.6} parent=15 // pred_check_branch
        %404 = sbr.rel (%p402) target = $region20
      $region19: #{dpad_forward.6} parent=15 // pred_region
        %p405 = scmp.lt.s32.totalorder %s19, 1
        %s406 = scalar_select %p405, %s19, 1
        %s407 = smul.addr %s406, 8
        %s408 = scalar_lea.vmem %s0, %s407
      $region20: #{dpad_forward.6} parent=15 // pred_fallthru
        _
      // Predicated region
      $region21: #{dpad_forward.6} parent=15 // pred_check
        %p409 = pneg %p65
      $region22: #{dpad_forward.6} parent=15 // pred_check_branch
        %411 = sbr.rel (%p409) target = $region24
      $region23: #{dpad_forward.6} parent=15 // pred_region
        %p412 = scmp.lt.s32.totalorder %s19, 1
        %s413 = scalar_select %p412, %s19, 1
        %s414 = smul.addr %s413, 4
        %s415 = scalar_lea.vmem %s1, %s414
      $region24: #{dpad_forward.6} parent=15 // pred_fallthru
        _
      // Predicated region
      $region25: #{dpad_forward.6} parent=15 // pred_check
        %p416 = pneg %p91
      $region26: #{dpad_forward.6} parent=15 // pred_check_branch
        %418 = sbr.rel (%p416) target = $region28
      $region27: #{dpad_forward.6} parent=15 // pred_region
        %p419 = scmp.lt.s32.totalorder %s19, 1
        %s420 = scalar_select %p419, %s19, 1
        %s421 = scalar_lea.vmem %s2, %s420
      $region28: #{dpad_forward.6} parent=15 // pred_fallthru
        _
      // Predicated region
      $region29: #{dpad_forward.6} parent=15 // pred_check
        %p422 = pneg %p117
      $region30: #{dpad_forward.6} parent=15 // pred_check_branch
        %424 = sbr.rel (%p422) target = $region32
      $region31: #{dpad_forward.6} parent=15 // pred_region
        %p425 = scmp.lt.s32.totalorder %s19, 1
        %s426 = scalar_select %p425, %s19, 1
        %s427 = smul.addr %s426, 2
        %s428 = smul.addr %s427, 8
        %s429 = scalar_lea.vmem %s3, %s428
      $region32: #{dpad_forward.6} parent=15 // pred_fallthru
        _
      // Predicated region
      $region33: #{dpad_forward.6} parent=15 // pred_check
        %p430 = pneg %p143
      $region34: #{dpad_forward.6} parent=15 // pred_check_branch
        %432 = sbr.rel (%p430) target = $region36
      $region35: #{dpad_forward.6} parent=15 // pred_region
        %p433 = scmp.lt.s32.totalorder %s19, 1
        %s434 = scalar_select %p433, %s19, 1
        %s435 = scalar_lea.vmem %s4, %s434
      $region36: #{dpad_forward.6} parent=15 // pred_fallthru
        _
      // Predicated region
      $region37: #{dpad_forward.6} parent=15 // pred_check
        %p436 = pneg %p169
      $region38: #{dpad_forward.6} parent=15 // pred_check_branch
        %438 = sbr.rel (%p436) target = $region40
      $region39: #{dpad_forward.6} parent=15 // pred_region
        %p439 = scmp.lt.s32.totalorder %s19, 1
        %s440 = scalar_select %p439, %s19, 1
        %s441 = smul.addr %s440, 8
        %s442 = smul.addr %s441, 8
        %s443 = scalar_lea.vmem %s5, %s442
      $region40: #{dpad_forward.6} parent=15 // pred_fallthru
        _
      // Predicated region
      $region41: #{dpad_forward.6} parent=15 // pred_check
        %p444 = pneg %p195
      $region42: #{dpad_forward.6} parent=15 // pred_check_branch
        %446 = sbr.rel (%p444) target = $region44
      $region43: #{dpad_forward.6} parent=15 // pred_region
        %p447 = scmp.lt.s32.totalorder %s19, 1
        %s448 = scalar_select %p447, %s19, 1
        %s449 = scalar_lea.vmem %s6, %s448
      $region44: #{dpad_forward.6} parent=15 // pred_fallthru
        _
      // Predicated region
      $region45: #{dpad_forward.6} parent=15 // pred_check
        %p450 = pneg %p221
      $region46: #{dpad_forward.6} parent=15 // pred_check_branch
        %452 = sbr.rel (%p450) target = $region48
      $region47: #{dpad_forward.6} parent=15 // pred_region
        %p453 = scmp.lt.s32.totalorder %s19, 1
        %s454 = scalar_select %p453, %s19, 1
        %s455 = smul.addr %s454, 2
        %s456 = smul.addr %s455, 8
        %s457 = scalar_lea.vmem %s7, %s456
      $region48: #{dpad_forward.6} parent=15 // pred_fallthru
        _
      // Predicated region
      $region49: #{dpad_forward.6} parent=15 // pred_check
        %p458 = pneg %p247
      $region50: #{dpad_forward.6} parent=15 // pred_check_branch
        %460 = sbr.rel (%p458) target = $region52
      $region51: #{dpad_forward.6} parent=15 // pred_region
        %p461 = scmp.lt.s32.totalorder %s19, 1
        %s462 = scalar_select %p461, %s19, 1
        %s463 = scalar_lea.vmem %s8, %s462
      $region52: #{dpad_forward.6} parent=15 // pred_fallthru
        _
      // Predicated region
      $region53: #{dpad_forward.6} parent=15 // pred_check
        %p464 = pneg %p273
      $region54: #{dpad_forward.6} parent=15 // pred_check_branch
        %466 = sbr.rel (%p464) target = $region56
      $region55: #{dpad_forward.6} parent=15 // pred_region
        %p467 = scmp.lt.s32.totalorder %s19, 1
        %s468 = scalar_select %p467, %s19, 1
        %s469 = smul.addr %s468, 4
        %s470 = smul.addr %s469, 8
        %s471 = scalar_lea.vmem %s9, %s470
      $region56: #{dpad_forward.6} parent=15 // pred_fallthru
        _
      // Predicated region
      $region57: #{dpad_forward.6} parent=15 // pred_check
        %p472 = pneg %p299
      $region58: #{dpad_forward.6} parent=15 // pred_check_branch
        %474 = sbr.rel (%p472) target = $region60
      $region59: #{dpad_forward.6} parent=15 // pred_region
        %p475 = scmp.lt.s32.totalorder %s19, 1
        %s476 = scalar_select %p475, %s19, 1
        %s477 = smul.addr %s476, 2
        %s478 = scalar_lea.vmem %s10, %s477
      $region60: #{dpad_forward.6} parent=15 // pred_fallthru
        _
      // Predicated region
      $region61: #{dpad_forward.6} parent=15 // pred_check
        %p479 = pneg %p325
      $region62: #{dpad_forward.6} parent=15 // pred_check_branch
        %481 = sbr.rel (%p479) target = $region64
      $region63: #{dpad_forward.6} parent=15 // pred_region
        %p482 = scmp.lt.s32.totalorder %s19, 1
        %s483 = scalar_select %p482, %s19, 1
        %s484 = smul.addr %s483, 4
        %s485 = smul.addr %s484, 8
        %s486 = scalar_lea.vmem %s11, %s485
      $region64: #{dpad_forward.6} parent=15 // pred_fallthru
        _
      // Predicated region
      $region65: #{dpad_forward.6} parent=15 // pred_check
        %p487 = pneg %p351
      $region66: #{dpad_forward.6} parent=15 // pred_check_branch
        %489 = sbr.rel (%p487) target = $region68
      $region67: #{dpad_forward.6} parent=15 // pred_region
        %p490 = scmp.lt.s32.totalorder %s19, 1
        %s491 = scalar_select %p490, %s19, 1
        %s492 = smul.addr %s491, 2
        %s493 = scalar_lea.vmem %s12, %s492
      $region68: #{dpad_forward.6} parent=15 // pred_fallthru
        _
    $region16: #{dpad_forward.6} parent=5 // pred_fallthru
      _
    %p494 = scmp.le.s32.totalorder 1, %s19
    %p495 = scmp.lt.s32.totalorder %s19, 3
    %p496 = pnand %p494, %p495
    %p497 = pneg %p496
    // Predicated region
    $region69: #{dpad_forward.6} parent=5 // pred_check
      _
    $region70: #{dpad_forward.6} parent=5 // pred_check_branch
      %499 = sbr.rel (%p496) target = $region72
    $region71: #{dpad_forward.6} parent=5 // pred_region
      %s500 = ssub.s32 %s19, 1
      %p501 = scmp.lt.s32.totalorder %s24, 1
      %s502 = scalar_select %p501, %s24, 1
      %s503 = smul.addr %s502, 8
      %s504 = scalar_lea.vmem %s0, %s503
      %p505 = pneg %p45
      %p506 = pneg %p42
      %p507 = scmp.lt.s32.totalorder %s24, 1
      %s508 = scalar_select %p507, %s24, 1
      %s509 = smul.addr %s508, 4
      %s510 = scalar_lea.vmem %s1, %s509
      %p511 = pneg %p71
      %p512 = pneg %p68
      %p513 = scmp.lt.s32.totalorder %s24, 1
      %s514 = scalar_select %p513, %s24, 1
      %s515 = scalar_lea.vmem %s2, %s514
      %p516 = pneg %p97
      %p517 = pneg %p94
      %p518 = scmp.lt.s32.totalorder %s24, 1
      %s519 = scalar_select %p518, %s24, 1
      %s520 = smul.addr %s519, 2
      %s521 = smul.addr %s520, 8
      %s522 = scalar_lea.vmem %s3, %s521
      %p523 = pneg %p123
      %p524 = pneg %p120
      %p525 = scmp.lt.s32.totalorder %s24, 1
      %s526 = scalar_select %p525, %s24, 1
      %s527 = scalar_lea.vmem %s4, %s526
      %p528 = pneg %p149
      %p529 = pneg %p146
      %p530 = scmp.lt.s32.totalorder %s24, 1
      %s531 = scalar_select %p530, %s24, 1
      %s532 = smul.addr %s531, 8
      %s533 = smul.addr %s532, 8
      %s534 = scalar_lea.vmem %s5, %s533
      %p535 = pneg %p175
      %p536 = pneg %p172
      %p537 = scmp.lt.s32.totalorder %s24, 1
      %s538 = scalar_select %p537, %s24, 1
      %s539 = scalar_lea.vmem %s6, %s538
      %p540 = pneg %p201
      %p541 = pneg %p198
      %p542 = scmp.lt.s32.totalorder %s24, 1
      %s543 = scalar_select %p542, %s24, 1
      %s544 = smul.addr %s543, 2
      %s545 = smul.addr %s544, 8
      %s546 = scalar_lea.vmem %s7, %s545
      %p547 = pneg %p227
      %p548 = pneg %p224
      %p549 = scmp.lt.s32.totalorder %s24, 1
      %s550 = scalar_select %p549, %s24, 1
      %s551 = scalar_lea.vmem %s8, %s550
      %p552 = pneg %p253
      %p553 = pneg %p250
      %p554 = scmp.lt.s32.totalorder %s24, 1
      %s555 = scalar_select %p554, %s24, 1
      %s556 = smul.addr %s555, 4
      %s557 = smul.addr %s556, 8
      %s558 = scalar_lea.vmem %s9, %s557
      %p559 = pneg %p279
      %p560 = pneg %p276
      %p561 = scmp.lt.s32.totalorder %s24, 1
      %s562 = scalar_select %p561, %s24, 1
      %s563 = smul.addr %s562, 2
      %s564 = scalar_lea.vmem %s10, %s563
      %p565 = pneg %p305
      %p566 = pneg %p302
      %p567 = scmp.lt.s32.totalorder %s24, 1
      %s568 = scalar_select %p567, %s24, 1
      %s569 = smul.addr %s568, 4
      %s570 = smul.addr %s569, 8
      %s571 = scalar_lea.vmem %s11, %s570
      %p572 = pneg %p331
      %p573 = pneg %p328
      %p574 = scmp.lt.s32.totalorder %s24, 1
      %s575 = scalar_select %p574, %s24, 1
      %s576 = smul.addr %s575, 2
      %s577 = scalar_lea.vmem %s12, %s576
      %p578 = pneg %p357
      %p579 = pneg %p354
      %p580 = pneg %p383
      %p581 = pneg %p380
      %p582 = scmp.lt.s32.totalorder %s24, 1
      %s583 = scalar_select %p582, %s24, 1
      %s584 = smul.addr %s583, 2
      %s585 = smul.addr %s584, 8
      %s586 = scalar_lea.vmem %s13, %s585
      %p587 = scmp.lt.s32.totalorder %s24, 1
      %s588 = scalar_select %p587, %s24, 1
      %s589 = smul.addr %s588, 8
      %s590 = scalar_lea.vmem %s0, %s589
      %p591 = scmp.lt.s32.totalorder %s24, 1
      %s592 = scalar_select %p591, %s24, 1
      %s593 = smul.addr %s592, 4
      %s594 = scalar_lea.vmem %s1, %s593
      %p595 = scmp.lt.s32.totalorder %s24, 1
      %s596 = scalar_select %p595, %s24, 1
      %s597 = scalar_lea.vmem %s2, %s596
      %p598 = scmp.lt.s32.totalorder %s24, 1
      %s599 = scalar_select %p598, %s24, 1
      %s600 = smul.addr %s599, 2
      %s601 = smul.addr %s600, 8
      %s602 = scalar_lea.vmem %s3, %s601
      %p603 = scmp.lt.s32.totalorder %s24, 1
      %s604 = scalar_select %p603, %s24, 1
      %s605 = scalar_lea.vmem %s4, %s604
      %p606 = scmp.lt.s32.totalorder %s24, 1
      %s607 = scalar_select %p606, %s24, 1
      %s608 = smul.addr %s607, 8
      %s609 = smul.addr %s608, 8
      %s610 = scalar_lea.vmem %s5, %s609
      %p611 = scmp.lt.s32.totalorder %s24, 1
      %s612 = scalar_select %p611, %s24, 1
      %s613 = scalar_lea.vmem %s6, %s612
      %p614 = scmp.lt.s32.totalorder %s24, 1
      %s615 = scalar_select %p614, %s24, 1
      %s616 = smul.addr %s615, 2
      %s617 = smul.addr %s616, 8
      %s618 = scalar_lea.vmem %s7, %s617
      %p619 = scmp.lt.s32.totalorder %s24, 1
      %s620 = scalar_select %p619, %s24, 1
      %s621 = scalar_lea.vmem %s8, %s620
      %p622 = scmp.lt.s32.totalorder %s24, 1
      %s623 = scalar_select %p622, %s24, 1
      %s624 = smul.addr %s623, 4
      %s625 = smul.addr %s624, 8
      %s626 = scalar_lea.vmem %s9, %s625
      %p627 = scmp.lt.s32.totalorder %s24, 1
      %s628 = scalar_select %p627, %s24, 1
      %s629 = smul.addr %s628, 2
      %s630 = scalar_lea.vmem %s10, %s629
      %p631 = scmp.lt.s32.totalorder %s24, 1
      %s632 = scalar_select %p631, %s24, 1
      %s633 = smul.addr %s632, 4
      %s634 = smul.addr %s633, 8
      %s635 = scalar_lea.vmem %s11, %s634
      %p636 = scmp.lt.s32.totalorder %s24, 1
      %s637 = scalar_select %p636, %s24, 1
      %s638 = smul.addr %s637, 2
      %s639 = scalar_lea.vmem %s12, %s638
      %p640 = scmp.lt.s32.totalorder %s24, 1
      %s641 = scalar_select %p640, %s24, 1
      %s642 = smul.addr %s641, 2
      %s643 = smul.addr %s642, 8
      %s644 = scalar_lea.vmem %s13, %s643
      %v646 = vlaneseq
      %v647 = vshrl.u32 %v646, 7
      %v648 = vadd.s32 %v647, 8
      %v649 = vlaneseq
      %v650 = vand.u32 %v649, 127
      %v651 = vsub.s32 %v650, 1
      %vm652 = vcmp.eq.s32.totalorder %v647, %v651
      %vm653 = vcmp.eq.s32.totalorder %v648, %v651
      %v654 = vsel %vm652, 1, 0
      %v655 = vsel %vm653, 1, 0
      %v656 = vcvt.s32.f32 %v654
      %v657 = vcvt.s32.f32 %v655
      %v658 = vadd.s32 %v650, 1
      %vm659 = vcmp.eq.s32.totalorder %v647, %v658
      %vm660 = vcmp.eq.s32.totalorder %v648, %v658
      %v661 = vsel %vm659, 1, 0
      %v662 = vsel %vm660, 1, 0
      %v663 = vcvt.s32.f32 %v661
      %v664 = vcvt.s32.f32 %v662
      %v665 = vld [vmem:[%s590] sm:$0xff]
      %vm666 = vcmask 130048
      %v668 = vsel %vm666, %v665, 0
      %670 = vmatprep.subr.mxu0 0.0
      %671 = vmatpush1.msra.mxu0 0.0
      %672 = vmatprep.subr.mxu0 0.0
      %673 = vmatpush1.msra.mxu0 0.0
      %674 = vmatprep.subr.mxu0 0.0
      %675 = vmatpush1.msra.mxu0 0.0
      %676 = vmatprep.subr.mxu0 0.0
      %677 = vmatpush1.msra.mxu0 0.0
      %678 = vmatprep.subr.mxu0 0.0
      %679 = vmatpush1.msra.mxu0 0.0
      %680 = vmatprep.subr.mxu0 0.0
      %681 = vmatpush1.msra.mxu0 0.0
      %682 = vmatprep.subr.mxu0 0.0
      %683 = vmatpush1.msra.mxu0 0.0
      %684 = vmatprep.subr.mxu0 0.0
      %685 = vmatpush1.msra.mxu0 0.0
      %686 = vmatprep.subr.mxu0 0.0
      %687 = vmatpush1.msra.mxu0 0.0
      %688 = vmatprep.subr.mxu0 0.0
      %689 = vmatpush1.msra.mxu0 0.0
      %690 = vmatprep.subr.mxu0 0.0
      %691 = vmatpush1.msra.mxu0 0.0
      %692 = vmatprep.subr.mxu0 0.0
      %693 = vmatpush1.msra.mxu0 0.0
      %694 = vmatprep.subr.mxu0 0.0
      %695 = vmatpush1.msra.mxu0 0.0
      %696 = vmatprep.subr.mxu0 0.0
      %697 = vmatpush1.msra.mxu0 0.0
      %698 = vmatprep.subr.mxu0 0.0
      %699 = vmatpush1.msra.mxu0 %v657
      %700 = vmatprep.subr.mxu0 0.0
      %701 = vmatpush1.msra.mxu0 %v656
      %702 = vmatprep.subr.mxu0 0.0
      %703 = vmatpush2.msra.mxu0 0.0
      %704 = vmatprep.subr.mxu0 0.0
      %705 = vmatpush2.msra.mxu0 0.0
      %706 = vmatprep.subr.mxu0 0.0
      %707 = vmatpush2.msra.mxu0 0.0
      %708 = vmatprep.subr.mxu0 0.0
      %709 = vmatpush2.msra.mxu0 0.0
      %710 = vmatprep.subr.mxu0 0.0
      %711 = vmatpush2.msra.mxu0 0.0
      %712 = vmatprep.subr.mxu0 0.0
      %713 = vmatpush2.msra.mxu0 0.0
      %714 = vmatprep.subr.mxu0 0.0
      %715 = vmatpush2.msra.mxu0 0.0
      %716 = vmatprep.subr.mxu0 0.0
      %717 = vmatpush2.msra.mxu0 0.0
      %718 = vmatprep.subr.mxu0 0.0
      %719 = vmatpush2.msra.mxu0 0.0
      %720 = vmatprep.subr.mxu0 0.0
      %721 = vmatpush2.msra.mxu0 0.0
      %722 = vmatprep.subr.mxu0 0.0
      %723 = vmatpush2.msra.mxu0 0.0
      %724 = vmatprep.subr.mxu0 0.0
      %725 = vmatpush2.msra.mxu0 0.0
      %726 = vmatprep.subr.mxu0 0.0
      %727 = vmatpush2.msra.mxu0 0.0
      %728 = vmatprep.subr.mxu0 0.0
      %729 = vmatpush2.msra.mxu0 0.0
      %730 = vmatprep.subr.mxu0 0.0
      %731 = vmatpush2.msra.mxu0 0.0
      %732 = vmatprep.subr.mxu0 0.0
      %733 = vmatpush2.msra.mxu0 0.0
      %734 = vmatprep.mubr.f32.mxu0 0.0
      %735 = vmatmul.mubr.f32.gmra.mxu0 %v668
      %v736 = vpop.f32.mrf.mxu0
      %v737 = vadd.f32 0.0, %v736
      %v738 = vpop.f32.mrf.mxu0
      %739 = vdwg.mxu0
      %740 = vmatprep.subr.mxu0 0.0
      %741 = vmatpush1.msra.mxu0 0.0
      %742 = vmatprep.subr.mxu0 0.0
      %743 = vmatpush1.msra.mxu0 0.0
      %744 = vmatprep.subr.mxu0 0.0
      %745 = vmatpush1.msra.mxu0 0.0
      %746 = vmatprep.subr.mxu0 0.0
      %747 = vmatpush1.msra.mxu0 0.0
      %748 = vmatprep.subr.mxu0 0.0
      %749 = vmatpush1.msra.mxu0 0.0
      %750 = vmatprep.subr.mxu0 0.0
      %751 = vmatpush1.msra.mxu0 0.0
      %752 = vmatprep.subr.mxu0 0.0
      %753 = vmatpush1.msra.mxu0 0.0
      %754 = vmatprep.subr.mxu0 0.0
      %755 = vmatpush1.msra.mxu0 0.0
      %756 = vmatprep.subr.mxu0 0.0
      %757 = vmatpush1.msra.mxu0 0.0
      %758 = vmatprep.subr.mxu0 0.0
      %759 = vmatpush1.msra.mxu0 0.0
      %760 = vmatprep.subr.mxu0 0.0
      %761 = vmatpush1.msra.mxu0 0.0
      %762 = vmatprep.subr.mxu0 0.0
      %763 = vmatpush1.msra.mxu0 0.0
      %764 = vmatprep.subr.mxu0 0.0
      %765 = vmatpush1.msra.mxu0 0.0
      %766 = vmatprep.subr.mxu0 0.0
      %767 = vmatpush1.msra.mxu0 0.0
      %768 = vmatprep.subr.mxu0 0.0
      %769 = vmatpush1.msra.mxu0 %v664
      %770 = vmatprep.subr.mxu0 0.0
      %771 = vmatpush1.msra.mxu0 %v663
      %772 = vmatprep.subr.mxu0 0.0
      %773 = vmatpush2.msra.mxu0 0.0
      %774 = vmatprep.subr.mxu0 0.0
      %775 = vmatpush2.msra.mxu0 0.0
      %776 = vmatprep.subr.mxu0 0.0
      %777 = vmatpush2.msra.mxu0 0.0
      %778 = vmatprep.subr.mxu0 0.0
      %779 = vmatpush2.msra.mxu0 0.0
      %780 = vmatprep.subr.mxu0 0.0
      %781 = vmatpush2.msra.mxu0 0.0
      %782 = vmatprep.subr.mxu0 0.0
      %783 = vmatpush2.msra.mxu0 0.0
      %784 = vmatprep.subr.mxu0 0.0
      %785 = vmatpush2.msra.mxu0 0.0
      %786 = vmatprep.subr.mxu0 0.0
      %787 = vmatpush2.msra.mxu0 0.0
      %788 = vmatprep.subr.mxu0 0.0
      %789 = vmatpush2.msra.mxu0 0.0
      %790 = vmatprep.subr.mxu0 0.0
      %791 = vmatpush2.msra.mxu0 0.0
      %792 = vmatprep.subr.mxu0 0.0
      %793 = vmatpush2.msra.mxu0 0.0
      %794 = vmatprep.subr.mxu0 0.0
      %795 = vmatpush2.msra.mxu0 0.0
      %796 = vmatprep.subr.mxu0 0.0
      %797 = vmatpush2.msra.mxu0 0.0
      %798 = vmatprep.subr.mxu0 0.0
      %799 = vmatpush2.msra.mxu0 0.0
      %800 = vmatprep.subr.mxu0 0.0
      %801 = vmatpush2.msra.mxu0 0.0
      %802 = vmatprep.subr.mxu0 0.0
      %803 = vmatpush2.msra.mxu0 0.0
      %804 = vmatprep.mubr.f32.mxu0 0.0
      %805 = vmatmul.mubr.f32.gmra.mxu0 %v668
      %v806 = vpop.f32.mrf.mxu0
      %v807 = vadd.f32 0.0, %v806
      %v808 = vpop.f32.mrf.mxu0
      %809 = vdwg.mxu0
      %v810 = vld [vmem:[%s594] sm:$0xf]
      %v811 = vld [vmem:[%s597] sm:$0x1]
      %s813 = vtos %v810
      %v814 = vstv %s813
      %v816 = vmul.f32 %v737, %v814
      %817 = vrot.lane.b32.xlu0 %v810, 127
      %v818 = vpop.permute.xlu0 %817
      %s819 = vtos %v818
      %v820 = vstv %s819
      %v822 = vmul.f32 %v665, %v820
      %v823 = vadd.f32 %v816, %v822
      %824 = vrot.lane.b32.xlu0 %v810, 126
      %v825 = vpop.permute.xlu0 %824
      %s826 = vtos %v825
      %v827 = vstv %s826
      %v829 = vmul.f32 %v807, %v827
      %v830 = vadd.f32 %v823, %v829
      %v832 = vlaneseq
      %v833 = vshrl.u32 %v832, 7
      %v834 = vsub.s32 0, %v833
      %v835 = vrot.slane %v811, %v834
      %836 = vset.pattern.permute.xlu0 0
      %837 = vperm.xlu0 %836, %v835
      %v838 = vpop.permute.xlu0 %837
      %v840 = vadd.f32 %v830, %v838
      %v841 = vrot.slane %v810, 1
      %s842 = vtos %v841
      %v843 = vstv %s842
      %v845 = vmul.f32 %v737, %v843
      %846 = vrot.lane.b32.xlu0 %v841, 127
      %v847 = vpop.permute.xlu0 %846
      %s848 = vtos %v847
      %v849 = vstv %s848
      %v851 = vmul.f32 %v665, %v849
      %v852 = vadd.f32 %v845, %v851
      %853 = vrot.lane.b32.xlu0 %v841, 126
      %v854 = vpop.permute.xlu0 %853
      %s855 = vtos %v854
      %v856 = vstv %s855
      %v858 = vmul.f32 %v807, %v856
      %v859 = vadd.f32 %v852, %v858
      %860 = vset.pattern.permute.xlu0 1
      %861 = vperm.xlu0 %860, %v835
      %v862 = vpop.permute.xlu0 %861
      %v864 = vadd.f32 %v859, %v862
      %v865 = vrot.slane %v810, 2
      %s866 = vtos %v865
      %v867 = vstv %s866
      %v869 = vmul.f32 %v737, %v867
      %870 = vrot.lane.b32.xlu0 %v865, 127
      %v871 = vpop.permute.xlu0 %870
      %s872 = vtos %v871
      %v873 = vstv %s872
      %v875 = vmul.f32 %v665, %v873
      %v876 = vadd.f32 %v869, %v875
      %877 = vrot.lane.b32.xlu0 %v865, 126
      %v878 = vpop.permute.xlu0 %877
      %s879 = vtos %v878
      %v880 = vstv %s879
      %v882 = vmul.f32 %v807, %v880
      %v883 = vadd.f32 %v876, %v882
      %884 = vset.pattern.permute.xlu0 2
      %885 = vperm.xlu0 %884, %v835
      %v886 = vpop.permute.xlu0 %885
      %v888 = vadd.f32 %v883, %v886
      %v889 = vrot.slane %v810, 3
      %s890 = vtos %v889
      %v891 = vstv %s890
      %v893 = vmul.f32 %v737, %v891
      %894 = vrot.lane.b32.xlu0 %v889, 127
      %v895 = vpop.permute.xlu0 %894
      %s896 = vtos %v895
      %v897 = vstv %s896
      %v899 = vmul.f32 %v665, %v897
      %v900 = vadd.f32 %v893, %v899
      %901 = vrot.lane.b32.xlu0 %v889, 126
      %v902 = vpop.permute.xlu0 %901
      %s903 = vtos %v902
      %v904 = vstv %s903
      %v906 = vmul.f32 %v807, %v904
      %v907 = vadd.f32 %v900, %v906
      %908 = vset.pattern.permute.xlu0 3
      %909 = vperm.xlu0 %908, %v835
      %v910 = vpop.permute.xlu0 %909
      %v912 = vadd.f32 %v907, %v910
      %v913 = vld [vmem:[%s602] sm:$0xff]
      %v914 = vld [vmem:[%s602 + $0x8] sm:$0xff]
      %v915 = vpack.c.bf16 %v864, %v840
      %v916 = vpack.c.bf16 %v912, %v888
      %v917 = vpack.c.bf16 %v914, %v913
      %v918 = vld [vmem:[%s605] sm:$0x1]
      %v920 = vlaneseq
      %v921 = vshrl.u32 %v920, 7
      %v922 = vsub.s32 0, %v921
      %v923 = vrot.slane %v918, %v922
      %v926 = vsel %vm666, %v915, 0
      %v929 = vsel %vm666, %v916, 0
      %931 = vmatprep.subr.bf16.mxu0 0
      %932 = vmatpush1.bf16.msra.mxu0 0
      %933 = vmatprep.subr.bf16.mxu0 0
      %934 = vmatpush1.bf16.msra.mxu0 0
      %935 = vmatprep.subr.bf16.mxu0 0
      %936 = vmatpush1.bf16.msra.mxu0 0
      %937 = vmatprep.subr.bf16.mxu0 0
      %938 = vmatpush1.bf16.msra.mxu0 0
      %939 = vmatprep.subr.bf16.mxu0 0
      %940 = vmatpush1.bf16.msra.mxu0 0
      %941 = vmatprep.subr.bf16.mxu0 0
      %942 = vmatpush1.bf16.msra.mxu0 0
      %943 = vmatprep.subr.bf16.mxu0 0
      %944 = vmatpush1.bf16.msra.mxu0 0
      %945 = vmatprep.subr.bf16.mxu0 0
      %946 = vmatpush1.bf16.msra.mxu0 %v917
      %947 = vmatprep.subr.bf16.mxu0 0
      %948 = vmatpush2.bf16.msra.mxu0 0
      %949 = vmatprep.subr.bf16.mxu0 0
      %950 = vmatpush2.bf16.msra.mxu0 0
      %951 = vmatprep.subr.bf16.mxu0 0
      %952 = vmatpush2.bf16.msra.mxu0 0
      %953 = vmatprep.subr.bf16.mxu0 0
      %954 = vmatpush2.bf16.msra.mxu0 0
      %955 = vmatprep.subr.bf16.mxu0 0
      %956 = vmatpush2.bf16.msra.mxu0 0
      %957 = vmatprep.subr.bf16.mxu0 0
      %958 = vmatpush2.bf16.msra.mxu0 0
      %959 = vmatprep.subr.bf16.mxu0 0
      %960 = vmatpush2.bf16.msra.mxu0 0
      %961 = vmatprep.subr.bf16.mxu0 0
      %962 = vmatpush2.bf16.msra.mxu0 0
      %963 = vmatprep.mubr.bf16.mxu0 0
      %964 = vmatmul.mubr.bf16.gmra.mxu0 %v926
      %v965 = vpop.f32.mrf.mxu0
      %v966 = vadd.f32 %v923, %v965
      %v967 = vpop.f32.mrf.mxu0
      %v968 = vpop.f32.mrf.mxu0
      %v969 = vadd.f32 %v923, %v968
      %v970 = vpop.f32.mrf.mxu0
      %971 = vmatprep.mubr.bf16.mxu0 0
      %972 = vmatmul.mubr.bf16.gmra.mxu0 %v929
      %v973 = vpop.f32.mrf.mxu0
      %v974 = vadd.f32 %v923, %v973
      %v975 = vpop.f32.mrf.mxu0
      %v976 = vpop.f32.mrf.mxu0
      %v977 = vadd.f32 %v923, %v976
      %v978 = vpop.f32.mrf.mxu0
      %979 = vdwg.mxu0
      %v980 = vmul.f32 %v966, 0.999995
      %v981 = vmul.f32 %v969, 0.999995
      %v982 = vmul.f32 %v974, 0.999995
      %v983 = vmul.f32 %v977, 0.999995
      %vm984 = vcmp.gt.f32.partialorder %v980, 0.0
      %vm985 = vcmp.gt.f32.partialorder %v981, 0.0
      %vm986 = vcmp.gt.f32.partialorder %v982, 0.0
      %vm987 = vcmp.gt.f32.partialorder %v983, 0.0
      %v988 = vmul.f32 %v980, 0.01
      %v989 = vmul.f32 %v981, 0.01
      %v990 = vmul.f32 %v982, 0.01
      %v991 = vmul.f32 %v983, 0.01
      %v992 = vsel %vm984, %v980, %v988
      %v993 = vsel %vm985, %v981, %v989
      %v994 = vsel %vm986, %v982, %v990
      %v995 = vsel %vm987, %v983, %v991
      %v996 = vld [vmem:[%s610] sm:$0xff]
      %v997 = vld [vmem:[%s610 + $0x8] sm:$0xff]
      %v998 = vld [vmem:[%s610 + $0x10] sm:$0xff]
      %v999 = vld [vmem:[%s610 + $0x18] sm:$0xff]
      %v1000 = vld [vmem:[%s610 + $0x20] sm:$0xff]
      %v1001 = vld [vmem:[%s610 + $0x28] sm:$0xff]
      %v1002 = vld [vmem:[%s610 + $0x30] sm:$0xff]
      %v1003 = vld [vmem:[%s610 + $0x38] sm:$0xff]
      %v1004 = vpack.c.bf16 %v993, %v992
      %v1005 = vpack.c.bf16 %v995, %v994
      %v1006 = vpack.c.bf16 %v997, %v996
      %v1007 = vpack.c.bf16 %v999, %v998
      %v1008 = vpack.c.bf16 %v1001, %v1000
      %v1009 = vpack.c.bf16 %v1003, %v1002
      %v1010 = vld [vmem:[%s613] sm:$0x1]
      %v1012 = vlaneseq
      %v1013 = vshrl.u32 %v1012, 7
      %v1014 = vsub.s32 0, %v1013
      %v1015 = vrot.slane %v1010, %v1014
      %vm1017 = vcmask 523264
      %v1019 = vsel %vm1017, %v1004, 0
      %v1022 = vsel %vm1017, %v1005, 0
      %1024 = vmatprep.subr.bf16.mxu0 0
      %1025 = vmatpush1.bf16.msra.mxu0 0
      %1026 = vmatprep.subr.bf16.mxu0 0
      %1027 = vmatpush1.bf16.msra.mxu0 0
      %1028 = vmatprep.subr.bf16.mxu0 0
      %1029 = vmatpush1.bf16.msra.mxu0 0
      %1030 = vmatprep.subr.bf16.mxu0 0
      %1031 = vmatpush1.bf16.msra.mxu0 0
      %1032 = vmatprep.subr.bf16.mxu0 0
      %1033 = vmatpush1.bf16.msra.mxu0 %v1009
      %1034 = vmatprep.subr.bf16.mxu0 0
      %1035 = vmatpush1.bf16.msra.mxu0 %v1008
      %1036 = vmatprep.subr.bf16.mxu0 0
      %1037 = vmatpush1.bf16.msra.mxu0 %v1007
      %1038 = vmatprep.subr.bf16.mxu0 0
      %1039 = vmatpush1.bf16.msra.mxu0 %v1006
      %1040 = vmatprep.subr.bf16.mxu0 0
      %1041 = vmatpush2.bf16.msra.mxu0 0
      %1042 = vmatprep.subr.bf16.mxu0 0
      %1043 = vmatpush2.bf16.msra.mxu0 0
      %1044 = vmatprep.subr.bf16.mxu0 0
      %1045 = vmatpush2.bf16.msra.mxu0 0
      %1046 = vmatprep.subr.bf16.mxu0 0
      %1047 = vmatpush2.bf16.msra.mxu0 0
      %1048 = vmatprep.subr.bf16.mxu0 0
      %1049 = vmatpush2.bf16.msra.mxu0 0
      %1050 = vmatprep.subr.bf16.mxu0 0
      %1051 = vmatpush2.bf16.msra.mxu0 0
      %1052 = vmatprep.subr.bf16.mxu0 0
      %1053 = vmatpush2.bf16.msra.mxu0 0
      %1054 = vmatprep.subr.bf16.mxu0 0
      %1055 = vmatpush2.bf16.msra.mxu0 0
      %1056 = vmatprep.mubr.bf16.mxu0 0
      %1057 = vmatmul.mubr.bf16.gmra.mxu0 %v1019
      %v1058 = vpop.f32.mrf.mxu0
      %v1059 = vadd.f32 %v1015, %v1058
      %v1060 = vpop.f32.mrf.mxu0
      %v1061 = vpop.f32.mrf.mxu0
      %v1062 = vadd.f32 %v1015, %v1061
      %v1063 = vpop.f32.mrf.mxu0
      %1064 = vmatprep.mubr.bf16.mxu0 0
      %1065 = vmatmul.mubr.bf16.gmra.mxu0 %v1022
      %v1066 = vpop.f32.mrf.mxu0
      %v1067 = vadd.f32 %v1015, %v1066
      %v1068 = vpop.f32.mrf.mxu0
      %v1069 = vpop.f32.mrf.mxu0
      %v1070 = vadd.f32 %v1015, %v1069
      %v1071 = vpop.f32.mrf.mxu0
      %1072 = vdwg.mxu0
      %vm1073 = vcmask 15360
      %v1074 = vsel %vm1073, %v1059, -inf
      %1075 = vmax.xlane.f32.xlu0 %v1074
      %v1076 = vpop.xlane.xlu0 %1075
      %v1077 = vsel %vm1073, %v1062, -inf
      %1078 = vmax.xlane.f32.xlu0 %v1077
      %v1079 = vpop.xlane.xlu0 %1078
      %v1080 = vsel %vm1073, %v1067, -inf
      %1081 = vmax.xlane.f32.xlu0 %v1080
      %v1082 = vpop.xlane.xlu0 %1081
      %v1083 = vsel %vm1073, %v1070, -inf
      %1084 = vmax.xlane.f32.xlu0 %v1083
      %v1085 = vpop.xlane.xlu0 %1084
      %v1086 = vsub.f32 %v1059, %v1076
      %v1087 = vsub.f32 %v1062, %v1079
      %v1088 = vsub.f32 %v1067, %v1082
      %v1089 = vsub.f32 %v1070, %v1085
      %v1090 = vmul.f32 %v1086, 1.442695
      %v1091 = vpow.pop %v1090
      %v1092 = vmul.f32 %v1087, 1.442695
      %v1093 = vpow.pop %v1092
      %v1094 = vmul.f32 %v1088, 1.442695
      %v1095 = vpow.pop %v1094
      %v1096 = vmul.f32 %v1089, 1.442695
      %v1097 = vpow.pop %v1096
      %v1098 = vsel %vm1073, %v1091, 0.0
      %1099 = vadd.xlane.f32.xlu0 %v1098
      %v1100 = vpop.xlane.xlu0 %1099
      %v1101 = vsel %vm1073, %v1093, 0.0
      %1102 = vadd.xlane.f32.xlu0 %v1101
      %v1103 = vpop.xlane.xlu0 %1102
      %v1104 = vsel %vm1073, %v1095, 0.0
      %1105 = vadd.xlane.f32.xlu0 %v1104
      %v1106 = vpop.xlane.xlu0 %1105
      %v1107 = vsel %vm1073, %v1097, 0.0
      %1108 = vadd.xlane.f32.xlu0 %v1107
      %v1109 = vpop.xlane.xlu0 %1108
      %v1110 = vrcp.pop %v1100
      %v1111 = vmul.f32 %v1091, %v1110
      %v1112 = vrcp.pop %v1103
      %v1113 = vmul.f32 %v1093, %v1112
      %v1114 = vrcp.pop %v1106
      %v1115 = vmul.f32 %v1095, %v1114
      %v1116 = vrcp.pop %v1109
      %v1117 = vmul.f32 %v1097, %v1116
      %v1119 = vsel %vm666, %v840, 0
      %v1122 = vsel %vm666, %v864, 0
      %v1125 = vsel %vm666, %v888, 0
      %v1128 = vsel %vm666, %v912, 0
      %1130 = vmatprep.subr.mxu0 0.0
      %1131 = vmatpush1.msra.mxu0 0.0
      %1132 = vmatprep.subr.mxu0 0.0
      %1133 = vmatpush1.msra.mxu0 0.0
      %1134 = vmatprep.subr.mxu0 0.0
      %1135 = vmatpush1.msra.mxu0 0.0
      %1136 = vmatprep.subr.mxu0 0.0
      %1137 = vmatpush1.msra.mxu0 0.0
      %1138 = vmatprep.subr.mxu0 0.0
      %1139 = vmatpush1.msra.mxu0 0.0
      %1140 = vmatprep.subr.mxu0 0.0
      %1141 = vmatpush1.msra.mxu0 0.0
      %1142 = vmatprep.subr.mxu0 0.0
      %1143 = vmatpush1.msra.mxu0 0.0
      %1144 = vmatprep.subr.mxu0 0.0
      %1145 = vmatpush1.msra.mxu0 0.0
      %1146 = vmatprep.subr.mxu0 0.0
      %1147 = vmatpush1.msra.mxu0 0.0
      %1148 = vmatprep.subr.mxu0 0.0
      %1149 = vmatpush1.msra.mxu0 0.0
      %1150 = vmatprep.subr.mxu0 0.0
      %1151 = vmatpush1.msra.mxu0 0.0
      %1152 = vmatprep.subr.mxu0 0.0
      %1153 = vmatpush1.msra.mxu0 0.0
      %1154 = vmatprep.subr.mxu0 0.0
      %1155 = vmatpush1.msra.mxu0 0.0
      %1156 = vmatprep.subr.mxu0 0.0
      %1157 = vmatpush1.msra.mxu0 0.0
      %1158 = vmatprep.subr.mxu0 0.0
      %1159 = vmatpush1.msra.mxu0 %v657
      %1160 = vmatprep.subr.mxu0 0.0
      %1161 = vmatpush1.msra.mxu0 %v656
      %1162 = vmatprep.subr.mxu0 0.0
      %1163 = vmatpush2.msra.mxu0 0.0
      %1164 = vmatprep.subr.mxu0 0.0
      %1165 = vmatpush2.msra.mxu0 0.0
      %1166 = vmatprep.subr.mxu0 0.0
      %1167 = vmatpush2.msra.mxu0 0.0
      %1168 = vmatprep.subr.mxu0 0.0
      %1169 = vmatpush2.msra.mxu0 0.0
      %1170 = vmatprep.subr.mxu0 0.0
      %1171 = vmatpush2.msra.mxu0 0.0
      %1172 = vmatprep.subr.mxu0 0.0
      %1173 = vmatpush2.msra.mxu0 0.0
      %1174 = vmatprep.subr.mxu0 0.0
      %1175 = vmatpush2.msra.mxu0 0.0
      %1176 = vmatprep.subr.mxu0 0.0
      %1177 = vmatpush2.msra.mxu0 0.0
      %1178 = vmatprep.subr.mxu0 0.0
      %1179 = vmatpush2.msra.mxu0 0.0
      %1180 = vmatprep.subr.mxu0 0.0
      %1181 = vmatpush2.msra.mxu0 0.0
      %1182 = vmatprep.subr.mxu0 0.0
      %1183 = vmatpush2.msra.mxu0 0.0
      %1184 = vmatprep.subr.mxu0 0.0
      %1185 = vmatpush2.msra.mxu0 0.0
      %1186 = vmatprep.subr.mxu0 0.0
      %1187 = vmatpush2.msra.mxu0 0.0
      %1188 = vmatprep.subr.mxu0 0.0
      %1189 = vmatpush2.msra.mxu0 0.0
      %1190 = vmatprep.subr.mxu0 0.0
      %1191 = vmatpush2.msra.mxu0 0.0
      %1192 = vmatprep.subr.mxu0 0.0
      %1193 = vmatpush2.msra.mxu0 0.0
      %1194 = vmatprep.mubr.f32.mxu0 0.0
      %1195 = vmatmul.mubr.f32.gmra.mxu0 %v1119
      %v1196 = vpop.f32.mrf.mxu0
      %v1197 = vadd.f32 0.0, %v1196
      %v1198 = vpop.f32.mrf.mxu0
      %1199 = vmatprep.mubr.f32.mxu0 0.0
      %1200 = vmatmul.mubr.f32.gmra.mxu0 %v1122
      %v1201 = vpop.f32.mrf.mxu0
      %v1202 = vadd.f32 0.0, %v1201
      %v1203 = vpop.f32.mrf.mxu0
      %1204 = vmatprep.mubr.f32.mxu0 0.0
      %1205 = vmatmul.mubr.f32.gmra.mxu0 %v1125
      %v1206 = vpop.f32.mrf.mxu0
      %v1207 = vadd.f32 0.0, %v1206
      %v1208 = vpop.f32.mrf.mxu0
      %1209 = vmatprep.mubr.f32.mxu0 0.0
      %1210 = vmatmul.mubr.f32.gmra.mxu0 %v1128
      %v1211 = vpop.f32.mrf.mxu0
      %v1212 = vadd.f32 0.0, %v1211
      %v1213 = vpop.f32.mrf.mxu0
      %1214 = vdwg.mxu0
      %1215 = vmatprep.subr.mxu0 0.0
      %1216 = vmatpush1.msra.mxu0 0.0
      %1217 = vmatprep.subr.mxu0 0.0
      %1218 = vmatpush1.msra.mxu0 0.0
      %1219 = vmatprep.subr.mxu0 0.0
      %1220 = vmatpush1.msra.mxu0 0.0
      %1221 = vmatprep.subr.mxu0 0.0
      %1222 = vmatpush1.msra.mxu0 0.0
      %1223 = vmatprep.subr.mxu0 0.0
      %1224 = vmatpush1.msra.mxu0 0.0
      %1225 = vmatprep.subr.mxu0 0.0
      %1226 = vmatpush1.msra.mxu0 0.0
      %1227 = vmatprep.subr.mxu0 0.0
      %1228 = vmatpush1.msra.mxu0 0.0
      %1229 = vmatprep.subr.mxu0 0.0
      %1230 = vmatpush1.msra.mxu0 0.0
      %1231 = vmatprep.subr.mxu0 0.0
      %1232 = vmatpush1.msra.mxu0 0.0
      %1233 = vmatprep.subr.mxu0 0.0
      %1234 = vmatpush1.msra.mxu0 0.0
      %1235 = vmatprep.subr.mxu0 0.0
      %1236 = vmatpush1.msra.mxu0 0.0
      %1237 = vmatprep.subr.mxu0 0.0
      %1238 = vmatpush1.msra.mxu0 0.0
      %1239 = vmatprep.subr.mxu0 0.0
      %1240 = vmatpush1.msra.mxu0 0.0
      %1241 = vmatprep.subr.mxu0 0.0
      %1242 = vmatpush1.msra.mxu0 0.0
      %1243 = vmatprep.subr.mxu0 0.0
      %1244 = vmatpush1.msra.mxu0 %v664
      %1245 = vmatprep.subr.mxu0 0.0
      %1246 = vmatpush1.msra.mxu0 %v663
      %1247 = vmatprep.subr.mxu0 0.0
      %1248 = vmatpush2.msra.mxu0 0.0
      %1249 = vmatprep.subr.mxu0 0.0
      %1250 = vmatpush2.msra.mxu0 0.0
      %1251 = vmatprep.subr.mxu0 0.0
      %1252 = vmatpush2.msra.mxu0 0.0
      %1253 = vmatprep.subr.mxu0 0.0
      %1254 = vmatpush2.msra.mxu0 0.0
      %1255 = vmatprep.subr.mxu0 0.0
      %1256 = vmatpush2.msra.mxu0 0.0
      %1257 = vmatprep.subr.mxu0 0.0
      %1258 = vmatpush2.msra.mxu0 0.0
      %1259 = vmatprep.subr.mxu0 0.0
      %1260 = vmatpush2.msra.mxu0 0.0
      %1261 = vmatprep.subr.mxu0 0.0
      %1262 = vmatpush2.msra.mxu0 0.0
      %1263 = vmatprep.subr.mxu0 0.0
      %1264 = vmatpush2.msra.mxu0 0.0
      %1265 = vmatprep.subr.mxu0 0.0
      %1266 = vmatpush2.msra.mxu0 0.0
      %1267 = vmatprep.subr.mxu0 0.0
      %1268 = vmatpush2.msra.mxu0 0.0
      %1269 = vmatprep.subr.mxu0 0.0
      %1270 = vmatpush2.msra.mxu0 0.0
      %1271 = vmatprep.subr.mxu0 0.0
      %1272 = vmatpush2.msra.mxu0 0.0
      %1273 = vmatprep.subr.mxu0 0.0
      %1274 = vmatpush2.msra.mxu0 0.0
      %1275 = vmatprep.subr.mxu0 0.0
      %1276 = vmatpush2.msra.mxu0 0.0
      %1277 = vmatprep.subr.mxu0 0.0
      %1278 = vmatpush2.msra.mxu0 0.0
      %1279 = vmatprep.mubr.f32.mxu0 0.0
      %1280 = vmatmul.mubr.f32.gmra.mxu0 %v1119
      %v1281 = vpop.f32.mrf.mxu0
      %v1282 = vadd.f32 0.0, %v1281
      %v1283 = vpop.f32.mrf.mxu0
      %1284 = vmatprep.mubr.f32.mxu0 0.0
      %1285 = vmatmul.mubr.f32.gmra.mxu0 %v1122
      %v1286 = vpop.f32.mrf.mxu0
      %v1287 = vadd.f32 0.0, %v1286
      %v1288 = vpop.f32.mrf.mxu0
      %1289 = vmatprep.mubr.f32.mxu0 0.0
      %1290 = vmatmul.mubr.f32.gmra.mxu0 %v1125
      %v1291 = vpop.f32.mrf.mxu0
      %v1292 = vadd.f32 0.0, %v1291
      %v1293 = vpop.f32.mrf.mxu0
      %1294 = vmatprep.mubr.f32.mxu0 0.0
      %1295 = vmatmul.mubr.f32.gmra.mxu0 %v1128
      %v1296 = vpop.f32.mrf.mxu0
      %v1297 = vadd.f32 0.0, %v1296
      %v1298 = vpop.f32.mrf.mxu0
      %1299 = vdwg.mxu0
      %v1300 = vld [vmem:[%s618] sm:$0xff]
      %v1301 = vld [vmem:[%s618 + $0x8] sm:$0xff]
      %v1302 = vld [vmem:[%s621] sm:$0x1]
      %v1304 = vlaneseq
      %v1305 = vshrl.u32 %v1304, 7
      %v1306 = vsub.s32 0, %v1305
      %v1307 = vrot.slane %v1302, %v1306
      %1308 = vset.pattern.permute.xlu0 0
      %1309 = vperm.xlu0 %1308, %v1307
      %v1310 = vpop.permute.xlu0 %1309
      %v1312 = vadd.f32 %v1310, 0.0
      %s1314 = vtos %v1300
      %v1315 = vstv %s1314
      %v1317 = vmul.f32 %v1197, %v1315
      %v1318 = vadd.f32 %v1312, %v1317
      %1319 = vrot.lane.b32.xlu0 %v1300, 127
      %v1320 = vpop.permute.xlu0 %1319
      %s1321 = vtos %v1320
      %v1322 = vstv %s1321
      %v1324 = vmul.f32 %v840, %v1322
      %v1325 = vadd.f32 %v1318, %v1324
      %1326 = vrot.lane.b32.xlu0 %v1300, 126
      %v1327 = vpop.permute.xlu0 %1326
      %s1328 = vtos %v1327
      %v1329 = vstv %s1328
      %v1331 = vmul.f32 %v1282, %v1329
      %v1332 = vadd.f32 %v1325, %v1331
      %v1333 = vrot.slane %v1300, 1
      %s1334 = vtos %v1333
      %v1335 = vstv %s1334
      %v1337 = vmul.f32 %v1202, %v1335
      %v1338 = vadd.f32 %v1332, %v1337
      %1339 = vrot.lane.b32.xlu0 %v1333, 127
      %v1340 = vpop.permute.xlu0 %1339
      %s1341 = vtos %v1340
      %v1342 = vstv %s1341
      %v1344 = vmul.f32 %v864, %v1342
      %v1345 = vadd.f32 %v1338, %v1344
      %1346 = vrot.lane.b32.xlu0 %v1333, 126
      %v1347 = vpop.permute.xlu0 %1346
      %s1348 = vtos %v1347
      %v1349 = vstv %s1348
      %v1351 = vmul.f32 %v1287, %v1349
      %v1352 = vadd.f32 %v1345, %v1351
      %v1353 = vrot.slane %v1300, 2
      %s1354 = vtos %v1353
      %v1355 = vstv %s1354
      %v1357 = vmul.f32 %v1207, %v1355
      %v1358 = vadd.f32 %v1352, %v1357
      %1359 = vrot.lane.b32.xlu0 %v1353, 127
      %v1360 = vpop.permute.xlu0 %1359
      %s1361 = vtos %v1360
      %v1362 = vstv %s1361
      %v1364 = vmul.f32 %v888, %v1362
      %v1365 = vadd.f32 %v1358, %v1364
      %1366 = vrot.lane.b32.xlu0 %v1353, 126
      %v1367 = vpop.permute.xlu0 %1366
      %s1368 = vtos %v1367
      %v1369 = vstv %s1368
      %v1371 = vmul.f32 %v1292, %v1369
      %v1372 = vadd.f32 %v1365, %v1371
      %v1373 = vrot.slane %v1300, 3
      %s1374 = vtos %v1373
      %v1375 = vstv %s1374
      %v1377 = vmul.f32 %v1212, %v1375
      %v1378 = vadd.f32 %v1372, %v1377
      %1379 = vrot.lane.b32.xlu0 %v1373, 127
      %v1380 = vpop.permute.xlu0 %1379
      %s1381 = vtos %v1380
      %v1382 = vstv %s1381
      %v1384 = vmul.f32 %v912, %v1382
      %v1385 = vadd.f32 %v1378, %v1384
      %1386 = vrot.lane.b32.xlu0 %v1373, 126
      %v1387 = vpop.permute.xlu0 %1386
      %s1388 = vtos %v1387
      %v1389 = vstv %s1388
      %v1391 = vmul.f32 %v1297, %v1389
      %v1392 = vadd.f32 %v1385, %v1391
      %v1393 = vmul.f32 %v840, %v1392
      %1394 = vset.pattern.permute.xlu0 1
      %1395 = vperm.xlu0 %1394, %v1307
      %v1396 = vpop.permute.xlu0 %1395
      %v1398 = vadd.f32 %v1396, 0.0
      %v1399 = vrot.slane %v1300, 4
      %s1400 = vtos %v1399
      %v1401 = vstv %s1400
      %v1403 = vmul.f32 %v1197, %v1401
      %v1404 = vadd.f32 %v1398, %v1403
      %1405 = vrot.lane.b32.xlu0 %v1399, 127
      %v1406 = vpop.permute.xlu0 %1405
      %s1407 = vtos %v1406
      %v1408 = vstv %s1407
      %v1410 = vmul.f32 %v840, %v1408
      %v1411 = vadd.f32 %v1404, %v1410
      %1412 = vrot.lane.b32.xlu0 %v1399, 126
      %v1413 = vpop.permute.xlu0 %1412
      %s1414 = vtos %v1413
      %v1415 = vstv %s1414
      %v1417 = vmul.f32 %v1282, %v1415
      %v1418 = vadd.f32 %v1411, %v1417
      %v1419 = vrot.slane %v1300, 5
      %s1420 = vtos %v1419
      %v1421 = vstv %s1420
      %v1423 = vmul.f32 %v1202, %v1421
      %v1424 = vadd.f32 %v1418, %v1423
      %1425 = vrot.lane.b32.xlu0 %v1419, 127
      %v1426 = vpop.permute.xlu0 %1425
      %s1427 = vtos %v1426
      %v1428 = vstv %s1427
      %v1430 = vmul.f32 %v864, %v1428
      %v1431 = vadd.f32 %v1424, %v1430
      %1432 = vrot.lane.b32.xlu0 %v1419, 126
      %v1433 = vpop.permute.xlu0 %1432
      %s1434 = vtos %v1433
      %v1435 = vstv %s1434
      %v1437 = vmul.f32 %v1287, %v1435
      %v1438 = vadd.f32 %v1431, %v1437
      %v1439 = vrot.slane %v1300, 6
      %s1440 = vtos %v1439
      %v1441 = vstv %s1440
      %v1443 = vmul.f32 %v1207, %v1441
      %v1444 = vadd.f32 %v1438, %v1443
      %1445 = vrot.lane.b32.xlu0 %v1439, 127
      %v1446 = vpop.permute.xlu0 %1445
      %s1447 = vtos %v1446
      %v1448 = vstv %s1447
      %v1450 = vmul.f32 %v888, %v1448
      %v1451 = vadd.f32 %v1444, %v1450
      %1452 = vrot.lane.b32.xlu0 %v1439, 126
      %v1453 = vpop.permute.xlu0 %1452
      %s1454 = vtos %v1453
      %v1455 = vstv %s1454
      %v1457 = vmul.f32 %v1292, %v1455
      %v1458 = vadd.f32 %v1451, %v1457
      %v1459 = vrot.slane %v1300, 7
      %s1460 = vtos %v1459
      %v1461 = vstv %s1460
      %v1463 = vmul.f32 %v1212, %v1461
      %v1464 = vadd.f32 %v1458, %v1463
      %1465 = vrot.lane.b32.xlu0 %v1459, 127
      %v1466 = vpop.permute.xlu0 %1465
      %s1467 = vtos %v1466
      %v1468 = vstv %s1467
      %v1470 = vmul.f32 %v912, %v1468
      %v1471 = vadd.f32 %v1464, %v1470
      %1472 = vrot.lane.b32.xlu0 %v1459, 126
      %v1473 = vpop.permute.xlu0 %1472
      %s1474 = vtos %v1473
      %v1475 = vstv %s1474
      %v1477 = vmul.f32 %v1297, %v1475
      %v1478 = vadd.f32 %v1471, %v1477
      %v1479 = vmul.f32 %v864, %v1478
      %1480 = vset.pattern.permute.xlu0 2
      %1481 = vperm.xlu0 %1480, %v1307
      %v1482 = vpop.permute.xlu0 %1481
      %v1484 = vadd.f32 %v1482, 0.0
      %s1486 = vtos %v1301
      %v1487 = vstv %s1486
      %v1489 = vmul.f32 %v1197, %v1487
      %v1490 = vadd.f32 %v1484, %v1489
      %1491 = vrot.lane.b32.xlu0 %v1301, 127
      %v1492 = vpop.permute.xlu0 %1491
      %s1493 = vtos %v1492
      %v1494 = vstv %s1493
      %v1496 = vmul.f32 %v840, %v1494
      %v1497 = vadd.f32 %v1490, %v1496
      %1498 = vrot.lane.b32.xlu0 %v1301, 126
      %v1499 = vpop.permute.xlu0 %1498
      %s1500 = vtos %v1499
      %v1501 = vstv %s1500
      %v1503 = vmul.f32 %v1282, %v1501
      %v1504 = vadd.f32 %v1497, %v1503
      %v1505 = vrot.slane %v1301, 1
      %s1506 = vtos %v1505
      %v1507 = vstv %s1506
      %v1509 = vmul.f32 %v1202, %v1507
      %v1510 = vadd.f32 %v1504, %v1509
      %1511 = vrot.lane.b32.xlu0 %v1505, 127
      %v1512 = vpop.permute.xlu0 %1511
      %s1513 = vtos %v1512
      %v1514 = vstv %s1513
      %v1516 = vmul.f32 %v864, %v1514
      %v1517 = vadd.f32 %v1510, %v1516
      %1518 = vrot.lane.b32.xlu0 %v1505, 126
      %v1519 = vpop.permute.xlu0 %1518
      %s1520 = vtos %v1519
      %v1521 = vstv %s1520
      %v1523 = vmul.f32 %v1287, %v1521
      %v1524 = vadd.f32 %v1517, %v1523
      %v1525 = vrot.slane %v1301, 2
      %s1526 = vtos %v1525
      %v1527 = vstv %s1526
      %v1529 = vmul.f32 %v1207, %v1527
      %v1530 = vadd.f32 %v1524, %v1529
      %1531 = vrot.lane.b32.xlu0 %v1525, 127
      %v1532 = vpop.permute.xlu0 %1531
      %s1533 = vtos %v1532
      %v1534 = vstv %s1533
      %v1536 = vmul.f32 %v888, %v1534
      %v1537 = vadd.f32 %v1530, %v1536
      %1538 = vrot.lane.b32.xlu0 %v1525, 126
      %v1539 = vpop.permute.xlu0 %1538
      %s1540 = vtos %v1539
      %v1541 = vstv %s1540
      %v1543 = vmul.f32 %v1292, %v1541
      %v1544 = vadd.f32 %v1537, %v1543
      %v1545 = vrot.slane %v1301, 3
      %s1546 = vtos %v1545
      %v1547 = vstv %s1546
      %v1549 = vmul.f32 %v1212, %v1547
      %v1550 = vadd.f32 %v1544, %v1549
      %1551 = vrot.lane.b32.xlu0 %v1545, 127
      %v1552 = vpop.permute.xlu0 %1551
      %s1553 = vtos %v1552
      %v1554 = vstv %s1553
      %v1556 = vmul.f32 %v912, %v1554
      %v1557 = vadd.f32 %v1550, %v1556
      %1558 = vrot.lane.b32.xlu0 %v1545, 126
      %v1559 = vpop.permute.xlu0 %1558
      %s1560 = vtos %v1559
      %v1561 = vstv %s1560
      %v1563 = vmul.f32 %v1297, %v1561
      %v1564 = vadd.f32 %v1557, %v1563
      %v1565 = vmul.f32 %v888, %v1564
      %1566 = vset.pattern.permute.xlu0 3
      %1567 = vperm.xlu0 %1566, %v1307
      %v1568 = vpop.permute.xlu0 %1567
      %v1570 = vadd.f32 %v1568, 0.0
      %v1571 = vrot.slane %v1301, 4
      %s1572 = vtos %v1571
      %v1573 = vstv %s1572
      %v1575 = vmul.f32 %v1197, %v1573
      %v1576 = vadd.f32 %v1570, %v1575
      %1577 = vrot.lane.b32.xlu0 %v1571, 127
      %v1578 = vpop.permute.xlu0 %1577
      %s1579 = vtos %v1578
      %v1580 = vstv %s1579
      %v1582 = vmul.f32 %v840, %v1580
      %v1583 = vadd.f32 %v1576, %v1582
      %1584 = vrot.lane.b32.xlu0 %v1571, 126
      %v1585 = vpop.permute.xlu0 %1584
      %s1586 = vtos %v1585
      %v1587 = vstv %s1586
      %v1589 = vmul.f32 %v1282, %v1587
      %v1590 = vadd.f32 %v1583, %v1589
      %v1591 = vrot.slane %v1301, 5
      %s1592 = vtos %v1591
      %v1593 = vstv %s1592
      %v1595 = vmul.f32 %v1202, %v1593
      %v1596 = vadd.f32 %v1590, %v1595
      %1597 = vrot.lane.b32.xlu0 %v1591, 127
      %v1598 = vpop.permute.xlu0 %1597
      %s1599 = vtos %v1598
      %v1600 = vstv %s1599
      %v1602 = vmul.f32 %v864, %v1600
      %v1603 = vadd.f32 %v1596, %v1602
      %1604 = vrot.lane.b32.xlu0 %v1591, 126
      %v1605 = vpop.permute.xlu0 %1604
      %s1606 = vtos %v1605
      %v1607 = vstv %s1606
      %v1609 = vmul.f32 %v1287, %v1607
      %v1610 = vadd.f32 %v1603, %v1609
      %v1611 = vrot.slane %v1301, 6
      %s1612 = vtos %v1611
      %v1613 = vstv %s1612
      %v1615 = vmul.f32 %v1207, %v1613
      %v1616 = vadd.f32 %v1610, %v1615
      %1617 = vrot.lane.b32.xlu0 %v1611, 127
      %v1618 = vpop.permute.xlu0 %1617
      %s1619 = vtos %v1618
      %v1620 = vstv %s1619
      %v1622 = vmul.f32 %v888, %v1620
      %v1623 = vadd.f32 %v1616, %v1622
      %1624 = vrot.lane.b32.xlu0 %v1611, 126
      %v1625 = vpop.permute.xlu0 %1624
      %s1626 = vtos %v1625
      %v1627 = vstv %s1626
      %v1629 = vmul.f32 %v1292, %v1627
      %v1630 = vadd.f32 %v1623, %v1629
      %v1631 = vrot.slane %v1301, 7
      %s1632 = vtos %v1631
      %v1633 = vstv %s1632
      %v1635 = vmul.f32 %v1212, %v1633
      %v1636 = vadd.f32 %v1630, %v1635
      %1637 = vrot.lane.b32.xlu0 %v1631, 127
      %v1638 = vpop.permute.xlu0 %1637
      %s1639 = vtos %v1638
      %v1640 = vstv %s1639
      %v1642 = vmul.f32 %v912, %v1640
      %v1643 = vadd.f32 %v1636, %v1642
      %1644 = vrot.lane.b32.xlu0 %v1631, 126
      %v1645 = vpop.permute.xlu0 %1644
      %s1646 = vtos %v1645
      %v1647 = vstv %s1646
      %v1649 = vmul.f32 %v1297, %v1647
      %v1650 = vadd.f32 %v1643, %v1649
      %v1651 = vmul.f32 %v912, %v1650
      %1653 = vset.pattern.permute.xlu0 0
      %1654 = vperm.xlu0 %1653, %v1111
      %v1655 = vpop.permute.xlu0 %1654
      %v1657 = vmul.f32 %v1393, %v1655
      %v1658 = vadd.f32 %v1657, 0.0
      %1660 = vset.pattern.permute.xlu0 0
      %1661 = vperm.xlu0 %1660, %v1113
      %v1662 = vpop.permute.xlu0 %1661
      %v1664 = vmul.f32 %v1479, %v1662
      %v1665 = vadd.f32 %v1658, %v1664
      %1667 = vset.pattern.permute.xlu0 0
      %1668 = vperm.xlu0 %1667, %v1115
      %v1669 = vpop.permute.xlu0 %1668
      %v1671 = vmul.f32 %v1565, %v1669
      %v1672 = vadd.f32 %v1665, %v1671
      %1674 = vset.pattern.permute.xlu0 0
      %1675 = vperm.xlu0 %1674, %v1117
      %v1676 = vpop.permute.xlu0 %1675
      %v1678 = vmul.f32 %v1651, %v1676
      %v1679 = vadd.f32 %v1672, %v1678
      %1680 = vset.pattern.permute.xlu0 1
      %1681 = vperm.xlu0 %1680, %v1111
      %v1682 = vpop.permute.xlu0 %1681
      %v1684 = vmul.f32 %v1393, %v1682
      %v1685 = vadd.f32 %v1684, 0.0
      %1686 = vset.pattern.permute.xlu0 1
      %1687 = vperm.xlu0 %1686, %v1113
      %v1688 = vpop.permute.xlu0 %1687
      %v1690 = vmul.f32 %v1479, %v1688
      %v1691 = vadd.f32 %v1685, %v1690
      %1692 = vset.pattern.permute.xlu0 1
      %1693 = vperm.xlu0 %1692, %v1115
      %v1694 = vpop.permute.xlu0 %1693
      %v1696 = vmul.f32 %v1565, %v1694
      %v1697 = vadd.f32 %v1691, %v1696
      %1698 = vset.pattern.permute.xlu0 1
      %1699 = vperm.xlu0 %1698, %v1117
      %v1700 = vpop.permute.xlu0 %1699
      %v1702 = vmul.f32 %v1651, %v1700
      %v1703 = vadd.f32 %v1697, %v1702
      %v1704 = vld [vmem:[%s626] sm:$0xff]
      %v1705 = vld [vmem:[%s626 + $0x8] sm:$0xff]
      %v1706 = vpack.c.bf16 %v1679, %v1679
      %v1707 = vpack.c.bf16 %v1705, %v1704
      %v1708 = vld [vmem:[%s630] sm:$0x1]
      %v1710 = vlaneseq
      %v1711 = vshrl.u32 %v1710, 7
      %v1712 = vsub.s32 0, %v1711
      %v1713 = vrot.slane %v1708, %v1712
      %v1716 = vsel %vm666, %v1706, 0
      %1718 = vmatprep.subr.bf16.mxu0 0
      %1719 = vmatpush1.bf16.msra.mxu0 0
      %1720 = vmatprep.subr.bf16.mxu0 0
      %1721 = vmatpush1.bf16.msra.mxu0 0
      %1722 = vmatprep.subr.bf16.mxu0 0
      %1723 = vmatpush1.bf16.msra.mxu0 0
      %1724 = vmatprep.subr.bf16.mxu0 0
      %1725 = vmatpush1.bf16.msra.mxu0 0
      %1726 = vmatprep.subr.bf16.mxu0 0
      %1727 = vmatpush1.bf16.msra.mxu0 0
      %1728 = vmatprep.subr.bf16.mxu0 0
      %1729 = vmatpush1.bf16.msra.mxu0 0
      %1730 = vmatprep.subr.bf16.mxu0 0
      %1731 = vmatpush1.bf16.msra.mxu0 0
      %1732 = vmatprep.subr.bf16.mxu0 0
      %1733 = vmatpush1.bf16.msra.mxu0 %v1707
      %1734 = vmatprep.subr.bf16.mxu0 0
      %1735 = vmatpush2.bf16.msra.mxu0 0
      %1736 = vmatprep.subr.bf16.mxu0 0
      %1737 = vmatpush2.bf16.msra.mxu0 0
      %1738 = vmatprep.subr.bf16.mxu0 0
      %1739 = vmatpush2.bf16.msra.mxu0 0
      %1740 = vmatprep.subr.bf16.mxu0 0
      %1741 = vmatpush2.bf16.msra.mxu0 0
      %1742 = vmatprep.subr.bf16.mxu0 0
      %1743 = vmatpush2.bf16.msra.mxu0 0
      %1744 = vmatprep.subr.bf16.mxu0 0
      %1745 = vmatpush2.bf16.msra.mxu0 0
      %1746 = vmatprep.subr.bf16.mxu0 0
      %1747 = vmatpush2.bf16.msra.mxu0 0
      %1748 = vmatprep.subr.bf16.mxu0 0
      %1749 = vmatpush2.bf16.msra.mxu0 0
      %1750 = vmatprep.mubr.bf16.mxu0 0
      %1751 = vmatmul.mubr.bf16.gmra.mxu0 %v1716
      %v1752 = vpop.f32.mrf.mxu0
      %v1753 = vadd.f32 %v1713, %v1752
      %v1754 = vpop.f32.mrf.mxu0
      %v1755 = vpop.f32.mrf.mxu0
      %v1756 = vpop.f32.mrf.mxu0
      %1757 = vdwg.mxu0
      %v1758 = vmul.f32 %v1753, 0.999995
      %vm1759 = vcmp.gt.f32.partialorder %v1758, 0.0
      %v1760 = vmul.f32 %v1758, 0.01
      %v1761 = vsel %vm1759, %v1758, %v1760
      %v1762 = vld [vmem:[%s635] sm:$0xff]
      %v1763 = vld [vmem:[%s635 + $0x8] sm:$0xff]
      %v1764 = vpack.c.bf16 %v1761, %v1761
      %v1765 = vpack.c.bf16 %v1763, %v1762
      %v1766 = vld [vmem:[%s639] sm:$0x1]
      %v1768 = vlaneseq
      %v1769 = vshrl.u32 %v1768, 7
      %v1770 = vsub.s32 0, %v1769
      %v1771 = vrot.slane %v1766, %v1770
      %v1774 = vsel %vm666, %v1764, 0
      %1776 = vmatprep.subr.bf16.mxu0 0
      %1777 = vmatpush1.bf16.msra.mxu0 0
      %1778 = vmatprep.subr.bf16.mxu0 0
      %1779 = vmatpush1.bf16.msra.mxu0 0
      %1780 = vmatprep.subr.bf16.mxu0 0
      %1781 = vmatpush1.bf16.msra.mxu0 0
      %1782 = vmatprep.subr.bf16.mxu0 0
      %1783 = vmatpush1.bf16.msra.mxu0 0
      %1784 = vmatprep.subr.bf16.mxu0 0
      %1785 = vmatpush1.bf16.msra.mxu0 0
      %1786 = vmatprep.subr.bf16.mxu0 0
      %1787 = vmatpush1.bf16.msra.mxu0 0
      %1788 = vmatprep.subr.bf16.mxu0 0
      %1789 = vmatpush1.bf16.msra.mxu0 0
      %1790 = vmatprep.subr.bf16.mxu0 0
      %1791 = vmatpush1.bf16.msra.mxu0 %v1765
      %1792 = vmatprep.subr.bf16.mxu0 0
      %1793 = vmatpush2.bf16.msra.mxu0 0
      %1794 = vmatprep.subr.bf16.mxu0 0
      %1795 = vmatpush2.bf16.msra.mxu0 0
      %1796 = vmatprep.subr.bf16.mxu0 0
      %1797 = vmatpush2.bf16.msra.mxu0 0
      %1798 = vmatprep.subr.bf16.mxu0 0
      %1799 = vmatpush2.bf16.msra.mxu0 0
      %1800 = vmatprep.subr.bf16.mxu0 0
      %1801 = vmatpush2.bf16.msra.mxu0 0
      %1802 = vmatprep.subr.bf16.mxu0 0
      %1803 = vmatpush2.bf16.msra.mxu0 0
      %1804 = vmatprep.subr.bf16.mxu0 0
      %1805 = vmatpush2.bf16.msra.mxu0 0
      %1806 = vmatprep.subr.bf16.mxu0 0
      %1807 = vmatpush2.bf16.msra.mxu0 0
      %1808 = vmatprep.mubr.bf16.mxu0 0
      %1809 = vmatmul.mubr.bf16.gmra.mxu0 %v1774
      %v1810 = vpop.f32.mrf.mxu0
      %v1811 = vadd.f32 %v1771, %v1810
      %v1812 = vpop.f32.mrf.mxu0
      %v1813 = vpop.f32.mrf.mxu0
      %v1814 = vpop.f32.mrf.mxu0
      %1815 = vdwg.mxu0
      %v1816 = vmul.f32 %v1811, 0.999995
      %vm1817 = vcmp.gt.f32.partialorder %v1816, 0.0
      %v1818 = vmul.f32 %v1816, 0.01
      %v1819 = vsel %vm1817, %v1816, %v1818
      %1820 = vst.msk [vmem:[%s644] sm:$0xff] %vm666, %v1819
      %s1821 = scalar_lea.vmem %s626, 16
      %v1822 = vld [vmem:[%s1821] sm:$0xff]
      %v1823 = vld [vmem:[%s1821 + $0x8] sm:$0xff]
      %v1824 = vpack.c.bf16 %v1703, %v1703
      %v1825 = vpack.c.bf16 %v1823, %v1822
      %s1826 = scalar_lea.vmem %s630, 1
      %v1827 = vld [vmem:[%s1826] sm:$0x1]
      %v1829 = vlaneseq
      %v1830 = vshrl.u32 %v1829, 7
      %v1831 = vsub.s32 0, %v1830
      %v1832 = vrot.slane %v1827, %v1831
      %v1835 = vsel %vm666, %v1824, 0
      %1837 = vmatprep.subr.bf16.mxu0 0
      %1838 = vmatpush1.bf16.msra.mxu0 0
      %1839 = vmatprep.subr.bf16.mxu0 0
      %1840 = vmatpush1.bf16.msra.mxu0 0
      %1841 = vmatprep.subr.bf16.mxu0 0
      %1842 = vmatpush1.bf16.msra.mxu0 0
      %1843 = vmatprep.subr.bf16.mxu0 0
      %1844 = vmatpush1.bf16.msra.mxu0 0
      %1845 = vmatprep.subr.bf16.mxu0 0
      %1846 = vmatpush1.bf16.msra.mxu0 0
      %1847 = vmatprep.subr.bf16.mxu0 0
      %1848 = vmatpush1.bf16.msra.mxu0 0
      %1849 = vmatprep.subr.bf16.mxu0 0
      %1850 = vmatpush1.bf16.msra.mxu0 0
      %1851 = vmatprep.subr.bf16.mxu0 0
      %1852 = vmatpush1.bf16.msra.mxu0 %v1825
      %1853 = vmatprep.subr.bf16.mxu0 0
      %1854 = vmatpush2.bf16.msra.mxu0 0
      %1855 = vmatprep.subr.bf16.mxu0 0
      %1856 = vmatpush2.bf16.msra.mxu0 0
      %1857 = vmatprep.subr.bf16.mxu0 0
      %1858 = vmatpush2.bf16.msra.mxu0 0
      %1859 = vmatprep.subr.bf16.mxu0 0
      %1860 = vmatpush2.bf16.msra.mxu0 0
      %1861 = vmatprep.subr.bf16.mxu0 0
      %1862 = vmatpush2.bf16.msra.mxu0 0
      %1863 = vmatprep.subr.bf16.mxu0 0
      %1864 = vmatpush2.bf16.msra.mxu0 0
      %1865 = vmatprep.subr.bf16.mxu0 0
      %1866 = vmatpush2.bf16.msra.mxu0 0
      %1867 = vmatprep.subr.bf16.mxu0 0
      %1868 = vmatpush2.bf16.msra.mxu0 0
      %1869 = vmatprep.mubr.bf16.mxu0 0
      %1870 = vmatmul.mubr.bf16.gmra.mxu0 %v1835
      %v1871 = vpop.f32.mrf.mxu0
      %v1872 = vadd.f32 %v1832, %v1871
      %v1873 = vpop.f32.mrf.mxu0
      %v1874 = vpop.f32.mrf.mxu0
      %v1875 = vpop.f32.mrf.mxu0
      %1876 = vdwg.mxu0
      %v1877 = vmul.f32 %v1872, 0.999995
      %vm1878 = vcmp.gt.f32.partialorder %v1877, 0.0
      %v1879 = vmul.f32 %v1877, 0.01
      %v1880 = vsel %vm1878, %v1877, %v1879
      %s1881 = scalar_lea.vmem %s635, 16
      %v1882 = vld [vmem:[%s1881] sm:$0xff]
      %v1883 = vld [vmem:[%s1881 + $0x8] sm:$0xff]
      %v1884 = vpack.c.bf16 %v1880, %v1880
      %v1885 = vpack.c.bf16 %v1883, %v1882
      %s1886 = scalar_lea.vmem %s639, 1
      %v1887 = vld [vmem:[%s1886] sm:$0x1]
      %v1889 = vlaneseq
      %v1890 = vshrl.u32 %v1889, 7
      %v1891 = vsub.s32 0, %v1890
      %v1892 = vrot.slane %v1887, %v1891
      %v1895 = vsel %vm666, %v1884, 0
      %1897 = vmatprep.subr.bf16.mxu0 0
      %1898 = vmatpush1.bf16.msra.mxu0 0
      %1899 = vmatprep.subr.bf16.mxu0 0
      %1900 = vmatpush1.bf16.msra.mxu0 0
      %1901 = vmatprep.subr.bf16.mxu0 0
      %1902 = vmatpush1.bf16.msra.mxu0 0
      %1903 = vmatprep.subr.bf16.mxu0 0
      %1904 = vmatpush1.bf16.msra.mxu0 0
      %1905 = vmatprep.subr.bf16.mxu0 0
      %1906 = vmatpush1.bf16.msra.mxu0 0
      %1907 = vmatprep.subr.bf16.mxu0 0
      %1908 = vmatpush1.bf16.msra.mxu0 0
      %1909 = vmatprep.subr.bf16.mxu0 0
      %1910 = vmatpush1.bf16.msra.mxu0 0
      %1911 = vmatprep.subr.bf16.mxu0 0
      %1912 = vmatpush1.bf16.msra.mxu0 %v1885
      %1913 = vmatprep.subr.bf16.mxu0 0
      %1914 = vmatpush2.bf16.msra.mxu0 0
      %1915 = vmatprep.subr.bf16.mxu0 0
      %1916 = vmatpush2.bf16.msra.mxu0 0
      %1917 = vmatprep.subr.bf16.mxu0 0
      %1918 = vmatpush2.bf16.msra.mxu0 0
      %1919 = vmatprep.subr.bf16.mxu0 0
      %1920 = vmatpush2.bf16.msra.mxu0 0
      %1921 = vmatprep.subr.bf16.mxu0 0
      %1922 = vmatpush2.bf16.msra.mxu0 0
      %1923 = vmatprep.subr.bf16.mxu0 0
      %1924 = vmatpush2.bf16.msra.mxu0 0
      %1925 = vmatprep.subr.bf16.mxu0 0
      %1926 = vmatpush2.bf16.msra.mxu0 0
      %1927 = vmatprep.subr.bf16.mxu0 0
      %1928 = vmatpush2.bf16.msra.mxu0 0
      %1929 = vmatprep.mubr.bf16.mxu0 0
      %1930 = vmatmul.mubr.bf16.gmra.mxu0 %v1895
      %v1931 = vpop.f32.mrf.mxu0
      %v1932 = vadd.f32 %v1892, %v1931
      %v1933 = vpop.f32.mrf.mxu0
      %v1934 = vpop.f32.mrf.mxu0
      %v1935 = vpop.f32.mrf.mxu0
      %1936 = vdwg.mxu0
      %v1937 = vmul.f32 %v1932, 0.999995
      %vm1938 = vcmp.gt.f32.partialorder %v1937, 0.0
      %v1939 = vmul.f32 %v1937, 0.01
      %v1940 = vsel %vm1938, %v1937, %v1939
      %s1941 = scalar_lea.vmem %s644, 8
      %1942 = vst.msk [vmem:[%s1941] sm:$0xff] %vm666, %v1940
      %p1943 = scmp.lt.s32.totalorder %s24, 1
      %s1944 = scalar_select %p1943, %s24, 1
      %s1945 = smul.addr %s1944, 2
      %s1946 = smul.addr %s1945, 8
      %s1947 = scalar_lea.vmem %s13, %s1946
      // Predicated region
      $region73: #{dpad_forward.6} parent=71 // pred_check
        %p1948 = pneg %p380
      $region74: #{dpad_forward.6} parent=71 // pred_check_branch
        %1950 = sbr.rel (%p1948) target = $region76
      $region75: #{dpad_forward.6} parent=71 // pred_region
        _
      $region76: #{dpad_forward.6} parent=71 // pred_fallthru
        _
    $region72: #{dpad_forward.6} parent=5 // pred_fallthru
      _
    %p1951 = scmp.le.s32.totalorder 2, %s19
    // Predicated region
    $region77: #{dpad_forward.6} parent=5 // pred_check
      %p1952 = pneg %p1951
    $region78: #{dpad_forward.6} parent=5 // pred_check_branch
      %1954 = sbr.rel (%p1952) target = $region80
    $region79: #{dpad_forward.6} parent=5 // pred_region
      %s1955 = ssub.s32 %s19, 2
      // Predicated region
      $region81: #{dpad_forward.6} parent=79 // pred_check
        %p1956 = pneg %p386
      $region82: #{dpad_forward.6} parent=79 // pred_check_branch
        %1958 = sbr.rel (%p1956) target = $region84
      $region83: #{dpad_forward.6} parent=79 // pred_region
        %p1959 = scmp.lt.s32.totalorder %s25, 1
        %s1960 = scalar_select %p1959, %s25, 1
        %s1961 = smul.addr %s1960, 2
        %s1962 = smul.addr %s1961, 8
        %s1963 = scalar_lea.vmem %s13, %s1962
      $region84: #{dpad_forward.6} parent=79 // pred_fallthru
        _
    $region80: #{dpad_forward.6} parent=5 // pred_fallthru
      _
  $region6: #{dpad_forward.6} parent=0 // loop_footer
    %s23 = sadd.s32 1, %s19
  $region7: #{dpad_forward.6} parent=0 // loop_footer_branch
    %18 = sbr.rel target = $region3
  $region8: #{dpad_forward.6} parent=0 // loop_exit
    _

// kernel: dpad_forward.5
$region0: #{dpad_forward.5}
  #allocation0 [shape = 'u32[]', space=smem, size = 0x4, offset = 0x4, fixed_abs, tag = 'smem constant byte address 0x4 - core index']
  #allocation1 [shape = 'u32[144,128]{1,0:T(1,128)}', space=vmem, size = 0x12000, scoped, tag = 'internal scratch']
  %s0 = inlined_call_operand.vmem [shape: f32[1,8,16], index: 0, kind: input, shape index: {}]
  %s1 = inlined_call_operand.vmem [shape: f32[1,4,3], index: 1, kind: input, shape index: {}]
  %s2 = inlined_call_operand.vmem [shape: f32[1,1,4], index: 2, kind: input, shape index: {}]
  %s3 = inlined_call_operand.vmem [shape: f32[1,16,64], index: 3, kind: input, shape index: {}]
  %s4 = inlined_call_operand.vmem [shape: f32[1,1,64], index: 4, kind: input, shape index: {}]
  %s5 = inlined_call_operand.vmem [shape: f32[1,64,2], index: 5, kind: input, shape index: {}]
  %s6 = inlined_call_operand.vmem [shape: f32[1,1,2], index: 6, kind: input, shape index: {}]
  %s7 = inlined_call_operand.vmem [shape: f32[1,16,3], index: 7, kind: input, shape index: {}]
  %s8 = inlined_call_operand.vmem [shape: f32[1,1,4], index: 8, kind: input, shape index: {}]
  %s9 = inlined_call_operand.vmem [shape: f32[1,2,16,16], index: 9, kind: input, shape index: {}]
  %s10 = inlined_call_operand.vmem [shape: f32[1,2,1,16], index: 10, kind: input, shape index: {}]
  %s11 = inlined_call_operand.vmem [shape: f32[1,2,16,16], index: 11, kind: input, shape index: {}]
  %s12 = inlined_call_operand.vmem [shape: f32[1,2,1,16], index: 12, kind: input, shape index: {}]
  %s13 = inlined_call_operand.vmem [shape: f32[1,2,8,16], index: 13, kind: output, shape index: {}]
  %s14 = sld [smem:[#allocation0]]
  $region62: #{dpad_forward.5} parent=0
    _
  %s16 = ssub.s32 1, %s14
  %s17 = scalar_select 0, %s16, %s14
  // Predicated region
  $region2: #{dpad_forward.5} parent=0 // pred_check
    _
  $region3: #{dpad_forward.5} parent=0 // pred_check_branch
    %19 = sbr.rel (0) target = $region5
  $region4: #{dpad_forward.5} parent=0 // pred_region
    _
  $region5: #{dpad_forward.5} parent=0 // pred_fallthru
    _
  // Predicated region
  $region6: #{dpad_forward.5} parent=0 // pred_check
    _
  $region7: #{dpad_forward.5} parent=0 // pred_check_branch
    %21 = sbr.rel (0) target = $region9
  $region8: #{dpad_forward.5} parent=0 // pred_region
    _
  $region9: #{dpad_forward.5} parent=0 // pred_fallthru
    _
  // Predicated region
  $region10: #{dpad_forward.5} parent=0 // pred_check
    _
  $region11: #{dpad_forward.5} parent=0 // pred_check_branch
    %23 = sbr.rel (0) target = $region13
  $region12: #{dpad_forward.5} parent=0 // pred_region
    _
  $region13: #{dpad_forward.5} parent=0 // pred_fallthru
    _
  // Predicated region
  $region14: #{dpad_forward.5} parent=0 // pred_check
    _
  $region15: #{dpad_forward.5} parent=0 // pred_check_branch
    %25 = sbr.rel (0) target = $region17
  $region16: #{dpad_forward.5} parent=0 // pred_region
    _
  $region17: #{dpad_forward.5} parent=0 // pred_fallthru
    _
  // Predicated region
  $region18: #{dpad_forward.5} parent=0 // pred_check
    _
  $region19: #{dpad_forward.5} parent=0 // pred_check_branch
    %27 = sbr.rel (0) target = $region21
  $region20: #{dpad_forward.5} parent=0 // pred_region
    _
  $region21: #{dpad_forward.5} parent=0 // pred_fallthru
    _
  // Predicated region
  $region22: #{dpad_forward.5} parent=0 // pred_check
    _
  $region23: #{dpad_forward.5} parent=0 // pred_check_branch
    %29 = sbr.rel (0) target = $region25
  $region24: #{dpad_forward.5} parent=0 // pred_region
    _
  $region25: #{dpad_forward.5} parent=0 // pred_fallthru
    _
  // Predicated region
  $region26: #{dpad_forward.5} parent=0 // pred_check
    _
  $region27: #{dpad_forward.5} parent=0 // pred_check_branch
    %31 = sbr.rel (0) target = $region29
  $region28: #{dpad_forward.5} parent=0 // pred_region
    _
  $region29: #{dpad_forward.5} parent=0 // pred_fallthru
    _
  // Predicated region
  $region30: #{dpad_forward.5} parent=0 // pred_check
    _
  $region31: #{dpad_forward.5} parent=0 // pred_check_branch
    %33 = sbr.rel (0) target = $region33
  $region32: #{dpad_forward.5} parent=0 // pred_region
    _
  $region33: #{dpad_forward.5} parent=0 // pred_fallthru
    _
  // Predicated region
  $region34: #{dpad_forward.5} parent=0 // pred_check
    _
  $region35: #{dpad_forward.5} parent=0 // pred_check_branch
    %35 = sbr.rel (0) target = $region37
  $region36: #{dpad_forward.5} parent=0 // pred_region
    _
  $region37: #{dpad_forward.5} parent=0 // pred_fallthru
    _
  // Predicated region
  $region38: #{dpad_forward.5} parent=0 // pred_check
    _
  $region39: #{dpad_forward.5} parent=0 // pred_check_branch
    %37 = sbr.rel (0) target = $region41
  $region40: #{dpad_forward.5} parent=0 // pred_region
    _
  $region41: #{dpad_forward.5} parent=0 // pred_fallthru
    _
  // Predicated region
  $region42: #{dpad_forward.5} parent=0 // pred_check
    _
  $region43: #{dpad_forward.5} parent=0 // pred_check_branch
    %39 = sbr.rel (0) target = $region45
  $region44: #{dpad_forward.5} parent=0 // pred_region
    _
  $region45: #{dpad_forward.5} parent=0 // pred_fallthru
    _
  // Predicated region
  $region46: #{dpad_forward.5} parent=0 // pred_check
    _
  $region47: #{dpad_forward.5} parent=0 // pred_check_branch
    %41 = sbr.rel (0) target = $region49
  $region48: #{dpad_forward.5} parent=0 // pred_region
    _
  $region49: #{dpad_forward.5} parent=0 // pred_fallthru
    _
  // Predicated region
  $region50: #{dpad_forward.5} parent=0 // pred_check
    _
  $region51: #{dpad_forward.5} parent=0 // pred_check_branch
    %43 = sbr.rel (0) target = $region53
  $region52: #{dpad_forward.5} parent=0 // pred_region
    _
  $region53: #{dpad_forward.5} parent=0 // pred_fallthru
    _
  %v45 = vlaneseq
  %v46 = vshrl.u32 %v45, 7
  %v47 = vadd.s32 %v46, 8
  %v48 = vlaneseq
  %v49 = vand.u32 %v48, 127
  %v50 = vsub.s32 %v49, 1
  %vm51 = vcmp.eq.s32.totalorder %v46, %v50
  %vm52 = vcmp.eq.s32.totalorder %v47, %v50
  %v53 = vsel %vm51, 1, 0
  %v54 = vsel %vm52, 1, 0
  %v55 = vcvt.s32.f32 %v53
  %v56 = vcvt.s32.f32 %v54
  %v57 = vadd.s32 %v49, 1
  %vm58 = vcmp.eq.s32.totalorder %v46, %v57
  %vm59 = vcmp.eq.s32.totalorder %v47, %v57
  %v60 = vsel %vm58, 1, 0
  %v61 = vsel %vm59, 1, 0
  %v62 = vcvt.s32.f32 %v60
  %v63 = vcvt.s32.f32 %v61
  %v64 = vld [vmem:[%s0] sm:$0xff]
  %vm65 = vcmask 130048
  %v67 = vsel %vm65, %v64, 0
  %69 = vmatprep.subr.mxu0 0.0
  %70 = vmatpush1.msra.mxu0 0.0
  %71 = vmatprep.subr.mxu0 0.0
  %72 = vmatpush1.msra.mxu0 0.0
  %73 = vmatprep.subr.mxu0 0.0
  %74 = vmatpush1.msra.mxu0 0.0
  %75 = vmatprep.subr.mxu0 0.0
  %76 = vmatpush1.msra.mxu0 0.0
  %77 = vmatprep.subr.mxu0 0.0
  %78 = vmatpush1.msra.mxu0 0.0
  %79 = vmatprep.subr.mxu0 0.0
  %80 = vmatpush1.msra.mxu0 0.0
  %81 = vmatprep.subr.mxu0 0.0
  %82 = vmatpush1.msra.mxu0 0.0
  %83 = vmatprep.subr.mxu0 0.0
  %84 = vmatpush1.msra.mxu0 0.0
  %85 = vmatprep.subr.mxu0 0.0
  %86 = vmatpush1.msra.mxu0 0.0
  %87 = vmatprep.subr.mxu0 0.0
  %88 = vmatpush1.msra.mxu0 0.0
  %89 = vmatprep.subr.mxu0 0.0
  %90 = vmatpush1.msra.mxu0 0.0
  %91 = vmatprep.subr.mxu0 0.0
  %92 = vmatpush1.msra.mxu0 0.0
  %93 = vmatprep.subr.mxu0 0.0
  %94 = vmatpush1.msra.mxu0 0.0
  %95 = vmatprep.subr.mxu0 0.0
  %96 = vmatpush1.msra.mxu0 0.0
  %97 = vmatprep.subr.mxu0 0.0
  %98 = vmatpush1.msra.mxu0 %v56
  %99 = vmatprep.subr.mxu0 0.0
  %100 = vmatpush1.msra.mxu0 %v55
  %101 = vmatprep.subr.mxu0 0.0
  %102 = vmatpush2.msra.mxu0 0.0
  %103 = vmatprep.subr.mxu0 0.0
  %104 = vmatpush2.msra.mxu0 0.0
  %105 = vmatprep.subr.mxu0 0.0
  %106 = vmatpush2.msra.mxu0 0.0
  %107 = vmatprep.subr.mxu0 0.0
  %108 = vmatpush2.msra.mxu0 0.0
  %109 = vmatprep.subr.mxu0 0.0
  %110 = vmatpush2.msra.mxu0 0.0
  %111 = vmatprep.subr.mxu0 0.0
  %112 = vmatpush2.msra.mxu0 0.0
  %113 = vmatprep.subr.mxu0 0.0
  %114 = vmatpush2.msra.mxu0 0.0
  %115 = vmatprep.subr.mxu0 0.0
  %116 = vmatpush2.msra.mxu0 0.0
  %117 = vmatprep.subr.mxu0 0.0
  %118 = vmatpush2.msra.mxu0 0.0
  %119 = vmatprep.subr.mxu0 0.0
  %120 = vmatpush2.msra.mxu0 0.0
  %121 = vmatprep.subr.mxu0 0.0
  %122 = vmatpush2.msra.mxu0 0.0
  %123 = vmatprep.subr.mxu0 0.0
  %124 = vmatpush2.msra.mxu0 0.0
  %125 = vmatprep.subr.mxu0 0.0
  %126 = vmatpush2.msra.mxu0 0.0
  %127 = vmatprep.subr.mxu0 0.0
  %128 = vmatpush2.msra.mxu0 0.0
  %129 = vmatprep.subr.mxu0 0.0
  %130 = vmatpush2.msra.mxu0 0.0
  %131 = vmatprep.subr.mxu0 0.0
  %132 = vmatpush2.msra.mxu0 0.0
  %133 = vmatprep.mubr.f32.mxu0 0.0
  %134 = vmatmul.mubr.f32.gmra.mxu0 %v67
  %v135 = vpop.f32.mrf.mxu0
  %v136 = vadd.f32 0.0, %v135
  %v137 = vpop.f32.mrf.mxu0
  %138 = vdwg.mxu0
  %139 = vmatprep.subr.mxu0 0.0
  %140 = vmatpush1.msra.mxu0 0.0
  %141 = vmatprep.subr.mxu0 0.0
  %142 = vmatpush1.msra.mxu0 0.0
  %143 = vmatprep.subr.mxu0 0.0
  %144 = vmatpush1.msra.mxu0 0.0
  %145 = vmatprep.subr.mxu0 0.0
  %146 = vmatpush1.msra.mxu0 0.0
  %147 = vmatprep.subr.mxu0 0.0
  %148 = vmatpush1.msra.mxu0 0.0
  %149 = vmatprep.subr.mxu0 0.0
  %150 = vmatpush1.msra.mxu0 0.0
  %151 = vmatprep.subr.mxu0 0.0
  %152 = vmatpush1.msra.mxu0 0.0
  %153 = vmatprep.subr.mxu0 0.0
  %154 = vmatpush1.msra.mxu0 0.0
  %155 = vmatprep.subr.mxu0 0.0
  %156 = vmatpush1.msra.mxu0 0.0
  %157 = vmatprep.subr.mxu0 0.0
  %158 = vmatpush1.msra.mxu0 0.0
  %159 = vmatprep.subr.mxu0 0.0
  %160 = vmatpush1.msra.mxu0 0.0
  %161 = vmatprep.subr.mxu0 0.0
  %162 = vmatpush1.msra.mxu0 0.0
  %163 = vmatprep.subr.mxu0 0.0
  %164 = vmatpush1.msra.mxu0 0.0
  %165 = vmatprep.subr.mxu0 0.0
  %166 = vmatpush1.msra.mxu0 0.0
  %167 = vmatprep.subr.mxu0 0.0
  %168 = vmatpush1.msra.mxu0 %v63
  %169 = vmatprep.subr.mxu0 0.0
  %170 = vmatpush1.msra.mxu0 %v62
  %171 = vmatprep.subr.mxu0 0.0
  %172 = vmatpush2.msra.mxu0 0.0
  %173 = vmatprep.subr.mxu0 0.0
  %174 = vmatpush2.msra.mxu0 0.0
  %175 = vmatprep.subr.mxu0 0.0
  %176 = vmatpush2.msra.mxu0 0.0
  %177 = vmatprep.subr.mxu0 0.0
  %178 = vmatpush2.msra.mxu0 0.0
  %179 = vmatprep.subr.mxu0 0.0
  %180 = vmatpush2.msra.mxu0 0.0
  %181 = vmatprep.subr.mxu0 0.0
  %182 = vmatpush2.msra.mxu0 0.0
  %183 = vmatprep.subr.mxu0 0.0
  %184 = vmatpush2.msra.mxu0 0.0
  %185 = vmatprep.subr.mxu0 0.0
  %186 = vmatpush2.msra.mxu0 0.0
  %187 = vmatprep.subr.mxu0 0.0
  %188 = vmatpush2.msra.mxu0 0.0
  %189 = vmatprep.subr.mxu0 0.0
  %190 = vmatpush2.msra.mxu0 0.0
  %191 = vmatprep.subr.mxu0 0.0
  %192 = vmatpush2.msra.mxu0 0.0
  %193 = vmatprep.subr.mxu0 0.0
  %194 = vmatpush2.msra.mxu0 0.0
  %195 = vmatprep.subr.mxu0 0.0
  %196 = vmatpush2.msra.mxu0 0.0
  %197 = vmatprep.subr.mxu0 0.0
  %198 = vmatpush2.msra.mxu0 0.0
  %199 = vmatprep.subr.mxu0 0.0
  %200 = vmatpush2.msra.mxu0 0.0
  %201 = vmatprep.subr.mxu0 0.0
  %202 = vmatpush2.msra.mxu0 0.0
  %203 = vmatprep.mubr.f32.mxu0 0.0
  %204 = vmatmul.mubr.f32.gmra.mxu0 %v67
  %v205 = vpop.f32.mrf.mxu0
  %v206 = vadd.f32 0.0, %v205
  %v207 = vpop.f32.mrf.mxu0
  %208 = vdwg.mxu0
  %v209 = vld [vmem:[%s1] sm:$0xf]
  %v210 = vld [vmem:[%s2] sm:$0x1]
  %s212 = vtos %v209
  %v213 = vstv %s212
  %v215 = vmul.f32 %v136, %v213
  %216 = vrot.lane.b32.xlu0 %v209, 127
  %v217 = vpop.permute.xlu0 %216
  %s218 = vtos %v217
  %v219 = vstv %s218
  %v221 = vmul.f32 %v64, %v219
  %v222 = vadd.f32 %v215, %v221
  %223 = vrot.lane.b32.xlu0 %v209, 126
  %v224 = vpop.permute.xlu0 %223
  %s225 = vtos %v224
  %v226 = vstv %s225
  %v228 = vmul.f32 %v206, %v226
  %v229 = vadd.f32 %v222, %v228
  %v231 = vlaneseq
  %v232 = vshrl.u32 %v231, 7
  %v233 = vsub.s32 0, %v232
  %v234 = vrot.slane %v210, %v233
  %235 = vset.pattern.permute.xlu0 0
  %236 = vperm.xlu0 %235, %v234
  %v237 = vpop.permute.xlu0 %236
  %v239 = vadd.f32 %v229, %v237
  %v240 = vrot.slane %v209, 1
  %s241 = vtos %v240
  %v242 = vstv %s241
  %v244 = vmul.f32 %v136, %v242
  %245 = vrot.lane.b32.xlu0 %v240, 127
  %v246 = vpop.permute.xlu0 %245
  %s247 = vtos %v246
  %v248 = vstv %s247
  %v250 = vmul.f32 %v64, %v248
  %v251 = vadd.f32 %v244, %v250
  %252 = vrot.lane.b32.xlu0 %v240, 126
  %v253 = vpop.permute.xlu0 %252
  %s254 = vtos %v253
  %v255 = vstv %s254
  %v257 = vmul.f32 %v206, %v255
  %v258 = vadd.f32 %v251, %v257
  %259 = vset.pattern.permute.xlu0 1
  %260 = vperm.xlu0 %259, %v234
  %v261 = vpop.permute.xlu0 %260
  %v263 = vadd.f32 %v258, %v261
  %v264 = vrot.slane %v209, 2
  %s265 = vtos %v264
  %v266 = vstv %s265
  %v268 = vmul.f32 %v136, %v266
  %269 = vrot.lane.b32.xlu0 %v264, 127
  %v270 = vpop.permute.xlu0 %269
  %s271 = vtos %v270
  %v272 = vstv %s271
  %v274 = vmul.f32 %v64, %v272
  %v275 = vadd.f32 %v268, %v274
  %276 = vrot.lane.b32.xlu0 %v264, 126
  %v277 = vpop.permute.xlu0 %276
  %s278 = vtos %v277
  %v279 = vstv %s278
  %v281 = vmul.f32 %v206, %v279
  %v282 = vadd.f32 %v275, %v281
  %283 = vset.pattern.permute.xlu0 2
  %284 = vperm.xlu0 %283, %v234
  %v285 = vpop.permute.xlu0 %284
  %v287 = vadd.f32 %v282, %v285
  %v288 = vrot.slane %v209, 3
  %s289 = vtos %v288
  %v290 = vstv %s289
  %v292 = vmul.f32 %v136, %v290
  %293 = vrot.lane.b32.xlu0 %v288, 127
  %v294 = vpop.permute.xlu0 %293
  %s295 = vtos %v294
  %v296 = vstv %s295
  %v298 = vmul.f32 %v64, %v296
  %v299 = vadd.f32 %v292, %v298
  %300 = vrot.lane.b32.xlu0 %v288, 126
  %v301 = vpop.permute.xlu0 %300
  %s302 = vtos %v301
  %v303 = vstv %s302
  %v305 = vmul.f32 %v206, %v303
  %v306 = vadd.f32 %v299, %v305
  %307 = vset.pattern.permute.xlu0 3
  %308 = vperm.xlu0 %307, %v234
  %v309 = vpop.permute.xlu0 %308
  %v311 = vadd.f32 %v306, %v309
  %v312 = vld [vmem:[%s3] sm:$0xff]
  %v313 = vld [vmem:[%s3 + $0x8] sm:$0xff]
  %v314 = vpack.c.bf16 %v263, %v239
  %v315 = vpack.c.bf16 %v311, %v287
  %v316 = vpack.c.bf16 %v313, %v312
  %v317 = vld [vmem:[%s4] sm:$0x1]
  %v319 = vlaneseq
  %v320 = vshrl.u32 %v319, 7
  %v321 = vsub.s32 0, %v320
  %v322 = vrot.slane %v317, %v321
  %v325 = vsel %vm65, %v314, 0
  %v328 = vsel %vm65, %v315, 0
  %330 = vmatprep.subr.bf16.mxu0 0
  %331 = vmatpush1.bf16.msra.mxu0 0
  %332 = vmatprep.subr.bf16.mxu0 0
  %333 = vmatpush1.bf16.msra.mxu0 0
  %334 = vmatprep.subr.bf16.mxu0 0
  %335 = vmatpush1.bf16.msra.mxu0 0
  %336 = vmatprep.subr.bf16.mxu0 0
  %337 = vmatpush1.bf16.msra.mxu0 0
  %338 = vmatprep.subr.bf16.mxu0 0
  %339 = vmatpush1.bf16.msra.mxu0 0
  %340 = vmatprep.subr.bf16.mxu0 0
  %341 = vmatpush1.bf16.msra.mxu0 0
  %342 = vmatprep.subr.bf16.mxu0 0
  %343 = vmatpush1.bf16.msra.mxu0 0
  %344 = vmatprep.subr.bf16.mxu0 0
  %345 = vmatpush1.bf16.msra.mxu0 %v316
  %346 = vmatprep.subr.bf16.mxu0 0
  %347 = vmatpush2.bf16.msra.mxu0 0
  %348 = vmatprep.subr.bf16.mxu0 0
  %349 = vmatpush2.bf16.msra.mxu0 0
  %350 = vmatprep.subr.bf16.mxu0 0
  %351 = vmatpush2.bf16.msra.mxu0 0
  %352 = vmatprep.subr.bf16.mxu0 0
  %353 = vmatpush2.bf16.msra.mxu0 0
  %354 = vmatprep.subr.bf16.mxu0 0
  %355 = vmatpush2.bf16.msra.mxu0 0
  %356 = vmatprep.subr.bf16.mxu0 0
  %357 = vmatpush2.bf16.msra.mxu0 0
  %358 = vmatprep.subr.bf16.mxu0 0
  %359 = vmatpush2.bf16.msra.mxu0 0
  %360 = vmatprep.subr.bf16.mxu0 0
  %361 = vmatpush2.bf16.msra.mxu0 0
  %362 = vmatprep.mubr.bf16.mxu0 0
  %363 = vmatmul.mubr.bf16.gmra.mxu0 %v325
  %v364 = vpop.f32.mrf.mxu0
  %v365 = vadd.f32 %v322, %v364
  %v366 = vpop.f32.mrf.mxu0
  %v367 = vpop.f32.mrf.mxu0
  %v368 = vadd.f32 %v322, %v367
  %v369 = vpop.f32.mrf.mxu0
  %370 = vmatprep.mubr.bf16.mxu0 0
  %371 = vmatmul.mubr.bf16.gmra.mxu0 %v328
  %v372 = vpop.f32.mrf.mxu0
  %v373 = vadd.f32 %v322, %v372
  %v374 = vpop.f32.mrf.mxu0
  %v375 = vpop.f32.mrf.mxu0
  %v376 = vadd.f32 %v322, %v375
  %v377 = vpop.f32.mrf.mxu0
  %378 = vdwg.mxu0
  %v379 = vmul.f32 %v365, 0.999995
  %v380 = vmul.f32 %v368, 0.999995
  %v381 = vmul.f32 %v373, 0.999995
  %v382 = vmul.f32 %v376, 0.999995
  %vm383 = vcmp.gt.f32.partialorder %v379, 0.0
  %vm384 = vcmp.gt.f32.partialorder %v380, 0.0
  %vm385 = vcmp.gt.f32.partialorder %v381, 0.0
  %vm386 = vcmp.gt.f32.partialorder %v382, 0.0
  %v387 = vmul.f32 %v379, 0.01
  %v388 = vmul.f32 %v380, 0.01
  %v389 = vmul.f32 %v381, 0.01
  %v390 = vmul.f32 %v382, 0.01
  %v391 = vsel %vm383, %v379, %v387
  %v392 = vsel %vm384, %v380, %v388
  %v393 = vsel %vm385, %v381, %v389
  %v394 = vsel %vm386, %v382, %v390
  %v395 = vld [vmem:[%s5] sm:$0xff]
  %v396 = vld [vmem:[%s5 + $0x8] sm:$0xff]
  %v397 = vld [vmem:[%s5 + $0x10] sm:$0xff]
  %v398 = vld [vmem:[%s5 + $0x18] sm:$0xff]
  %v399 = vld [vmem:[%s5 + $0x20] sm:$0xff]
  %v400 = vld [vmem:[%s5 + $0x28] sm:$0xff]
  %v401 = vld [vmem:[%s5 + $0x30] sm:$0xff]
  %v402 = vld [vmem:[%s5 + $0x38] sm:$0xff]
  %v403 = vpack.c.bf16 %v392, %v391
  %v404 = vpack.c.bf16 %v394, %v393
  %v405 = vpack.c.bf16 %v396, %v395
  %v406 = vpack.c.bf16 %v398, %v397
  %v407 = vpack.c.bf16 %v400, %v399
  %v408 = vpack.c.bf16 %v402, %v401
  %v409 = vld [vmem:[%s6] sm:$0x1]
  %v411 = vlaneseq
  %v412 = vshrl.u32 %v411, 7
  %v413 = vsub.s32 0, %v412
  %v414 = vrot.slane %v409, %v413
  %vm416 = vcmask 523264
  %v418 = vsel %vm416, %v403, 0
  %v421 = vsel %vm416, %v404, 0
  %423 = vmatprep.subr.bf16.mxu0 0
  %424 = vmatpush1.bf16.msra.mxu0 0
  %425 = vmatprep.subr.bf16.mxu0 0
  %426 = vmatpush1.bf16.msra.mxu0 0
  %427 = vmatprep.subr.bf16.mxu0 0
  %428 = vmatpush1.bf16.msra.mxu0 0
  %429 = vmatprep.subr.bf16.mxu0 0
  %430 = vmatpush1.bf16.msra.mxu0 0
  %431 = vmatprep.subr.bf16.mxu0 0
  %432 = vmatpush1.bf16.msra.mxu0 %v408
  %433 = vmatprep.subr.bf16.mxu0 0
  %434 = vmatpush1.bf16.msra.mxu0 %v407
  %435 = vmatprep.subr.bf16.mxu0 0
  %436 = vmatpush1.bf16.msra.mxu0 %v406
  %437 = vmatprep.subr.bf16.mxu0 0
  %438 = vmatpush1.bf16.msra.mxu0 %v405
  %439 = vmatprep.subr.bf16.mxu0 0
  %440 = vmatpush2.bf16.msra.mxu0 0
  %441 = vmatprep.subr.bf16.mxu0 0
  %442 = vmatpush2.bf16.msra.mxu0 0
  %443 = vmatprep.subr.bf16.mxu0 0
  %444 = vmatpush2.bf16.msra.mxu0 0
  %445 = vmatprep.subr.bf16.mxu0 0
  %446 = vmatpush2.bf16.msra.mxu0 0
  %447 = vmatprep.subr.bf16.mxu0 0
  %448 = vmatpush2.bf16.msra.mxu0 0
  %449 = vmatprep.subr.bf16.mxu0 0
  %450 = vmatpush2.bf16.msra.mxu0 0
  %451 = vmatprep.subr.bf16.mxu0 0
  %452 = vmatpush2.bf16.msra.mxu0 0
  %453 = vmatprep.subr.bf16.mxu0 0
  %454 = vmatpush2.bf16.msra.mxu0 0
  %455 = vmatprep.mubr.bf16.mxu0 0
  %456 = vmatmul.mubr.bf16.gmra.mxu0 %v418
  %v457 = vpop.f32.mrf.mxu0
  %v458 = vadd.f32 %v414, %v457
  %v459 = vpop.f32.mrf.mxu0
  %v460 = vpop.f32.mrf.mxu0
  %v461 = vadd.f32 %v414, %v460
  %v462 = vpop.f32.mrf.mxu0
  %463 = vmatprep.mubr.bf16.mxu0 0
  %464 = vmatmul.mubr.bf16.gmra.mxu0 %v421
  %v465 = vpop.f32.mrf.mxu0
  %v466 = vadd.f32 %v414, %v465
  %v467 = vpop.f32.mrf.mxu0
  %v468 = vpop.f32.mrf.mxu0
  %v469 = vadd.f32 %v414, %v468
  %v470 = vpop.f32.mrf.mxu0
  %471 = vdwg.mxu0
  %vm472 = vcmask 15360
  %v473 = vsel %vm472, %v458, -inf
  %474 = vmax.xlane.f32.xlu0 %v473
  %v475 = vpop.xlane.xlu0 %474
  %v476 = vsel %vm472, %v461, -inf
  %477 = vmax.xlane.f32.xlu0 %v476
  %v478 = vpop.xlane.xlu0 %477
  %v479 = vsel %vm472, %v466, -inf
  %480 = vmax.xlane.f32.xlu0 %v479
  %v481 = vpop.xlane.xlu0 %480
  %v482 = vsel %vm472, %v469, -inf
  %483 = vmax.xlane.f32.xlu0 %v482
  %v484 = vpop.xlane.xlu0 %483
  %v485 = vsub.f32 %v458, %v475
  %v486 = vsub.f32 %v461, %v478
  %v487 = vsub.f32 %v466, %v481
  %v488 = vsub.f32 %v469, %v484
  %v489 = vmul.f32 %v485, 1.442695
  %v490 = vpow.pop %v489
  %v491 = vmul.f32 %v486, 1.442695
  %v492 = vpow.pop %v491
  %v493 = vmul.f32 %v487, 1.442695
  %v494 = vpow.pop %v493
  %v495 = vmul.f32 %v488, 1.442695
  %v496 = vpow.pop %v495
  %v497 = vsel %vm472, %v490, 0.0
  %498 = vadd.xlane.f32.xlu0 %v497
  %v499 = vpop.xlane.xlu0 %498
  %v500 = vsel %vm472, %v492, 0.0
  %501 = vadd.xlane.f32.xlu0 %v500
  %v502 = vpop.xlane.xlu0 %501
  %v503 = vsel %vm472, %v494, 0.0
  %504 = vadd.xlane.f32.xlu0 %v503
  %v505 = vpop.xlane.xlu0 %504
  %v506 = vsel %vm472, %v496, 0.0
  %507 = vadd.xlane.f32.xlu0 %v506
  %v508 = vpop.xlane.xlu0 %507
  %v509 = vrcp.pop %v499
  %v510 = vmul.f32 %v490, %v509
  %v511 = vrcp.pop %v502
  %v512 = vmul.f32 %v492, %v511
  %v513 = vrcp.pop %v505
  %v514 = vmul.f32 %v494, %v513
  %v515 = vrcp.pop %v508
  %v516 = vmul.f32 %v496, %v515
  %v518 = vsel %vm65, %v239, 0
  %v521 = vsel %vm65, %v263, 0
  %v524 = vsel %vm65, %v287, 0
  %v527 = vsel %vm65, %v311, 0
  %529 = vmatprep.subr.mxu0 0.0
  %530 = vmatpush1.msra.mxu0 0.0
  %531 = vmatprep.subr.mxu0 0.0
  %532 = vmatpush1.msra.mxu0 0.0
  %533 = vmatprep.subr.mxu0 0.0
  %534 = vmatpush1.msra.mxu0 0.0
  %535 = vmatprep.subr.mxu0 0.0
  %536 = vmatpush1.msra.mxu0 0.0
  %537 = vmatprep.subr.mxu0 0.0
  %538 = vmatpush1.msra.mxu0 0.0
  %539 = vmatprep.subr.mxu0 0.0
  %540 = vmatpush1.msra.mxu0 0.0
  %541 = vmatprep.subr.mxu0 0.0
  %542 = vmatpush1.msra.mxu0 0.0
  %543 = vmatprep.subr.mxu0 0.0
  %544 = vmatpush1.msra.mxu0 0.0
  %545 = vmatprep.subr.mxu0 0.0
  %546 = vmatpush1.msra.mxu0 0.0
  %547 = vmatprep.subr.mxu0 0.0
  %548 = vmatpush1.msra.mxu0 0.0
  %549 = vmatprep.subr.mxu0 0.0
  %550 = vmatpush1.msra.mxu0 0.0
  %551 = vmatprep.subr.mxu0 0.0
  %552 = vmatpush1.msra.mxu0 0.0
  %553 = vmatprep.subr.mxu0 0.0
  %554 = vmatpush1.msra.mxu0 0.0
  %555 = vmatprep.subr.mxu0 0.0
  %556 = vmatpush1.msra.mxu0 0.0
  %557 = vmatprep.subr.mxu0 0.0
  %558 = vmatpush1.msra.mxu0 %v56
  %559 = vmatprep.subr.mxu0 0.0
  %560 = vmatpush1.msra.mxu0 %v55
  %561 = vmatprep.subr.mxu0 0.0
  %562 = vmatpush2.msra.mxu0 0.0
  %563 = vmatprep.subr.mxu0 0.0
  %564 = vmatpush2.msra.mxu0 0.0
  %565 = vmatprep.subr.mxu0 0.0
  %566 = vmatpush2.msra.mxu0 0.0
  %567 = vmatprep.subr.mxu0 0.0
  %568 = vmatpush2.msra.mxu0 0.0
  %569 = vmatprep.subr.mxu0 0.0
  %570 = vmatpush2.msra.mxu0 0.0
  %571 = vmatprep.subr.mxu0 0.0
  %572 = vmatpush2.msra.mxu0 0.0
  %573 = vmatprep.subr.mxu0 0.0
  %574 = vmatpush2.msra.mxu0 0.0
  %575 = vmatprep.subr.mxu0 0.0
  %576 = vmatpush2.msra.mxu0 0.0
  %577 = vmatprep.subr.mxu0 0.0
  %578 = vmatpush2.msra.mxu0 0.0
  %579 = vmatprep.subr.mxu0 0.0
  %580 = vmatpush2.msra.mxu0 0.0
  %581 = vmatprep.subr.mxu0 0.0
  %582 = vmatpush2.msra.mxu0 0.0
  %583 = vmatprep.subr.mxu0 0.0
  %584 = vmatpush2.msra.mxu0 0.0
  %585 = vmatprep.subr.mxu0 0.0
  %586 = vmatpush2.msra.mxu0 0.0
  %587 = vmatprep.subr.mxu0 0.0
  %588 = vmatpush2.msra.mxu0 0.0
  %589 = vmatprep.subr.mxu0 0.0
  %590 = vmatpush2.msra.mxu0 0.0
  %591 = vmatprep.subr.mxu0 0.0
  %592 = vmatpush2.msra.mxu0 0.0
  %593 = vmatprep.mubr.f32.mxu0 0.0
  %594 = vmatmul.mubr.f32.gmra.mxu0 %v518
  %v595 = vpop.f32.mrf.mxu0
  %v596 = vadd.f32 0.0, %v595
  %v597 = vpop.f32.mrf.mxu0
  %598 = vmatprep.mubr.f32.mxu0 0.0
  %599 = vmatmul.mubr.f32.gmra.mxu0 %v521
  %v600 = vpop.f32.mrf.mxu0
  %v601 = vadd.f32 0.0, %v600
  %v602 = vpop.f32.mrf.mxu0
  %603 = vmatprep.mubr.f32.mxu0 0.0
  %604 = vmatmul.mubr.f32.gmra.mxu0 %v524
  %v605 = vpop.f32.mrf.mxu0
  %v606 = vadd.f32 0.0, %v605
  %v607 = vpop.f32.mrf.mxu0
  %608 = vmatprep.mubr.f32.mxu0 0.0
  %609 = vmatmul.mubr.f32.gmra.mxu0 %v527
  %v610 = vpop.f32.mrf.mxu0
  %v611 = vadd.f32 0.0, %v610
  %v612 = vpop.f32.mrf.mxu0
  %613 = vdwg.mxu0
  %614 = vmatprep.subr.mxu0 0.0
  %615 = vmatpush1.msra.mxu0 0.0
  %616 = vmatprep.subr.mxu0 0.0
  %617 = vmatpush1.msra.mxu0 0.0
  %618 = vmatprep.subr.mxu0 0.0
  %619 = vmatpush1.msra.mxu0 0.0
  %620 = vmatprep.subr.mxu0 0.0
  %621 = vmatpush1.msra.mxu0 0.0
  %622 = vmatprep.subr.mxu0 0.0
  %623 = vmatpush1.msra.mxu0 0.0
  %624 = vmatprep.subr.mxu0 0.0
  %625 = vmatpush1.msra.mxu0 0.0
  %626 = vmatprep.subr.mxu0 0.0
  %627 = vmatpush1.msra.mxu0 0.0
  %628 = vmatprep.subr.mxu0 0.0
  %629 = vmatpush1.msra.mxu0 0.0
  %630 = vmatprep.subr.mxu0 0.0
  %631 = vmatpush1.msra.mxu0 0.0
  %632 = vmatprep.subr.mxu0 0.0
  %633 = vmatpush1.msra.mxu0 0.0
  %634 = vmatprep.subr.mxu0 0.0
  %635 = vmatpush1.msra.mxu0 0.0
  %636 = vmatprep.subr.mxu0 0.0
  %637 = vmatpush1.msra.mxu0 0.0
  %638 = vmatprep.subr.mxu0 0.0
  %639 = vmatpush1.msra.mxu0 0.0
  %640 = vmatprep.subr.mxu0 0.0
  %641 = vmatpush1.msra.mxu0 0.0
  %642 = vmatprep.subr.mxu0 0.0
  %643 = vmatpush1.msra.mxu0 %v63
  %644 = vmatprep.subr.mxu0 0.0
  %645 = vmatpush1.msra.mxu0 %v62
  %646 = vmatprep.subr.mxu0 0.0
  %647 = vmatpush2.msra.mxu0 0.0
  %648 = vmatprep.subr.mxu0 0.0
  %649 = vmatpush2.msra.mxu0 0.0
  %650 = vmatprep.subr.mxu0 0.0
  %651 = vmatpush2.msra.mxu0 0.0
  %652 = vmatprep.subr.mxu0 0.0
  %653 = vmatpush2.msra.mxu0 0.0
  %654 = vmatprep.subr.mxu0 0.0
  %655 = vmatpush2.msra.mxu0 0.0
  %656 = vmatprep.subr.mxu0 0.0
  %657 = vmatpush2.msra.mxu0 0.0
  %658 = vmatprep.subr.mxu0 0.0
  %659 = vmatpush2.msra.mxu0 0.0
  %660 = vmatprep.subr.mxu0 0.0
  %661 = vmatpush2.msra.mxu0 0.0
  %662 = vmatprep.subr.mxu0 0.0
  %663 = vmatpush2.msra.mxu0 0.0
  %664 = vmatprep.subr.mxu0 0.0
  %665 = vmatpush2.msra.mxu0 0.0
  %666 = vmatprep.subr.mxu0 0.0
  %667 = vmatpush2.msra.mxu0 0.0
  %668 = vmatprep.subr.mxu0 0.0
  %669 = vmatpush2.msra.mxu0 0.0
  %670 = vmatprep.subr.mxu0 0.0
  %671 = vmatpush2.msra.mxu0 0.0
  %672 = vmatprep.subr.mxu0 0.0
  %673 = vmatpush2.msra.mxu0 0.0
  %674 = vmatprep.subr.mxu0 0.0
  %675 = vmatpush2.msra.mxu0 0.0
  %676 = vmatprep.subr.mxu0 0.0
  %677 = vmatpush2.msra.mxu0 0.0
  %678 = vmatprep.mubr.f32.mxu0 0.0
  %679 = vmatmul.mubr.f32.gmra.mxu0 %v518
  %v680 = vpop.f32.mrf.mxu0
  %v681 = vadd.f32 0.0, %v680
  %v682 = vpop.f32.mrf.mxu0
  %683 = vmatprep.mubr.f32.mxu0 0.0
  %684 = vmatmul.mubr.f32.gmra.mxu0 %v521
  %v685 = vpop.f32.mrf.mxu0
  %v686 = vadd.f32 0.0, %v685
  %v687 = vpop.f32.mrf.mxu0
  %688 = vmatprep.mubr.f32.mxu0 0.0
  %689 = vmatmul.mubr.f32.gmra.mxu0 %v524
  %v690 = vpop.f32.mrf.mxu0
  %v691 = vadd.f32 0.0, %v690
  %v692 = vpop.f32.mrf.mxu0
  %693 = vmatprep.mubr.f32.mxu0 0.0
  %694 = vmatmul.mubr.f32.gmra.mxu0 %v527
  %v695 = vpop.f32.mrf.mxu0
  %v696 = vadd.f32 0.0, %v695
  %v697 = vpop.f32.mrf.mxu0
  %698 = vdwg.mxu0
  %v699 = vld [vmem:[%s7] sm:$0xff]
  %v700 = vld [vmem:[%s7 + $0x8] sm:$0xff]
  %v701 = vld [vmem:[%s8] sm:$0x1]
  %v703 = vlaneseq
  %v704 = vshrl.u32 %v703, 7
  %v705 = vsub.s32 0, %v704
  %v706 = vrot.slane %v701, %v705
  %707 = vset.pattern.permute.xlu0 0
  %708 = vperm.xlu0 %707, %v706
  %v709 = vpop.permute.xlu0 %708
  %v711 = vadd.f32 %v709, 0.0
  %s713 = vtos %v699
  %v714 = vstv %s713
  %v716 = vmul.f32 %v596, %v714
  %v717 = vadd.f32 %v711, %v716
  %718 = vrot.lane.b32.xlu0 %v699, 127
  %v719 = vpop.permute.xlu0 %718
  %s720 = vtos %v719
  %v721 = vstv %s720
  %v723 = vmul.f32 %v239, %v721
  %v724 = vadd.f32 %v717, %v723
  %725 = vrot.lane.b32.xlu0 %v699, 126
  %v726 = vpop.permute.xlu0 %725
  %s727 = vtos %v726
  %v728 = vstv %s727
  %v730 = vmul.f32 %v681, %v728
  %v731 = vadd.f32 %v724, %v730
  %v732 = vrot.slane %v699, 1
  %s733 = vtos %v732
  %v734 = vstv %s733
  %v736 = vmul.f32 %v601, %v734
  %v737 = vadd.f32 %v731, %v736
  %738 = vrot.lane.b32.xlu0 %v732, 127
  %v739 = vpop.permute.xlu0 %738
  %s740 = vtos %v739
  %v741 = vstv %s740
  %v743 = vmul.f32 %v263, %v741
  %v744 = vadd.f32 %v737, %v743
  %745 = vrot.lane.b32.xlu0 %v732, 126
  %v746 = vpop.permute.xlu0 %745
  %s747 = vtos %v746
  %v748 = vstv %s747
  %v750 = vmul.f32 %v686, %v748
  %v751 = vadd.f32 %v744, %v750
  %v752 = vrot.slane %v699, 2
  %s753 = vtos %v752
  %v754 = vstv %s753
  %v756 = vmul.f32 %v606, %v754
  %v757 = vadd.f32 %v751, %v756
  %758 = vrot.lane.b32.xlu0 %v752, 127
  %v759 = vpop.permute.xlu0 %758
  %s760 = vtos %v759
  %v761 = vstv %s760
  %v763 = vmul.f32 %v287, %v761
  %v764 = vadd.f32 %v757, %v763
  %765 = vrot.lane.b32.xlu0 %v752, 126
  %v766 = vpop.permute.xlu0 %765
  %s767 = vtos %v766
  %v768 = vstv %s767
  %v770 = vmul.f32 %v691, %v768
  %v771 = vadd.f32 %v764, %v770
  %v772 = vrot.slane %v699, 3
  %s773 = vtos %v772
  %v774 = vstv %s773
  %v776 = vmul.f32 %v611, %v774
  %v777 = vadd.f32 %v771, %v776
  %778 = vrot.lane.b32.xlu0 %v772, 127
  %v779 = vpop.permute.xlu0 %778
  %s780 = vtos %v779
  %v781 = vstv %s780
  %v783 = vmul.f32 %v311, %v781
  %v784 = vadd.f32 %v777, %v783
  %785 = vrot.lane.b32.xlu0 %v772, 126
  %v786 = vpop.permute.xlu0 %785
  %s787 = vtos %v786
  %v788 = vstv %s787
  %v790 = vmul.f32 %v696, %v788
  %v791 = vadd.f32 %v784, %v790
  %v792 = vmul.f32 %v239, %v791
  %793 = vset.pattern.permute.xlu0 1
  %794 = vperm.xlu0 %793, %v706
  %v795 = vpop.permute.xlu0 %794
  %v797 = vadd.f32 %v795, 0.0
  %v798 = vrot.slane %v699, 4
  %s799 = vtos %v798
  %v800 = vstv %s799
  %v802 = vmul.f32 %v596, %v800
  %v803 = vadd.f32 %v797, %v802
  %804 = vrot.lane.b32.xlu0 %v798, 127
  %v805 = vpop.permute.xlu0 %804
  %s806 = vtos %v805
  %v807 = vstv %s806
  %v809 = vmul.f32 %v239, %v807
  %v810 = vadd.f32 %v803, %v809
  %811 = vrot.lane.b32.xlu0 %v798, 126
  %v812 = vpop.permute.xlu0 %811
  %s813 = vtos %v812
  %v814 = vstv %s813
  %v816 = vmul.f32 %v681, %v814
  %v817 = vadd.f32 %v810, %v816
  %v818 = vrot.slane %v699, 5
  %s819 = vtos %v818
  %v820 = vstv %s819
  %v822 = vmul.f32 %v601, %v820
  %v823 = vadd.f32 %v817, %v822
  %824 = vrot.lane.b32.xlu0 %v818, 127
  %v825 = vpop.permute.xlu0 %824
  %s826 = vtos %v825
  %v827 = vstv %s826
  %v829 = vmul.f32 %v263, %v827
  %v830 = vadd.f32 %v823, %v829
  %831 = vrot.lane.b32.xlu0 %v818, 126
  %v832 = vpop.permute.xlu0 %831
  %s833 = vtos %v832
  %v834 = vstv %s833
  %v836 = vmul.f32 %v686, %v834
  %v837 = vadd.f32 %v830, %v836
  %v838 = vrot.slane %v699, 6
  %s839 = vtos %v838
  %v840 = vstv %s839
  %v842 = vmul.f32 %v606, %v840
  %v843 = vadd.f32 %v837, %v842
  %844 = vrot.lane.b32.xlu0 %v838, 127
  %v845 = vpop.permute.xlu0 %844
  %s846 = vtos %v845
  %v847 = vstv %s846
  %v849 = vmul.f32 %v287, %v847
  %v850 = vadd.f32 %v843, %v849
  %851 = vrot.lane.b32.xlu0 %v838, 126
  %v852 = vpop.permute.xlu0 %851
  %s853 = vtos %v852
  %v854 = vstv %s853
  %v856 = vmul.f32 %v691, %v854
  %v857 = vadd.f32 %v850, %v856
  %v858 = vrot.slane %v699, 7
  %s859 = vtos %v858
  %v860 = vstv %s859
  %v862 = vmul.f32 %v611, %v860
  %v863 = vadd.f32 %v857, %v862
  %864 = vrot.lane.b32.xlu0 %v858, 127
  %v865 = vpop.permute.xlu0 %864
  %s866 = vtos %v865
  %v867 = vstv %s866
  %v869 = vmul.f32 %v311, %v867
  %v870 = vadd.f32 %v863, %v869
  %871 = vrot.lane.b32.xlu0 %v858, 126
  %v872 = vpop.permute.xlu0 %871
  %s873 = vtos %v872
  %v874 = vstv %s873
  %v876 = vmul.f32 %v696, %v874
  %v877 = vadd.f32 %v870, %v876
  %v878 = vmul.f32 %v263, %v877
  %879 = vset.pattern.permute.xlu0 2
  %880 = vperm.xlu0 %879, %v706
  %v881 = vpop.permute.xlu0 %880
  %v883 = vadd.f32 %v881, 0.0
  %s885 = vtos %v700
  %v886 = vstv %s885
  %v888 = vmul.f32 %v596, %v886
  %v889 = vadd.f32 %v883, %v888
  %890 = vrot.lane.b32.xlu0 %v700, 127
  %v891 = vpop.permute.xlu0 %890
  %s892 = vtos %v891
  %v893 = vstv %s892
  %v895 = vmul.f32 %v239, %v893
  %v896 = vadd.f32 %v889, %v895
  %897 = vrot.lane.b32.xlu0 %v700, 126
  %v898 = vpop.permute.xlu0 %897
  %s899 = vtos %v898
  %v900 = vstv %s899
  %v902 = vmul.f32 %v681, %v900
  %v903 = vadd.f32 %v896, %v902
  %v904 = vrot.slane %v700, 1
  %s905 = vtos %v904
  %v906 = vstv %s905
  %v908 = vmul.f32 %v601, %v906
  %v909 = vadd.f32 %v903, %v908
  %910 = vrot.lane.b32.xlu0 %v904, 127
  %v911 = vpop.permute.xlu0 %910
  %s912 = vtos %v911
  %v913 = vstv %s912
  %v915 = vmul.f32 %v263, %v913
  %v916 = vadd.f32 %v909, %v915
  %917 = vrot.lane.b32.xlu0 %v904, 126
  %v918 = vpop.permute.xlu0 %917
  %s919 = vtos %v918
  %v920 = vstv %s919
  %v922 = vmul.f32 %v686, %v920
  %v923 = vadd.f32 %v916, %v922
  %v924 = vrot.slane %v700, 2
  %s925 = vtos %v924
  %v926 = vstv %s925
  %v928 = vmul.f32 %v606, %v926
  %v929 = vadd.f32 %v923, %v928
  %930 = vrot.lane.b32.xlu0 %v924, 127
  %v931 = vpop.permute.xlu0 %930
  %s932 = vtos %v931
  %v933 = vstv %s932
  %v935 = vmul.f32 %v287, %v933
  %v936 = vadd.f32 %v929, %v935
  %937 = vrot.lane.b32.xlu0 %v924, 126
  %v938 = vpop.permute.xlu0 %937
  %s939 = vtos %v938
  %v940 = vstv %s939
  %v942 = vmul.f32 %v691, %v940
  %v943 = vadd.f32 %v936, %v942
  %v944 = vrot.slane %v700, 3
  %s945 = vtos %v944
  %v946 = vstv %s945
  %v948 = vmul.f32 %v611, %v946
  %v949 = vadd.f32 %v943, %v948
  %950 = vrot.lane.b32.xlu0 %v944, 127
  %v951 = vpop.permute.xlu0 %950
  %s952 = vtos %v951
  %v953 = vstv %s952
  %v955 = vmul.f32 %v311, %v953
  %v956 = vadd.f32 %v949, %v955
  %957 = vrot.lane.b32.xlu0 %v944, 126
  %v958 = vpop.permute.xlu0 %957
  %s959 = vtos %v958
  %v960 = vstv %s959
  %v962 = vmul.f32 %v696, %v960
  %v963 = vadd.f32 %v956, %v962
  %v964 = vmul.f32 %v287, %v963
  %965 = vset.pattern.permute.xlu0 3
  %966 = vperm.xlu0 %965, %v706
  %v967 = vpop.permute.xlu0 %966
  %v969 = vadd.f32 %v967, 0.0
  %v970 = vrot.slane %v700, 4
  %s971 = vtos %v970
  %v972 = vstv %s971
  %v974 = vmul.f32 %v596, %v972
  %v975 = vadd.f32 %v969, %v974
  %976 = vrot.lane.b32.xlu0 %v970, 127
  %v977 = vpop.permute.xlu0 %976
  %s978 = vtos %v977
  %v979 = vstv %s978
  %v981 = vmul.f32 %v239, %v979
  %v982 = vadd.f32 %v975, %v981
  %983 = vrot.lane.b32.xlu0 %v970, 126
  %v984 = vpop.permute.xlu0 %983
  %s985 = vtos %v984
  %v986 = vstv %s985
  %v988 = vmul.f32 %v681, %v986
  %v989 = vadd.f32 %v982, %v988
  %v990 = vrot.slane %v700, 5
  %s991 = vtos %v990
  %v992 = vstv %s991
  %v994 = vmul.f32 %v601, %v992
  %v995 = vadd.f32 %v989, %v994
  %996 = vrot.lane.b32.xlu0 %v990, 127
  %v997 = vpop.permute.xlu0 %996
  %s998 = vtos %v997
  %v999 = vstv %s998
  %v1001 = vmul.f32 %v263, %v999
  %v1002 = vadd.f32 %v995, %v1001
  %1003 = vrot.lane.b32.xlu0 %v990, 126
  %v1004 = vpop.permute.xlu0 %1003
  %s1005 = vtos %v1004
  %v1006 = vstv %s1005
  %v1008 = vmul.f32 %v686, %v1006
  %v1009 = vadd.f32 %v1002, %v1008
  %v1010 = vrot.slane %v700, 6
  %s1011 = vtos %v1010
  %v1012 = vstv %s1011
  %v1014 = vmul.f32 %v606, %v1012
  %v1015 = vadd.f32 %v1009, %v1014
  %1016 = vrot.lane.b32.xlu0 %v1010, 127
  %v1017 = vpop.permute.xlu0 %1016
  %s1018 = vtos %v1017
  %v1019 = vstv %s1018
  %v1021 = vmul.f32 %v287, %v1019
  %v1022 = vadd.f32 %v1015, %v1021
  %1023 = vrot.lane.b32.xlu0 %v1010, 126
  %v1024 = vpop.permute.xlu0 %1023
  %s1025 = vtos %v1024
  %v1026 = vstv %s1025
  %v1028 = vmul.f32 %v691, %v1026
  %v1029 = vadd.f32 %v1022, %v1028
  %v1030 = vrot.slane %v700, 7
  %s1031 = vtos %v1030
  %v1032 = vstv %s1031
  %v1034 = vmul.f32 %v611, %v1032
  %v1035 = vadd.f32 %v1029, %v1034
  %1036 = vrot.lane.b32.xlu0 %v1030, 127
  %v1037 = vpop.permute.xlu0 %1036
  %s1038 = vtos %v1037
  %v1039 = vstv %s1038
  %v1041 = vmul.f32 %v311, %v1039
  %v1042 = vadd.f32 %v1035, %v1041
  %1043 = vrot.lane.b32.xlu0 %v1030, 126
  %v1044 = vpop.permute.xlu0 %1043
  %s1045 = vtos %v1044
  %v1046 = vstv %s1045
  %v1048 = vmul.f32 %v696, %v1046
  %v1049 = vadd.f32 %v1042, %v1048
  %v1050 = vmul.f32 %v311, %v1049
  %1052 = vset.pattern.permute.xlu0 0
  %1053 = vperm.xlu0 %1052, %v510
  %v1054 = vpop.permute.xlu0 %1053
  %v1056 = vmul.f32 %v792, %v1054
  %v1057 = vadd.f32 %v1056, 0.0
  %1059 = vset.pattern.permute.xlu0 0
  %1060 = vperm.xlu0 %1059, %v512
  %v1061 = vpop.permute.xlu0 %1060
  %v1063 = vmul.f32 %v878, %v1061
  %v1064 = vadd.f32 %v1057, %v1063
  %1066 = vset.pattern.permute.xlu0 0
  %1067 = vperm.xlu0 %1066, %v514
  %v1068 = vpop.permute.xlu0 %1067
  %v1070 = vmul.f32 %v964, %v1068
  %v1071 = vadd.f32 %v1064, %v1070
  %1073 = vset.pattern.permute.xlu0 0
  %1074 = vperm.xlu0 %1073, %v516
  %v1075 = vpop.permute.xlu0 %1074
  %v1077 = vmul.f32 %v1050, %v1075
  %v1078 = vadd.f32 %v1071, %v1077
  %1079 = vset.pattern.permute.xlu0 1
  %1080 = vperm.xlu0 %1079, %v510
  %v1081 = vpop.permute.xlu0 %1080
  %v1083 = vmul.f32 %v792, %v1081
  %v1084 = vadd.f32 %v1083, 0.0
  %1085 = vset.pattern.permute.xlu0 1
  %1086 = vperm.xlu0 %1085, %v512
  %v1087 = vpop.permute.xlu0 %1086
  %v1089 = vmul.f32 %v878, %v1087
  %v1090 = vadd.f32 %v1084, %v1089
  %1091 = vset.pattern.permute.xlu0 1
  %1092 = vperm.xlu0 %1091, %v514
  %v1093 = vpop.permute.xlu0 %1092
  %v1095 = vmul.f32 %v964, %v1093
  %v1096 = vadd.f32 %v1090, %v1095
  %1097 = vset.pattern.permute.xlu0 1
  %1098 = vperm.xlu0 %1097, %v516
  %v1099 = vpop.permute.xlu0 %1098
  %v1101 = vmul.f32 %v1050, %v1099
  %v1102 = vadd.f32 %v1096, %v1101
  %v1103 = vld [vmem:[%s9] sm:$0xff]
  %v1104 = vld [vmem:[%s9 + $0x8] sm:$0xff]
  %v1105 = vpack.c.bf16 %v1078, %v1078
  %v1106 = vpack.c.bf16 %v1104, %v1103
  %v1107 = vld [vmem:[%s10] sm:$0x1]
  %v1109 = vlaneseq
  %v1110 = vshrl.u32 %v1109, 7
  %v1111 = vsub.s32 0, %v1110
  %v1112 = vrot.slane %v1107, %v1111
  %v1115 = vsel %vm65, %v1105, 0
  %1117 = vmatprep.subr.bf16.mxu0 0
  %1118 = vmatpush1.bf16.msra.mxu0 0
  %1119 = vmatprep.subr.bf16.mxu0 0
  %1120 = vmatpush1.bf16.msra.mxu0 0
  %1121 = vmatprep.subr.bf16.mxu0 0
  %1122 = vmatpush1.bf16.msra.mxu0 0
  %1123 = vmatprep.subr.bf16.mxu0 0
  %1124 = vmatpush1.bf16.msra.mxu0 0
  %1125 = vmatprep.subr.bf16.mxu0 0
  %1126 = vmatpush1.bf16.msra.mxu0 0
  %1127 = vmatprep.subr.bf16.mxu0 0
  %1128 = vmatpush1.bf16.msra.mxu0 0
  %1129 = vmatprep.subr.bf16.mxu0 0
  %1130 = vmatpush1.bf16.msra.mxu0 0
  %1131 = vmatprep.subr.bf16.mxu0 0
  %1132 = vmatpush1.bf16.msra.mxu0 %v1106
  %1133 = vmatprep.subr.bf16.mxu0 0
  %1134 = vmatpush2.bf16.msra.mxu0 0
  %1135 = vmatprep.subr.bf16.mxu0 0
  %1136 = vmatpush2.bf16.msra.mxu0 0
  %1137 = vmatprep.subr.bf16.mxu0 0
  %1138 = vmatpush2.bf16.msra.mxu0 0
  %1139 = vmatprep.subr.bf16.mxu0 0
  %1140 = vmatpush2.bf16.msra.mxu0 0
  %1141 = vmatprep.subr.bf16.mxu0 0
  %1142 = vmatpush2.bf16.msra.mxu0 0
  %1143 = vmatprep.subr.bf16.mxu0 0
  %1144 = vmatpush2.bf16.msra.mxu0 0
  %1145 = vmatprep.subr.bf16.mxu0 0
  %1146 = vmatpush2.bf16.msra.mxu0 0
  %1147 = vmatprep.subr.bf16.mxu0 0
  %1148 = vmatpush2.bf16.msra.mxu0 0
  %1149 = vmatprep.mubr.bf16.mxu0 0
  %1150 = vmatmul.mubr.bf16.gmra.mxu0 %v1115
  %v1151 = vpop.f32.mrf.mxu0
  %v1152 = vadd.f32 %v1112, %v1151
  %v1153 = vpop.f32.mrf.mxu0
  %v1154 = vpop.f32.mrf.mxu0
  %v1155 = vpop.f32.mrf.mxu0
  %1156 = vdwg.mxu0
  %v1157 = vmul.f32 %v1152, 0.999995
  %vm1158 = vcmp.gt.f32.partialorder %v1157, 0.0
  %v1159 = vmul.f32 %v1157, 0.01
  %v1160 = vsel %vm1158, %v1157, %v1159
  %v1161 = vld [vmem:[%s11] sm:$0xff]
  %v1162 = vld [vmem:[%s11 + $0x8] sm:$0xff]
  %v1163 = vpack.c.bf16 %v1160, %v1160
  %v1164 = vpack.c.bf16 %v1162, %v1161
  %v1165 = vld [vmem:[%s12] sm:$0x1]
  %v1167 = vlaneseq
  %v1168 = vshrl.u32 %v1167, 7
  %v1169 = vsub.s32 0, %v1168
  %v1170 = vrot.slane %v1165, %v1169
  %v1173 = vsel %vm65, %v1163, 0
  %1175 = vmatprep.subr.bf16.mxu0 0
  %1176 = vmatpush1.bf16.msra.mxu0 0
  %1177 = vmatprep.subr.bf16.mxu0 0
  %1178 = vmatpush1.bf16.msra.mxu0 0
  %1179 = vmatprep.subr.bf16.mxu0 0
  %1180 = vmatpush1.bf16.msra.mxu0 0
  %1181 = vmatprep.subr.bf16.mxu0 0
  %1182 = vmatpush1.bf16.msra.mxu0 0
  %1183 = vmatprep.subr.bf16.mxu0 0
  %1184 = vmatpush1.bf16.msra.mxu0 0
  %1185 = vmatprep.subr.bf16.mxu0 0
  %1186 = vmatpush1.bf16.msra.mxu0 0
  %1187 = vmatprep.subr.bf16.mxu0 0
  %1188 = vmatpush1.bf16.msra.mxu0 0
  %1189 = vmatprep.subr.bf16.mxu0 0
  %1190 = vmatpush1.bf16.msra.mxu0 %v1164
  %1191 = vmatprep.subr.bf16.mxu0 0
  %1192 = vmatpush2.bf16.msra.mxu0 0
  %1193 = vmatprep.subr.bf16.mxu0 0
  %1194 = vmatpush2.bf16.msra.mxu0 0
  %1195 = vmatprep.subr.bf16.mxu0 0
  %1196 = vmatpush2.bf16.msra.mxu0 0
  %1197 = vmatprep.subr.bf16.mxu0 0
  %1198 = vmatpush2.bf16.msra.mxu0 0
  %1199 = vmatprep.subr.bf16.mxu0 0
  %1200 = vmatpush2.bf16.msra.mxu0 0
  %1201 = vmatprep.subr.bf16.mxu0 0
  %1202 = vmatpush2.bf16.msra.mxu0 0
  %1203 = vmatprep.subr.bf16.mxu0 0
  %1204 = vmatpush2.bf16.msra.mxu0 0
  %1205 = vmatprep.subr.bf16.mxu0 0
  %1206 = vmatpush2.bf16.msra.mxu0 0
  %1207 = vmatprep.mubr.bf16.mxu0 0
  %1208 = vmatmul.mubr.bf16.gmra.mxu0 %v1173
  %v1209 = vpop.f32.mrf.mxu0
  %v1210 = vadd.f32 %v1170, %v1209
  %v1211 = vpop.f32.mrf.mxu0
  %v1212 = vpop.f32.mrf.mxu0
  %v1213 = vpop.f32.mrf.mxu0
  %1214 = vdwg.mxu0
  %v1215 = vmul.f32 %v1210, 0.999995
  %vm1216 = vcmp.gt.f32.partialorder %v1215, 0.0
  %v1217 = vmul.f32 %v1215, 0.01
  %v1218 = vsel %vm1216, %v1215, %v1217
  %1219 = vst.msk [vmem:[%s13] sm:$0xff] %vm65, %v1218
  %s1220 = scalar_lea.vmem %s9, 16
  %v1221 = vld [vmem:[%s1220] sm:$0xff]
  %v1222 = vld [vmem:[%s1220 + $0x8] sm:$0xff]
  %v1223 = vpack.c.bf16 %v1102, %v1102
  %v1224 = vpack.c.bf16 %v1222, %v1221
  %s1225 = scalar_lea.vmem %s10, 1
  %v1226 = vld [vmem:[%s1225] sm:$0x1]
  %v1228 = vlaneseq
  %v1229 = vshrl.u32 %v1228, 7
  %v1230 = vsub.s32 0, %v1229
  %v1231 = vrot.slane %v1226, %v1230
  %v1234 = vsel %vm65, %v1223, 0
  %1236 = vmatprep.subr.bf16.mxu0 0
  %1237 = vmatpush1.bf16.msra.mxu0 0
  %1238 = vmatprep.subr.bf16.mxu0 0
  %1239 = vmatpush1.bf16.msra.mxu0 0
  %1240 = vmatprep.subr.bf16.mxu0 0
  %1241 = vmatpush1.bf16.msra.mxu0 0
  %1242 = vmatprep.subr.bf16.mxu0 0
  %1243 = vmatpush1.bf16.msra.mxu0 0
  %1244 = vmatprep.subr.bf16.mxu0 0
  %1245 = vmatpush1.bf16.msra.mxu0 0
  %1246 = vmatprep.subr.bf16.mxu0 0
  %1247 = vmatpush1.bf16.msra.mxu0 0
  %1248 = vmatprep.subr.bf16.mxu0 0
  %1249 = vmatpush1.bf16.msra.mxu0 0
  %1250 = vmatprep.subr.bf16.mxu0 0
  %1251 = vmatpush1.bf16.msra.mxu0 %v1224
  %1252 = vmatprep.subr.bf16.mxu0 0
  %1253 = vmatpush2.bf16.msra.mxu0 0
  %1254 = vmatprep.subr.bf16.mxu0 0
  %1255 = vmatpush2.bf16.msra.mxu0 0
  %1256 = vmatprep.subr.bf16.mxu0 0
  %1257 = vmatpush2.bf16.msra.mxu0 0
  %1258 = vmatprep.subr.bf16.mxu0 0
  %1259 = vmatpush2.bf16.msra.mxu0 0
  %1260 = vmatprep.subr.bf16.mxu0 0
  %1261 = vmatpush2.bf16.msra.mxu0 0
  %1262 = vmatprep.subr.bf16.mxu0 0
  %1263 = vmatpush2.bf16.msra.mxu0 0
  %1264 = vmatprep.subr.bf16.mxu0 0
  %1265 = vmatpush2.bf16.msra.mxu0 0
  %1266 = vmatprep.subr.bf16.mxu0 0
  %1267 = vmatpush2.bf16.msra.mxu0 0
  %1268 = vmatprep.mubr.bf16.mxu0 0
  %1269 = vmatmul.mubr.bf16.gmra.mxu0 %v1234
  %v1270 = vpop.f32.mrf.mxu0
  %v1271 = vadd.f32 %v1231, %v1270
  %v1272 = vpop.f32.mrf.mxu0
  %v1273 = vpop.f32.mrf.mxu0
  %v1274 = vpop.f32.mrf.mxu0
  %1275 = vdwg.mxu0
  %v1276 = vmul.f32 %v1271, 0.999995
  %vm1277 = vcmp.gt.f32.partialorder %v1276, 0.0
  %v1278 = vmul.f32 %v1276, 0.01
  %v1279 = vsel %vm1277, %v1276, %v1278
  %s1280 = scalar_lea.vmem %s11, 16
  %v1281 = vld [vmem:[%s1280] sm:$0xff]
  %v1282 = vld [vmem:[%s1280 + $0x8] sm:$0xff]
  %v1283 = vpack.c.bf16 %v1279, %v1279
  %v1284 = vpack.c.bf16 %v1282, %v1281
  %s1285 = scalar_lea.vmem %s12, 1
  %v1286 = vld [vmem:[%s1285] sm:$0x1]
  %v1288 = vlaneseq
  %v1289 = vshrl.u32 %v1288, 7
  %v1290 = vsub.s32 0, %v1289
  %v1291 = vrot.slane %v1286, %v1290
  %v1294 = vsel %vm65, %v1283, 0
  %1296 = vmatprep.subr.bf16.mxu0 0
  %1297 = vmatpush1.bf16.msra.mxu0 0
  %1298 = vmatprep.subr.bf16.mxu0 0
  %1299 = vmatpush1.bf16.msra.mxu0 0
  %1300 = vmatprep.subr.bf16.mxu0 0
  %1301 = vmatpush1.bf16.msra.mxu0 0
  %1302 = vmatprep.subr.bf16.mxu0 0
  %1303 = vmatpush1.bf16.msra.mxu0 0
  %1304 = vmatprep.subr.bf16.mxu0 0
  %1305 = vmatpush1.bf16.msra.mxu0 0
  %1306 = vmatprep.subr.bf16.mxu0 0
  %1307 = vmatpush1.bf16.msra.mxu0 0
  %1308 = vmatprep.subr.bf16.mxu0 0
  %1309 = vmatpush1.bf16.msra.mxu0 0
  %1310 = vmatprep.subr.bf16.mxu0 0
  %1311 = vmatpush1.bf16.msra.mxu0 %v1284
  %1312 = vmatprep.subr.bf16.mxu0 0
  %1313 = vmatpush2.bf16.msra.mxu0 0
  %1314 = vmatprep.subr.bf16.mxu0 0
  %1315 = vmatpush2.bf16.msra.mxu0 0
  %1316 = vmatprep.subr.bf16.mxu0 0
  %1317 = vmatpush2.bf16.msra.mxu0 0
  %1318 = vmatprep.subr.bf16.mxu0 0
  %1319 = vmatpush2.bf16.msra.mxu0 0
  %1320 = vmatprep.subr.bf16.mxu0 0
  %1321 = vmatpush2.bf16.msra.mxu0 0
  %1322 = vmatprep.subr.bf16.mxu0 0
  %1323 = vmatpush2.bf16.msra.mxu0 0
  %1324 = vmatprep.subr.bf16.mxu0 0
  %1325 = vmatpush2.bf16.msra.mxu0 0
  %1326 = vmatprep.subr.bf16.mxu0 0
  %1327 = vmatpush2.bf16.msra.mxu0 0
  %1328 = vmatprep.mubr.bf16.mxu0 0
  %1329 = vmatmul.mubr.bf16.gmra.mxu0 %v1294
  %v1330 = vpop.f32.mrf.mxu0
  %v1331 = vadd.f32 %v1291, %v1330
  %v1332 = vpop.f32.mrf.mxu0
  %v1333 = vpop.f32.mrf.mxu0
  %v1334 = vpop.f32.mrf.mxu0
  %1335 = vdwg.mxu0
  %v1336 = vmul.f32 %v1331, 0.999995
  %vm1337 = vcmp.gt.f32.partialorder %v1336, 0.0
  %v1338 = vmul.f32 %v1336, 0.01
  %v1339 = vsel %vm1337, %v1336, %v1338
  %s1340 = scalar_lea.vmem %s13, 8
  %1341 = vst.msk [vmem:[%s1340] sm:$0xff] %vm65, %v1339
  // Predicated region
  $region54: #{dpad_forward.5} parent=0 // pred_check
    _
  $region55: #{dpad_forward.5} parent=0 // pred_check_branch
    %1343 = sbr.rel (0) target = $region57
  $region56: #{dpad_forward.5} parent=0 // pred_region
    _
  $region57: #{dpad_forward.5} parent=0 // pred_fallthru
    _
  // Predicated region
  $region58: #{dpad_forward.5} parent=0 // pred_check
    _
  $region59: #{dpad_forward.5} parent=0 // pred_check_branch
    %1345 = sbr.rel (0) target = $region61
  $region60: #{dpad_forward.5} parent=0 // pred_region
    _
  $region61: #{dpad_forward.5} parent=0 // pred_fallthru
    _

// kernel: dpad_forward.8
$region0: #{dpad_forward.8}
  #allocation0 [shape = 'u32[]', space=smem, size = 0x4, offset = 0x4, fixed_abs, tag = 'smem constant byte address 0x4 - core index']
  #allocation1 [shape = 'u32[144,128]{1,0:T(1,128)}', space=vmem, size = 0x12000, scoped, tag = 'internal scratch']
  %s0 = inlined_call_operand.vmem [shape: f32[16,8,16], index: 0, kind: input, shape index: {}]
  %s1 = inlined_call_operand.vmem [shape: f32[16,16,16], index: 1, kind: input, shape index: {}]
  %s2 = inlined_call_operand.vmem [shape: f32[16,1,16], index: 2, kind: input, shape index: {}]
  %s3 = inlined_call_operand.vmem [shape: f32[16,16,16], index: 3, kind: input, shape index: {}]
  %s4 = inlined_call_operand.vmem [shape: f32[16,1,16], index: 4, kind: input, shape index: {}]
  %s5 = inlined_call_operand.vmem [shape: f32[16,8,16], index: 5, kind: output, shape index: {}]
  %s6 = sld [smem:[#allocation0]]
  $region30: #{dpad_forward.8} parent=0
    _
  %s8 = ssub.s32 1, %s6
  %s9 = scalar_select 0, %s8, %s6
  // Predicated region
  $region2: #{dpad_forward.8} parent=0 // pred_check
    _
  $region3: #{dpad_forward.8} parent=0 // pred_check_branch
    %11 = sbr.rel (0) target = $region5
  $region4: #{dpad_forward.8} parent=0 // pred_region
    _
  $region5: #{dpad_forward.8} parent=0 // pred_fallthru
    _
  // Predicated region
  $region6: #{dpad_forward.8} parent=0 // pred_check
    _
  $region7: #{dpad_forward.8} parent=0 // pred_check_branch
    %13 = sbr.rel (0) target = $region9
  $region8: #{dpad_forward.8} parent=0 // pred_region
    _
  $region9: #{dpad_forward.8} parent=0 // pred_fallthru
    _
  // Predicated region
  $region10: #{dpad_forward.8} parent=0 // pred_check
    _
  $region11: #{dpad_forward.8} parent=0 // pred_check_branch
    %15 = sbr.rel (0) target = $region13
  $region12: #{dpad_forward.8} parent=0 // pred_region
    _
  $region13: #{dpad_forward.8} parent=0 // pred_fallthru
    _
  // Predicated region
  $region14: #{dpad_forward.8} parent=0 // pred_check
    _
  $region15: #{dpad_forward.8} parent=0 // pred_check_branch
    %17 = sbr.rel (0) target = $region17
  $region16: #{dpad_forward.8} parent=0 // pred_region
    _
  $region17: #{dpad_forward.8} parent=0 // pred_fallthru
    _
  // Predicated region
  $region18: #{dpad_forward.8} parent=0 // pred_check
    _
  $region19: #{dpad_forward.8} parent=0 // pred_check_branch
    %19 = sbr.rel (0) target = $region21
  $region20: #{dpad_forward.8} parent=0 // pred_region
    _
  $region21: #{dpad_forward.8} parent=0 // pred_fallthru
    _
  %v21 = vld [vmem:[%s0] sm:$0xff]
  %v22 = vld [vmem:[%s0 + $0x8] sm:$0xff]
  %v23 = vld [vmem:[%s0 + $0x10] sm:$0xff]
  %v24 = vld [vmem:[%s0 + $0x18] sm:$0xff]
  %v25 = vld [vmem:[%s0 + $0x20] sm:$0xff]
  %v26 = vld [vmem:[%s0 + $0x28] sm:$0xff]
  %v27 = vld [vmem:[%s0 + $0x30] sm:$0xff]
  %v28 = vld [vmem:[%s0 + $0x38] sm:$0xff]
  %v29 = vld [vmem:[%s0 + $0x40] sm:$0xff]
  %v30 = vld [vmem:[%s0 + $0x48] sm:$0xff]
  %v31 = vld [vmem:[%s0 + $0x50] sm:$0xff]
  %v32 = vld [vmem:[%s0 + $0x58] sm:$0xff]
  %v33 = vld [vmem:[%s0 + $0x60] sm:$0xff]
  %v34 = vld [vmem:[%s0 + $0x68] sm:$0xff]
  %v35 = vld [vmem:[%s0 + $0x70] sm:$0xff]
  %v36 = vld [vmem:[%s0 + $0x78] sm:$0xff]
  %v37 = vpack.c.bf16 %v21, %v21
  %v38 = vpack.c.bf16 %v22, %v22
  %v39 = vpack.c.bf16 %v23, %v23
  %v40 = vpack.c.bf16 %v24, %v24
  %v41 = vpack.c.bf16 %v25, %v25
  %v42 = vpack.c.bf16 %v26, %v26
  %v43 = vpack.c.bf16 %v27, %v27
  %v44 = vpack.c.bf16 %v28, %v28
  %v45 = vpack.c.bf16 %v29, %v29
  %v46 = vpack.c.bf16 %v30, %v30
  %v47 = vpack.c.bf16 %v31, %v31
  %v48 = vpack.c.bf16 %v32, %v32
  %v49 = vpack.c.bf16 %v33, %v33
  %v50 = vpack.c.bf16 %v34, %v34
  %v51 = vpack.c.bf16 %v35, %v35
  %v52 = vpack.c.bf16 %v36, %v36
  %v53 = vld [vmem:[%s1] sm:$0xff]
  %v54 = vld [vmem:[%s1 + $0x8] sm:$0xff]
  %v55 = vld [vmem:[%s1 + $0x10] sm:$0xff]
  %v56 = vld [vmem:[%s1 + $0x18] sm:$0xff]
  %v57 = vld [vmem:[%s1 + $0x20] sm:$0xff]
  %v58 = vld [vmem:[%s1 + $0x28] sm:$0xff]
  %v59 = vld [vmem:[%s1 + $0x30] sm:$0xff]
  %v60 = vld [vmem:[%s1 + $0x38] sm:$0xff]
  %v61 = vld [vmem:[%s1 + $0x40] sm:$0xff]
  %v62 = vld [vmem:[%s1 + $0x48] sm:$0xff]
  %v63 = vld [vmem:[%s1 + $0x50] sm:$0xff]
  %v64 = vld [vmem:[%s1 + $0x58] sm:$0xff]
  %v65 = vld [vmem:[%s1 + $0x60] sm:$0xff]
  %v66 = vld [vmem:[%s1 + $0x68] sm:$0xff]
  %v67 = vld [vmem:[%s1 + $0x70] sm:$0xff]
  %v68 = vld [vmem:[%s1 + $0x78] sm:$0xff]
  %v69 = vld [vmem:[%s1 + $0x80] sm:$0xff]
  %v70 = vld [vmem:[%s1 + $0x88] sm:$0xff]
  %v71 = vld [vmem:[%s1 + $0x90] sm:$0xff]
  %v72 = vld [vmem:[%s1 + $0x98] sm:$0xff]
  %v73 = vld [vmem:[%s1 + $0xa0] sm:$0xff]
  %v74 = vld [vmem:[%s1 + $0xa8] sm:$0xff]
  %v75 = vld [vmem:[%s1 + $0xb0] sm:$0xff]
  %v76 = vld [vmem:[%s1 + $0xb8] sm:$0xff]
  %v77 = vld [vmem:[%s1 + $0xc0] sm:$0xff]
  %v78 = vld [vmem:[%s1 + $0xc8] sm:$0xff]
  %v79 = vld [vmem:[%s1 + $0xd0] sm:$0xff]
  %v80 = vld [vmem:[%s1 + $0xd8] sm:$0xff]
  %v81 = vld [vmem:[%s1 + $0xe0] sm:$0xff]
  %v82 = vld [vmem:[%s1 + $0xe8] sm:$0xff]
  %v83 = vld [vmem:[%s1 + $0xf0] sm:$0xff]
  %v84 = vld [vmem:[%s1 + $0xf8] sm:$0xff]
  %v85 = vpack.c.bf16 %v54, %v53
  %v86 = vpack.c.bf16 %v56, %v55
  %v87 = vpack.c.bf16 %v58, %v57
  %v88 = vpack.c.bf16 %v60, %v59
  %v89 = vpack.c.bf16 %v62, %v61
  %v90 = vpack.c.bf16 %v64, %v63
  %v91 = vpack.c.bf16 %v66, %v65
  %v92 = vpack.c.bf16 %v68, %v67
  %v93 = vpack.c.bf16 %v70, %v69
  %v94 = vpack.c.bf16 %v72, %v71
  %v95 = vpack.c.bf16 %v74, %v73
  %v96 = vpack.c.bf16 %v76, %v75
  %v97 = vpack.c.bf16 %v78, %v77
  %v98 = vpack.c.bf16 %v80, %v79
  %v99 = vpack.c.bf16 %v82, %v81
  %v100 = vpack.c.bf16 %v84, %v83
  %v101 = vld [vmem:[%s2] sm:$0x1]
  %v102 = vld [vmem:[%s2 + $0x1] sm:$0x1]
  %v103 = vld [vmem:[%s2 + $0x2] sm:$0x1]
  %v104 = vld [vmem:[%s2 + $0x3] sm:$0x1]
  %v105 = vld [vmem:[%s2 + $0x4] sm:$0x1]
  %v106 = vld [vmem:[%s2 + $0x5] sm:$0x1]
  %v107 = vld [vmem:[%s2 + $0x6] sm:$0x1]
  %v108 = vld [vmem:[%s2 + $0x7] sm:$0x1]
  %v109 = vld [vmem:[%s2 + $0x8] sm:$0x1]
  %v110 = vld [vmem:[%s2 + $0x9] sm:$0x1]
  %v111 = vld [vmem:[%s2 + $0xa] sm:$0x1]
  %v112 = vld [vmem:[%s2 + $0xb] sm:$0x1]
  %v113 = vld [vmem:[%s2 + $0xc] sm:$0x1]
  %v114 = vld [vmem:[%s2 + $0xd] sm:$0x1]
  %v115 = vld [vmem:[%s2 + $0xe] sm:$0x1]
  %v116 = vld [vmem:[%s2 + $0xf] sm:$0x1]
  %v133 = vlaneseq
  %v134 = vshrl.u32 %v133, 7
  %v135 = vsub.s32 0, %v134
  %v136 = vrot.slane %v101, %v135
  %v137 = vlaneseq
  %v138 = vshrl.u32 %v137, 7
  %v139 = vsub.s32 0, %v138
  %v140 = vrot.slane %v102, %v139
  %v141 = vlaneseq
  %v142 = vshrl.u32 %v141, 7
  %v143 = vsub.s32 0, %v142
  %v144 = vrot.slane %v103, %v143
  %v145 = vlaneseq
  %v146 = vshrl.u32 %v145, 7
  %v147 = vsub.s32 0, %v146
  %v148 = vrot.slane %v104, %v147
  %v149 = vlaneseq
  %v150 = vshrl.u32 %v149, 7
  %v151 = vsub.s32 0, %v150
  %v152 = vrot.slane %v105, %v151
  %v153 = vlaneseq
  %v154 = vshrl.u32 %v153, 7
  %v155 = vsub.s32 0, %v154
  %v156 = vrot.slane %v106, %v155
  %v157 = vlaneseq
  %v158 = vshrl.u32 %v157, 7
  %v159 = vsub.s32 0, %v158
  %v160 = vrot.slane %v107, %v159
  %v161 = vlaneseq
  %v162 = vshrl.u32 %v161, 7
  %v163 = vsub.s32 0, %v162
  %v164 = vrot.slane %v108, %v163
  %v165 = vlaneseq
  %v166 = vshrl.u32 %v165, 7
  %v167 = vsub.s32 0, %v166
  %v168 = vrot.slane %v109, %v167
  %v169 = vlaneseq
  %v170 = vshrl.u32 %v169, 7
  %v171 = vsub.s32 0, %v170
  %v172 = vrot.slane %v110, %v171
  %v173 = vlaneseq
  %v174 = vshrl.u32 %v173, 7
  %v175 = vsub.s32 0, %v174
  %v176 = vrot.slane %v111, %v175
  %v177 = vlaneseq
  %v178 = vshrl.u32 %v177, 7
  %v179 = vsub.s32 0, %v178
  %v180 = vrot.slane %v112, %v179
  %v181 = vlaneseq
  %v182 = vshrl.u32 %v181, 7
  %v183 = vsub.s32 0, %v182
  %v184 = vrot.slane %v113, %v183
  %v185 = vlaneseq
  %v186 = vshrl.u32 %v185, 7
  %v187 = vsub.s32 0, %v186
  %v188 = vrot.slane %v114, %v187
  %v189 = vlaneseq
  %v190 = vshrl.u32 %v189, 7
  %v191 = vsub.s32 0, %v190
  %v192 = vrot.slane %v115, %v191
  %v193 = vlaneseq
  %v194 = vshrl.u32 %v193, 7
  %v195 = vsub.s32 0, %v194
  %v196 = vrot.slane %v116, %v195
  %vm213 = vcmask 130048
  %v215 = vsel %vm213, %v37, 0
  %217 = vmatprep.subr.bf16.mxu0 0
  %218 = vmatpush1.bf16.msra.mxu0 0
  %219 = vmatprep.subr.bf16.mxu0 0
  %220 = vmatpush1.bf16.msra.mxu0 0
  %221 = vmatprep.subr.bf16.mxu0 0
  %222 = vmatpush1.bf16.msra.mxu0 0
  %223 = vmatprep.subr.bf16.mxu0 0
  %224 = vmatpush1.bf16.msra.mxu0 0
  %225 = vmatprep.subr.bf16.mxu0 0
  %226 = vmatpush1.bf16.msra.mxu0 0
  %227 = vmatprep.subr.bf16.mxu0 0
  %228 = vmatpush1.bf16.msra.mxu0 0
  %229 = vmatprep.subr.bf16.mxu0 0
  %230 = vmatpush1.bf16.msra.mxu0 0
  %231 = vmatprep.subr.bf16.mxu0 0
  %232 = vmatpush1.bf16.msra.mxu0 %v85
  %233 = vmatprep.subr.bf16.mxu0 0
  %234 = vmatpush2.bf16.msra.mxu0 0
  %235 = vmatprep.subr.bf16.mxu0 0
  %236 = vmatpush2.bf16.msra.mxu0 0
  %237 = vmatprep.subr.bf16.mxu0 0
  %238 = vmatpush2.bf16.msra.mxu0 0
  %239 = vmatprep.subr.bf16.mxu0 0
  %240 = vmatpush2.bf16.msra.mxu0 0
  %241 = vmatprep.subr.bf16.mxu0 0
  %242 = vmatpush2.bf16.msra.mxu0 0
  %243 = vmatprep.subr.bf16.mxu0 0
  %244 = vmatpush2.bf16.msra.mxu0 0
  %245 = vmatprep.subr.bf16.mxu0 0
  %246 = vmatpush2.bf16.msra.mxu0 0
  %247 = vmatprep.subr.bf16.mxu0 0
  %248 = vmatpush2.bf16.msra.mxu0 0
  %249 = vmatprep.mubr.bf16.mxu0 0
  %250 = vmatmul.mubr.bf16.gmra.mxu0 %v215
  %v251 = vpop.f32.mrf.mxu0
  %v252 = vadd.f32 %v136, %v251
  %v253 = vpop.f32.mrf.mxu0
  %v254 = vpop.f32.mrf.mxu0
  %v255 = vpop.f32.mrf.mxu0
  %256 = vdwg.mxu0
  %v258 = vsel %vm213, %v38, 0
  %260 = vmatprep.subr.bf16.mxu0 0
  %261 = vmatpush1.bf16.msra.mxu0 0
  %262 = vmatprep.subr.bf16.mxu0 0
  %263 = vmatpush1.bf16.msra.mxu0 0
  %264 = vmatprep.subr.bf16.mxu0 0
  %265 = vmatpush1.bf16.msra.mxu0 0
  %266 = vmatprep.subr.bf16.mxu0 0
  %267 = vmatpush1.bf16.msra.mxu0 0
  %268 = vmatprep.subr.bf16.mxu0 0
  %269 = vmatpush1.bf16.msra.mxu0 0
  %270 = vmatprep.subr.bf16.mxu0 0
  %271 = vmatpush1.bf16.msra.mxu0 0
  %272 = vmatprep.subr.bf16.mxu0 0
  %273 = vmatpush1.bf16.msra.mxu0 0
  %274 = vmatprep.subr.bf16.mxu0 0
  %275 = vmatpush1.bf16.msra.mxu0 %v86
  %276 = vmatprep.subr.bf16.mxu0 0
  %277 = vmatpush2.bf16.msra.mxu0 0
  %278 = vmatprep.subr.bf16.mxu0 0
  %279 = vmatpush2.bf16.msra.mxu0 0
  %280 = vmatprep.subr.bf16.mxu0 0
  %281 = vmatpush2.bf16.msra.mxu0 0
  %282 = vmatprep.subr.bf16.mxu0 0
  %283 = vmatpush2.bf16.msra.mxu0 0
  %284 = vmatprep.subr.bf16.mxu0 0
  %285 = vmatpush2.bf16.msra.mxu0 0
  %286 = vmatprep.subr.bf16.mxu0 0
  %287 = vmatpush2.bf16.msra.mxu0 0
  %288 = vmatprep.subr.bf16.mxu0 0
  %289 = vmatpush2.bf16.msra.mxu0 0
  %290 = vmatprep.subr.bf16.mxu0 0
  %291 = vmatpush2.bf16.msra.mxu0 0
  %292 = vmatprep.mubr.bf16.mxu0 0
  %293 = vmatmul.mubr.bf16.gmra.mxu0 %v258
  %v294 = vpop.f32.mrf.mxu0
  %v295 = vadd.f32 %v140, %v294
  %v296 = vpop.f32.mrf.mxu0
  %v297 = vpop.f32.mrf.mxu0
  %v298 = vpop.f32.mrf.mxu0
  %299 = vdwg.mxu0
  %v301 = vsel %vm213, %v39, 0
  %303 = vmatprep.subr.bf16.mxu0 0
  %304 = vmatpush1.bf16.msra.mxu0 0
  %305 = vmatprep.subr.bf16.mxu0 0
  %306 = vmatpush1.bf16.msra.mxu0 0
  %307 = vmatprep.subr.bf16.mxu0 0
  %308 = vmatpush1.bf16.msra.mxu0 0
  %309 = vmatprep.subr.bf16.mxu0 0
  %310 = vmatpush1.bf16.msra.mxu0 0
  %311 = vmatprep.subr.bf16.mxu0 0
  %312 = vmatpush1.bf16.msra.mxu0 0
  %313 = vmatprep.subr.bf16.mxu0 0
  %314 = vmatpush1.bf16.msra.mxu0 0
  %315 = vmatprep.subr.bf16.mxu0 0
  %316 = vmatpush1.bf16.msra.mxu0 0
  %317 = vmatprep.subr.bf16.mxu0 0
  %318 = vmatpush1.bf16.msra.mxu0 %v87
  %319 = vmatprep.subr.bf16.mxu0 0
  %320 = vmatpush2.bf16.msra.mxu0 0
  %321 = vmatprep.subr.bf16.mxu0 0
  %322 = vmatpush2.bf16.msra.mxu0 0
  %323 = vmatprep.subr.bf16.mxu0 0
  %324 = vmatpush2.bf16.msra.mxu0 0
  %325 = vmatprep.subr.bf16.mxu0 0
  %326 = vmatpush2.bf16.msra.mxu0 0
  %327 = vmatprep.subr.bf16.mxu0 0
  %328 = vmatpush2.bf16.msra.mxu0 0
  %329 = vmatprep.subr.bf16.mxu0 0
  %330 = vmatpush2.bf16.msra.mxu0 0
  %331 = vmatprep.subr.bf16.mxu0 0
  %332 = vmatpush2.bf16.msra.mxu0 0
  %333 = vmatprep.subr.bf16.mxu0 0
  %334 = vmatpush2.bf16.msra.mxu0 0
  %335 = vmatprep.mubr.bf16.mxu0 0
  %336 = vmatmul.mubr.bf16.gmra.mxu0 %v301
  %v337 = vpop.f32.mrf.mxu0
  %v338 = vadd.f32 %v144, %v337
  %v339 = vpop.f32.mrf.mxu0
  %v340 = vpop.f32.mrf.mxu0
  %v341 = vpop.f32.mrf.mxu0
  %342 = vdwg.mxu0
  %v344 = vsel %vm213, %v40, 0
  %346 = vmatprep.subr.bf16.mxu0 0
  %347 = vmatpush1.bf16.msra.mxu0 0
  %348 = vmatprep.subr.bf16.mxu0 0
  %349 = vmatpush1.bf16.msra.mxu0 0
  %350 = vmatprep.subr.bf16.mxu0 0
  %351 = vmatpush1.bf16.msra.mxu0 0
  %352 = vmatprep.subr.bf16.mxu0 0
  %353 = vmatpush1.bf16.msra.mxu0 0
  %354 = vmatprep.subr.bf16.mxu0 0
  %355 = vmatpush1.bf16.msra.mxu0 0
  %356 = vmatprep.subr.bf16.mxu0 0
  %357 = vmatpush1.bf16.msra.mxu0 0
  %358 = vmatprep.subr.bf16.mxu0 0
  %359 = vmatpush1.bf16.msra.mxu0 0
  %360 = vmatprep.subr.bf16.mxu0 0
  %361 = vmatpush1.bf16.msra.mxu0 %v88
  %362 = vmatprep.subr.bf16.mxu0 0
  %363 = vmatpush2.bf16.msra.mxu0 0
  %364 = vmatprep.subr.bf16.mxu0 0
  %365 = vmatpush2.bf16.msra.mxu0 0
  %366 = vmatprep.subr.bf16.mxu0 0
  %367 = vmatpush2.bf16.msra.mxu0 0
  %368 = vmatprep.subr.bf16.mxu0 0
  %369 = vmatpush2.bf16.msra.mxu0 0
  %370 = vmatprep.subr.bf16.mxu0 0
  %371 = vmatpush2.bf16.msra.mxu0 0
  %372 = vmatprep.subr.bf16.mxu0 0
  %373 = vmatpush2.bf16.msra.mxu0 0
  %374 = vmatprep.subr.bf16.mxu0 0
  %375 = vmatpush2.bf16.msra.mxu0 0
  %376 = vmatprep.subr.bf16.mxu0 0
  %377 = vmatpush2.bf16.msra.mxu0 0
  %378 = vmatprep.mubr.bf16.mxu0 0
  %379 = vmatmul.mubr.bf16.gmra.mxu0 %v344
  %v380 = vpop.f32.mrf.mxu0
  %v381 = vadd.f32 %v148, %v380
  %v382 = vpop.f32.mrf.mxu0
  %v383 = vpop.f32.mrf.mxu0
  %v384 = vpop.f32.mrf.mxu0
  %385 = vdwg.mxu0
  %v387 = vsel %vm213, %v41, 0
  %389 = vmatprep.subr.bf16.mxu0 0
  %390 = vmatpush1.bf16.msra.mxu0 0
  %391 = vmatprep.subr.bf16.mxu0 0
  %392 = vmatpush1.bf16.msra.mxu0 0
  %393 = vmatprep.subr.bf16.mxu0 0
  %394 = vmatpush1.bf16.msra.mxu0 0
  %395 = vmatprep.subr.bf16.mxu0 0
  %396 = vmatpush1.bf16.msra.mxu0 0
  %397 = vmatprep.subr.bf16.mxu0 0
  %398 = vmatpush1.bf16.msra.mxu0 0
  %399 = vmatprep.subr.bf16.mxu0 0
  %400 = vmatpush1.bf16.msra.mxu0 0
  %401 = vmatprep.subr.bf16.mxu0 0
  %402 = vmatpush1.bf16.msra.mxu0 0
  %403 = vmatprep.subr.bf16.mxu0 0
  %404 = vmatpush1.bf16.msra.mxu0 %v89
  %405 = vmatprep.subr.bf16.mxu0 0
  %406 = vmatpush2.bf16.msra.mxu0 0
  %407 = vmatprep.subr.bf16.mxu0 0
  %408 = vmatpush2.bf16.msra.mxu0 0
  %409 = vmatprep.subr.bf16.mxu0 0
  %410 = vmatpush2.bf16.msra.mxu0 0
  %411 = vmatprep.subr.bf16.mxu0 0
  %412 = vmatpush2.bf16.msra.mxu0 0
  %413 = vmatprep.subr.bf16.mxu0 0
  %414 = vmatpush2.bf16.msra.mxu0 0
  %415 = vmatprep.subr.bf16.mxu0 0
  %416 = vmatpush2.bf16.msra.mxu0 0
  %417 = vmatprep.subr.bf16.mxu0 0
  %418 = vmatpush2.bf16.msra.mxu0 0
  %419 = vmatprep.subr.bf16.mxu0 0
  %420 = vmatpush2.bf16.msra.mxu0 0
  %421 = vmatprep.mubr.bf16.mxu0 0
  %422 = vmatmul.mubr.bf16.gmra.mxu0 %v387
  %v423 = vpop.f32.mrf.mxu0
  %v424 = vadd.f32 %v152, %v423
  %v425 = vpop.f32.mrf.mxu0
  %v426 = vpop.f32.mrf.mxu0
  %v427 = vpop.f32.mrf.mxu0
  %428 = vdwg.mxu0
  %v430 = vsel %vm213, %v42, 0
  %432 = vmatprep.subr.bf16.mxu0 0
  %433 = vmatpush1.bf16.msra.mxu0 0
  %434 = vmatprep.subr.bf16.mxu0 0
  %435 = vmatpush1.bf16.msra.mxu0 0
  %436 = vmatprep.subr.bf16.mxu0 0
  %437 = vmatpush1.bf16.msra.mxu0 0
  %438 = vmatprep.subr.bf16.mxu0 0
  %439 = vmatpush1.bf16.msra.mxu0 0
  %440 = vmatprep.subr.bf16.mxu0 0
  %441 = vmatpush1.bf16.msra.mxu0 0
  %442 = vmatprep.subr.bf16.mxu0 0
  %443 = vmatpush1.bf16.msra.mxu0 0
  %444 = vmatprep.subr.bf16.mxu0 0
  %445 = vmatpush1.bf16.msra.mxu0 0
  %446 = vmatprep.subr.bf16.mxu0 0
  %447 = vmatpush1.bf16.msra.mxu0 %v90
  %448 = vmatprep.subr.bf16.mxu0 0
  %449 = vmatpush2.bf16.msra.mxu0 0
  %450 = vmatprep.subr.bf16.mxu0 0
  %451 = vmatpush2.bf16.msra.mxu0 0
  %452 = vmatprep.subr.bf16.mxu0 0
  %453 = vmatpush2.bf16.msra.mxu0 0
  %454 = vmatprep.subr.bf16.mxu0 0
  %455 = vmatpush2.bf16.msra.mxu0 0
  %456 = vmatprep.subr.bf16.mxu0 0
  %457 = vmatpush2.bf16.msra.mxu0 0
  %458 = vmatprep.subr.bf16.mxu0 0
  %459 = vmatpush2.bf16.msra.mxu0 0
  %460 = vmatprep.subr.bf16.mxu0 0
  %461 = vmatpush2.bf16.msra.mxu0 0
  %462 = vmatprep.subr.bf16.mxu0 0
  %463 = vmatpush2.bf16.msra.mxu0 0
  %464 = vmatprep.mubr.bf16.mxu0 0
  %465 = vmatmul.mubr.bf16.gmra.mxu0 %v430
  %v466 = vpop.f32.mrf.mxu0
  %v467 = vadd.f32 %v156, %v466
  %v468 = vpop.f32.mrf.mxu0
  %v469 = vpop.f32.mrf.mxu0
  %v470 = vpop.f32.mrf.mxu0
  %471 = vdwg.mxu0
  %v473 = vsel %vm213, %v43, 0
  %475 = vmatprep.subr.bf16.mxu0 0
  %476 = vmatpush1.bf16.msra.mxu0 0
  %477 = vmatprep.subr.bf16.mxu0 0
  %478 = vmatpush1.bf16.msra.mxu0 0
  %479 = vmatprep.subr.bf16.mxu0 0
  %480 = vmatpush1.bf16.msra.mxu0 0
  %481 = vmatprep.subr.bf16.mxu0 0
  %482 = vmatpush1.bf16.msra.mxu0 0
  %483 = vmatprep.subr.bf16.mxu0 0
  %484 = vmatpush1.bf16.msra.mxu0 0
  %485 = vmatprep.subr.bf16.mxu0 0
  %486 = vmatpush1.bf16.msra.mxu0 0
  %487 = vmatprep.subr.bf16.mxu0 0
  %488 = vmatpush1.bf16.msra.mxu0 0
  %489 = vmatprep.subr.bf16.mxu0 0
  %490 = vmatpush1.bf16.msra.mxu0 %v91
  %491 = vmatprep.subr.bf16.mxu0 0
  %492 = vmatpush2.bf16.msra.mxu0 0
  %493 = vmatprep.subr.bf16.mxu0 0
  %494 = vmatpush2.bf16.msra.mxu0 0
  %495 = vmatprep.subr.bf16.mxu0 0
  %496 = vmatpush2.bf16.msra.mxu0 0
  %497 = vmatprep.subr.bf16.mxu0 0
  %498 = vmatpush2.bf16.msra.mxu0 0
  %499 = vmatprep.subr.bf16.mxu0 0
  %500 = vmatpush2.bf16.msra.mxu0 0
  %501 = vmatprep.subr.bf16.mxu0 0
  %502 = vmatpush2.bf16.msra.mxu0 0
  %503 = vmatprep.subr.bf16.mxu0 0
  %504 = vmatpush2.bf16.msra.mxu0 0
  %505 = vmatprep.subr.bf16.mxu0 0
  %506 = vmatpush2.bf16.msra.mxu0 0
  %507 = vmatprep.mubr.bf16.mxu0 0
  %508 = vmatmul.mubr.bf16.gmra.mxu0 %v473
  %v509 = vpop.f32.mrf.mxu0
  %v510 = vadd.f32 %v160, %v509
  %v511 = vpop.f32.mrf.mxu0
  %v512 = vpop.f32.mrf.mxu0
  %v513 = vpop.f32.mrf.mxu0
  %514 = vdwg.mxu0
  %v516 = vsel %vm213, %v44, 0
  %518 = vmatprep.subr.bf16.mxu0 0
  %519 = vmatpush1.bf16.msra.mxu0 0
  %520 = vmatprep.subr.bf16.mxu0 0
  %521 = vmatpush1.bf16.msra.mxu0 0
  %522 = vmatprep.subr.bf16.mxu0 0
  %523 = vmatpush1.bf16.msra.mxu0 0
  %524 = vmatprep.subr.bf16.mxu0 0
  %525 = vmatpush1.bf16.msra.mxu0 0
  %526 = vmatprep.subr.bf16.mxu0 0
  %527 = vmatpush1.bf16.msra.mxu0 0
  %528 = vmatprep.subr.bf16.mxu0 0
  %529 = vmatpush1.bf16.msra.mxu0 0
  %530 = vmatprep.subr.bf16.mxu0 0
  %531 = vmatpush1.bf16.msra.mxu0 0
  %532 = vmatprep.subr.bf16.mxu0 0
  %533 = vmatpush1.bf16.msra.mxu0 %v92
  %534 = vmatprep.subr.bf16.mxu0 0
  %535 = vmatpush2.bf16.msra.mxu0 0
  %536 = vmatprep.subr.bf16.mxu0 0
  %537 = vmatpush2.bf16.msra.mxu0 0
  %538 = vmatprep.subr.bf16.mxu0 0
  %539 = vmatpush2.bf16.msra.mxu0 0
  %540 = vmatprep.subr.bf16.mxu0 0
  %541 = vmatpush2.bf16.msra.mxu0 0
  %542 = vmatprep.subr.bf16.mxu0 0
  %543 = vmatpush2.bf16.msra.mxu0 0
  %544 = vmatprep.subr.bf16.mxu0 0
  %545 = vmatpush2.bf16.msra.mxu0 0
  %546 = vmatprep.subr.bf16.mxu0 0
  %547 = vmatpush2.bf16.msra.mxu0 0
  %548 = vmatprep.subr.bf16.mxu0 0
  %549 = vmatpush2.bf16.msra.mxu0 0
  %550 = vmatprep.mubr.bf16.mxu0 0
  %551 = vmatmul.mubr.bf16.gmra.mxu0 %v516
  %v552 = vpop.f32.mrf.mxu0
  %v553 = vadd.f32 %v164, %v552
  %v554 = vpop.f32.mrf.mxu0
  %v555 = vpop.f32.mrf.mxu0
  %v556 = vpop.f32.mrf.mxu0
  %557 = vdwg.mxu0
  %v559 = vsel %vm213, %v45, 0
  %561 = vmatprep.subr.bf16.mxu0 0
  %562 = vmatpush1.bf16.msra.mxu0 0
  %563 = vmatprep.subr.bf16.mxu0 0
  %564 = vmatpush1.bf16.msra.mxu0 0
  %565 = vmatprep.subr.bf16.mxu0 0
  %566 = vmatpush1.bf16.msra.mxu0 0
  %567 = vmatprep.subr.bf16.mxu0 0
  %568 = vmatpush1.bf16.msra.mxu0 0
  %569 = vmatprep.subr.bf16.mxu0 0
  %570 = vmatpush1.bf16.msra.mxu0 0
  %571 = vmatprep.subr.bf16.mxu0 0
  %572 = vmatpush1.bf16.msra.mxu0 0
  %573 = vmatprep.subr.bf16.mxu0 0
  %574 = vmatpush1.bf16.msra.mxu0 0
  %575 = vmatprep.subr.bf16.mxu0 0
  %576 = vmatpush1.bf16.msra.mxu0 %v93
  %577 = vmatprep.subr.bf16.mxu0 0
  %578 = vmatpush2.bf16.msra.mxu0 0
  %579 = vmatprep.subr.bf16.mxu0 0
  %580 = vmatpush2.bf16.msra.mxu0 0
  %581 = vmatprep.subr.bf16.mxu0 0
  %582 = vmatpush2.bf16.msra.mxu0 0
  %583 = vmatprep.subr.bf16.mxu0 0
  %584 = vmatpush2.bf16.msra.mxu0 0
  %585 = vmatprep.subr.bf16.mxu0 0
  %586 = vmatpush2.bf16.msra.mxu0 0
  %587 = vmatprep.subr.bf16.mxu0 0
  %588 = vmatpush2.bf16.msra.mxu0 0
  %589 = vmatprep.subr.bf16.mxu0 0
  %590 = vmatpush2.bf16.msra.mxu0 0
  %591 = vmatprep.subr.bf16.mxu0 0
  %592 = vmatpush2.bf16.msra.mxu0 0
  %593 = vmatprep.mubr.bf16.mxu0 0
  %594 = vmatmul.mubr.bf16.gmra.mxu0 %v559
  %v595 = vpop.f32.mrf.mxu0
  %v596 = vadd.f32 %v168, %v595
  %v597 = vpop.f32.mrf.mxu0
  %v598 = vpop.f32.mrf.mxu0
  %v599 = vpop.f32.mrf.mxu0
  %600 = vdwg.mxu0
  %v602 = vsel %vm213, %v46, 0
  %604 = vmatprep.subr.bf16.mxu0 0
  %605 = vmatpush1.bf16.msra.mxu0 0
  %606 = vmatprep.subr.bf16.mxu0 0
  %607 = vmatpush1.bf16.msra.mxu0 0
  %608 = vmatprep.subr.bf16.mxu0 0
  %609 = vmatpush1.bf16.msra.mxu0 0
  %610 = vmatprep.subr.bf16.mxu0 0
  %611 = vmatpush1.bf16.msra.mxu0 0
  %612 = vmatprep.subr.bf16.mxu0 0
  %613 = vmatpush1.bf16.msra.mxu0 0
  %614 = vmatprep.subr.bf16.mxu0 0
  %615 = vmatpush1.bf16.msra.mxu0 0
  %616 = vmatprep.subr.bf16.mxu0 0
  %617 = vmatpush1.bf16.msra.mxu0 0
  %618 = vmatprep.subr.bf16.mxu0 0
  %619 = vmatpush1.bf16.msra.mxu0 %v94
  %620 = vmatprep.subr.bf16.mxu0 0
  %621 = vmatpush2.bf16.msra.mxu0 0
  %622 = vmatprep.subr.bf16.mxu0 0
  %623 = vmatpush2.bf16.msra.mxu0 0
  %624 = vmatprep.subr.bf16.mxu0 0
  %625 = vmatpush2.bf16.msra.mxu0 0
  %626 = vmatprep.subr.bf16.mxu0 0
  %627 = vmatpush2.bf16.msra.mxu0 0
  %628 = vmatprep.subr.bf16.mxu0 0
  %629 = vmatpush2.bf16.msra.mxu0 0
  %630 = vmatprep.subr.bf16.mxu0 0
  %631 = vmatpush2.bf16.msra.mxu0 0
  %632 = vmatprep.subr.bf16.mxu0 0
  %633 = vmatpush2.bf16.msra.mxu0 0
  %634 = vmatprep.subr.bf16.mxu0 0
  %635 = vmatpush2.bf16.msra.mxu0 0
  %636 = vmatprep.mubr.bf16.mxu0 0
  %637 = vmatmul.mubr.bf16.gmra.mxu0 %v602
  %v638 = vpop.f32.mrf.mxu0
  %v639 = vadd.f32 %v172, %v638
  %v640 = vpop.f32.mrf.mxu0
  %v641 = vpop.f32.mrf.mxu0
  %v642 = vpop.f32.mrf.mxu0
  %643 = vdwg.mxu0
  %v645 = vsel %vm213, %v47, 0
  %647 = vmatprep.subr.bf16.mxu0 0
  %648 = vmatpush1.bf16.msra.mxu0 0
  %649 = vmatprep.subr.bf16.mxu0 0
  %650 = vmatpush1.bf16.msra.mxu0 0
  %651 = vmatprep.subr.bf16.mxu0 0
  %652 = vmatpush1.bf16.msra.mxu0 0
  %653 = vmatprep.subr.bf16.mxu0 0
  %654 = vmatpush1.bf16.msra.mxu0 0
  %655 = vmatprep.subr.bf16.mxu0 0
  %656 = vmatpush1.bf16.msra.mxu0 0
  %657 = vmatprep.subr.bf16.mxu0 0
  %658 = vmatpush1.bf16.msra.mxu0 0
  %659 = vmatprep.subr.bf16.mxu0 0
  %660 = vmatpush1.bf16.msra.mxu0 0
  %661 = vmatprep.subr.bf16.mxu0 0
  %662 = vmatpush1.bf16.msra.mxu0 %v95
  %663 = vmatprep.subr.bf16.mxu0 0
  %664 = vmatpush2.bf16.msra.mxu0 0
  %665 = vmatprep.subr.bf16.mxu0 0
  %666 = vmatpush2.bf16.msra.mxu0 0
  %667 = vmatprep.subr.bf16.mxu0 0
  %668 = vmatpush2.bf16.msra.mxu0 0
  %669 = vmatprep.subr.bf16.mxu0 0
  %670 = vmatpush2.bf16.msra.mxu0 0
  %671 = vmatprep.subr.bf16.mxu0 0
  %672 = vmatpush2.bf16.msra.mxu0 0
  %673 = vmatprep.subr.bf16.mxu0 0
  %674 = vmatpush2.bf16.msra.mxu0 0
  %675 = vmatprep.subr.bf16.mxu0 0
  %676 = vmatpush2.bf16.msra.mxu0 0
  %677 = vmatprep.subr.bf16.mxu0 0
  %678 = vmatpush2.bf16.msra.mxu0 0
  %679 = vmatprep.mubr.bf16.mxu0 0
  %680 = vmatmul.mubr.bf16.gmra.mxu0 %v645
  %v681 = vpop.f32.mrf.mxu0
  %v682 = vadd.f32 %v176, %v681
  %v683 = vpop.f32.mrf.mxu0
  %v684 = vpop.f32.mrf.mxu0
  %v685 = vpop.f32.mrf.mxu0
  %686 = vdwg.mxu0
  %v688 = vsel %vm213, %v48, 0
  %690 = vmatprep.subr.bf16.mxu0 0
  %691 = vmatpush1.bf16.msra.mxu0 0
  %692 = vmatprep.subr.bf16.mxu0 0
  %693 = vmatpush1.bf16.msra.mxu0 0
  %694 = vmatprep.subr.bf16.mxu0 0
  %695 = vmatpush1.bf16.msra.mxu0 0
  %696 = vmatprep.subr.bf16.mxu0 0
  %697 = vmatpush1.bf16.msra.mxu0 0
  %698 = vmatprep.subr.bf16.mxu0 0
  %699 = vmatpush1.bf16.msra.mxu0 0
  %700 = vmatprep.subr.bf16.mxu0 0
  %701 = vmatpush1.bf16.msra.mxu0 0
  %702 = vmatprep.subr.bf16.mxu0 0
  %703 = vmatpush1.bf16.msra.mxu0 0
  %704 = vmatprep.subr.bf16.mxu0 0
  %705 = vmatpush1.bf16.msra.mxu0 %v96
  %706 = vmatprep.subr.bf16.mxu0 0
  %707 = vmatpush2.bf16.msra.mxu0 0
  %708 = vmatprep.subr.bf16.mxu0 0
  %709 = vmatpush2.bf16.msra.mxu0 0
  %710 = vmatprep.subr.bf16.mxu0 0
  %711 = vmatpush2.bf16.msra.mxu0 0
  %712 = vmatprep.subr.bf16.mxu0 0
  %713 = vmatpush2.bf16.msra.mxu0 0
  %714 = vmatprep.subr.bf16.mxu0 0
  %715 = vmatpush2.bf16.msra.mxu0 0
  %716 = vmatprep.subr.bf16.mxu0 0
  %717 = vmatpush2.bf16.msra.mxu0 0
  %718 = vmatprep.subr.bf16.mxu0 0
  %719 = vmatpush2.bf16.msra.mxu0 0
  %720 = vmatprep.subr.bf16.mxu0 0
  %721 = vmatpush2.bf16.msra.mxu0 0
  %722 = vmatprep.mubr.bf16.mxu0 0
  %723 = vmatmul.mubr.bf16.gmra.mxu0 %v688
  %v724 = vpop.f32.mrf.mxu0
  %v725 = vadd.f32 %v180, %v724
  %v726 = vpop.f32.mrf.mxu0
  %v727 = vpop.f32.mrf.mxu0
  %v728 = vpop.f32.mrf.mxu0
  %729 = vdwg.mxu0
  %v731 = vsel %vm213, %v49, 0
  %733 = vmatprep.subr.bf16.mxu0 0
  %734 = vmatpush1.bf16.msra.mxu0 0
  %735 = vmatprep.subr.bf16.mxu0 0
  %736 = vmatpush1.bf16.msra.mxu0 0
  %737 = vmatprep.subr.bf16.mxu0 0
  %738 = vmatpush1.bf16.msra.mxu0 0
  %739 = vmatprep.subr.bf16.mxu0 0
  %740 = vmatpush1.bf16.msra.mxu0 0
  %741 = vmatprep.subr.bf16.mxu0 0
  %742 = vmatpush1.bf16.msra.mxu0 0
  %743 = vmatprep.subr.bf16.mxu0 0
  %744 = vmatpush1.bf16.msra.mxu0 0
  %745 = vmatprep.subr.bf16.mxu0 0
  %746 = vmatpush1.bf16.msra.mxu0 0
  %747 = vmatprep.subr.bf16.mxu0 0
  %748 = vmatpush1.bf16.msra.mxu0 %v97
  %749 = vmatprep.subr.bf16.mxu0 0
  %750 = vmatpush2.bf16.msra.mxu0 0
  %751 = vmatprep.subr.bf16.mxu0 0
  %752 = vmatpush2.bf16.msra.mxu0 0
  %753 = vmatprep.subr.bf16.mxu0 0
  %754 = vmatpush2.bf16.msra.mxu0 0
  %755 = vmatprep.subr.bf16.mxu0 0
  %756 = vmatpush2.bf16.msra.mxu0 0
  %757 = vmatprep.subr.bf16.mxu0 0
  %758 = vmatpush2.bf16.msra.mxu0 0
  %759 = vmatprep.subr.bf16.mxu0 0
  %760 = vmatpush2.bf16.msra.mxu0 0
  %761 = vmatprep.subr.bf16.mxu0 0
  %762 = vmatpush2.bf16.msra.mxu0 0
  %763 = vmatprep.subr.bf16.mxu0 0
  %764 = vmatpush2.bf16.msra.mxu0 0
  %765 = vmatprep.mubr.bf16.mxu0 0
  %766 = vmatmul.mubr.bf16.gmra.mxu0 %v731
  %v767 = vpop.f32.mrf.mxu0
  %v768 = vadd.f32 %v184, %v767
  %v769 = vpop.f32.mrf.mxu0
  %v770 = vpop.f32.mrf.mxu0
  %v771 = vpop.f32.mrf.mxu0
  %772 = vdwg.mxu0
  %v774 = vsel %vm213, %v50, 0
  %776 = vmatprep.subr.bf16.mxu0 0
  %777 = vmatpush1.bf16.msra.mxu0 0
  %778 = vmatprep.subr.bf16.mxu0 0
  %779 = vmatpush1.bf16.msra.mxu0 0
  %780 = vmatprep.subr.bf16.mxu0 0
  %781 = vmatpush1.bf16.msra.mxu0 0
  %782 = vmatprep.subr.bf16.mxu0 0
  %783 = vmatpush1.bf16.msra.mxu0 0
  %784 = vmatprep.subr.bf16.mxu0 0
  %785 = vmatpush1.bf16.msra.mxu0 0
  %786 = vmatprep.subr.bf16.mxu0 0
  %787 = vmatpush1.bf16.msra.mxu0 0
  %788 = vmatprep.subr.bf16.mxu0 0
  %789 = vmatpush1.bf16.msra.mxu0 0
  %790 = vmatprep.subr.bf16.mxu0 0
  %791 = vmatpush1.bf16.msra.mxu0 %v98
  %792 = vmatprep.subr.bf16.mxu0 0
  %793 = vmatpush2.bf16.msra.mxu0 0
  %794 = vmatprep.subr.bf16.mxu0 0
  %795 = vmatpush2.bf16.msra.mxu0 0
  %796 = vmatprep.subr.bf16.mxu0 0
  %797 = vmatpush2.bf16.msra.mxu0 0
  %798 = vmatprep.subr.bf16.mxu0 0
  %799 = vmatpush2.bf16.msra.mxu0 0
  %800 = vmatprep.subr.bf16.mxu0 0
  %801 = vmatpush2.bf16.msra.mxu0 0
  %802 = vmatprep.subr.bf16.mxu0 0
  %803 = vmatpush2.bf16.msra.mxu0 0
  %804 = vmatprep.subr.bf16.mxu0 0
  %805 = vmatpush2.bf16.msra.mxu0 0
  %806 = vmatprep.subr.bf16.mxu0 0
  %807 = vmatpush2.bf16.msra.mxu0 0
  %808 = vmatprep.mubr.bf16.mxu0 0
  %809 = vmatmul.mubr.bf16.gmra.mxu0 %v774
  %v810 = vpop.f32.mrf.mxu0
  %v811 = vadd.f32 %v188, %v810
  %v812 = vpop.f32.mrf.mxu0
  %v813 = vpop.f32.mrf.mxu0
  %v814 = vpop.f32.mrf.mxu0
  %815 = vdwg.mxu0
  %v817 = vsel %vm213, %v51, 0
  %819 = vmatprep.subr.bf16.mxu0 0
  %820 = vmatpush1.bf16.msra.mxu0 0
  %821 = vmatprep.subr.bf16.mxu0 0
  %822 = vmatpush1.bf16.msra.mxu0 0
  %823 = vmatprep.subr.bf16.mxu0 0
  %824 = vmatpush1.bf16.msra.mxu0 0
  %825 = vmatprep.subr.bf16.mxu0 0
  %826 = vmatpush1.bf16.msra.mxu0 0
  %827 = vmatprep.subr.bf16.mxu0 0
  %828 = vmatpush1.bf16.msra.mxu0 0
  %829 = vmatprep.subr.bf16.mxu0 0
  %830 = vmatpush1.bf16.msra.mxu0 0
  %831 = vmatprep.subr.bf16.mxu0 0
  %832 = vmatpush1.bf16.msra.mxu0 0
  %833 = vmatprep.subr.bf16.mxu0 0
  %834 = vmatpush1.bf16.msra.mxu0 %v99
  %835 = vmatprep.subr.bf16.mxu0 0
  %836 = vmatpush2.bf16.msra.mxu0 0
  %837 = vmatprep.subr.bf16.mxu0 0
  %838 = vmatpush2.bf16.msra.mxu0 0
  %839 = vmatprep.subr.bf16.mxu0 0
  %840 = vmatpush2.bf16.msra.mxu0 0
  %841 = vmatprep.subr.bf16.mxu0 0
  %842 = vmatpush2.bf16.msra.mxu0 0
  %843 = vmatprep.subr.bf16.mxu0 0
  %844 = vmatpush2.bf16.msra.mxu0 0
  %845 = vmatprep.subr.bf16.mxu0 0
  %846 = vmatpush2.bf16.msra.mxu0 0
  %847 = vmatprep.subr.bf16.mxu0 0
  %848 = vmatpush2.bf16.msra.mxu0 0
  %849 = vmatprep.subr.bf16.mxu0 0
  %850 = vmatpush2.bf16.msra.mxu0 0
  %851 = vmatprep.mubr.bf16.mxu0 0
  %852 = vmatmul.mubr.bf16.gmra.mxu0 %v817
  %v853 = vpop.f32.mrf.mxu0
  %v854 = vadd.f32 %v192, %v853
  %v855 = vpop.f32.mrf.mxu0
  %v856 = vpop.f32.mrf.mxu0
  %v857 = vpop.f32.mrf.mxu0
  %858 = vdwg.mxu0
  %v860 = vsel %vm213, %v52, 0
  %862 = vmatprep.subr.bf16.mxu0 0
  %863 = vmatpush1.bf16.msra.mxu0 0
  %864 = vmatprep.subr.bf16.mxu0 0
  %865 = vmatpush1.bf16.msra.mxu0 0
  %866 = vmatprep.subr.bf16.mxu0 0
  %867 = vmatpush1.bf16.msra.mxu0 0
  %868 = vmatprep.subr.bf16.mxu0 0
  %869 = vmatpush1.bf16.msra.mxu0 0
  %870 = vmatprep.subr.bf16.mxu0 0
  %871 = vmatpush1.bf16.msra.mxu0 0
  %872 = vmatprep.subr.bf16.mxu0 0
  %873 = vmatpush1.bf16.msra.mxu0 0
  %874 = vmatprep.subr.bf16.mxu0 0
  %875 = vmatpush1.bf16.msra.mxu0 0
  %876 = vmatprep.subr.bf16.mxu0 0
  %877 = vmatpush1.bf16.msra.mxu0 %v100
  %878 = vmatprep.subr.bf16.mxu0 0
  %879 = vmatpush2.bf16.msra.mxu0 0
  %880 = vmatprep.subr.bf16.mxu0 0
  %881 = vmatpush2.bf16.msra.mxu0 0
  %882 = vmatprep.subr.bf16.mxu0 0
  %883 = vmatpush2.bf16.msra.mxu0 0
  %884 = vmatprep.subr.bf16.mxu0 0
  %885 = vmatpush2.bf16.msra.mxu0 0
  %886 = vmatprep.subr.bf16.mxu0 0
  %887 = vmatpush2.bf16.msra.mxu0 0
  %888 = vmatprep.subr.bf16.mxu0 0
  %889 = vmatpush2.bf16.msra.mxu0 0
  %890 = vmatprep.subr.bf16.mxu0 0
  %891 = vmatpush2.bf16.msra.mxu0 0
  %892 = vmatprep.subr.bf16.mxu0 0
  %893 = vmatpush2.bf16.msra.mxu0 0
  %894 = vmatprep.mubr.bf16.mxu0 0
  %895 = vmatmul.mubr.bf16.gmra.mxu0 %v860
  %v896 = vpop.f32.mrf.mxu0
  %v897 = vadd.f32 %v196, %v896
  %v898 = vpop.f32.mrf.mxu0
  %v899 = vpop.f32.mrf.mxu0
  %v900 = vpop.f32.mrf.mxu0
  %901 = vdwg.mxu0
  %vm902 = vcmp.gt.f32.partialorder %v252, 0.0
  %vm903 = vcmp.gt.f32.partialorder %v295, 0.0
  %vm904 = vcmp.gt.f32.partialorder %v338, 0.0
  %vm905 = vcmp.gt.f32.partialorder %v381, 0.0
  %vm906 = vcmp.gt.f32.partialorder %v424, 0.0
  %vm907 = vcmp.gt.f32.partialorder %v467, 0.0
  %vm908 = vcmp.gt.f32.partialorder %v510, 0.0
  %vm909 = vcmp.gt.f32.partialorder %v553, 0.0
  %vm910 = vcmp.gt.f32.partialorder %v596, 0.0
  %vm911 = vcmp.gt.f32.partialorder %v639, 0.0
  %vm912 = vcmp.gt.f32.partialorder %v682, 0.0
  %vm913 = vcmp.gt.f32.partialorder %v725, 0.0
  %vm914 = vcmp.gt.f32.partialorder %v768, 0.0
  %vm915 = vcmp.gt.f32.partialorder %v811, 0.0
  %vm916 = vcmp.gt.f32.partialorder %v854, 0.0
  %vm917 = vcmp.gt.f32.partialorder %v897, 0.0
  %v918 = vmul.f32 %v252, 0.01
  %v919 = vmul.f32 %v295, 0.01
  %v920 = vmul.f32 %v338, 0.01
  %v921 = vmul.f32 %v381, 0.01
  %v922 = vmul.f32 %v424, 0.01
  %v923 = vmul.f32 %v467, 0.01
  %v924 = vmul.f32 %v510, 0.01
  %v925 = vmul.f32 %v553, 0.01
  %v926 = vmul.f32 %v596, 0.01
  %v927 = vmul.f32 %v639, 0.01
  %v928 = vmul.f32 %v682, 0.01
  %v929 = vmul.f32 %v725, 0.01
  %v930 = vmul.f32 %v768, 0.01
  %v931 = vmul.f32 %v811, 0.01
  %v932 = vmul.f32 %v854, 0.01
  %v933 = vmul.f32 %v897, 0.01
  %v934 = vsel %vm902, %v252, %v918
  %v935 = vsel %vm903, %v295, %v919
  %v936 = vsel %vm904, %v338, %v920
  %v937 = vsel %vm905, %v381, %v921
  %v938 = vsel %vm906, %v424, %v922
  %v939 = vsel %vm907, %v467, %v923
  %v940 = vsel %vm908, %v510, %v924
  %v941 = vsel %vm909, %v553, %v925
  %v942 = vsel %vm910, %v596, %v926
  %v943 = vsel %vm911, %v639, %v927
  %v944 = vsel %vm912, %v682, %v928
  %v945 = vsel %vm913, %v725, %v929
  %v946 = vsel %vm914, %v768, %v930
  %v947 = vsel %vm915, %v811, %v931
  %v948 = vsel %vm916, %v854, %v932
  %v949 = vsel %vm917, %v897, %v933
  %v950 = vpack.c.bf16 %v934, %v934
  %v951 = vpack.c.bf16 %v935, %v935
  %v952 = vpack.c.bf16 %v936, %v936
  %v953 = vpack.c.bf16 %v937, %v937
  %v954 = vpack.c.bf16 %v938, %v938
  %v955 = vpack.c.bf16 %v939, %v939
  %v956 = vpack.c.bf16 %v940, %v940
  %v957 = vpack.c.bf16 %v941, %v941
  %v958 = vpack.c.bf16 %v942, %v942
  %v959 = vpack.c.bf16 %v943, %v943
  %v960 = vpack.c.bf16 %v944, %v944
  %v961 = vpack.c.bf16 %v945, %v945
  %v962 = vpack.c.bf16 %v946, %v946
  %v963 = vpack.c.bf16 %v947, %v947
  %v964 = vpack.c.bf16 %v948, %v948
  %v965 = vpack.c.bf16 %v949, %v949
  %v966 = vld [vmem:[%s3] sm:$0xff]
  %v967 = vld [vmem:[%s3 + $0x8] sm:$0xff]
  %v968 = vld [vmem:[%s3 + $0x10] sm:$0xff]
  %v969 = vld [vmem:[%s3 + $0x18] sm:$0xff]
  %v970 = vld [vmem:[%s3 + $0x20] sm:$0xff]
  %v971 = vld [vmem:[%s3 + $0x28] sm:$0xff]
  %v972 = vld [vmem:[%s3 + $0x30] sm:$0xff]
  %v973 = vld [vmem:[%s3 + $0x38] sm:$0xff]
  %v974 = vld [vmem:[%s3 + $0x40] sm:$0xff]
  %v975 = vld [vmem:[%s3 + $0x48] sm:$0xff]
  %v976 = vld [vmem:[%s3 + $0x50] sm:$0xff]
  %v977 = vld [vmem:[%s3 + $0x58] sm:$0xff]
  %v978 = vld [vmem:[%s3 + $0x60] sm:$0xff]
  %v979 = vld [vmem:[%s3 + $0x68] sm:$0xff]
  %v980 = vld [vmem:[%s3 + $0x70] sm:$0xff]
  %v981 = vld [vmem:[%s3 + $0x78] sm:$0xff]
  %v982 = vld [vmem:[%s3 + $0x80] sm:$0xff]
  %v983 = vld [vmem:[%s3 + $0x88] sm:$0xff]
  %v984 = vld [vmem:[%s3 + $0x90] sm:$0xff]
  %v985 = vld [vmem:[%s3 + $0x98] sm:$0xff]
  %v986 = vld [vmem:[%s3 + $0xa0] sm:$0xff]
  %v987 = vld [vmem:[%s3 + $0xa8] sm:$0xff]
  %v988 = vld [vmem:[%s3 + $0xb0] sm:$0xff]
  %v989 = vld [vmem:[%s3 + $0xb8] sm:$0xff]
  %v990 = vld [vmem:[%s3 + $0xc0] sm:$0xff]
  %v991 = vld [vmem:[%s3 + $0xc8] sm:$0xff]
  %v992 = vld [vmem:[%s3 + $0xd0] sm:$0xff]
  %v993 = vld [vmem:[%s3 + $0xd8] sm:$0xff]
  %v994 = vld [vmem:[%s3 + $0xe0] sm:$0xff]
  %v995 = vld [vmem:[%s3 + $0xe8] sm:$0xff]
  %v996 = vld [vmem:[%s3 + $0xf0] sm:$0xff]
  %v997 = vld [vmem:[%s3 + $0xf8] sm:$0xff]
  %v998 = vpack.c.bf16 %v967, %v966
  %v999 = vpack.c.bf16 %v969, %v968
  %v1000 = vpack.c.bf16 %v971, %v970
  %v1001 = vpack.c.bf16 %v973, %v972
  %v1002 = vpack.c.bf16 %v975, %v974
  %v1003 = vpack.c.bf16 %v977, %v976
  %v1004 = vpack.c.bf16 %v979, %v978
  %v1005 = vpack.c.bf16 %v981, %v980
  %v1006 = vpack.c.bf16 %v983, %v982
  %v1007 = vpack.c.bf16 %v985, %v984
  %v1008 = vpack.c.bf16 %v987, %v986
  %v1009 = vpack.c.bf16 %v989, %v988
  %v1010 = vpack.c.bf16 %v991, %v990
  %v1011 = vpack.c.bf16 %v993, %v992
  %v1012 = vpack.c.bf16 %v995, %v994
  %v1013 = vpack.c.bf16 %v997, %v996
  %v1014 = vld [vmem:[%s4] sm:$0x1]
  %v1015 = vld [vmem:[%s4 + $0x1] sm:$0x1]
  %v1016 = vld [vmem:[%s4 + $0x2] sm:$0x1]
  %v1017 = vld [vmem:[%s4 + $0x3] sm:$0x1]
  %v1018 = vld [vmem:[%s4 + $0x4] sm:$0x1]
  %v1019 = vld [vmem:[%s4 + $0x5] sm:$0x1]
  %v1020 = vld [vmem:[%s4 + $0x6] sm:$0x1]
  %v1021 = vld [vmem:[%s4 + $0x7] sm:$0x1]
  %v1022 = vld [vmem:[%s4 + $0x8] sm:$0x1]
  %v1023 = vld [vmem:[%s4 + $0x9] sm:$0x1]
  %v1024 = vld [vmem:[%s4 + $0xa] sm:$0x1]
  %v1025 = vld [vmem:[%s4 + $0xb] sm:$0x1]
  %v1026 = vld [vmem:[%s4 + $0xc] sm:$0x1]
  %v1027 = vld [vmem:[%s4 + $0xd] sm:$0x1]
  %v1028 = vld [vmem:[%s4 + $0xe] sm:$0x1]
  %v1029 = vld [vmem:[%s4 + $0xf] sm:$0x1]
  %v1046 = vlaneseq
  %v1047 = vshrl.u32 %v1046, 7
  %v1048 = vsub.s32 0, %v1047
  %v1049 = vrot.slane %v1014, %v1048
  %v1050 = vlaneseq
  %v1051 = vshrl.u32 %v1050, 7
  %v1052 = vsub.s32 0, %v1051
  %v1053 = vrot.slane %v1015, %v1052
  %v1054 = vlaneseq
  %v1055 = vshrl.u32 %v1054, 7
  %v1056 = vsub.s32 0, %v1055
  %v1057 = vrot.slane %v1016, %v1056
  %v1058 = vlaneseq
  %v1059 = vshrl.u32 %v1058, 7
  %v1060 = vsub.s32 0, %v1059
  %v1061 = vrot.slane %v1017, %v1060
  %v1062 = vlaneseq
  %v1063 = vshrl.u32 %v1062, 7
  %v1064 = vsub.s32 0, %v1063
  %v1065 = vrot.slane %v1018, %v1064
  %v1066 = vlaneseq
  %v1067 = vshrl.u32 %v1066, 7
  %v1068 = vsub.s32 0, %v1067
  %v1069 = vrot.slane %v1019, %v1068
  %v1070 = vlaneseq
  %v1071 = vshrl.u32 %v1070, 7
  %v1072 = vsub.s32 0, %v1071
  %v1073 = vrot.slane %v1020, %v1072
  %v1074 = vlaneseq
  %v1075 = vshrl.u32 %v1074, 7
  %v1076 = vsub.s32 0, %v1075
  %v1077 = vrot.slane %v1021, %v1076
  %v1078 = vlaneseq
  %v1079 = vshrl.u32 %v1078, 7
  %v1080 = vsub.s32 0, %v1079
  %v1081 = vrot.slane %v1022, %v1080
  %v1082 = vlaneseq
  %v1083 = vshrl.u32 %v1082, 7
  %v1084 = vsub.s32 0, %v1083
  %v1085 = vrot.slane %v1023, %v1084
  %v1086 = vlaneseq
  %v1087 = vshrl.u32 %v1086, 7
  %v1088 = vsub.s32 0, %v1087
  %v1089 = vrot.slane %v1024, %v1088
  %v1090 = vlaneseq
  %v1091 = vshrl.u32 %v1090, 7
  %v1092 = vsub.s32 0, %v1091
  %v1093 = vrot.slane %v1025, %v1092
  %v1094 = vlaneseq
  %v1095 = vshrl.u32 %v1094, 7
  %v1096 = vsub.s32 0, %v1095
  %v1097 = vrot.slane %v1026, %v1096
  %v1098 = vlaneseq
  %v1099 = vshrl.u32 %v1098, 7
  %v1100 = vsub.s32 0, %v1099
  %v1101 = vrot.slane %v1027, %v1100
  %v1102 = vlaneseq
  %v1103 = vshrl.u32 %v1102, 7
  %v1104 = vsub.s32 0, %v1103
  %v1105 = vrot.slane %v1028, %v1104
  %v1106 = vlaneseq
  %v1107 = vshrl.u32 %v1106, 7
  %v1108 = vsub.s32 0, %v1107
  %v1109 = vrot.slane %v1029, %v1108
  %v1127 = vsel %vm213, %v950, 0
  %1129 = vmatprep.subr.bf16.mxu0 0
  %1130 = vmatpush1.bf16.msra.mxu0 0
  %1131 = vmatprep.subr.bf16.mxu0 0
  %1132 = vmatpush1.bf16.msra.mxu0 0
  %1133 = vmatprep.subr.bf16.mxu0 0
  %1134 = vmatpush1.bf16.msra.mxu0 0
  %1135 = vmatprep.subr.bf16.mxu0 0
  %1136 = vmatpush1.bf16.msra.mxu0 0
  %1137 = vmatprep.subr.bf16.mxu0 0
  %1138 = vmatpush1.bf16.msra.mxu0 0
  %1139 = vmatprep.subr.bf16.mxu0 0
  %1140 = vmatpush1.bf16.msra.mxu0 0
  %1141 = vmatprep.subr.bf16.mxu0 0
  %1142 = vmatpush1.bf16.msra.mxu0 0
  %1143 = vmatprep.subr.bf16.mxu0 0
  %1144 = vmatpush1.bf16.msra.mxu0 %v998
  %1145 = vmatprep.subr.bf16.mxu0 0
  %1146 = vmatpush2.bf16.msra.mxu0 0
  %1147 = vmatprep.subr.bf16.mxu0 0
  %1148 = vmatpush2.bf16.msra.mxu0 0
  %1149 = vmatprep.subr.bf16.mxu0 0
  %1150 = vmatpush2.bf16.msra.mxu0 0
  %1151 = vmatprep.subr.bf16.mxu0 0
  %1152 = vmatpush2.bf16.msra.mxu0 0
  %1153 = vmatprep.subr.bf16.mxu0 0
  %1154 = vmatpush2.bf16.msra.mxu0 0
  %1155 = vmatprep.subr.bf16.mxu0 0
  %1156 = vmatpush2.bf16.msra.mxu0 0
  %1157 = vmatprep.subr.bf16.mxu0 0
  %1158 = vmatpush2.bf16.msra.mxu0 0
  %1159 = vmatprep.subr.bf16.mxu0 0
  %1160 = vmatpush2.bf16.msra.mxu0 0
  %1161 = vmatprep.mubr.bf16.mxu0 0
  %1162 = vmatmul.mubr.bf16.gmra.mxu0 %v1127
  %v1163 = vpop.f32.mrf.mxu0
  %v1164 = vadd.f32 %v1049, %v1163
  %v1165 = vpop.f32.mrf.mxu0
  %v1166 = vpop.f32.mrf.mxu0
  %v1167 = vpop.f32.mrf.mxu0
  %1168 = vdwg.mxu0
  %v1170 = vsel %vm213, %v951, 0
  %1172 = vmatprep.subr.bf16.mxu0 0
  %1173 = vmatpush1.bf16.msra.mxu0 0
  %1174 = vmatprep.subr.bf16.mxu0 0
  %1175 = vmatpush1.bf16.msra.mxu0 0
  %1176 = vmatprep.subr.bf16.mxu0 0
  %1177 = vmatpush1.bf16.msra.mxu0 0
  %1178 = vmatprep.subr.bf16.mxu0 0
  %1179 = vmatpush1.bf16.msra.mxu0 0
  %1180 = vmatprep.subr.bf16.mxu0 0
  %1181 = vmatpush1.bf16.msra.mxu0 0
  %1182 = vmatprep.subr.bf16.mxu0 0
  %1183 = vmatpush1.bf16.msra.mxu0 0
  %1184 = vmatprep.subr.bf16.mxu0 0
  %1185 = vmatpush1.bf16.msra.mxu0 0
  %1186 = vmatprep.subr.bf16.mxu0 0
  %1187 = vmatpush1.bf16.msra.mxu0 %v999
  %1188 = vmatprep.subr.bf16.mxu0 0
  %1189 = vmatpush2.bf16.msra.mxu0 0
  %1190 = vmatprep.subr.bf16.mxu0 0
  %1191 = vmatpush2.bf16.msra.mxu0 0
  %1192 = vmatprep.subr.bf16.mxu0 0
  %1193 = vmatpush2.bf16.msra.mxu0 0
  %1194 = vmatprep.subr.bf16.mxu0 0
  %1195 = vmatpush2.bf16.msra.mxu0 0
  %1196 = vmatprep.subr.bf16.mxu0 0
  %1197 = vmatpush2.bf16.msra.mxu0 0
  %1198 = vmatprep.subr.bf16.mxu0 0
  %1199 = vmatpush2.bf16.msra.mxu0 0
  %1200 = vmatprep.subr.bf16.mxu0 0
  %1201 = vmatpush2.bf16.msra.mxu0 0
  %1202 = vmatprep.subr.bf16.mxu0 0
  %1203 = vmatpush2.bf16.msra.mxu0 0
  %1204 = vmatprep.mubr.bf16.mxu0 0
  %1205 = vmatmul.mubr.bf16.gmra.mxu0 %v1170
  %v1206 = vpop.f32.mrf.mxu0
  %v1207 = vadd.f32 %v1053, %v1206
  %v1208 = vpop.f32.mrf.mxu0
  %v1209 = vpop.f32.mrf.mxu0
  %v1210 = vpop.f32.mrf.mxu0
  %1211 = vdwg.mxu0
  %v1213 = vsel %vm213, %v952, 0
  %1215 = vmatprep.subr.bf16.mxu0 0
  %1216 = vmatpush1.bf16.msra.mxu0 0
  %1217 = vmatprep.subr.bf16.mxu0 0
  %1218 = vmatpush1.bf16.msra.mxu0 0
  %1219 = vmatprep.subr.bf16.mxu0 0
  %1220 = vmatpush1.bf16.msra.mxu0 0
  %1221 = vmatprep.subr.bf16.mxu0 0
  %1222 = vmatpush1.bf16.msra.mxu0 0
  %1223 = vmatprep.subr.bf16.mxu0 0
  %1224 = vmatpush1.bf16.msra.mxu0 0
  %1225 = vmatprep.subr.bf16.mxu0 0
  %1226 = vmatpush1.bf16.msra.mxu0 0
  %1227 = vmatprep.subr.bf16.mxu0 0
  %1228 = vmatpush1.bf16.msra.mxu0 0
  %1229 = vmatprep.subr.bf16.mxu0 0
  %1230 = vmatpush1.bf16.msra.mxu0 %v1000
  %1231 = vmatprep.subr.bf16.mxu0 0
  %1232 = vmatpush2.bf16.msra.mxu0 0
  %1233 = vmatprep.subr.bf16.mxu0 0
  %1234 = vmatpush2.bf16.msra.mxu0 0
  %1235 = vmatprep.subr.bf16.mxu0 0
  %1236 = vmatpush2.bf16.msra.mxu0 0
  %1237 = vmatprep.subr.bf16.mxu0 0
  %1238 = vmatpush2.bf16.msra.mxu0 0
  %1239 = vmatprep.subr.bf16.mxu0 0
  %1240 = vmatpush2.bf16.msra.mxu0 0
  %1241 = vmatprep.subr.bf16.mxu0 0
  %1242 = vmatpush2.bf16.msra.mxu0 0
  %1243 = vmatprep.subr.bf16.mxu0 0
  %1244 = vmatpush2.bf16.msra.mxu0 0
  %1245 = vmatprep.subr.bf16.mxu0 0
  %1246 = vmatpush2.bf16.msra.mxu0 0
  %1247 = vmatprep.mubr.bf16.mxu0 0
  %1248 = vmatmul.mubr.bf16.gmra.mxu0 %v1213
  %v1249 = vpop.f32.mrf.mxu0
  %v1250 = vadd.f32 %v1057, %v1249
  %v1251 = vpop.f32.mrf.mxu0
  %v1252 = vpop.f32.mrf.mxu0
  %v1253 = vpop.f32.mrf.mxu0
  %1254 = vdwg.mxu0
  %v1256 = vsel %vm213, %v953, 0
  %1258 = vmatprep.subr.bf16.mxu0 0
  %1259 = vmatpush1.bf16.msra.mxu0 0
  %1260 = vmatprep.subr.bf16.mxu0 0
  %1261 = vmatpush1.bf16.msra.mxu0 0
  %1262 = vmatprep.subr.bf16.mxu0 0
  %1263 = vmatpush1.bf16.msra.mxu0 0
  %1264 = vmatprep.subr.bf16.mxu0 0
  %1265 = vmatpush1.bf16.msra.mxu0 0
  %1266 = vmatprep.subr.bf16.mxu0 0
  %1267 = vmatpush1.bf16.msra.mxu0 0
  %1268 = vmatprep.subr.bf16.mxu0 0
  %1269 = vmatpush1.bf16.msra.mxu0 0
  %1270 = vmatprep.subr.bf16.mxu0 0
  %1271 = vmatpush1.bf16.msra.mxu0 0
  %1272 = vmatprep.subr.bf16.mxu0 0
  %1273 = vmatpush1.bf16.msra.mxu0 %v1001
  %1274 = vmatprep.subr.bf16.mxu0 0
  %1275 = vmatpush2.bf16.msra.mxu0 0
  %1276 = vmatprep.subr.bf16.mxu0 0
  %1277 = vmatpush2.bf16.msra.mxu0 0
  %1278 = vmatprep.subr.bf16.mxu0 0
  %1279 = vmatpush2.bf16.msra.mxu0 0
  %1280 = vmatprep.subr.bf16.mxu0 0
  %1281 = vmatpush2.bf16.msra.mxu0 0
  %1282 = vmatprep.subr.bf16.mxu0 0
  %1283 = vmatpush2.bf16.msra.mxu0 0
  %1284 = vmatprep.subr.bf16.mxu0 0
  %1285 = vmatpush2.bf16.msra.mxu0 0
  %1286 = vmatprep.subr.bf16.mxu0 0
  %1287 = vmatpush2.bf16.msra.mxu0 0
  %1288 = vmatprep.subr.bf16.mxu0 0
  %1289 = vmatpush2.bf16.msra.mxu0 0
  %1290 = vmatprep.mubr.bf16.mxu0 0
  %1291 = vmatmul.mubr.bf16.gmra.mxu0 %v1256
  %v1292 = vpop.f32.mrf.mxu0
  %v1293 = vadd.f32 %v1061, %v1292
  %v1294 = vpop.f32.mrf.mxu0
  %v1295 = vpop.f32.mrf.mxu0
  %v1296 = vpop.f32.mrf.mxu0
  %1297 = vdwg.mxu0
  %v1299 = vsel %vm213, %v954, 0
  %1301 = vmatprep.subr.bf16.mxu0 0
  %1302 = vmatpush1.bf16.msra.mxu0 0
  %1303 = vmatprep.subr.bf16.mxu0 0
  %1304 = vmatpush1.bf16.msra.mxu0 0
  %1305 = vmatprep.subr.bf16.mxu0 0
  %1306 = vmatpush1.bf16.msra.mxu0 0
  %1307 = vmatprep.subr.bf16.mxu0 0
  %1308 = vmatpush1.bf16.msra.mxu0 0
  %1309 = vmatprep.subr.bf16.mxu0 0
  %1310 = vmatpush1.bf16.msra.mxu0 0
  %1311 = vmatprep.subr.bf16.mxu0 0
  %1312 = vmatpush1.bf16.msra.mxu0 0
  %1313 = vmatprep.subr.bf16.mxu0 0
  %1314 = vmatpush1.bf16.msra.mxu0 0
  %1315 = vmatprep.subr.bf16.mxu0 0
  %1316 = vmatpush1.bf16.msra.mxu0 %v1002
  %1317 = vmatprep.subr.bf16.mxu0 0
  %1318 = vmatpush2.bf16.msra.mxu0 0
  %1319 = vmatprep.subr.bf16.mxu0 0
  %1320 = vmatpush2.bf16.msra.mxu0 0
  %1321 = vmatprep.subr.bf16.mxu0 0
  %1322 = vmatpush2.bf16.msra.mxu0 0
  %1323 = vmatprep.subr.bf16.mxu0 0
  %1324 = vmatpush2.bf16.msra.mxu0 0
  %1325 = vmatprep.subr.bf16.mxu0 0
  %1326 = vmatpush2.bf16.msra.mxu0 0
  %1327 = vmatprep.subr.bf16.mxu0 0
  %1328 = vmatpush2.bf16.msra.mxu0 0
  %1329 = vmatprep.subr.bf16.mxu0 0
  %1330 = vmatpush2.bf16.msra.mxu0 0
  %1331 = vmatprep.subr.bf16.mxu0 0
  %1332 = vmatpush2.bf16.msra.mxu0 0
  %1333 = vmatprep.mubr.bf16.mxu0 0
  %1334 = vmatmul.mubr.bf16.gmra.mxu0 %v1299
  %v1335 = vpop.f32.mrf.mxu0
  %v1336 = vadd.f32 %v1065, %v1335
  %v1337 = vpop.f32.mrf.mxu0
  %v1338 = vpop.f32.mrf.mxu0
  %v1339 = vpop.f32.mrf.mxu0
  %1340 = vdwg.mxu0
  %v1342 = vsel %vm213, %v955, 0
  %1344 = vmatprep.subr.bf16.mxu0 0
  %1345 = vmatpush1.bf16.msra.mxu0 0
  %1346 = vmatprep.subr.bf16.mxu0 0
  %1347 = vmatpush1.bf16.msra.mxu0 0
  %1348 = vmatprep.subr.bf16.mxu0 0
  %1349 = vmatpush1.bf16.msra.mxu0 0
  %1350 = vmatprep.subr.bf16.mxu0 0
  %1351 = vmatpush1.bf16.msra.mxu0 0
  %1352 = vmatprep.subr.bf16.mxu0 0
  %1353 = vmatpush1.bf16.msra.mxu0 0
  %1354 = vmatprep.subr.bf16.mxu0 0
  %1355 = vmatpush1.bf16.msra.mxu0 0
  %1356 = vmatprep.subr.bf16.mxu0 0
  %1357 = vmatpush1.bf16.msra.mxu0 0
  %1358 = vmatprep.subr.bf16.mxu0 0
  %1359 = vmatpush1.bf16.msra.mxu0 %v1003
  %1360 = vmatprep.subr.bf16.mxu0 0
  %1361 = vmatpush2.bf16.msra.mxu0 0
  %1362 = vmatprep.subr.bf16.mxu0 0
  %1363 = vmatpush2.bf16.msra.mxu0 0
  %1364 = vmatprep.subr.bf16.mxu0 0
  %1365 = vmatpush2.bf16.msra.mxu0 0
  %1366 = vmatprep.subr.bf16.mxu0 0
  %1367 = vmatpush2.bf16.msra.mxu0 0
  %1368 = vmatprep.subr.bf16.mxu0 0
  %1369 = vmatpush2.bf16.msra.mxu0 0
  %1370 = vmatprep.subr.bf16.mxu0 0
  %1371 = vmatpush2.bf16.msra.mxu0 0
  %1372 = vmatprep.subr.bf16.mxu0 0
  %1373 = vmatpush2.bf16.msra.mxu0 0
  %1374 = vmatprep.subr.bf16.mxu0 0
  %1375 = vmatpush2.bf16.msra.mxu0 0
  %1376 = vmatprep.mubr.bf16.mxu0 0
  %1377 = vmatmul.mubr.bf16.gmra.mxu0 %v1342
  %v1378 = vpop.f32.mrf.mxu0
  %v1379 = vadd.f32 %v1069, %v1378
  %v1380 = vpop.f32.mrf.mxu0
  %v1381 = vpop.f32.mrf.mxu0
  %v1382 = vpop.f32.mrf.mxu0
  %1383 = vdwg.mxu0
  %v1385 = vsel %vm213, %v956, 0
  %1387 = vmatprep.subr.bf16.mxu0 0
  %1388 = vmatpush1.bf16.msra.mxu0 0
  %1389 = vmatprep.subr.bf16.mxu0 0
  %1390 = vmatpush1.bf16.msra.mxu0 0
  %1391 = vmatprep.subr.bf16.mxu0 0
  %1392 = vmatpush1.bf16.msra.mxu0 0
  %1393 = vmatprep.subr.bf16.mxu0 0
  %1394 = vmatpush1.bf16.msra.mxu0 0
  %1395 = vmatprep.subr.bf16.mxu0 0
  %1396 = vmatpush1.bf16.msra.mxu0 0
  %1397 = vmatprep.subr.bf16.mxu0 0
  %1398 = vmatpush1.bf16.msra.mxu0 0
  %1399 = vmatprep.subr.bf16.mxu0 0
  %1400 = vmatpush1.bf16.msra.mxu0 0
  %1401 = vmatprep.subr.bf16.mxu0 0
  %1402 = vmatpush1.bf16.msra.mxu0 %v1004
  %1403 = vmatprep.subr.bf16.mxu0 0
  %1404 = vmatpush2.bf16.msra.mxu0 0
  %1405 = vmatprep.subr.bf16.mxu0 0
  %1406 = vmatpush2.bf16.msra.mxu0 0
  %1407 = vmatprep.subr.bf16.mxu0 0
  %1408 = vmatpush2.bf16.msra.mxu0 0
  %1409 = vmatprep.subr.bf16.mxu0 0
  %1410 = vmatpush2.bf16.msra.mxu0 0
  %1411 = vmatprep.subr.bf16.mxu0 0
  %1412 = vmatpush2.bf16.msra.mxu0 0
  %1413 = vmatprep.subr.bf16.mxu0 0
  %1414 = vmatpush2.bf16.msra.mxu0 0
  %1415 = vmatprep.subr.bf16.mxu0 0
  %1416 = vmatpush2.bf16.msra.mxu0 0
  %1417 = vmatprep.subr.bf16.mxu0 0
  %1418 = vmatpush2.bf16.msra.mxu0 0
  %1419 = vmatprep.mubr.bf16.mxu0 0
  %1420 = vmatmul.mubr.bf16.gmra.mxu0 %v1385
  %v1421 = vpop.f32.mrf.mxu0
  %v1422 = vadd.f32 %v1073, %v1421
  %v1423 = vpop.f32.mrf.mxu0
  %v1424 = vpop.f32.mrf.mxu0
  %v1425 = vpop.f32.mrf.mxu0
  %1426 = vdwg.mxu0
  %v1428 = vsel %vm213, %v957, 0
  %1430 = vmatprep.subr.bf16.mxu0 0
  %1431 = vmatpush1.bf16.msra.mxu0 0
  %1432 = vmatprep.subr.bf16.mxu0 0
  %1433 = vmatpush1.bf16.msra.mxu0 0
  %1434 = vmatprep.subr.bf16.mxu0 0
  %1435 = vmatpush1.bf16.msra.mxu0 0
  %1436 = vmatprep.subr.bf16.mxu0 0
  %1437 = vmatpush1.bf16.msra.mxu0 0
  %1438 = vmatprep.subr.bf16.mxu0 0
  %1439 = vmatpush1.bf16.msra.mxu0 0
  %1440 = vmatprep.subr.bf16.mxu0 0
  %1441 = vmatpush1.bf16.msra.mxu0 0
  %1442 = vmatprep.subr.bf16.mxu0 0
  %1443 = vmatpush1.bf16.msra.mxu0 0
  %1444 = vmatprep.subr.bf16.mxu0 0
  %1445 = vmatpush1.bf16.msra.mxu0 %v1005
  %1446 = vmatprep.subr.bf16.mxu0 0
  %1447 = vmatpush2.bf16.msra.mxu0 0
  %1448 = vmatprep.subr.bf16.mxu0 0
  %1449 = vmatpush2.bf16.msra.mxu0 0
  %1450 = vmatprep.subr.bf16.mxu0 0
  %1451 = vmatpush2.bf16.msra.mxu0 0
  %1452 = vmatprep.subr.bf16.mxu0 0
  %1453 = vmatpush2.bf16.msra.mxu0 0
  %1454 = vmatprep.subr.bf16.mxu0 0
  %1455 = vmatpush2.bf16.msra.mxu0 0
  %1456 = vmatprep.subr.bf16.mxu0 0
  %1457 = vmatpush2.bf16.msra.mxu0 0
  %1458 = vmatprep.subr.bf16.mxu0 0
  %1459 = vmatpush2.bf16.msra.mxu0 0
  %1460 = vmatprep.subr.bf16.mxu0 0
  %1461 = vmatpush2.bf16.msra.mxu0 0
  %1462 = vmatprep.mubr.bf16.mxu0 0
  %1463 = vmatmul.mubr.bf16.gmra.mxu0 %v1428
  %v1464 = vpop.f32.mrf.mxu0
  %v1465 = vadd.f32 %v1077, %v1464
  %v1466 = vpop.f32.mrf.mxu0
  %v1467 = vpop.f32.mrf.mxu0
  %v1468 = vpop.f32.mrf.mxu0
  %1469 = vdwg.mxu0
  %v1471 = vsel %vm213, %v958, 0
  %1473 = vmatprep.subr.bf16.mxu0 0
  %1474 = vmatpush1.bf16.msra.mxu0 0
  %1475 = vmatprep.subr.bf16.mxu0 0
  %1476 = vmatpush1.bf16.msra.mxu0 0
  %1477 = vmatprep.subr.bf16.mxu0 0
  %1478 = vmatpush1.bf16.msra.mxu0 0
  %1479 = vmatprep.subr.bf16.mxu0 0
  %1480 = vmatpush1.bf16.msra.mxu0 0
  %1481 = vmatprep.subr.bf16.mxu0 0
  %1482 = vmatpush1.bf16.msra.mxu0 0
  %1483 = vmatprep.subr.bf16.mxu0 0
  %1484 = vmatpush1.bf16.msra.mxu0 0
  %1485 = vmatprep.subr.bf16.mxu0 0
  %1486 = vmatpush1.bf16.msra.mxu0 0
  %1487 = vmatprep.subr.bf16.mxu0 0
  %1488 = vmatpush1.bf16.msra.mxu0 %v1006
  %1489 = vmatprep.subr.bf16.mxu0 0
  %1490 = vmatpush2.bf16.msra.mxu0 0
  %1491 = vmatprep.subr.bf16.mxu0 0
  %1492 = vmatpush2.bf16.msra.mxu0 0
  %1493 = vmatprep.subr.bf16.mxu0 0
  %1494 = vmatpush2.bf16.msra.mxu0 0
  %1495 = vmatprep.subr.bf16.mxu0 0
  %1496 = vmatpush2.bf16.msra.mxu0 0
  %1497 = vmatprep.subr.bf16.mxu0 0
  %1498 = vmatpush2.bf16.msra.mxu0 0
  %1499 = vmatprep.subr.bf16.mxu0 0
  %1500 = vmatpush2.bf16.msra.mxu0 0
  %1501 = vmatprep.subr.bf16.mxu0 0
  %1502 = vmatpush2.bf16.msra.mxu0 0
  %1503 = vmatprep.subr.bf16.mxu0 0
  %1504 = vmatpush2.bf16.msra.mxu0 0
  %1505 = vmatprep.mubr.bf16.mxu0 0
  %1506 = vmatmul.mubr.bf16.gmra.mxu0 %v1471
  %v1507 = vpop.f32.mrf.mxu0
  %v1508 = vadd.f32 %v1081, %v1507
  %v1509 = vpop.f32.mrf.mxu0
  %v1510 = vpop.f32.mrf.mxu0
  %v1511 = vpop.f32.mrf.mxu0
  %1512 = vdwg.mxu0
  %v1514 = vsel %vm213, %v959, 0
  %1516 = vmatprep.subr.bf16.mxu0 0
  %1517 = vmatpush1.bf16.msra.mxu0 0
  %1518 = vmatprep.subr.bf16.mxu0 0
  %1519 = vmatpush1.bf16.msra.mxu0 0
  %1520 = vmatprep.subr.bf16.mxu0 0
  %1521 = vmatpush1.bf16.msra.mxu0 0
  %1522 = vmatprep.subr.bf16.mxu0 0
  %1523 = vmatpush1.bf16.msra.mxu0 0
  %1524 = vmatprep.subr.bf16.mxu0 0
  %1525 = vmatpush1.bf16.msra.mxu0 0
  %1526 = vmatprep.subr.bf16.mxu0 0
  %1527 = vmatpush1.bf16.msra.mxu0 0
  %1528 = vmatprep.subr.bf16.mxu0 0
  %1529 = vmatpush1.bf16.msra.mxu0 0
  %1530 = vmatprep.subr.bf16.mxu0 0
  %1531 = vmatpush1.bf16.msra.mxu0 %v1007
  %1532 = vmatprep.subr.bf16.mxu0 0
  %1533 = vmatpush2.bf16.msra.mxu0 0
  %1534 = vmatprep.subr.bf16.mxu0 0
  %1535 = vmatpush2.bf16.msra.mxu0 0
  %1536 = vmatprep.subr.bf16.mxu0 0
  %1537 = vmatpush2.bf16.msra.mxu0 0
  %1538 = vmatprep.subr.bf16.mxu0 0
  %1539 = vmatpush2.bf16.msra.mxu0 0
  %1540 = vmatprep.subr.bf16.mxu0 0
  %1541 = vmatpush2.bf16.msra.mxu0 0
  %1542 = vmatprep.subr.bf16.mxu0 0
  %1543 = vmatpush2.bf16.msra.mxu0 0
  %1544 = vmatprep.subr.bf16.mxu0 0
  %1545 = vmatpush2.bf16.msra.mxu0 0
  %1546 = vmatprep.subr.bf16.mxu0 0
  %1547 = vmatpush2.bf16.msra.mxu0 0
  %1548 = vmatprep.mubr.bf16.mxu0 0
  %1549 = vmatmul.mubr.bf16.gmra.mxu0 %v1514
  %v1550 = vpop.f32.mrf.mxu0
  %v1551 = vadd.f32 %v1085, %v1550
  %v1552 = vpop.f32.mrf.mxu0
  %v1553 = vpop.f32.mrf.mxu0
  %v1554 = vpop.f32.mrf.mxu0
  %1555 = vdwg.mxu0
  %v1557 = vsel %vm213, %v960, 0
  %1559 = vmatprep.subr.bf16.mxu0 0
  %1560 = vmatpush1.bf16.msra.mxu0 0
  %1561 = vmatprep.subr.bf16.mxu0 0
  %1562 = vmatpush1.bf16.msra.mxu0 0
  %1563 = vmatprep.subr.bf16.mxu0 0
  %1564 = vmatpush1.bf16.msra.mxu0 0
  %1565 = vmatprep.subr.bf16.mxu0 0
  %1566 = vmatpush1.bf16.msra.mxu0 0
  %1567 = vmatprep.subr.bf16.mxu0 0
  %1568 = vmatpush1.bf16.msra.mxu0 0
  %1569 = vmatprep.subr.bf16.mxu0 0
  %1570 = vmatpush1.bf16.msra.mxu0 0
  %1571 = vmatprep.subr.bf16.mxu0 0
  %1572 = vmatpush1.bf16.msra.mxu0 0
  %1573 = vmatprep.subr.bf16.mxu0 0
  %1574 = vmatpush1.bf16.msra.mxu0 %v1008
  %1575 = vmatprep.subr.bf16.mxu0 0
  %1576 = vmatpush2.bf16.msra.mxu0 0
  %1577 = vmatprep.subr.bf16.mxu0 0
  %1578 = vmatpush2.bf16.msra.mxu0 0
  %1579 = vmatprep.subr.bf16.mxu0 0
  %1580 = vmatpush2.bf16.msra.mxu0 0
  %1581 = vmatprep.subr.bf16.mxu0 0
  %1582 = vmatpush2.bf16.msra.mxu0 0
  %1583 = vmatprep.subr.bf16.mxu0 0
  %1584 = vmatpush2.bf16.msra.mxu0 0
  %1585 = vmatprep.subr.bf16.mxu0 0
  %1586 = vmatpush2.bf16.msra.mxu0 0
  %1587 = vmatprep.subr.bf16.mxu0 0
  %1588 = vmatpush2.bf16.msra.mxu0 0
  %1589 = vmatprep.subr.bf16.mxu0 0
  %1590 = vmatpush2.bf16.msra.mxu0 0
  %1591 = vmatprep.mubr.bf16.mxu0 0
  %1592 = vmatmul.mubr.bf16.gmra.mxu0 %v1557
  %v1593 = vpop.f32.mrf.mxu0
  %v1594 = vadd.f32 %v1089, %v1593
  %v1595 = vpop.f32.mrf.mxu0
  %v1596 = vpop.f32.mrf.mxu0
  %v1597 = vpop.f32.mrf.mxu0
  %1598 = vdwg.mxu0
  %v1600 = vsel %vm213, %v961, 0
  %1602 = vmatprep.subr.bf16.mxu0 0
  %1603 = vmatpush1.bf16.msra.mxu0 0
  %1604 = vmatprep.subr.bf16.mxu0 0
  %1605 = vmatpush1.bf16.msra.mxu0 0
  %1606 = vmatprep.subr.bf16.mxu0 0
  %1607 = vmatpush1.bf16.msra.mxu0 0
  %1608 = vmatprep.subr.bf16.mxu0 0
  %1609 = vmatpush1.bf16.msra.mxu0 0
  %1610 = vmatprep.subr.bf16.mxu0 0
  %1611 = vmatpush1.bf16.msra.mxu0 0
  %1612 = vmatprep.subr.bf16.mxu0 0
  %1613 = vmatpush1.bf16.msra.mxu0 0
  %1614 = vmatprep.subr.bf16.mxu0 0
  %1615 = vmatpush1.bf16.msra.mxu0 0
  %1616 = vmatprep.subr.bf16.mxu0 0
  %1617 = vmatpush1.bf16.msra.mxu0 %v1009
  %1618 = vmatprep.subr.bf16.mxu0 0
  %1619 = vmatpush2.bf16.msra.mxu0 0
  %1620 = vmatprep.subr.bf16.mxu0 0
  %1621 = vmatpush2.bf16.msra.mxu0 0
  %1622 = vmatprep.subr.bf16.mxu0 0
  %1623 = vmatpush2.bf16.msra.mxu0 0
  %1624 = vmatprep.subr.bf16.mxu0 0
  %1625 = vmatpush2.bf16.msra.mxu0 0
  %1626 = vmatprep.subr.bf16.mxu0 0
  %1627 = vmatpush2.bf16.msra.mxu0 0
  %1628 = vmatprep.subr.bf16.mxu0 0
  %1629 = vmatpush2.bf16.msra.mxu0 0
  %1630 = vmatprep.subr.bf16.mxu0 0
  %1631 = vmatpush2.bf16.msra.mxu0 0
  %1632 = vmatprep.subr.bf16.mxu0 0
  %1633 = vmatpush2.bf16.msra.mxu0 0
  %1634 = vmatprep.mubr.bf16.mxu0 0
  %1635 = vmatmul.mubr.bf16.gmra.mxu0 %v1600
  %v1636 = vpop.f32.mrf.mxu0
  %v1637 = vadd.f32 %v1093, %v1636
  %v1638 = vpop.f32.mrf.mxu0
  %v1639 = vpop.f32.mrf.mxu0
  %v1640 = vpop.f32.mrf.mxu0
  %1641 = vdwg.mxu0
  %v1643 = vsel %vm213, %v962, 0
  %1645 = vmatprep.subr.bf16.mxu0 0
  %1646 = vmatpush1.bf16.msra.mxu0 0
  %1647 = vmatprep.subr.bf16.mxu0 0
  %1648 = vmatpush1.bf16.msra.mxu0 0
  %1649 = vmatprep.subr.bf16.mxu0 0
  %1650 = vmatpush1.bf16.msra.mxu0 0
  %1651 = vmatprep.subr.bf16.mxu0 0
  %1652 = vmatpush1.bf16.msra.mxu0 0
  %1653 = vmatprep.subr.bf16.mxu0 0
  %1654 = vmatpush1.bf16.msra.mxu0 0
  %1655 = vmatprep.subr.bf16.mxu0 0
  %1656 = vmatpush1.bf16.msra.mxu0 0
  %1657 = vmatprep.subr.bf16.mxu0 0
  %1658 = vmatpush1.bf16.msra.mxu0 0
  %1659 = vmatprep.subr.bf16.mxu0 0
  %1660 = vmatpush1.bf16.msra.mxu0 %v1010
  %1661 = vmatprep.subr.bf16.mxu0 0
  %1662 = vmatpush2.bf16.msra.mxu0 0
  %1663 = vmatprep.subr.bf16.mxu0 0
  %1664 = vmatpush2.bf16.msra.mxu0 0
  %1665 = vmatprep.subr.bf16.mxu0 0
  %1666 = vmatpush2.bf16.msra.mxu0 0
  %1667 = vmatprep.subr.bf16.mxu0 0
  %1668 = vmatpush2.bf16.msra.mxu0 0
  %1669 = vmatprep.subr.bf16.mxu0 0
  %1670 = vmatpush2.bf16.msra.mxu0 0
  %1671 = vmatprep.subr.bf16.mxu0 0
  %1672 = vmatpush2.bf16.msra.mxu0 0
  %1673 = vmatprep.subr.bf16.mxu0 0
  %1674 = vmatpush2.bf16.msra.mxu0 0
  %1675 = vmatprep.subr.bf16.mxu0 0
  %1676 = vmatpush2.bf16.msra.mxu0 0
  %1677 = vmatprep.mubr.bf16.mxu0 0
  %1678 = vmatmul.mubr.bf16.gmra.mxu0 %v1643
  %v1679 = vpop.f32.mrf.mxu0
  %v1680 = vadd.f32 %v1097, %v1679
  %v1681 = vpop.f32.mrf.mxu0
  %v1682 = vpop.f32.mrf.mxu0
  %v1683 = vpop.f32.mrf.mxu0
  %1684 = vdwg.mxu0
  %v1686 = vsel %vm213, %v963, 0
  %1688 = vmatprep.subr.bf16.mxu0 0
  %1689 = vmatpush1.bf16.msra.mxu0 0
  %1690 = vmatprep.subr.bf16.mxu0 0
  %1691 = vmatpush1.bf16.msra.mxu0 0
  %1692 = vmatprep.subr.bf16.mxu0 0
  %1693 = vmatpush1.bf16.msra.mxu0 0
  %1694 = vmatprep.subr.bf16.mxu0 0
  %1695 = vmatpush1.bf16.msra.mxu0 0
  %1696 = vmatprep.subr.bf16.mxu0 0
  %1697 = vmatpush1.bf16.msra.mxu0 0
  %1698 = vmatprep.subr.bf16.mxu0 0
  %1699 = vmatpush1.bf16.msra.mxu0 0
  %1700 = vmatprep.subr.bf16.mxu0 0
  %1701 = vmatpush1.bf16.msra.mxu0 0
  %1702 = vmatprep.subr.bf16.mxu0 0
  %1703 = vmatpush1.bf16.msra.mxu0 %v1011
  %1704 = vmatprep.subr.bf16.mxu0 0
  %1705 = vmatpush2.bf16.msra.mxu0 0
  %1706 = vmatprep.subr.bf16.mxu0 0
  %1707 = vmatpush2.bf16.msra.mxu0 0
  %1708 = vmatprep.subr.bf16.mxu0 0
  %1709 = vmatpush2.bf16.msra.mxu0 0
  %1710 = vmatprep.subr.bf16.mxu0 0
  %1711 = vmatpush2.bf16.msra.mxu0 0
  %1712 = vmatprep.subr.bf16.mxu0 0
  %1713 = vmatpush2.bf16.msra.mxu0 0
  %1714 = vmatprep.subr.bf16.mxu0 0
  %1715 = vmatpush2.bf16.msra.mxu0 0
  %1716 = vmatprep.subr.bf16.mxu0 0
  %1717 = vmatpush2.bf16.msra.mxu0 0
  %1718 = vmatprep.subr.bf16.mxu0 0
  %1719 = vmatpush2.bf16.msra.mxu0 0
  %1720 = vmatprep.mubr.bf16.mxu0 0
  %1721 = vmatmul.mubr.bf16.gmra.mxu0 %v1686
  %v1722 = vpop.f32.mrf.mxu0
  %v1723 = vadd.f32 %v1101, %v1722
  %v1724 = vpop.f32.mrf.mxu0
  %v1725 = vpop.f32.mrf.mxu0
  %v1726 = vpop.f32.mrf.mxu0
  %1727 = vdwg.mxu0
  %v1729 = vsel %vm213, %v964, 0
  %1731 = vmatprep.subr.bf16.mxu0 0
  %1732 = vmatpush1.bf16.msra.mxu0 0
  %1733 = vmatprep.subr.bf16.mxu0 0
  %1734 = vmatpush1.bf16.msra.mxu0 0
  %1735 = vmatprep.subr.bf16.mxu0 0
  %1736 = vmatpush1.bf16.msra.mxu0 0
  %1737 = vmatprep.subr.bf16.mxu0 0
  %1738 = vmatpush1.bf16.msra.mxu0 0
  %1739 = vmatprep.subr.bf16.mxu0 0
  %1740 = vmatpush1.bf16.msra.mxu0 0
  %1741 = vmatprep.subr.bf16.mxu0 0
  %1742 = vmatpush1.bf16.msra.mxu0 0
  %1743 = vmatprep.subr.bf16.mxu0 0
  %1744 = vmatpush1.bf16.msra.mxu0 0
  %1745 = vmatprep.subr.bf16.mxu0 0
  %1746 = vmatpush1.bf16.msra.mxu0 %v1012
  %1747 = vmatprep.subr.bf16.mxu0 0
  %1748 = vmatpush2.bf16.msra.mxu0 0
  %1749 = vmatprep.subr.bf16.mxu0 0
  %1750 = vmatpush2.bf16.msra.mxu0 0
  %1751 = vmatprep.subr.bf16.mxu0 0
  %1752 = vmatpush2.bf16.msra.mxu0 0
  %1753 = vmatprep.subr.bf16.mxu0 0
  %1754 = vmatpush2.bf16.msra.mxu0 0
  %1755 = vmatprep.subr.bf16.mxu0 0
  %1756 = vmatpush2.bf16.msra.mxu0 0
  %1757 = vmatprep.subr.bf16.mxu0 0
  %1758 = vmatpush2.bf16.msra.mxu0 0
  %1759 = vmatprep.subr.bf16.mxu0 0
  %1760 = vmatpush2.bf16.msra.mxu0 0
  %1761 = vmatprep.subr.bf16.mxu0 0
  %1762 = vmatpush2.bf16.msra.mxu0 0
  %1763 = vmatprep.mubr.bf16.mxu0 0
  %1764 = vmatmul.mubr.bf16.gmra.mxu0 %v1729
  %v1765 = vpop.f32.mrf.mxu0
  %v1766 = vadd.f32 %v1105, %v1765
  %v1767 = vpop.f32.mrf.mxu0
  %v1768 = vpop.f32.mrf.mxu0
  %v1769 = vpop.f32.mrf.mxu0
  %1770 = vdwg.mxu0
  %v1772 = vsel %vm213, %v965, 0
  %1774 = vmatprep.subr.bf16.mxu0 0
  %1775 = vmatpush1.bf16.msra.mxu0 0
  %1776 = vmatprep.subr.bf16.mxu0 0
  %1777 = vmatpush1.bf16.msra.mxu0 0
  %1778 = vmatprep.subr.bf16.mxu0 0
  %1779 = vmatpush1.bf16.msra.mxu0 0
  %1780 = vmatprep.subr.bf16.mxu0 0
  %1781 = vmatpush1.bf16.msra.mxu0 0
  %1782 = vmatprep.subr.bf16.mxu0 0
  %1783 = vmatpush1.bf16.msra.mxu0 0
  %1784 = vmatprep.subr.bf16.mxu0 0
  %1785 = vmatpush1.bf16.msra.mxu0 0
  %1786 = vmatprep.subr.bf16.mxu0 0
  %1787 = vmatpush1.bf16.msra.mxu0 0
  %1788 = vmatprep.subr.bf16.mxu0 0
  %1789 = vmatpush1.bf16.msra.mxu0 %v1013
  %1790 = vmatprep.subr.bf16.mxu0 0
  %1791 = vmatpush2.bf16.msra.mxu0 0
  %1792 = vmatprep.subr.bf16.mxu0 0
  %1793 = vmatpush2.bf16.msra.mxu0 0
  %1794 = vmatprep.subr.bf16.mxu0 0
  %1795 = vmatpush2.bf16.msra.mxu0 0
  %1796 = vmatprep.subr.bf16.mxu0 0
  %1797 = vmatpush2.bf16.msra.mxu0 0
  %1798 = vmatprep.subr.bf16.mxu0 0
  %1799 = vmatpush2.bf16.msra.mxu0 0
  %1800 = vmatprep.subr.bf16.mxu0 0
  %1801 = vmatpush2.bf16.msra.mxu0 0
  %1802 = vmatprep.subr.bf16.mxu0 0
  %1803 = vmatpush2.bf16.msra.mxu0 0
  %1804 = vmatprep.subr.bf16.mxu0 0
  %1805 = vmatpush2.bf16.msra.mxu0 0
  %1806 = vmatprep.mubr.bf16.mxu0 0
  %1807 = vmatmul.mubr.bf16.gmra.mxu0 %v1772
  %v1808 = vpop.f32.mrf.mxu0
  %v1809 = vadd.f32 %v1109, %v1808
  %v1810 = vpop.f32.mrf.mxu0
  %v1811 = vpop.f32.mrf.mxu0
  %v1812 = vpop.f32.mrf.mxu0
  %1813 = vdwg.mxu0
  %1814 = vst.msk [vmem:[%s5] sm:$0xff] %vm213, %v1164
  %1815 = vst.msk [vmem:[%s5 + $0x8] sm:$0xff] %vm213, %v1207
  %1816 = vst.msk [vmem:[%s5 + $0x10] sm:$0xff] %vm213, %v1250
  %1817 = vst.msk [vmem:[%s5 + $0x18] sm:$0xff] %vm213, %v1293
  %1818 = vst.msk [vmem:[%s5 + $0x20] sm:$0xff] %vm213, %v1336
  %1819 = vst.msk [vmem:[%s5 + $0x28] sm:$0xff] %vm213, %v1379
  %1820 = vst.msk [vmem:[%s5 + $0x30] sm:$0xff] %vm213, %v1422
  %1821 = vst.msk [vmem:[%s5 + $0x38] sm:$0xff] %vm213, %v1465
  %1822 = vst.msk [vmem:[%s5 + $0x40] sm:$0xff] %vm213, %v1508
  %1823 = vst.msk [vmem:[%s5 + $0x48] sm:$0xff] %vm213, %v1551
  %1824 = vst.msk [vmem:[%s5 + $0x50] sm:$0xff] %vm213, %v1594
  %1825 = vst.msk [vmem:[%s5 + $0x58] sm:$0xff] %vm213, %v1637
  %1826 = vst.msk [vmem:[%s5 + $0x60] sm:$0xff] %vm213, %v1680
  %1827 = vst.msk [vmem:[%s5 + $0x68] sm:$0xff] %vm213, %v1723
  %1828 = vst.msk [vmem:[%s5 + $0x70] sm:$0xff] %vm213, %v1766
  %1829 = vst.msk [vmem:[%s5 + $0x78] sm:$0xff] %vm213, %v1809
  // Predicated region
  $region22: #{dpad_forward.8} parent=0 // pred_check
    _
  $region23: #{dpad_forward.8} parent=0 // pred_check_branch
    %1831 = sbr.rel (0) target = $region25
  $region24: #{dpad_forward.8} parent=0 // pred_region
    _
  $region25: #{dpad_forward.8} parent=0 // pred_fallthru
    _
  // Predicated region
  $region26: #{dpad_forward.8} parent=0 // pred_check
    _
  $region27: #{dpad_forward.8} parent=0 // pred_check_branch
    %1833 = sbr.rel (0) target = $region29
  $region28: #{dpad_forward.8} parent=0 // pred_region
    _
  $region29: #{dpad_forward.8} parent=0 // pred_fallthru
    _

// kernel: dpad_forward.9
$region0: #{dpad_forward.9}
  #allocation0 [shape = 'u32[]', space=smem, size = 0x4, offset = 0x4, fixed_abs, tag = 'smem constant byte address 0x4 - core index']
  #allocation1 [shape = 'u32[144,128]{1,0:T(1,128)}', space=vmem, size = 0x12000, scoped, tag = 'internal scratch']
  %s0 = inlined_call_operand.vmem [shape: f32[8,16,16], index: 0, kind: input, shape index: {}]
  %s1 = inlined_call_operand.vmem [shape: f32[16,16], index: 1, kind: input, shape index: {}]
  %s2 = inlined_call_operand.vmem [shape: f32[1,16], index: 2, kind: input, shape index: {}]
  %s3 = inlined_call_operand.vmem [shape: f32[16,16], index: 3, kind: input, shape index: {}]
  %s4 = inlined_call_operand.vmem [shape: f32[1,16], index: 4, kind: input, shape index: {}]
  %s5 = inlined_call_operand.vmem [shape: f32[16,8], index: 5, kind: input, shape index: {}]
  %s6 = inlined_call_operand.vmem [shape: f32[1,8], index: 6, kind: input, shape index: {}]
  %s7 = inlined_call_operand.vmem [shape: f32[2,4,1,8], index: 7, kind: output, shape index: {}]
  %s8 = sld [smem:[#allocation0]]
  $region61: #{dpad_forward.9} parent=0
    _
  %s10 = ssub.s32 1, %s8
  %s11 = scalar_select 0, %s10, %s8
  loop: start=0, step=1, limit=4
  $region2: #{dpad_forward.9} parent=0 // loop_pre_header
    _
  $region3: #{dpad_forward.9} parent=0 // loop_header
    %s13 = sphi 0, %s17
    %p14 = scmp.ge.s32.totalorder %s13, 4
    %s23 = sphi 0, %s25
    %s26 = sphi 0, %s23
    %s27 = sphi 0, %s26
    %s43 = sphi 0, %s27
    %s47 = sphi 0, %s47
    %s49 = sphi 0, %s47
    %s50 = sphi 0, %s49
    %s64 = sphi 0, %s50
    %s68 = sphi 0, %s68
    %s70 = sphi 0, %s68
    %s71 = sphi 0, %s70
    %s85 = sphi 0, %s71
    %s89 = sphi 0, %s89
    %s91 = sphi 0, %s89
    %s92 = sphi 0, %s91
    %s106 = sphi 0, %s92
    %s110 = sphi 0, %s110
    %s112 = sphi 0, %s110
    %s113 = sphi 0, %s112
    %s127 = sphi 0, %s113
    %s131 = sphi 0, %s131
    %s133 = sphi 0, %s131
    %s134 = sphi 0, %s133
    %s148 = sphi 0, %s134
    %s152 = sphi 0, %s152
    %s154 = sphi 0, %s152
    %s155 = sphi 0, %s154
    %s169 = sphi 0, %s155
    %s175 = sphi 0, %s177
    %s178 = sphi 0, %s175
    %s179 = sphi 0, %s178
    %s195 = sphi 0, %s179
  $region4: #{dpad_forward.9} parent=0 // loop_header_branch
    %16 = sbr.rel (%p14) target = $region8
  $region5: #{dpad_forward.9} parent=0 // loop_body
    %s18 = ssub.s32 %s13, 1
    %s19 = ssub.s32 %s13, 2
    %s20 = sadd.s32 %s13, 1
    %s21 = ssub.s32 %s13, %s20
    %p22 = scmp.eq.s32.totalorder %s21, 0
    %s24 = sadd.s32 %s23, 1
    %s25 = scalar_select %p22, %s23, %s24
    %p28 = pneg %p22
    %p29 = scmp.eq.s32.totalorder %s13, 1
    %p30 = por %p28, %p29
    %p31 = scmp.ne.s32.totalorder %s23, %s26
    %p32 = scmp.eq.s32.totalorder %s13, 0
    %p33 = por %p31, %p32
    %p34 = scmp.ne.s32.totalorder %s23, %s26
    %p35 = scmp.eq.s32.totalorder %s18, 1
    %p36 = por %p34, %p35
    %p37 = scmp.ne.s32.totalorder %s26, %s27
    %p38 = scmp.eq.s32.totalorder %s18, 0
    %p39 = por %p37, %p38
    %p40 = scmp.ne.s32.totalorder %s26, %s27
    %p41 = scmp.eq.s32.totalorder %s19, 1
    %p42 = por %p40, %p41
    %p44 = scmp.ne.s32.totalorder %s27, %s43
    %p45 = scmp.eq.s32.totalorder %s19, 0
    %p46 = por %p44, %p45
    %s48 = sadd.s32 %s47, 1
    %p51 = scmp.eq.s32.totalorder %s13, 1
    %p52 = scmp.ne.s32.totalorder %s47, %s49
    %p53 = scmp.eq.s32.totalorder %s13, 0
    %p54 = por %p52, %p53
    %p55 = scmp.ne.s32.totalorder %s47, %s49
    %p56 = scmp.eq.s32.totalorder %s18, 1
    %p57 = por %p55, %p56
    %p58 = scmp.ne.s32.totalorder %s49, %s50
    %p59 = scmp.eq.s32.totalorder %s18, 0
    %p60 = por %p58, %p59
    %p61 = scmp.ne.s32.totalorder %s49, %s50
    %p62 = scmp.eq.s32.totalorder %s19, 1
    %p63 = por %p61, %p62
    %p65 = scmp.ne.s32.totalorder %s50, %s64
    %p66 = scmp.eq.s32.totalorder %s19, 0
    %p67 = por %p65, %p66
    %s69 = sadd.s32 %s68, 1
    %p72 = scmp.eq.s32.totalorder %s13, 1
    %p73 = scmp.ne.s32.totalorder %s68, %s70
    %p74 = scmp.eq.s32.totalorder %s13, 0
    %p75 = por %p73, %p74
    %p76 = scmp.ne.s32.totalorder %s68, %s70
    %p77 = scmp.eq.s32.totalorder %s18, 1
    %p78 = por %p76, %p77
    %p79 = scmp.ne.s32.totalorder %s70, %s71
    %p80 = scmp.eq.s32.totalorder %s18, 0
    %p81 = por %p79, %p80
    %p82 = scmp.ne.s32.totalorder %s70, %s71
    %p83 = scmp.eq.s32.totalorder %s19, 1
    %p84 = por %p82, %p83
    %p86 = scmp.ne.s32.totalorder %s71, %s85
    %p87 = scmp.eq.s32.totalorder %s19, 0
    %p88 = por %p86, %p87
    %s90 = sadd.s32 %s89, 1
    %p93 = scmp.eq.s32.totalorder %s13, 1
    %p94 = scmp.ne.s32.totalorder %s89, %s91
    %p95 = scmp.eq.s32.totalorder %s13, 0
    %p96 = por %p94, %p95
    %p97 = scmp.ne.s32.totalorder %s89, %s91
    %p98 = scmp.eq.s32.totalorder %s18, 1
    %p99 = por %p97, %p98
    %p100 = scmp.ne.s32.totalorder %s91, %s92
    %p101 = scmp.eq.s32.totalorder %s18, 0
    %p102 = por %p100, %p101
    %p103 = scmp.ne.s32.totalorder %s91, %s92
    %p104 = scmp.eq.s32.totalorder %s19, 1
    %p105 = por %p103, %p104
    %p107 = scmp.ne.s32.totalorder %s92, %s106
    %p108 = scmp.eq.s32.totalorder %s19, 0
    %p109 = por %p107, %p108
    %s111 = sadd.s32 %s110, 1
    %p114 = scmp.eq.s32.totalorder %s13, 1
    %p115 = scmp.ne.s32.totalorder %s110, %s112
    %p116 = scmp.eq.s32.totalorder %s13, 0
    %p117 = por %p115, %p116
    %p118 = scmp.ne.s32.totalorder %s110, %s112
    %p119 = scmp.eq.s32.totalorder %s18, 1
    %p120 = por %p118, %p119
    %p121 = scmp.ne.s32.totalorder %s112, %s113
    %p122 = scmp.eq.s32.totalorder %s18, 0
    %p123 = por %p121, %p122
    %p124 = scmp.ne.s32.totalorder %s112, %s113
    %p125 = scmp.eq.s32.totalorder %s19, 1
    %p126 = por %p124, %p125
    %p128 = scmp.ne.s32.totalorder %s113, %s127
    %p129 = scmp.eq.s32.totalorder %s19, 0
    %p130 = por %p128, %p129
    %s132 = sadd.s32 %s131, 1
    %p135 = scmp.eq.s32.totalorder %s13, 1
    %p136 = scmp.ne.s32.totalorder %s131, %s133
    %p137 = scmp.eq.s32.totalorder %s13, 0
    %p138 = por %p136, %p137
    %p139 = scmp.ne.s32.totalorder %s131, %s133
    %p140 = scmp.eq.s32.totalorder %s18, 1
    %p141 = por %p139, %p140
    %p142 = scmp.ne.s32.totalorder %s133, %s134
    %p143 = scmp.eq.s32.totalorder %s18, 0
    %p144 = por %p142, %p143
    %p145 = scmp.ne.s32.totalorder %s133, %s134
    %p146 = scmp.eq.s32.totalorder %s19, 1
    %p147 = por %p145, %p146
    %p149 = scmp.ne.s32.totalorder %s134, %s148
    %p150 = scmp.eq.s32.totalorder %s19, 0
    %p151 = por %p149, %p150
    %s153 = sadd.s32 %s152, 1
    %p156 = scmp.eq.s32.totalorder %s13, 1
    %p157 = scmp.ne.s32.totalorder %s152, %s154
    %p158 = scmp.eq.s32.totalorder %s13, 0
    %p159 = por %p157, %p158
    %p160 = scmp.ne.s32.totalorder %s152, %s154
    %p161 = scmp.eq.s32.totalorder %s18, 1
    %p162 = por %p160, %p161
    %p163 = scmp.ne.s32.totalorder %s154, %s155
    %p164 = scmp.eq.s32.totalorder %s18, 0
    %p165 = por %p163, %p164
    %p166 = scmp.ne.s32.totalorder %s154, %s155
    %p167 = scmp.eq.s32.totalorder %s19, 1
    %p168 = por %p166, %p167
    %p170 = scmp.ne.s32.totalorder %s155, %s169
    %p171 = scmp.eq.s32.totalorder %s19, 0
    %p172 = por %p170, %p171
    %s173 = ssub.s32 %s13, %s20
    %p174 = scmp.eq.s32.totalorder %s173, 0
    %s176 = sadd.s32 %s175, 1
    %s177 = scalar_select %p174, %s175, %s176
    %p180 = pneg %p174
    %p181 = scmp.eq.s32.totalorder %s13, 1
    %p182 = por %p180, %p181
    %p183 = scmp.ne.s32.totalorder %s175, %s178
    %p184 = scmp.eq.s32.totalorder %s13, 0
    %p185 = por %p183, %p184
    %p186 = scmp.ne.s32.totalorder %s175, %s178
    %p187 = scmp.eq.s32.totalorder %s18, 1
    %p188 = por %p186, %p187
    %p189 = scmp.ne.s32.totalorder %s178, %s179
    %p190 = scmp.eq.s32.totalorder %s18, 0
    %p191 = por %p189, %p190
    %p192 = scmp.ne.s32.totalorder %s178, %s179
    %p193 = scmp.eq.s32.totalorder %s19, 1
    %p194 = por %p192, %p193
    %p196 = scmp.ne.s32.totalorder %s179, %s195
    %p197 = scmp.eq.s32.totalorder %s19, 0
    %p198 = por %p196, %p197
    %p199 = scmp.le.s32.totalorder 1, %s13
    %p200 = scmp.lt.s32.totalorder %s13, 3
    %p201 = pnand %p199, %p200
    %p202 = pneg %p201
    // Predicated region
    $region9: #{dpad_forward.9} parent=5 // pred_check
      _
    $region10: #{dpad_forward.9} parent=5 // pred_check_branch
      %204 = sbr.rel (%p201) target = $region12
    $region11: #{dpad_forward.9} parent=5 // pred_region
      %s205 = ssub.s32 %s13, 1
      // Predicated region
      $region13: #{dpad_forward.9} parent=11 // pred_check
        %p206 = pneg %p60
      $region14: #{dpad_forward.9} parent=11 // pred_check_branch
        %208 = sbr.rel (%p206) target = $region16
      $region15: #{dpad_forward.9} parent=11 // pred_region
        _
      $region16: #{dpad_forward.9} parent=11 // pred_fallthru
        _
      // Predicated region
      $region17: #{dpad_forward.9} parent=11 // pred_check
        %p209 = pneg %p81
      $region18: #{dpad_forward.9} parent=11 // pred_check_branch
        %211 = sbr.rel (%p209) target = $region20
      $region19: #{dpad_forward.9} parent=11 // pred_region
        _
      $region20: #{dpad_forward.9} parent=11 // pred_fallthru
        _
      // Predicated region
      $region21: #{dpad_forward.9} parent=11 // pred_check
        %p212 = pneg %p102
      $region22: #{dpad_forward.9} parent=11 // pred_check_branch
        %214 = sbr.rel (%p212) target = $region24
      $region23: #{dpad_forward.9} parent=11 // pred_region
        _
      $region24: #{dpad_forward.9} parent=11 // pred_fallthru
        _
      // Predicated region
      $region25: #{dpad_forward.9} parent=11 // pred_check
        %p215 = pneg %p123
      $region26: #{dpad_forward.9} parent=11 // pred_check_branch
        %217 = sbr.rel (%p215) target = $region28
      $region27: #{dpad_forward.9} parent=11 // pred_region
        _
      $region28: #{dpad_forward.9} parent=11 // pred_fallthru
        _
      // Predicated region
      $region29: #{dpad_forward.9} parent=11 // pred_check
        %p218 = pneg %p144
      $region30: #{dpad_forward.9} parent=11 // pred_check_branch
        %220 = sbr.rel (%p218) target = $region32
      $region31: #{dpad_forward.9} parent=11 // pred_region
        _
      $region32: #{dpad_forward.9} parent=11 // pred_fallthru
        _
      // Predicated region
      $region33: #{dpad_forward.9} parent=11 // pred_check
        %p221 = pneg %p165
      $region34: #{dpad_forward.9} parent=11 // pred_check_branch
        %223 = sbr.rel (%p221) target = $region36
      $region35: #{dpad_forward.9} parent=11 // pred_region
        _
      $region36: #{dpad_forward.9} parent=11 // pred_fallthru
        _
    $region12: #{dpad_forward.9} parent=5 // pred_fallthru
      _
    %p224 = scmp.lt.s32.totalorder %s13, 2
    // Predicated region
    $region37: #{dpad_forward.9} parent=5 // pred_check
      %p225 = pneg %p224
    $region38: #{dpad_forward.9} parent=5 // pred_check_branch
      %227 = sbr.rel (%p225) target = $region40
    $region39: #{dpad_forward.9} parent=5 // pred_region
      // Predicated region
      $region41: #{dpad_forward.9} parent=39 // pred_check
        %p228 = pneg %p33
      $region42: #{dpad_forward.9} parent=39 // pred_check_branch
        %230 = sbr.rel (%p228) target = $region44
      $region43: #{dpad_forward.9} parent=39 // pred_region
        %s231 = smul.u32 4, %s13
        %p232 = scmp.lt.s32.totalorder %s231, 7
        %s233 = scalar_select %p232, %s231, 7
        %s234 = smul.addr %s233, 2
        %s235 = smul.addr %s234, 8
        %s236 = scalar_lea.vmem %s0, %s235
        %s237 = smul.u32 4, %s13
      $region44: #{dpad_forward.9} parent=39 // pred_fallthru
        _
    $region40: #{dpad_forward.9} parent=5 // pred_fallthru
      _
    %p238 = scmp.le.s32.totalorder 1, %s13
    %p239 = scmp.lt.s32.totalorder %s13, 3
    %p240 = pnand %p238, %p239
    %p241 = pneg %p240
    // Predicated region
    $region45: #{dpad_forward.9} parent=5 // pred_check
      _
    $region46: #{dpad_forward.9} parent=5 // pred_check_branch
      %243 = sbr.rel (%p240) target = $region48
    $region47: #{dpad_forward.9} parent=5 // pred_region
      %s244 = ssub.s32 %s13, 1
      %s245 = smul.u32 4, %s18
      %p246 = scmp.lt.s32.totalorder %s245, 7
      %s247 = scalar_select %p246, %s245, 7
      %s248 = smul.addr %s247, 2
      %s249 = smul.addr %s248, 8
      %s250 = scalar_lea.vmem %s0, %s249
      %p251 = pneg %p39
      %p252 = pneg %p36
      %p253 = pneg %p60
      %p254 = pneg %p57
      %p255 = pneg %p81
      %p256 = pneg %p78
      %p257 = pneg %p102
      %p258 = pneg %p99
      %p259 = pneg %p123
      %p260 = pneg %p120
      %p261 = pneg %p144
      %p262 = pneg %p141
      %p263 = pneg %p165
      %p264 = pneg %p162
      %p265 = pneg %p191
      %p266 = pneg %p188
      %p267 = scmp.lt.s32.totalorder %s18, 1
      %s268 = scalar_select %p267, %s18, 1
      %s269 = smul.addr %s268, 4
      %s270 = scalar_lea.vmem %s7, %s269
      %s271 = smul.u32 4, %s18
      %p272 = scmp.lt.s32.totalorder %s271, 7
      %s273 = scalar_select %p272, %s271, 7
      %s274 = smul.addr %s273, 2
      %s275 = smul.addr %s274, 8
      %s276 = scalar_lea.vmem %s0, %s275
      %s277 = smul.u32 4, %s18
      %p278 = scmp.lt.s32.totalorder %s18, 1
      %s279 = scalar_select %p278, %s18, 1
      %s280 = smul.addr %s279, 4
      %s281 = scalar_lea.vmem %s7, %s280
      %v283 = vld [vmem:[%s1] sm:$0xff]
      %v284 = vld [vmem:[%s1 + $0x8] sm:$0xff]
      %v285 = vpack.c.bf16 %v284, %v283
      %v286 = vld [vmem:[%s3] sm:$0xff]
      %v287 = vld [vmem:[%s3 + $0x8] sm:$0xff]
      %v288 = vpack.c.bf16 %v287, %v286
      %v289 = vld [vmem:[%s5] sm:$0xff]
      %v290 = vld [vmem:[%s5 + $0x8] sm:$0xff]
      %v291 = vpack.c.bf16 %v290, %v289
      %v292 = vld [vmem:[%s2] sm:$0x1]
      %v293 = vld [vmem:[%s4] sm:$0x1]
      %v294 = vld [vmem:[%s6] sm:$0x1]
      %v295 = vld [vmem:[%s276] sm:$0xff]
      %v296 = vld [vmem:[%s276 + $0x8] sm:$0xff]
      %v297 = vpack.c.bf16 %v296, %v295
      %vm298 = vcmask 130048
      %v300 = vsel %vm298, %v297, 0
      %302 = vmatprep.subr.bf16.mxu0 0
      %303 = vmatpush1.bf16.xpose.msra.mxu0 0
      %304 = vmatprep.subr.bf16.mxu0 0
      %305 = vmatpush1.bf16.xpose.msra.mxu0 0
      %306 = vmatprep.subr.bf16.mxu0 0
      %307 = vmatpush1.bf16.xpose.msra.mxu0 0
      %308 = vmatprep.subr.bf16.mxu0 0
      %309 = vmatpush1.bf16.xpose.msra.mxu0 0
      %310 = vmatprep.subr.bf16.mxu0 0
      %311 = vmatpush1.bf16.xpose.msra.mxu0 0
      %312 = vmatprep.subr.bf16.mxu0 0
      %313 = vmatpush1.bf16.xpose.msra.mxu0 0
      %314 = vmatprep.subr.bf16.mxu0 0
      %315 = vmatpush1.bf16.xpose.msra.mxu0 0
      %316 = vmatprep.subr.bf16.mxu0 0
      %317 = vmatpush1.bf16.xpose.msra.mxu0 %v300
      %318 = vmatprep.subr.bf16.mxu0 0
      %319 = vmatpush2.bf16.xpose.msra.mxu0 0
      %320 = vmatprep.subr.bf16.mxu0 0
      %321 = vmatpush2.bf16.xpose.msra.mxu0 0
      %322 = vmatprep.subr.bf16.mxu0 0
      %323 = vmatpush2.bf16.xpose.msra.mxu0 0
      %324 = vmatprep.subr.bf16.mxu0 0
      %325 = vmatpush2.bf16.xpose.msra.mxu0 0
      %326 = vmatprep.subr.bf16.mxu0 0
      %327 = vmatpush2.bf16.xpose.msra.mxu0 0
      %328 = vmatprep.subr.bf16.mxu0 0
      %329 = vmatpush2.bf16.xpose.msra.mxu0 0
      %330 = vmatprep.subr.bf16.mxu0 0
      %331 = vmatpush2.bf16.xpose.msra.mxu0 0
      %332 = vmatprep.subr.bf16.mxu0 0
      %333 = vmatpush2.bf16.xpose.msra.mxu0 0
      %334 = vmatprep.mubr.bf16.mxu0 0
      %335 = vmatmul.mubr.bf16.gmra.mxu0 %v300
      %v336 = vpop.f32.mrf.mxu0
      %v337 = vadd.f32 0.0, %v336
      %v338 = vpop.f32.mrf.mxu0
      %v339 = vpop.f32.mrf.mxu0
      %v340 = vadd.f32 0.0, %v339
      %v341 = vpop.f32.mrf.mxu0
      %342 = vdwg.mxu0
      %vm343 = vcmp.gt.f32.partialorder %v337, 0.0
      %vm344 = vcmp.gt.f32.partialorder %v340, 0.0
      %v345 = vmul.f32 %v337, 0.01
      %v346 = vmul.f32 %v340, 0.01
      %v347 = vsel %vm343, %v337, %v345
      %v348 = vsel %vm344, %v340, %v346
      %v349 = vsel %vm298, %v347, -inf
      %350 = vmax.xlane.f32.xlu0 %v349
      %v351 = vpop.xlane.xlu0 %350
      %v352 = vsel %vm298, %v348, -inf
      %353 = vmax.xlane.f32.xlu0 %v352
      %v354 = vpop.xlane.xlu0 %353
      %v355 = vsub.f32 %v347, %v351
      %v356 = vsub.f32 %v348, %v354
      %v357 = vmul.f32 %v355, 1.442695
      %v358 = vpow.pop %v357
      %v359 = vmul.f32 %v356, 1.442695
      %v360 = vpow.pop %v359
      %v361 = vsel %vm298, %v358, 0.0
      %362 = vadd.xlane.f32.xlu0 %v361
      %v363 = vpop.xlane.xlu0 %362
      %v364 = vsel %vm298, %v360, 0.0
      %365 = vadd.xlane.f32.xlu0 %v364
      %v366 = vpop.xlane.xlu0 %365
      %v367 = vrcp.pop %v363
      %v368 = vrcp.pop %v366
      %v369 = vmul.f32 %v358, %v367
      %v370 = vmul.f32 %v360, %v368
      %v371 = vpack.c.bf16 %v370, %v369
      %v373 = vsel %vm298, %v371, 0
      %375 = vmatprep.subr.bf16.mxu0 0
      %376 = vmatpush1.bf16.msra.mxu0 0
      %377 = vmatprep.subr.bf16.mxu0 0
      %378 = vmatpush1.bf16.msra.mxu0 0
      %379 = vmatprep.subr.bf16.mxu0 0
      %380 = vmatpush1.bf16.msra.mxu0 0
      %381 = vmatprep.subr.bf16.mxu0 0
      %382 = vmatpush1.bf16.msra.mxu0 0
      %383 = vmatprep.subr.bf16.mxu0 0
      %384 = vmatpush1.bf16.msra.mxu0 0
      %385 = vmatprep.subr.bf16.mxu0 0
      %386 = vmatpush1.bf16.msra.mxu0 0
      %387 = vmatprep.subr.bf16.mxu0 0
      %388 = vmatpush1.bf16.msra.mxu0 0
      %389 = vmatprep.subr.bf16.mxu0 0
      %390 = vmatpush1.bf16.msra.mxu0 %v297
      %391 = vmatprep.subr.bf16.mxu0 0
      %392 = vmatpush2.bf16.msra.mxu0 0
      %393 = vmatprep.subr.bf16.mxu0 0
      %394 = vmatpush2.bf16.msra.mxu0 0
      %395 = vmatprep.subr.bf16.mxu0 0
      %396 = vmatpush2.bf16.msra.mxu0 0
      %397 = vmatprep.subr.bf16.mxu0 0
      %398 = vmatpush2.bf16.msra.mxu0 0
      %399 = vmatprep.subr.bf16.mxu0 0
      %400 = vmatpush2.bf16.msra.mxu0 0
      %401 = vmatprep.subr.bf16.mxu0 0
      %402 = vmatpush2.bf16.msra.mxu0 0
      %403 = vmatprep.subr.bf16.mxu0 0
      %404 = vmatpush2.bf16.msra.mxu0 0
      %405 = vmatprep.subr.bf16.mxu0 0
      %406 = vmatpush2.bf16.msra.mxu0 0
      %407 = vmatprep.mubr.bf16.mxu0 0
      %408 = vmatmul.mubr.bf16.gmra.mxu0 %v373
      %v409 = vpop.f32.mrf.mxu0
      %v410 = vadd.f32 0.0, %v409
      %v411 = vpop.f32.mrf.mxu0
      %v412 = vpop.f32.mrf.mxu0
      %v413 = vadd.f32 0.0, %v412
      %v414 = vpop.f32.mrf.mxu0
      %415 = vdwg.mxu0
      %v416 = vpack.c.bf16 %v413, %v410
      %v418 = vlaneseq
      %v419 = vshrl.u32 %v418, 7
      %v420 = vsub.s32 0, %v419
      %v421 = vrot.slane %v292, %v420
      %v424 = vsel %vm298, %v416, 0
      %426 = vmatprep.subr.bf16.mxu0 0
      %427 = vmatpush1.bf16.msra.mxu0 0
      %428 = vmatprep.subr.bf16.mxu0 0
      %429 = vmatpush1.bf16.msra.mxu0 0
      %430 = vmatprep.subr.bf16.mxu0 0
      %431 = vmatpush1.bf16.msra.mxu0 0
      %432 = vmatprep.subr.bf16.mxu0 0
      %433 = vmatpush1.bf16.msra.mxu0 0
      %434 = vmatprep.subr.bf16.mxu0 0
      %435 = vmatpush1.bf16.msra.mxu0 0
      %436 = vmatprep.subr.bf16.mxu0 0
      %437 = vmatpush1.bf16.msra.mxu0 0
      %438 = vmatprep.subr.bf16.mxu0 0
      %439 = vmatpush1.bf16.msra.mxu0 0
      %440 = vmatprep.subr.bf16.mxu0 0
      %441 = vmatpush1.bf16.msra.mxu0 %v285
      %442 = vmatprep.subr.bf16.mxu0 0
      %443 = vmatpush2.bf16.msra.mxu0 0
      %444 = vmatprep.subr.bf16.mxu0 0
      %445 = vmatpush2.bf16.msra.mxu0 0
      %446 = vmatprep.subr.bf16.mxu0 0
      %447 = vmatpush2.bf16.msra.mxu0 0
      %448 = vmatprep.subr.bf16.mxu0 0
      %449 = vmatpush2.bf16.msra.mxu0 0
      %450 = vmatprep.subr.bf16.mxu0 0
      %451 = vmatpush2.bf16.msra.mxu0 0
      %452 = vmatprep.subr.bf16.mxu0 0
      %453 = vmatpush2.bf16.msra.mxu0 0
      %454 = vmatprep.subr.bf16.mxu0 0
      %455 = vmatpush2.bf16.msra.mxu0 0
      %456 = vmatprep.subr.bf16.mxu0 0
      %457 = vmatpush2.bf16.msra.mxu0 0
      %458 = vmatprep.mubr.bf16.mxu0 0
      %459 = vmatmul.mubr.bf16.gmra.mxu0 %v424
      %v460 = vpop.f32.mrf.mxu0
      %v461 = vadd.f32 %v421, %v460
      %v462 = vpop.f32.mrf.mxu0
      %v463 = vpop.f32.mrf.mxu0
      %v464 = vadd.f32 %v421, %v463
      %v465 = vpop.f32.mrf.mxu0
      %466 = vdwg.mxu0
      %vm467 = vcmp.gt.f32.partialorder %v461, 0.0
      %vm468 = vcmp.gt.f32.partialorder %v464, 0.0
      %v469 = vmul.f32 %v461, 0.01
      %v470 = vmul.f32 %v464, 0.01
      %v471 = vsel %vm467, %v461, %v469
      %v472 = vsel %vm468, %v464, %v470
      %v473 = vpack.c.bf16 %v472, %v471
      %474 = vmatprep.subr.bf16.mxu0 0
      %475 = vmatpush1.bf16.msra.mxu0 0
      %476 = vmatprep.subr.bf16.mxu0 0
      %477 = vmatpush1.bf16.msra.mxu0 0
      %478 = vmatprep.subr.bf16.mxu0 0
      %479 = vmatpush1.bf16.msra.mxu0 0
      %480 = vmatprep.subr.bf16.mxu0 0
      %481 = vmatpush1.bf16.msra.mxu0 0
      %482 = vmatprep.subr.bf16.mxu0 0
      %483 = vmatpush1.bf16.msra.mxu0 0
      %484 = vmatprep.subr.bf16.mxu0 0
      %485 = vmatpush1.bf16.msra.mxu0 0
      %486 = vmatprep.subr.bf16.mxu0 0
      %487 = vmatpush1.bf16.msra.mxu0 0
      %488 = vmatprep.subr.bf16.mxu0 0
      %489 = vmatpush1.bf16.msra.mxu0 %v473
      %490 = vmatprep.subr.bf16.mxu0 0
      %491 = vmatpush2.bf16.msra.mxu0 0
      %492 = vmatprep.subr.bf16.mxu0 0
      %493 = vmatpush2.bf16.msra.mxu0 0
      %494 = vmatprep.subr.bf16.mxu0 0
      %495 = vmatpush2.bf16.msra.mxu0 0
      %496 = vmatprep.subr.bf16.mxu0 0
      %497 = vmatpush2.bf16.msra.mxu0 0
      %498 = vmatprep.subr.bf16.mxu0 0
      %499 = vmatpush2.bf16.msra.mxu0 0
      %500 = vmatprep.subr.bf16.mxu0 0
      %501 = vmatpush2.bf16.msra.mxu0 0
      %502 = vmatprep.subr.bf16.mxu0 0
      %503 = vmatpush2.bf16.msra.mxu0 0
      %504 = vmatprep.subr.bf16.mxu0 0
      %505 = vmatpush2.bf16.msra.mxu0 0
      %506 = vmatprep.mubr.bf16.mxu0 0
      %507 = vmatmul.mubr.bf16.gmra.mxu0 %v373
      %v508 = vpop.f32.mrf.mxu0
      %v509 = vadd.f32 0.0, %v508
      %v510 = vpop.f32.mrf.mxu0
      %v511 = vpop.f32.mrf.mxu0
      %v512 = vadd.f32 0.0, %v511
      %v513 = vpop.f32.mrf.mxu0
      %514 = vdwg.mxu0
      %v515 = vpack.c.bf16 %v512, %v509
      %v517 = vlaneseq
      %v518 = vshrl.u32 %v517, 7
      %v519 = vsub.s32 0, %v518
      %v520 = vrot.slane %v293, %v519
      %v523 = vsel %vm298, %v515, 0
      %525 = vmatprep.subr.bf16.mxu0 0
      %526 = vmatpush1.bf16.msra.mxu0 0
      %527 = vmatprep.subr.bf16.mxu0 0
      %528 = vmatpush1.bf16.msra.mxu0 0
      %529 = vmatprep.subr.bf16.mxu0 0
      %530 = vmatpush1.bf16.msra.mxu0 0
      %531 = vmatprep.subr.bf16.mxu0 0
      %532 = vmatpush1.bf16.msra.mxu0 0
      %533 = vmatprep.subr.bf16.mxu0 0
      %534 = vmatpush1.bf16.msra.mxu0 0
      %535 = vmatprep.subr.bf16.mxu0 0
      %536 = vmatpush1.bf16.msra.mxu0 0
      %537 = vmatprep.subr.bf16.mxu0 0
      %538 = vmatpush1.bf16.msra.mxu0 0
      %539 = vmatprep.subr.bf16.mxu0 0
      %540 = vmatpush1.bf16.msra.mxu0 %v288
      %541 = vmatprep.subr.bf16.mxu0 0
      %542 = vmatpush2.bf16.msra.mxu0 0
      %543 = vmatprep.subr.bf16.mxu0 0
      %544 = vmatpush2.bf16.msra.mxu0 0
      %545 = vmatprep.subr.bf16.mxu0 0
      %546 = vmatpush2.bf16.msra.mxu0 0
      %547 = vmatprep.subr.bf16.mxu0 0
      %548 = vmatpush2.bf16.msra.mxu0 0
      %549 = vmatprep.subr.bf16.mxu0 0
      %550 = vmatpush2.bf16.msra.mxu0 0
      %551 = vmatprep.subr.bf16.mxu0 0
      %552 = vmatpush2.bf16.msra.mxu0 0
      %553 = vmatprep.subr.bf16.mxu0 0
      %554 = vmatpush2.bf16.msra.mxu0 0
      %555 = vmatprep.subr.bf16.mxu0 0
      %556 = vmatpush2.bf16.msra.mxu0 0
      %557 = vmatprep.mubr.bf16.mxu0 0
      %558 = vmatmul.mubr.bf16.gmra.mxu0 %v523
      %v559 = vpop.f32.mrf.mxu0
      %v560 = vadd.f32 %v520, %v559
      %v561 = vpop.f32.mrf.mxu0
      %v562 = vpop.f32.mrf.mxu0
      %v563 = vadd.f32 %v520, %v562
      %v564 = vpop.f32.mrf.mxu0
      %565 = vdwg.mxu0
      %vm566 = vcmp.gt.f32.partialorder %v560, 0.0
      %vm567 = vcmp.gt.f32.partialorder %v563, 0.0
      %v568 = vmul.f32 %v560, 0.01
      %v569 = vmul.f32 %v563, 0.01
      %v570 = vsel %vm566, %v560, %v568
      %v571 = vsel %vm567, %v563, %v569
      %v572 = vsel %vm298, %v570, 0.0
      %v573 = vsel %vm298, %v571, 0.0
      %v574 = vadd.f32 %v572, %v573
      %v575 = vrot.slane %v574, 4
      %v576 = vadd.f32 %v574, %v575
      %v577 = vrot.slane %v576, 2
      %v578 = vadd.f32 %v576, %v577
      %v579 = vrot.slane %v578, 1
      %v580 = vadd.f32 %v578, %v579
      %v581 = vpack.c.bf16 %v580, %v580
      %v583 = vsel %vm298, %v581, 0
      %585 = vmatprep.subr.bf16.mxu0 0
      %586 = vmatpush1.bf16.msra.mxu0 0
      %587 = vmatprep.subr.bf16.mxu0 0
      %588 = vmatpush1.bf16.msra.mxu0 0
      %589 = vmatprep.subr.bf16.mxu0 0
      %590 = vmatpush1.bf16.msra.mxu0 0
      %591 = vmatprep.subr.bf16.mxu0 0
      %592 = vmatpush1.bf16.msra.mxu0 0
      %593 = vmatprep.subr.bf16.mxu0 0
      %594 = vmatpush1.bf16.msra.mxu0 0
      %595 = vmatprep.subr.bf16.mxu0 0
      %596 = vmatpush1.bf16.msra.mxu0 0
      %597 = vmatprep.subr.bf16.mxu0 0
      %598 = vmatpush1.bf16.msra.mxu0 0
      %599 = vmatprep.subr.bf16.mxu0 0
      %600 = vmatpush1.bf16.msra.mxu0 %v291
      %601 = vmatprep.subr.bf16.mxu0 0
      %602 = vmatpush2.bf16.msra.mxu0 0
      %603 = vmatprep.subr.bf16.mxu0 0
      %604 = vmatpush2.bf16.msra.mxu0 0
      %605 = vmatprep.subr.bf16.mxu0 0
      %606 = vmatpush2.bf16.msra.mxu0 0
      %607 = vmatprep.subr.bf16.mxu0 0
      %608 = vmatpush2.bf16.msra.mxu0 0
      %609 = vmatprep.subr.bf16.mxu0 0
      %610 = vmatpush2.bf16.msra.mxu0 0
      %611 = vmatprep.subr.bf16.mxu0 0
      %612 = vmatpush2.bf16.msra.mxu0 0
      %613 = vmatprep.subr.bf16.mxu0 0
      %614 = vmatpush2.bf16.msra.mxu0 0
      %615 = vmatprep.subr.bf16.mxu0 0
      %616 = vmatpush2.bf16.msra.mxu0 0
      %617 = vmatprep.mubr.bf16.mxu0 0
      %618 = vmatmul.mubr.bf16.gmra.mxu0 %v583
      %v619 = vpop.f32.mrf.mxu0
      %v620 = vadd.f32 %v294, %v619
      %v621 = vpop.f32.mrf.mxu0
      %v622 = vpop.f32.mrf.mxu0
      %v623 = vpop.f32.mrf.mxu0
      %624 = vdwg.mxu0
      %vm625 = vcmask 57344
      %626 = vst.msk [vmem:[%s281] sm:$0x1] %vm625, %v620
      %s627 = scalar_lea.vmem %s276, 16
      %v628 = vld [vmem:[%s627] sm:$0xff]
      %v629 = vld [vmem:[%s627 + $0x8] sm:$0xff]
      %v630 = vpack.c.bf16 %v629, %v628
      %v632 = vsel %vm298, %v630, 0
      %634 = vmatprep.subr.bf16.mxu0 0
      %635 = vmatpush1.bf16.xpose.msra.mxu0 0
      %636 = vmatprep.subr.bf16.mxu0 0
      %637 = vmatpush1.bf16.xpose.msra.mxu0 0
      %638 = vmatprep.subr.bf16.mxu0 0
      %639 = vmatpush1.bf16.xpose.msra.mxu0 0
      %640 = vmatprep.subr.bf16.mxu0 0
      %641 = vmatpush1.bf16.xpose.msra.mxu0 0
      %642 = vmatprep.subr.bf16.mxu0 0
      %643 = vmatpush1.bf16.xpose.msra.mxu0 0
      %644 = vmatprep.subr.bf16.mxu0 0
      %645 = vmatpush1.bf16.xpose.msra.mxu0 0
      %646 = vmatprep.subr.bf16.mxu0 0
      %647 = vmatpush1.bf16.xpose.msra.mxu0 0
      %648 = vmatprep.subr.bf16.mxu0 0
      %649 = vmatpush1.bf16.xpose.msra.mxu0 %v632
      %650 = vmatprep.subr.bf16.mxu0 0
      %651 = vmatpush2.bf16.xpose.msra.mxu0 0
      %652 = vmatprep.subr.bf16.mxu0 0
      %653 = vmatpush2.bf16.xpose.msra.mxu0 0
      %654 = vmatprep.subr.bf16.mxu0 0
      %655 = vmatpush2.bf16.xpose.msra.mxu0 0
      %656 = vmatprep.subr.bf16.mxu0 0
      %657 = vmatpush2.bf16.xpose.msra.mxu0 0
      %658 = vmatprep.subr.bf16.mxu0 0
      %659 = vmatpush2.bf16.xpose.msra.mxu0 0
      %660 = vmatprep.subr.bf16.mxu0 0
      %661 = vmatpush2.bf16.xpose.msra.mxu0 0
      %662 = vmatprep.subr.bf16.mxu0 0
      %663 = vmatpush2.bf16.xpose.msra.mxu0 0
      %664 = vmatprep.subr.bf16.mxu0 0
      %665 = vmatpush2.bf16.xpose.msra.mxu0 0
      %666 = vmatprep.mubr.bf16.mxu0 0
      %667 = vmatmul.mubr.bf16.gmra.mxu0 %v632
      %v668 = vpop.f32.mrf.mxu0
      %v669 = vadd.f32 0.0, %v668
      %v670 = vpop.f32.mrf.mxu0
      %v671 = vpop.f32.mrf.mxu0
      %v672 = vadd.f32 0.0, %v671
      %v673 = vpop.f32.mrf.mxu0
      %674 = vdwg.mxu0
      %vm675 = vcmp.gt.f32.partialorder %v669, 0.0
      %vm676 = vcmp.gt.f32.partialorder %v672, 0.0
      %v677 = vmul.f32 %v669, 0.01
      %v678 = vmul.f32 %v672, 0.01
      %v679 = vsel %vm675, %v669, %v677
      %v680 = vsel %vm676, %v672, %v678
      %v681 = vsel %vm298, %v679, -inf
      %682 = vmax.xlane.f32.xlu0 %v681
      %v683 = vpop.xlane.xlu0 %682
      %v684 = vsel %vm298, %v680, -inf
      %685 = vmax.xlane.f32.xlu0 %v684
      %v686 = vpop.xlane.xlu0 %685
      %v687 = vsub.f32 %v679, %v683
      %v688 = vsub.f32 %v680, %v686
      %v689 = vmul.f32 %v687, 1.442695
      %v690 = vpow.pop %v689
      %v691 = vmul.f32 %v688, 1.442695
      %v692 = vpow.pop %v691
      %v693 = vsel %vm298, %v690, 0.0
      %694 = vadd.xlane.f32.xlu0 %v693
      %v695 = vpop.xlane.xlu0 %694
      %v696 = vsel %vm298, %v692, 0.0
      %697 = vadd.xlane.f32.xlu0 %v696
      %v698 = vpop.xlane.xlu0 %697
      %v699 = vrcp.pop %v695
      %v700 = vrcp.pop %v698
      %v701 = vmul.f32 %v690, %v699
      %v702 = vmul.f32 %v692, %v700
      %v703 = vpack.c.bf16 %v702, %v701
      %v705 = vsel %vm298, %v703, 0
      %707 = vmatprep.subr.bf16.mxu0 0
      %708 = vmatpush1.bf16.msra.mxu0 0
      %709 = vmatprep.subr.bf16.mxu0 0
      %710 = vmatpush1.bf16.msra.mxu0 0
      %711 = vmatprep.subr.bf16.mxu0 0
      %712 = vmatpush1.bf16.msra.mxu0 0
      %713 = vmatprep.subr.bf16.mxu0 0
      %714 = vmatpush1.bf16.msra.mxu0 0
      %715 = vmatprep.subr.bf16.mxu0 0
      %716 = vmatpush1.bf16.msra.mxu0 0
      %717 = vmatprep.subr.bf16.mxu0 0
      %718 = vmatpush1.bf16.msra.mxu0 0
      %719 = vmatprep.subr.bf16.mxu0 0
      %720 = vmatpush1.bf16.msra.mxu0 0
      %721 = vmatprep.subr.bf16.mxu0 0
      %722 = vmatpush1.bf16.msra.mxu0 %v630
      %723 = vmatprep.subr.bf16.mxu0 0
      %724 = vmatpush2.bf16.msra.mxu0 0
      %725 = vmatprep.subr.bf16.mxu0 0
      %726 = vmatpush2.bf16.msra.mxu0 0
      %727 = vmatprep.subr.bf16.mxu0 0
      %728 = vmatpush2.bf16.msra.mxu0 0
      %729 = vmatprep.subr.bf16.mxu0 0
      %730 = vmatpush2.bf16.msra.mxu0 0
      %731 = vmatprep.subr.bf16.mxu0 0
      %732 = vmatpush2.bf16.msra.mxu0 0
      %733 = vmatprep.subr.bf16.mxu0 0
      %734 = vmatpush2.bf16.msra.mxu0 0
      %735 = vmatprep.subr.bf16.mxu0 0
      %736 = vmatpush2.bf16.msra.mxu0 0
      %737 = vmatprep.subr.bf16.mxu0 0
      %738 = vmatpush2.bf16.msra.mxu0 0
      %739 = vmatprep.mubr.bf16.mxu0 0
      %740 = vmatmul.mubr.bf16.gmra.mxu0 %v705
      %v741 = vpop.f32.mrf.mxu0
      %v742 = vadd.f32 0.0, %v741
      %v743 = vpop.f32.mrf.mxu0
      %v744 = vpop.f32.mrf.mxu0
      %v745 = vadd.f32 0.0, %v744
      %v746 = vpop.f32.mrf.mxu0
      %747 = vdwg.mxu0
      %v748 = vpack.c.bf16 %v745, %v742
      %v750 = vsel %vm298, %v748, 0
      %752 = vmatprep.subr.bf16.mxu0 0
      %753 = vmatpush1.bf16.msra.mxu0 0
      %754 = vmatprep.subr.bf16.mxu0 0
      %755 = vmatpush1.bf16.msra.mxu0 0
      %756 = vmatprep.subr.bf16.mxu0 0
      %757 = vmatpush1.bf16.msra.mxu0 0
      %758 = vmatprep.subr.bf16.mxu0 0
      %759 = vmatpush1.bf16.msra.mxu0 0
      %760 = vmatprep.subr.bf16.mxu0 0
      %761 = vmatpush1.bf16.msra.mxu0 0
      %762 = vmatprep.subr.bf16.mxu0 0
      %763 = vmatpush1.bf16.msra.mxu0 0
      %764 = vmatprep.subr.bf16.mxu0 0
      %765 = vmatpush1.bf16.msra.mxu0 0
      %766 = vmatprep.subr.bf16.mxu0 0
      %767 = vmatpush1.bf16.msra.mxu0 %v285
      %768 = vmatprep.subr.bf16.mxu0 0
      %769 = vmatpush2.bf16.msra.mxu0 0
      %770 = vmatprep.subr.bf16.mxu0 0
      %771 = vmatpush2.bf16.msra.mxu0 0
      %772 = vmatprep.subr.bf16.mxu0 0
      %773 = vmatpush2.bf16.msra.mxu0 0
      %774 = vmatprep.subr.bf16.mxu0 0
      %775 = vmatpush2.bf16.msra.mxu0 0
      %776 = vmatprep.subr.bf16.mxu0 0
      %777 = vmatpush2.bf16.msra.mxu0 0
      %778 = vmatprep.subr.bf16.mxu0 0
      %779 = vmatpush2.bf16.msra.mxu0 0
      %780 = vmatprep.subr.bf16.mxu0 0
      %781 = vmatpush2.bf16.msra.mxu0 0
      %782 = vmatprep.subr.bf16.mxu0 0
      %783 = vmatpush2.bf16.msra.mxu0 0
      %784 = vmatprep.mubr.bf16.mxu0 0
      %785 = vmatmul.mubr.bf16.gmra.mxu0 %v750
      %v786 = vpop.f32.mrf.mxu0
      %v787 = vadd.f32 %v421, %v786
      %v788 = vpop.f32.mrf.mxu0
      %v789 = vpop.f32.mrf.mxu0
      %v790 = vadd.f32 %v421, %v789
      %v791 = vpop.f32.mrf.mxu0
      %792 = vdwg.mxu0
      %vm793 = vcmp.gt.f32.partialorder %v787, 0.0
      %vm794 = vcmp.gt.f32.partialorder %v790, 0.0
      %v795 = vmul.f32 %v787, 0.01
      %v796 = vmul.f32 %v790, 0.01
      %v797 = vsel %vm793, %v787, %v795
      %v798 = vsel %vm794, %v790, %v796
      %v799 = vpack.c.bf16 %v798, %v797
      %800 = vmatprep.subr.bf16.mxu0 0
      %801 = vmatpush1.bf16.msra.mxu0 0
      %802 = vmatprep.subr.bf16.mxu0 0
      %803 = vmatpush1.bf16.msra.mxu0 0
      %804 = vmatprep.subr.bf16.mxu0 0
      %805 = vmatpush1.bf16.msra.mxu0 0
      %806 = vmatprep.subr.bf16.mxu0 0
      %807 = vmatpush1.bf16.msra.mxu0 0
      %808 = vmatprep.subr.bf16.mxu0 0
      %809 = vmatpush1.bf16.msra.mxu0 0
      %810 = vmatprep.subr.bf16.mxu0 0
      %811 = vmatpush1.bf16.msra.mxu0 0
      %812 = vmatprep.subr.bf16.mxu0 0
      %813 = vmatpush1.bf16.msra.mxu0 0
      %814 = vmatprep.subr.bf16.mxu0 0
      %815 = vmatpush1.bf16.msra.mxu0 %v799
      %816 = vmatprep.subr.bf16.mxu0 0
      %817 = vmatpush2.bf16.msra.mxu0 0
      %818 = vmatprep.subr.bf16.mxu0 0
      %819 = vmatpush2.bf16.msra.mxu0 0
      %820 = vmatprep.subr.bf16.mxu0 0
      %821 = vmatpush2.bf16.msra.mxu0 0
      %822 = vmatprep.subr.bf16.mxu0 0
      %823 = vmatpush2.bf16.msra.mxu0 0
      %824 = vmatprep.subr.bf16.mxu0 0
      %825 = vmatpush2.bf16.msra.mxu0 0
      %826 = vmatprep.subr.bf16.mxu0 0
      %827 = vmatpush2.bf16.msra.mxu0 0
      %828 = vmatprep.subr.bf16.mxu0 0
      %829 = vmatpush2.bf16.msra.mxu0 0
      %830 = vmatprep.subr.bf16.mxu0 0
      %831 = vmatpush2.bf16.msra.mxu0 0
      %832 = vmatprep.mubr.bf16.mxu0 0
      %833 = vmatmul.mubr.bf16.gmra.mxu0 %v705
      %v834 = vpop.f32.mrf.mxu0
      %v835 = vadd.f32 0.0, %v834
      %v836 = vpop.f32.mrf.mxu0
      %v837 = vpop.f32.mrf.mxu0
      %v838 = vadd.f32 0.0, %v837
      %v839 = vpop.f32.mrf.mxu0
      %840 = vdwg.mxu0
      %v841 = vpack.c.bf16 %v838, %v835
      %v843 = vsel %vm298, %v841, 0
      %845 = vmatprep.subr.bf16.mxu0 0
      %846 = vmatpush1.bf16.msra.mxu0 0
      %847 = vmatprep.subr.bf16.mxu0 0
      %848 = vmatpush1.bf16.msra.mxu0 0
      %849 = vmatprep.subr.bf16.mxu0 0
      %850 = vmatpush1.bf16.msra.mxu0 0
      %851 = vmatprep.subr.bf16.mxu0 0
      %852 = vmatpush1.bf16.msra.mxu0 0
      %853 = vmatprep.subr.bf16.mxu0 0
      %854 = vmatpush1.bf16.msra.mxu0 0
      %855 = vmatprep.subr.bf16.mxu0 0
      %856 = vmatpush1.bf16.msra.mxu0 0
      %857 = vmatprep.subr.bf16.mxu0 0
      %858 = vmatpush1.bf16.msra.mxu0 0
      %859 = vmatprep.subr.bf16.mxu0 0
      %860 = vmatpush1.bf16.msra.mxu0 %v288
      %861 = vmatprep.subr.bf16.mxu0 0
      %862 = vmatpush2.bf16.msra.mxu0 0
      %863 = vmatprep.subr.bf16.mxu0 0
      %864 = vmatpush2.bf16.msra.mxu0 0
      %865 = vmatprep.subr.bf16.mxu0 0
      %866 = vmatpush2.bf16.msra.mxu0 0
      %867 = vmatprep.subr.bf16.mxu0 0
      %868 = vmatpush2.bf16.msra.mxu0 0
      %869 = vmatprep.subr.bf16.mxu0 0
      %870 = vmatpush2.bf16.msra.mxu0 0
      %871 = vmatprep.subr.bf16.mxu0 0
      %872 = vmatpush2.bf16.msra.mxu0 0
      %873 = vmatprep.subr.bf16.mxu0 0
      %874 = vmatpush2.bf16.msra.mxu0 0
      %875 = vmatprep.subr.bf16.mxu0 0
      %876 = vmatpush2.bf16.msra.mxu0 0
      %877 = vmatprep.mubr.bf16.mxu0 0
      %878 = vmatmul.mubr.bf16.gmra.mxu0 %v843
      %v879 = vpop.f32.mrf.mxu0
      %v880 = vadd.f32 %v520, %v879
      %v881 = vpop.f32.mrf.mxu0
      %v882 = vpop.f32.mrf.mxu0
      %v883 = vadd.f32 %v520, %v882
      %v884 = vpop.f32.mrf.mxu0
      %885 = vdwg.mxu0
      %vm886 = vcmp.gt.f32.partialorder %v880, 0.0
      %vm887 = vcmp.gt.f32.partialorder %v883, 0.0
      %v888 = vmul.f32 %v880, 0.01
      %v889 = vmul.f32 %v883, 0.01
      %v890 = vsel %vm886, %v880, %v888
      %v891 = vsel %vm887, %v883, %v889
      %v892 = vsel %vm298, %v890, 0.0
      %v893 = vsel %vm298, %v891, 0.0
      %v894 = vadd.f32 %v892, %v893
      %v895 = vrot.slane %v894, 4
      %v896 = vadd.f32 %v894, %v895
      %v897 = vrot.slane %v896, 2
      %v898 = vadd.f32 %v896, %v897
      %v899 = vrot.slane %v898, 1
      %v900 = vadd.f32 %v898, %v899
      %v901 = vpack.c.bf16 %v900, %v900
      %v903 = vsel %vm298, %v901, 0
      %905 = vmatprep.subr.bf16.mxu0 0
      %906 = vmatpush1.bf16.msra.mxu0 0
      %907 = vmatprep.subr.bf16.mxu0 0
      %908 = vmatpush1.bf16.msra.mxu0 0
      %909 = vmatprep.subr.bf16.mxu0 0
      %910 = vmatpush1.bf16.msra.mxu0 0
      %911 = vmatprep.subr.bf16.mxu0 0
      %912 = vmatpush1.bf16.msra.mxu0 0
      %913 = vmatprep.subr.bf16.mxu0 0
      %914 = vmatpush1.bf16.msra.mxu0 0
      %915 = vmatprep.subr.bf16.mxu0 0
      %916 = vmatpush1.bf16.msra.mxu0 0
      %917 = vmatprep.subr.bf16.mxu0 0
      %918 = vmatpush1.bf16.msra.mxu0 0
      %919 = vmatprep.subr.bf16.mxu0 0
      %920 = vmatpush1.bf16.msra.mxu0 %v291
      %921 = vmatprep.subr.bf16.mxu0 0
      %922 = vmatpush2.bf16.msra.mxu0 0
      %923 = vmatprep.subr.bf16.mxu0 0
      %924 = vmatpush2.bf16.msra.mxu0 0
      %925 = vmatprep.subr.bf16.mxu0 0
      %926 = vmatpush2.bf16.msra.mxu0 0
      %927 = vmatprep.subr.bf16.mxu0 0
      %928 = vmatpush2.bf16.msra.mxu0 0
      %929 = vmatprep.subr.bf16.mxu0 0
      %930 = vmatpush2.bf16.msra.mxu0 0
      %931 = vmatprep.subr.bf16.mxu0 0
      %932 = vmatpush2.bf16.msra.mxu0 0
      %933 = vmatprep.subr.bf16.mxu0 0
      %934 = vmatpush2.bf16.msra.mxu0 0
      %935 = vmatprep.subr.bf16.mxu0 0
      %936 = vmatpush2.bf16.msra.mxu0 0
      %937 = vmatprep.mubr.bf16.mxu0 0
      %938 = vmatmul.mubr.bf16.gmra.mxu0 %v903
      %v939 = vpop.f32.mrf.mxu0
      %v940 = vadd.f32 %v294, %v939
      %v941 = vpop.f32.mrf.mxu0
      %v942 = vpop.f32.mrf.mxu0
      %v943 = vpop.f32.mrf.mxu0
      %944 = vdwg.mxu0
      %s945 = scalar_lea.vmem %s281, 1
      %946 = vst.msk [vmem:[%s945] sm:$0x1] %vm625, %v940
      %s947 = scalar_lea.vmem %s276, 32
      %v948 = vld [vmem:[%s947] sm:$0xff]
      %v949 = vld [vmem:[%s947 + $0x8] sm:$0xff]
      %v950 = vpack.c.bf16 %v949, %v948
      %v952 = vsel %vm298, %v950, 0
      %954 = vmatprep.subr.bf16.mxu0 0
      %955 = vmatpush1.bf16.xpose.msra.mxu0 0
      %956 = vmatprep.subr.bf16.mxu0 0
      %957 = vmatpush1.bf16.xpose.msra.mxu0 0
      %958 = vmatprep.subr.bf16.mxu0 0
      %959 = vmatpush1.bf16.xpose.msra.mxu0 0
      %960 = vmatprep.subr.bf16.mxu0 0
      %961 = vmatpush1.bf16.xpose.msra.mxu0 0
      %962 = vmatprep.subr.bf16.mxu0 0
      %963 = vmatpush1.bf16.xpose.msra.mxu0 0
      %964 = vmatprep.subr.bf16.mxu0 0
      %965 = vmatpush1.bf16.xpose.msra.mxu0 0
      %966 = vmatprep.subr.bf16.mxu0 0
      %967 = vmatpush1.bf16.xpose.msra.mxu0 0
      %968 = vmatprep.subr.bf16.mxu0 0
      %969 = vmatpush1.bf16.xpose.msra.mxu0 %v952
      %970 = vmatprep.subr.bf16.mxu0 0
      %971 = vmatpush2.bf16.xpose.msra.mxu0 0
      %972 = vmatprep.subr.bf16.mxu0 0
      %973 = vmatpush2.bf16.xpose.msra.mxu0 0
      %974 = vmatprep.subr.bf16.mxu0 0
      %975 = vmatpush2.bf16.xpose.msra.mxu0 0
      %976 = vmatprep.subr.bf16.mxu0 0
      %977 = vmatpush2.bf16.xpose.msra.mxu0 0
      %978 = vmatprep.subr.bf16.mxu0 0
      %979 = vmatpush2.bf16.xpose.msra.mxu0 0
      %980 = vmatprep.subr.bf16.mxu0 0
      %981 = vmatpush2.bf16.xpose.msra.mxu0 0
      %982 = vmatprep.subr.bf16.mxu0 0
      %983 = vmatpush2.bf16.xpose.msra.mxu0 0
      %984 = vmatprep.subr.bf16.mxu0 0
      %985 = vmatpush2.bf16.xpose.msra.mxu0 0
      %986 = vmatprep.mubr.bf16.mxu0 0
      %987 = vmatmul.mubr.bf16.gmra.mxu0 %v952
      %v988 = vpop.f32.mrf.mxu0
      %v989 = vadd.f32 0.0, %v988
      %v990 = vpop.f32.mrf.mxu0
      %v991 = vpop.f32.mrf.mxu0
      %v992 = vadd.f32 0.0, %v991
      %v993 = vpop.f32.mrf.mxu0
      %994 = vdwg.mxu0
      %vm995 = vcmp.gt.f32.partialorder %v989, 0.0
      %vm996 = vcmp.gt.f32.partialorder %v992, 0.0
      %v997 = vmul.f32 %v989, 0.01
      %v998 = vmul.f32 %v992, 0.01
      %v999 = vsel %vm995, %v989, %v997
      %v1000 = vsel %vm996, %v992, %v998
      %v1001 = vsel %vm298, %v999, -inf
      %1002 = vmax.xlane.f32.xlu0 %v1001
      %v1003 = vpop.xlane.xlu0 %1002
      %v1004 = vsel %vm298, %v1000, -inf
      %1005 = vmax.xlane.f32.xlu0 %v1004
      %v1006 = vpop.xlane.xlu0 %1005
      %v1007 = vsub.f32 %v999, %v1003
      %v1008 = vsub.f32 %v1000, %v1006
      %v1009 = vmul.f32 %v1007, 1.442695
      %v1010 = vpow.pop %v1009
      %v1011 = vmul.f32 %v1008, 1.442695
      %v1012 = vpow.pop %v1011
      %v1013 = vsel %vm298, %v1010, 0.0
      %1014 = vadd.xlane.f32.xlu0 %v1013
      %v1015 = vpop.xlane.xlu0 %1014
      %v1016 = vsel %vm298, %v1012, 0.0
      %1017 = vadd.xlane.f32.xlu0 %v1016
      %v1018 = vpop.xlane.xlu0 %1017
      %v1019 = vrcp.pop %v1015
      %v1020 = vrcp.pop %v1018
      %v1021 = vmul.f32 %v1010, %v1019
      %v1022 = vmul.f32 %v1012, %v1020
      %v1023 = vpack.c.bf16 %v1022, %v1021
      %v1025 = vsel %vm298, %v1023, 0
      %1027 = vmatprep.subr.bf16.mxu0 0
      %1028 = vmatpush1.bf16.msra.mxu0 0
      %1029 = vmatprep.subr.bf16.mxu0 0
      %1030 = vmatpush1.bf16.msra.mxu0 0
      %1031 = vmatprep.subr.bf16.mxu0 0
      %1032 = vmatpush1.bf16.msra.mxu0 0
      %1033 = vmatprep.subr.bf16.mxu0 0
      %1034 = vmatpush1.bf16.msra.mxu0 0
      %1035 = vmatprep.subr.bf16.mxu0 0
      %1036 = vmatpush1.bf16.msra.mxu0 0
      %1037 = vmatprep.subr.bf16.mxu0 0
      %1038 = vmatpush1.bf16.msra.mxu0 0
      %1039 = vmatprep.subr.bf16.mxu0 0
      %1040 = vmatpush1.bf16.msra.mxu0 0
      %1041 = vmatprep.subr.bf16.mxu0 0
      %1042 = vmatpush1.bf16.msra.mxu0 %v950
      %1043 = vmatprep.subr.bf16.mxu0 0
      %1044 = vmatpush2.bf16.msra.mxu0 0
      %1045 = vmatprep.subr.bf16.mxu0 0
      %1046 = vmatpush2.bf16.msra.mxu0 0
      %1047 = vmatprep.subr.bf16.mxu0 0
      %1048 = vmatpush2.bf16.msra.mxu0 0
      %1049 = vmatprep.subr.bf16.mxu0 0
      %1050 = vmatpush2.bf16.msra.mxu0 0
      %1051 = vmatprep.subr.bf16.mxu0 0
      %1052 = vmatpush2.bf16.msra.mxu0 0
      %1053 = vmatprep.subr.bf16.mxu0 0
      %1054 = vmatpush2.bf16.msra.mxu0 0
      %1055 = vmatprep.subr.bf16.mxu0 0
      %1056 = vmatpush2.bf16.msra.mxu0 0
      %1057 = vmatprep.subr.bf16.mxu0 0
      %1058 = vmatpush2.bf16.msra.mxu0 0
      %1059 = vmatprep.mubr.bf16.mxu0 0
      %1060 = vmatmul.mubr.bf16.gmra.mxu0 %v1025
      %v1061 = vpop.f32.mrf.mxu0
      %v1062 = vadd.f32 0.0, %v1061
      %v1063 = vpop.f32.mrf.mxu0
      %v1064 = vpop.f32.mrf.mxu0
      %v1065 = vadd.f32 0.0, %v1064
      %v1066 = vpop.f32.mrf.mxu0
      %1067 = vdwg.mxu0
      %v1068 = vpack.c.bf16 %v1065, %v1062
      %v1070 = vsel %vm298, %v1068, 0
      %1072 = vmatprep.subr.bf16.mxu0 0
      %1073 = vmatpush1.bf16.msra.mxu0 0
      %1074 = vmatprep.subr.bf16.mxu0 0
      %1075 = vmatpush1.bf16.msra.mxu0 0
      %1076 = vmatprep.subr.bf16.mxu0 0
      %1077 = vmatpush1.bf16.msra.mxu0 0
      %1078 = vmatprep.subr.bf16.mxu0 0
      %1079 = vmatpush1.bf16.msra.mxu0 0
      %1080 = vmatprep.subr.bf16.mxu0 0
      %1081 = vmatpush1.bf16.msra.mxu0 0
      %1082 = vmatprep.subr.bf16.mxu0 0
      %1083 = vmatpush1.bf16.msra.mxu0 0
      %1084 = vmatprep.subr.bf16.mxu0 0
      %1085 = vmatpush1.bf16.msra.mxu0 0
      %1086 = vmatprep.subr.bf16.mxu0 0
      %1087 = vmatpush1.bf16.msra.mxu0 %v285
      %1088 = vmatprep.subr.bf16.mxu0 0
      %1089 = vmatpush2.bf16.msra.mxu0 0
      %1090 = vmatprep.subr.bf16.mxu0 0
      %1091 = vmatpush2.bf16.msra.mxu0 0
      %1092 = vmatprep.subr.bf16.mxu0 0
      %1093 = vmatpush2.bf16.msra.mxu0 0
      %1094 = vmatprep.subr.bf16.mxu0 0
      %1095 = vmatpush2.bf16.msra.mxu0 0
      %1096 = vmatprep.subr.bf16.mxu0 0
      %1097 = vmatpush2.bf16.msra.mxu0 0
      %1098 = vmatprep.subr.bf16.mxu0 0
      %1099 = vmatpush2.bf16.msra.mxu0 0
      %1100 = vmatprep.subr.bf16.mxu0 0
      %1101 = vmatpush2.bf16.msra.mxu0 0
      %1102 = vmatprep.subr.bf16.mxu0 0
      %1103 = vmatpush2.bf16.msra.mxu0 0
      %1104 = vmatprep.mubr.bf16.mxu0 0
      %1105 = vmatmul.mubr.bf16.gmra.mxu0 %v1070
      %v1106 = vpop.f32.mrf.mxu0
      %v1107 = vadd.f32 %v421, %v1106
      %v1108 = vpop.f32.mrf.mxu0
      %v1109 = vpop.f32.mrf.mxu0
      %v1110 = vadd.f32 %v421, %v1109
      %v1111 = vpop.f32.mrf.mxu0
      %1112 = vdwg.mxu0
      %vm1113 = vcmp.gt.f32.partialorder %v1107, 0.0
      %vm1114 = vcmp.gt.f32.partialorder %v1110, 0.0
      %v1115 = vmul.f32 %v1107, 0.01
      %v1116 = vmul.f32 %v1110, 0.01
      %v1117 = vsel %vm1113, %v1107, %v1115
      %v1118 = vsel %vm1114, %v1110, %v1116
      %v1119 = vpack.c.bf16 %v1118, %v1117
      %1120 = vmatprep.subr.bf16.mxu0 0
      %1121 = vmatpush1.bf16.msra.mxu0 0
      %1122 = vmatprep.subr.bf16.mxu0 0
      %1123 = vmatpush1.bf16.msra.mxu0 0
      %1124 = vmatprep.subr.bf16.mxu0 0
      %1125 = vmatpush1.bf16.msra.mxu0 0
      %1126 = vmatprep.subr.bf16.mxu0 0
      %1127 = vmatpush1.bf16.msra.mxu0 0
      %1128 = vmatprep.subr.bf16.mxu0 0
      %1129 = vmatpush1.bf16.msra.mxu0 0
      %1130 = vmatprep.subr.bf16.mxu0 0
      %1131 = vmatpush1.bf16.msra.mxu0 0
      %1132 = vmatprep.subr.bf16.mxu0 0
      %1133 = vmatpush1.bf16.msra.mxu0 0
      %1134 = vmatprep.subr.bf16.mxu0 0
      %1135 = vmatpush1.bf16.msra.mxu0 %v1119
      %1136 = vmatprep.subr.bf16.mxu0 0
      %1137 = vmatpush2.bf16.msra.mxu0 0
      %1138 = vmatprep.subr.bf16.mxu0 0
      %1139 = vmatpush2.bf16.msra.mxu0 0
      %1140 = vmatprep.subr.bf16.mxu0 0
      %1141 = vmatpush2.bf16.msra.mxu0 0
      %1142 = vmatprep.subr.bf16.mxu0 0
      %1143 = vmatpush2.bf16.msra.mxu0 0
      %1144 = vmatprep.subr.bf16.mxu0 0
      %1145 = vmatpush2.bf16.msra.mxu0 0
      %1146 = vmatprep.subr.bf16.mxu0 0
      %1147 = vmatpush2.bf16.msra.mxu0 0
      %1148 = vmatprep.subr.bf16.mxu0 0
      %1149 = vmatpush2.bf16.msra.mxu0 0
      %1150 = vmatprep.subr.bf16.mxu0 0
      %1151 = vmatpush2.bf16.msra.mxu0 0
      %1152 = vmatprep.mubr.bf16.mxu0 0
      %1153 = vmatmul.mubr.bf16.gmra.mxu0 %v1025
      %v1154 = vpop.f32.mrf.mxu0
      %v1155 = vadd.f32 0.0, %v1154
      %v1156 = vpop.f32.mrf.mxu0
      %v1157 = vpop.f32.mrf.mxu0
      %v1158 = vadd.f32 0.0, %v1157
      %v1159 = vpop.f32.mrf.mxu0
      %1160 = vdwg.mxu0
      %v1161 = vpack.c.bf16 %v1158, %v1155
      %v1163 = vsel %vm298, %v1161, 0
      %1165 = vmatprep.subr.bf16.mxu0 0
      %1166 = vmatpush1.bf16.msra.mxu0 0
      %1167 = vmatprep.subr.bf16.mxu0 0
      %1168 = vmatpush1.bf16.msra.mxu0 0
      %1169 = vmatprep.subr.bf16.mxu0 0
      %1170 = vmatpush1.bf16.msra.mxu0 0
      %1171 = vmatprep.subr.bf16.mxu0 0
      %1172 = vmatpush1.bf16.msra.mxu0 0
      %1173 = vmatprep.subr.bf16.mxu0 0
      %1174 = vmatpush1.bf16.msra.mxu0 0
      %1175 = vmatprep.subr.bf16.mxu0 0
      %1176 = vmatpush1.bf16.msra.mxu0 0
      %1177 = vmatprep.subr.bf16.mxu0 0
      %1178 = vmatpush1.bf16.msra.mxu0 0
      %1179 = vmatprep.subr.bf16.mxu0 0
      %1180 = vmatpush1.bf16.msra.mxu0 %v288
      %1181 = vmatprep.subr.bf16.mxu0 0
      %1182 = vmatpush2.bf16.msra.mxu0 0
      %1183 = vmatprep.subr.bf16.mxu0 0
      %1184 = vmatpush2.bf16.msra.mxu0 0
      %1185 = vmatprep.subr.bf16.mxu0 0
      %1186 = vmatpush2.bf16.msra.mxu0 0
      %1187 = vmatprep.subr.bf16.mxu0 0
      %1188 = vmatpush2.bf16.msra.mxu0 0
      %1189 = vmatprep.subr.bf16.mxu0 0
      %1190 = vmatpush2.bf16.msra.mxu0 0
      %1191 = vmatprep.subr.bf16.mxu0 0
      %1192 = vmatpush2.bf16.msra.mxu0 0
      %1193 = vmatprep.subr.bf16.mxu0 0
      %1194 = vmatpush2.bf16.msra.mxu0 0
      %1195 = vmatprep.subr.bf16.mxu0 0
      %1196 = vmatpush2.bf16.msra.mxu0 0
      %1197 = vmatprep.mubr.bf16.mxu0 0
      %1198 = vmatmul.mubr.bf16.gmra.mxu0 %v1163
      %v1199 = vpop.f32.mrf.mxu0
      %v1200 = vadd.f32 %v520, %v1199
      %v1201 = vpop.f32.mrf.mxu0
      %v1202 = vpop.f32.mrf.mxu0
      %v1203 = vadd.f32 %v520, %v1202
      %v1204 = vpop.f32.mrf.mxu0
      %1205 = vdwg.mxu0
      %vm1206 = vcmp.gt.f32.partialorder %v1200, 0.0
      %vm1207 = vcmp.gt.f32.partialorder %v1203, 0.0
      %v1208 = vmul.f32 %v1200, 0.01
      %v1209 = vmul.f32 %v1203, 0.01
      %v1210 = vsel %vm1206, %v1200, %v1208
      %v1211 = vsel %vm1207, %v1203, %v1209
      %v1212 = vsel %vm298, %v1210, 0.0
      %v1213 = vsel %vm298, %v1211, 0.0
      %v1214 = vadd.f32 %v1212, %v1213
      %v1215 = vrot.slane %v1214, 4
      %v1216 = vadd.f32 %v1214, %v1215
      %v1217 = vrot.slane %v1216, 2
      %v1218 = vadd.f32 %v1216, %v1217
      %v1219 = vrot.slane %v1218, 1
      %v1220 = vadd.f32 %v1218, %v1219
      %v1221 = vpack.c.bf16 %v1220, %v1220
      %v1223 = vsel %vm298, %v1221, 0
      %1225 = vmatprep.subr.bf16.mxu0 0
      %1226 = vmatpush1.bf16.msra.mxu0 0
      %1227 = vmatprep.subr.bf16.mxu0 0
      %1228 = vmatpush1.bf16.msra.mxu0 0
      %1229 = vmatprep.subr.bf16.mxu0 0
      %1230 = vmatpush1.bf16.msra.mxu0 0
      %1231 = vmatprep.subr.bf16.mxu0 0
      %1232 = vmatpush1.bf16.msra.mxu0 0
      %1233 = vmatprep.subr.bf16.mxu0 0
      %1234 = vmatpush1.bf16.msra.mxu0 0
      %1235 = vmatprep.subr.bf16.mxu0 0
      %1236 = vmatpush1.bf16.msra.mxu0 0
      %1237 = vmatprep.subr.bf16.mxu0 0
      %1238 = vmatpush1.bf16.msra.mxu0 0
      %1239 = vmatprep.subr.bf16.mxu0 0
      %1240 = vmatpush1.bf16.msra.mxu0 %v291
      %1241 = vmatprep.subr.bf16.mxu0 0
      %1242 = vmatpush2.bf16.msra.mxu0 0
      %1243 = vmatprep.subr.bf16.mxu0 0
      %1244 = vmatpush2.bf16.msra.mxu0 0
      %1245 = vmatprep.subr.bf16.mxu0 0
      %1246 = vmatpush2.bf16.msra.mxu0 0
      %1247 = vmatprep.subr.bf16.mxu0 0
      %1248 = vmatpush2.bf16.msra.mxu0 0
      %1249 = vmatprep.subr.bf16.mxu0 0
      %1250 = vmatpush2.bf16.msra.mxu0 0
      %1251 = vmatprep.subr.bf16.mxu0 0
      %1252 = vmatpush2.bf16.msra.mxu0 0
      %1253 = vmatprep.subr.bf16.mxu0 0
      %1254 = vmatpush2.bf16.msra.mxu0 0
      %1255 = vmatprep.subr.bf16.mxu0 0
      %1256 = vmatpush2.bf16.msra.mxu0 0
      %1257 = vmatprep.mubr.bf16.mxu0 0
      %1258 = vmatmul.mubr.bf16.gmra.mxu0 %v1223
      %v1259 = vpop.f32.mrf.mxu0
      %v1260 = vadd.f32 %v294, %v1259
      %v1261 = vpop.f32.mrf.mxu0
      %v1262 = vpop.f32.mrf.mxu0
      %v1263 = vpop.f32.mrf.mxu0
      %1264 = vdwg.mxu0
      %s1265 = scalar_lea.vmem %s281, 2
      %1266 = vst.msk [vmem:[%s1265] sm:$0x1] %vm625, %v1260
      %s1267 = scalar_lea.vmem %s276, 48
      %v1268 = vld [vmem:[%s1267] sm:$0xff]
      %v1269 = vld [vmem:[%s1267 + $0x8] sm:$0xff]
      %v1270 = vpack.c.bf16 %v1269, %v1268
      %v1272 = vsel %vm298, %v1270, 0
      %1274 = vmatprep.subr.bf16.mxu0 0
      %1275 = vmatpush1.bf16.xpose.msra.mxu0 0
      %1276 = vmatprep.subr.bf16.mxu0 0
      %1277 = vmatpush1.bf16.xpose.msra.mxu0 0
      %1278 = vmatprep.subr.bf16.mxu0 0
      %1279 = vmatpush1.bf16.xpose.msra.mxu0 0
      %1280 = vmatprep.subr.bf16.mxu0 0
      %1281 = vmatpush1.bf16.xpose.msra.mxu0 0
      %1282 = vmatprep.subr.bf16.mxu0 0
      %1283 = vmatpush1.bf16.xpose.msra.mxu0 0
      %1284 = vmatprep.subr.bf16.mxu0 0
      %1285 = vmatpush1.bf16.xpose.msra.mxu0 0
      %1286 = vmatprep.subr.bf16.mxu0 0
      %1287 = vmatpush1.bf16.xpose.msra.mxu0 0
      %1288 = vmatprep.subr.bf16.mxu0 0
      %1289 = vmatpush1.bf16.xpose.msra.mxu0 %v1272
      %1290 = vmatprep.subr.bf16.mxu0 0
      %1291 = vmatpush2.bf16.xpose.msra.mxu0 0
      %1292 = vmatprep.subr.bf16.mxu0 0
      %1293 = vmatpush2.bf16.xpose.msra.mxu0 0
      %1294 = vmatprep.subr.bf16.mxu0 0
      %1295 = vmatpush2.bf16.xpose.msra.mxu0 0
      %1296 = vmatprep.subr.bf16.mxu0 0
      %1297 = vmatpush2.bf16.xpose.msra.mxu0 0
      %1298 = vmatprep.subr.bf16.mxu0 0
      %1299 = vmatpush2.bf16.xpose.msra.mxu0 0
      %1300 = vmatprep.subr.bf16.mxu0 0
      %1301 = vmatpush2.bf16.xpose.msra.mxu0 0
      %1302 = vmatprep.subr.bf16.mxu0 0
      %1303 = vmatpush2.bf16.xpose.msra.mxu0 0
      %1304 = vmatprep.subr.bf16.mxu0 0
      %1305 = vmatpush2.bf16.xpose.msra.mxu0 0
      %1306 = vmatprep.mubr.bf16.mxu0 0
      %1307 = vmatmul.mubr.bf16.gmra.mxu0 %v1272
      %v1308 = vpop.f32.mrf.mxu0
      %v1309 = vadd.f32 0.0, %v1308
      %v1310 = vpop.f32.mrf.mxu0
      %v1311 = vpop.f32.mrf.mxu0
      %v1312 = vadd.f32 0.0, %v1311
      %v1313 = vpop.f32.mrf.mxu0
      %1314 = vdwg.mxu0
      %vm1315 = vcmp.gt.f32.partialorder %v1309, 0.0
      %vm1316 = vcmp.gt.f32.partialorder %v1312, 0.0
      %v1317 = vmul.f32 %v1309, 0.01
      %v1318 = vmul.f32 %v1312, 0.01
      %v1319 = vsel %vm1315, %v1309, %v1317
      %v1320 = vsel %vm1316, %v1312, %v1318
      %v1321 = vsel %vm298, %v1319, -inf
      %1322 = vmax.xlane.f32.xlu0 %v1321
      %v1323 = vpop.xlane.xlu0 %1322
      %v1324 = vsel %vm298, %v1320, -inf
      %1325 = vmax.xlane.f32.xlu0 %v1324
      %v1326 = vpop.xlane.xlu0 %1325
      %v1327 = vsub.f32 %v1319, %v1323
      %v1328 = vsub.f32 %v1320, %v1326
      %v1329 = vmul.f32 %v1327, 1.442695
      %v1330 = vpow.pop %v1329
      %v1331 = vmul.f32 %v1328, 1.442695
      %v1332 = vpow.pop %v1331
      %v1333 = vsel %vm298, %v1330, 0.0
      %1334 = vadd.xlane.f32.xlu0 %v1333
      %v1335 = vpop.xlane.xlu0 %1334
      %v1336 = vsel %vm298, %v1332, 0.0
      %1337 = vadd.xlane.f32.xlu0 %v1336
      %v1338 = vpop.xlane.xlu0 %1337
      %v1339 = vrcp.pop %v1335
      %v1340 = vrcp.pop %v1338
      %v1341 = vmul.f32 %v1330, %v1339
      %v1342 = vmul.f32 %v1332, %v1340
      %v1343 = vpack.c.bf16 %v1342, %v1341
      %v1345 = vsel %vm298, %v1343, 0
      %1347 = vmatprep.subr.bf16.mxu0 0
      %1348 = vmatpush1.bf16.msra.mxu0 0
      %1349 = vmatprep.subr.bf16.mxu0 0
      %1350 = vmatpush1.bf16.msra.mxu0 0
      %1351 = vmatprep.subr.bf16.mxu0 0
      %1352 = vmatpush1.bf16.msra.mxu0 0
      %1353 = vmatprep.subr.bf16.mxu0 0
      %1354 = vmatpush1.bf16.msra.mxu0 0
      %1355 = vmatprep.subr.bf16.mxu0 0
      %1356 = vmatpush1.bf16.msra.mxu0 0
      %1357 = vmatprep.subr.bf16.mxu0 0
      %1358 = vmatpush1.bf16.msra.mxu0 0
      %1359 = vmatprep.subr.bf16.mxu0 0
      %1360 = vmatpush1.bf16.msra.mxu0 0
      %1361 = vmatprep.subr.bf16.mxu0 0
      %1362 = vmatpush1.bf16.msra.mxu0 %v1270
      %1363 = vmatprep.subr.bf16.mxu0 0
      %1364 = vmatpush2.bf16.msra.mxu0 0
      %1365 = vmatprep.subr.bf16.mxu0 0
      %1366 = vmatpush2.bf16.msra.mxu0 0
      %1367 = vmatprep.subr.bf16.mxu0 0
      %1368 = vmatpush2.bf16.msra.mxu0 0
      %1369 = vmatprep.subr.bf16.mxu0 0
      %1370 = vmatpush2.bf16.msra.mxu0 0
      %1371 = vmatprep.subr.bf16.mxu0 0
      %1372 = vmatpush2.bf16.msra.mxu0 0
      %1373 = vmatprep.subr.bf16.mxu0 0
      %1374 = vmatpush2.bf16.msra.mxu0 0
      %1375 = vmatprep.subr.bf16.mxu0 0
      %1376 = vmatpush2.bf16.msra.mxu0 0
      %1377 = vmatprep.subr.bf16.mxu0 0
      %1378 = vmatpush2.bf16.msra.mxu0 0
      %1379 = vmatprep.mubr.bf16.mxu0 0
      %1380 = vmatmul.mubr.bf16.gmra.mxu0 %v1345
      %v1381 = vpop.f32.mrf.mxu0
      %v1382 = vadd.f32 0.0, %v1381
      %v1383 = vpop.f32.mrf.mxu0
      %v1384 = vpop.f32.mrf.mxu0
      %v1385 = vadd.f32 0.0, %v1384
      %v1386 = vpop.f32.mrf.mxu0
      %1387 = vdwg.mxu0
      %v1388 = vpack.c.bf16 %v1385, %v1382
      %v1390 = vsel %vm298, %v1388, 0
      %1392 = vmatprep.subr.bf16.mxu0 0
      %1393 = vmatpush1.bf16.msra.mxu0 0
      %1394 = vmatprep.subr.bf16.mxu0 0
      %1395 = vmatpush1.bf16.msra.mxu0 0
      %1396 = vmatprep.subr.bf16.mxu0 0
      %1397 = vmatpush1.bf16.msra.mxu0 0
      %1398 = vmatprep.subr.bf16.mxu0 0
      %1399 = vmatpush1.bf16.msra.mxu0 0
      %1400 = vmatprep.subr.bf16.mxu0 0
      %1401 = vmatpush1.bf16.msra.mxu0 0
      %1402 = vmatprep.subr.bf16.mxu0 0
      %1403 = vmatpush1.bf16.msra.mxu0 0
      %1404 = vmatprep.subr.bf16.mxu0 0
      %1405 = vmatpush1.bf16.msra.mxu0 0
      %1406 = vmatprep.subr.bf16.mxu0 0
      %1407 = vmatpush1.bf16.msra.mxu0 %v285
      %1408 = vmatprep.subr.bf16.mxu0 0
      %1409 = vmatpush2.bf16.msra.mxu0 0
      %1410 = vmatprep.subr.bf16.mxu0 0
      %1411 = vmatpush2.bf16.msra.mxu0 0
      %1412 = vmatprep.subr.bf16.mxu0 0
      %1413 = vmatpush2.bf16.msra.mxu0 0
      %1414 = vmatprep.subr.bf16.mxu0 0
      %1415 = vmatpush2.bf16.msra.mxu0 0
      %1416 = vmatprep.subr.bf16.mxu0 0
      %1417 = vmatpush2.bf16.msra.mxu0 0
      %1418 = vmatprep.subr.bf16.mxu0 0
      %1419 = vmatpush2.bf16.msra.mxu0 0
      %1420 = vmatprep.subr.bf16.mxu0 0
      %1421 = vmatpush2.bf16.msra.mxu0 0
      %1422 = vmatprep.subr.bf16.mxu0 0
      %1423 = vmatpush2.bf16.msra.mxu0 0
      %1424 = vmatprep.mubr.bf16.mxu0 0
      %1425 = vmatmul.mubr.bf16.gmra.mxu0 %v1390
      %v1426 = vpop.f32.mrf.mxu0
      %v1427 = vadd.f32 %v421, %v1426
      %v1428 = vpop.f32.mrf.mxu0
      %v1429 = vpop.f32.mrf.mxu0
      %v1430 = vadd.f32 %v421, %v1429
      %v1431 = vpop.f32.mrf.mxu0
      %1432 = vdwg.mxu0
      %vm1433 = vcmp.gt.f32.partialorder %v1427, 0.0
      %vm1434 = vcmp.gt.f32.partialorder %v1430, 0.0
      %v1435 = vmul.f32 %v1427, 0.01
      %v1436 = vmul.f32 %v1430, 0.01
      %v1437 = vsel %vm1433, %v1427, %v1435
      %v1438 = vsel %vm1434, %v1430, %v1436
      %v1439 = vpack.c.bf16 %v1438, %v1437
      %1440 = vmatprep.subr.bf16.mxu0 0
      %1441 = vmatpush1.bf16.msra.mxu0 0
      %1442 = vmatprep.subr.bf16.mxu0 0
      %1443 = vmatpush1.bf16.msra.mxu0 0
      %1444 = vmatprep.subr.bf16.mxu0 0
      %1445 = vmatpush1.bf16.msra.mxu0 0
      %1446 = vmatprep.subr.bf16.mxu0 0
      %1447 = vmatpush1.bf16.msra.mxu0 0
      %1448 = vmatprep.subr.bf16.mxu0 0
      %1449 = vmatpush1.bf16.msra.mxu0 0
      %1450 = vmatprep.subr.bf16.mxu0 0
      %1451 = vmatpush1.bf16.msra.mxu0 0
      %1452 = vmatprep.subr.bf16.mxu0 0
      %1453 = vmatpush1.bf16.msra.mxu0 0
      %1454 = vmatprep.subr.bf16.mxu0 0
      %1455 = vmatpush1.bf16.msra.mxu0 %v1439
      %1456 = vmatprep.subr.bf16.mxu0 0
      %1457 = vmatpush2.bf16.msra.mxu0 0
      %1458 = vmatprep.subr.bf16.mxu0 0
      %1459 = vmatpush2.bf16.msra.mxu0 0
      %1460 = vmatprep.subr.bf16.mxu0 0
      %1461 = vmatpush2.bf16.msra.mxu0 0
      %1462 = vmatprep.subr.bf16.mxu0 0
      %1463 = vmatpush2.bf16.msra.mxu0 0
      %1464 = vmatprep.subr.bf16.mxu0 0
      %1465 = vmatpush2.bf16.msra.mxu0 0
      %1466 = vmatprep.subr.bf16.mxu0 0
      %1467 = vmatpush2.bf16.msra.mxu0 0
      %1468 = vmatprep.subr.bf16.mxu0 0
      %1469 = vmatpush2.bf16.msra.mxu0 0
      %1470 = vmatprep.subr.bf16.mxu0 0
      %1471 = vmatpush2.bf16.msra.mxu0 0
      %1472 = vmatprep.mubr.bf16.mxu0 0
      %1473 = vmatmul.mubr.bf16.gmra.mxu0 %v1345
      %v1474 = vpop.f32.mrf.mxu0
      %v1475 = vadd.f32 0.0, %v1474
      %v1476 = vpop.f32.mrf.mxu0
      %v1477 = vpop.f32.mrf.mxu0
      %v1478 = vadd.f32 0.0, %v1477
      %v1479 = vpop.f32.mrf.mxu0
      %1480 = vdwg.mxu0
      %v1481 = vpack.c.bf16 %v1478, %v1475
      %v1483 = vsel %vm298, %v1481, 0
      %1485 = vmatprep.subr.bf16.mxu0 0
      %1486 = vmatpush1.bf16.msra.mxu0 0
      %1487 = vmatprep.subr.bf16.mxu0 0
      %1488 = vmatpush1.bf16.msra.mxu0 0
      %1489 = vmatprep.subr.bf16.mxu0 0
      %1490 = vmatpush1.bf16.msra.mxu0 0
      %1491 = vmatprep.subr.bf16.mxu0 0
      %1492 = vmatpush1.bf16.msra.mxu0 0
      %1493 = vmatprep.subr.bf16.mxu0 0
      %1494 = vmatpush1.bf16.msra.mxu0 0
      %1495 = vmatprep.subr.bf16.mxu0 0
      %1496 = vmatpush1.bf16.msra.mxu0 0
      %1497 = vmatprep.subr.bf16.mxu0 0
      %1498 = vmatpush1.bf16.msra.mxu0 0
      %1499 = vmatprep.subr.bf16.mxu0 0
      %1500 = vmatpush1.bf16.msra.mxu0 %v288
      %1501 = vmatprep.subr.bf16.mxu0 0
      %1502 = vmatpush2.bf16.msra.mxu0 0
      %1503 = vmatprep.subr.bf16.mxu0 0
      %1504 = vmatpush2.bf16.msra.mxu0 0
      %1505 = vmatprep.subr.bf16.mxu0 0
      %1506 = vmatpush2.bf16.msra.mxu0 0
      %1507 = vmatprep.subr.bf16.mxu0 0
      %1508 = vmatpush2.bf16.msra.mxu0 0
      %1509 = vmatprep.subr.bf16.mxu0 0
      %1510 = vmatpush2.bf16.msra.mxu0 0
      %1511 = vmatprep.subr.bf16.mxu0 0
      %1512 = vmatpush2.bf16.msra.mxu0 0
      %1513 = vmatprep.subr.bf16.mxu0 0
      %1514 = vmatpush2.bf16.msra.mxu0 0
      %1515 = vmatprep.subr.bf16.mxu0 0
      %1516 = vmatpush2.bf16.msra.mxu0 0
      %1517 = vmatprep.mubr.bf16.mxu0 0
      %1518 = vmatmul.mubr.bf16.gmra.mxu0 %v1483
      %v1519 = vpop.f32.mrf.mxu0
      %v1520 = vadd.f32 %v520, %v1519
      %v1521 = vpop.f32.mrf.mxu0
      %v1522 = vpop.f32.mrf.mxu0
      %v1523 = vadd.f32 %v520, %v1522
      %v1524 = vpop.f32.mrf.mxu0
      %1525 = vdwg.mxu0
      %vm1526 = vcmp.gt.f32.partialorder %v1520, 0.0
      %vm1527 = vcmp.gt.f32.partialorder %v1523, 0.0
      %v1528 = vmul.f32 %v1520, 0.01
      %v1529 = vmul.f32 %v1523, 0.01
      %v1530 = vsel %vm1526, %v1520, %v1528
      %v1531 = vsel %vm1527, %v1523, %v1529
      %v1532 = vsel %vm298, %v1530, 0.0
      %v1533 = vsel %vm298, %v1531, 0.0
      %v1534 = vadd.f32 %v1532, %v1533
      %v1535 = vrot.slane %v1534, 4
      %v1536 = vadd.f32 %v1534, %v1535
      %v1537 = vrot.slane %v1536, 2
      %v1538 = vadd.f32 %v1536, %v1537
      %v1539 = vrot.slane %v1538, 1
      %v1540 = vadd.f32 %v1538, %v1539
      %v1541 = vpack.c.bf16 %v1540, %v1540
      %v1543 = vsel %vm298, %v1541, 0
      %1545 = vmatprep.subr.bf16.mxu0 0
      %1546 = vmatpush1.bf16.msra.mxu0 0
      %1547 = vmatprep.subr.bf16.mxu0 0
      %1548 = vmatpush1.bf16.msra.mxu0 0
      %1549 = vmatprep.subr.bf16.mxu0 0
      %1550 = vmatpush1.bf16.msra.mxu0 0
      %1551 = vmatprep.subr.bf16.mxu0 0
      %1552 = vmatpush1.bf16.msra.mxu0 0
      %1553 = vmatprep.subr.bf16.mxu0 0
      %1554 = vmatpush1.bf16.msra.mxu0 0
      %1555 = vmatprep.subr.bf16.mxu0 0
      %1556 = vmatpush1.bf16.msra.mxu0 0
      %1557 = vmatprep.subr.bf16.mxu0 0
      %1558 = vmatpush1.bf16.msra.mxu0 0
      %1559 = vmatprep.subr.bf16.mxu0 0
      %1560 = vmatpush1.bf16.msra.mxu0 %v291
      %1561 = vmatprep.subr.bf16.mxu0 0
      %1562 = vmatpush2.bf16.msra.mxu0 0
      %1563 = vmatprep.subr.bf16.mxu0 0
      %1564 = vmatpush2.bf16.msra.mxu0 0
      %1565 = vmatprep.subr.bf16.mxu0 0
      %1566 = vmatpush2.bf16.msra.mxu0 0
      %1567 = vmatprep.subr.bf16.mxu0 0
      %1568 = vmatpush2.bf16.msra.mxu0 0
      %1569 = vmatprep.subr.bf16.mxu0 0
      %1570 = vmatpush2.bf16.msra.mxu0 0
      %1571 = vmatprep.subr.bf16.mxu0 0
      %1572 = vmatpush2.bf16.msra.mxu0 0
      %1573 = vmatprep.subr.bf16.mxu0 0
      %1574 = vmatpush2.bf16.msra.mxu0 0
      %1575 = vmatprep.subr.bf16.mxu0 0
      %1576 = vmatpush2.bf16.msra.mxu0 0
      %1577 = vmatprep.mubr.bf16.mxu0 0
      %1578 = vmatmul.mubr.bf16.gmra.mxu0 %v1543
      %v1579 = vpop.f32.mrf.mxu0
      %v1580 = vadd.f32 %v294, %v1579
      %v1581 = vpop.f32.mrf.mxu0
      %v1582 = vpop.f32.mrf.mxu0
      %v1583 = vpop.f32.mrf.mxu0
      %1584 = vdwg.mxu0
      %s1585 = scalar_lea.vmem %s281, 3
      %1586 = vst.msk [vmem:[%s1585] sm:$0x1] %vm625, %v1580
      %p1587 = scmp.lt.s32.totalorder %s18, 1
      %s1588 = scalar_select %p1587, %s18, 1
      %s1589 = smul.addr %s1588, 4
      %s1590 = scalar_lea.vmem %s7, %s1589
      // Predicated region
      $region49: #{dpad_forward.9} parent=47 // pred_check
        %p1591 = pneg %p188
      $region50: #{dpad_forward.9} parent=47 // pred_check_branch
        %1593 = sbr.rel (%p1591) target = $region52
      $region51: #{dpad_forward.9} parent=47 // pred_region
        _
      $region52: #{dpad_forward.9} parent=47 // pred_fallthru
        _
    $region48: #{dpad_forward.9} parent=5 // pred_fallthru
      _
    %p1594 = scmp.le.s32.totalorder 2, %s13
    // Predicated region
    $region53: #{dpad_forward.9} parent=5 // pred_check
      %p1595 = pneg %p1594
    $region54: #{dpad_forward.9} parent=5 // pred_check_branch
      %1597 = sbr.rel (%p1595) target = $region56
    $region55: #{dpad_forward.9} parent=5 // pred_region
      %s1598 = ssub.s32 %s13, 2
      // Predicated region
      $region57: #{dpad_forward.9} parent=55 // pred_check
        %p1599 = pneg %p194
      $region58: #{dpad_forward.9} parent=55 // pred_check_branch
        %1601 = sbr.rel (%p1599) target = $region60
      $region59: #{dpad_forward.9} parent=55 // pred_region
        %p1602 = scmp.lt.s32.totalorder %s19, 1
        %s1603 = scalar_select %p1602, %s19, 1
        %s1604 = smul.addr %s1603, 4
        %s1605 = scalar_lea.vmem %s7, %s1604
      $region60: #{dpad_forward.9} parent=55 // pred_fallthru
        _
    $region56: #{dpad_forward.9} parent=5 // pred_fallthru
      _
  $region6: #{dpad_forward.9} parent=0 // loop_footer
    %s17 = sadd.s32 1, %s13
  $region7: #{dpad_forward.9} parent=0 // loop_footer_branch
    %12 = sbr.rel target = $region3
  $region8: #{dpad_forward.9} parent=0 // loop_exit
    _

</llo_original>
